<compile_context>
chip_gen: v5e
topology: v5e:2x2
jax: 0.10.0
libtpu: 0.0.40
codegen_flags: <defaults>
</compile_context>

<pallas_src>
import jax
import jax.numpy as jnp
from jax.experimental import pallas as pl
from jax.experimental.pallas import tpu as pltpu


WIDTH = 512            # uniform padded width of the middle layers
NUM_LAYERS = 16
NUM_MID = 14           # fc2 .. fc15 run inside the fused kernel
LPB = 7                # layers per grid step (NUM_MID % LPB == 0)
# fc1..fc15 output widths; fc16 -> output_size
HEAD_WIDTHS = [256, 512, 512, 512, 512, 512, 512, 512,
               512, 512, 512, 512, 512, 512, 256]


def _softplus_f32(y):
    # Numerically-stable softplus: max(y,0) + log1p(exp(-|y|))
    # (matches torch.nn.functional.softplus within f32 resolution).
    return jnp.maximum(y, 0.0) + jnp.log1p(jnp.exp(-jnp.abs(y)))


def _head_mid_kernel(x_ref, w_ref, b_ref, o_ref):
    """One grid step == LPB consecutive layers.

    x_ref : (B, 512)           f32   padded fc1 activation (resident, constant block)
    w_ref : (LPB, 512, 512)    bf16  this step's weight slab (pipelined DMA)
    b_ref : (NUM_MID, 1, 512)  f32   full bias stack (resident, constant block)
    o_ref : (B, 512)           f32   resident activation / output accumulator
    """
    step = pl.program_id(0)

    # Seed the resident activation with the (padded) fc1 output once.
    @pl.when(step == 0)
    def _():
        o_ref[...] = x_ref[...]

    a = o_ref[...]                       # (B, 512) f32
    base = step * LPB
    for i in range(LPB):                 # short, fully unrolled straight-line
        w = w_ref[i]                     # (512, 512) bf16 weights
        b = b_ref[base + i]              # (1, 512) f32 bias (dynamic leading-axis)
        # MXU matmul: bf16 operands, f32 accumulation.
        y = jnp.dot(a.astype(jnp.bfloat16), w,
                    preferred_element_type=jnp.float32)
        a = _softplus_f32(y + b)         # bias + softplus in f32 (VPU/EUP)
    o_ref[...] = a


def _mid_layers(xp, w_mid, b_mid):
    """Fused fc2..fc15 (14 x 512x512 Linear+softplus) in one pallas_call."""
    B = xp.shape[0]
    return pl.pallas_call(
        _head_mid_kernel,
        out_shape=jax.ShapeDtypeStruct((B, WIDTH), jnp.float32),
        grid=(NUM_MID // LPB,),                                        # 2 steps
        in_specs=[
            # padded fc1 activation: fetched once, resident
            pl.BlockSpec((B, WIDTH), lambda l: (0, 0)),
            # per-step 7-layer weight slab: pipelined / double-buffered
            pl.BlockSpec((LPB, WIDTH, WIDTH), lambda l: (l, 0, 0)),
            # full bias stack: fetched once, resident (28 KiB)
            pl.BlockSpec((NUM_MID, 1, WIDTH), lambda l: (0, 0, 0)),
        ],
        # constant block index -> output block resident across all steps,
        # written back to HBM once at the end.
        out_specs=pl.BlockSpec((B, WIDTH), lambda l: (0, 0)),
        compiler_params=pltpu.CompilerParams(
            dimension_semantics=("arbitrary",),   # layers carry state -> sequential
            vmem_limit_bytes=32 << 20,            # 2 x LPB x 512 KiB weight buffers
        ),
    )(xp, w_mid, b_mid)


@jax.jit
def head_forward(x, w1, b1, w_mid, b_mid, w16, b16):
    """DeLaN Head forward.

    x:      (B, state_size) f32
    w1,b1:  (state_size, 256), (256,)          f32  (fc1, dense)
    w_mid:  (14, 512, 512)                      bf16 (fc2..fc15, zero-padded)
    b_mid:  (14, 1, 512)                        f32
    w16,b16:(256, output_size), (output_size,)  f32  (fc16, dense)
    returns (B, output_size) f32
    """
    B = x.shape[0]

    # fc1 is tiny -> compute in f32 in the wrapper (no 512x512 padding waste).
    a1 = _softplus_f32(jnp.dot(x, w1) + b1)                    # (B, 256)
    xp = jnp.zeros((B, WIDTH), jnp.float32).at[:, :a1.shape[1]].set(a1)

    mid = _mid_layers(xp, w_mid, b_mid)                        # (B, 512)

    # fc15 real width is 256 -> drop padded lanes, then tiny fc16 in f32.
    a15 = mid[:, :w16.shape[0]]                                # (B, 256)
    return _softplus_f32(jnp.dot(a15, w16) + b16)              # (B, output_size)


# ---------------------------------------------------------------------------
# Parameter construction / packing
# ---------------------------------------------------------------------------
def init_head_params(state_size, output_size, key):
    """Deterministic init matching nn.Linear default U(-1/sqrt(fan_in), +),
    stored as (in, out) weights for x @ W."""
    dims = [state_size] + HEAD_WIDTHS + [output_size]
    params = []
    for i in range(NUM_LAYERS):
        din, dout = dims[i], dims[i + 1]
        key, kw, kb = jax.random.split(key, 3)
        bound = 1.0 / jnp.sqrt(jnp.float32(din))
        w = jax.random.uniform(kw, (din, dout), jnp.float32, -bound, bound)
        b = jax.random.uniform(kb, (dout,), jnp.float32, -bound, bound)
        params.append((w, b))
    return params


def pack_params(params):
    """fc1/fc16 stay dense f32 (handled in the wrapper); fc2..fc15 are
    zero-padded to (512, 512), stacked and cast to bf16 (weight stream)."""
    w1, b1 = params[0]
    w16, b16 = params[NUM_LAYERS - 1]
    ws, bs = [], []
    for (w, b) in params[1:NUM_LAYERS - 1]:
        din, dout = w.shape
        wp = jnp.zeros((WIDTH, WIDTH), jnp.float32).at[:din, :dout].set(w)
        bp = jnp.zeros((WIDTH,), jnp.float32).at[:dout].set(b)
        ws.append(wp)
        bs.append(bp)
    w_mid = jnp.stack(ws).astype(jnp.bfloat16)                # (14, 512, 512) bf16
    b_mid = jnp.stack(bs).reshape(NUM_MID, 1, WIDTH)          # (14, 1, 512) f32
    return w1, b1, w_mid, b_mid, w16, b16


# Pure-JAX reference with the SAME mixed-precision recipe as the kernel
# (f32 fc1/fc16, bf16-operand / f32-accumulate middle layers) for tight
# validation.  A true all-f32 torch Head diverges at ~1e-2 over 16 layers.
def head_forward_ref(x, params):
    a = x
    for idx, (w, b) in enumerate(params):
        if idx == 0 or idx == NUM_LAYERS - 1:
            y = jnp.dot(a, w) + b
        else:
            y = jnp.dot(a.astype(jnp.bfloat16), w.astype(jnp.bfloat16),
                        preferred_element_type=jnp.float32) + b
        a = _softplus_f32(y)
    return a


if __name__ == "__main__":
    key = jax.random.PRNGKey(0)
    state_size = 4     # dimension of q
    output_size = 8    # head output dimension
    batch = 16         # multiple of 16 -> full bf16 (16,128) activation tiles

    kx, kp = jax.random.split(key)
    x = jax.random.normal(kx, (batch, state_size), jnp.float32)
    params = init_head_params(state_size, output_size, kp)
    packed = pack_params(params)

    out = head_forward(x, *packed)
    out = jax.block_until_ready(out)

    ref = head_forward_ref(x, params)
    assert out.shape == (batch, output_size), out.shape
    err = float(jnp.max(jnp.abs(out - ref)))
    assert jnp.allclose(out, ref, atol=2e-3, rtol=2e-3), err

    print("KERNEL_OK")
</pallas_src>

<mosaic_0001>
module attributes {stable_mosaic.version = 11 : i64} {
  func.func @_head_mid_kernel(%arg0: i32, %arg1: memref<16x512xf32, #tpu.memory_space<vmem>>, %arg2: memref<7x512x512xbf16, #tpu.memory_space<vmem>>, %arg3: memref<14x1x512xf32, #tpu.memory_space<vmem>>, %arg4: memref<16x512xf32, #tpu.memory_space<vmem>>) attributes {dimension_semantics = [#tpu.dimension_semantics<arbitrary>], iteration_bounds = array<i64: 2>, scalar_prefetch = 0 : i64, scratch_operands = 0 : i64, tpu.core_type = #tpu.core_type<tc>, window_params = [{pipeline_mode = #tpu.pipeline_mode<synchronous>, transform_indices = @transform_0, window_bounds = array<i64: 16, 512>}, {transform_indices = @transform_1, window_bounds = array<i64: 7, 512, 512>}, {pipeline_mode = #tpu.pipeline_mode<synchronous>, transform_indices = @transform_2, window_bounds = array<i64: 14, 1, 512>}, {pipeline_mode = #tpu.pipeline_mode<synchronous>, transform_indices = @transform_3, window_bounds = array<i64: 16, 512>}]} {
    %c0_i32 = arith.constant 0 : i32
    %0 = arith.cmpi eq, %arg0, %c0_i32 : i32
    %1 = arith.extui %0 : i1 to i32
    %c0_i32_0 = arith.constant 0 : i32
    %2 = arith.cmpi ne, %1, %c0_i32_0 : i32
    scf.if %2 {
      %c0_54 = arith.constant 0 : index
      %c0_55 = arith.constant 0 : index
      %132 = vector.load %arg1[%c0_54, %c0_55] : memref<16x512xf32, #tpu.memory_space<vmem>>, vector<16x512xf32>
      %c0_56 = arith.constant 0 : index
      %c0_57 = arith.constant 0 : index
      %133 = vector.load %arg4[%c0_56, %c0_57] : memref<16x512xf32, #tpu.memory_space<vmem>>, vector<16x512xf32>
      tpu.vector_store %arg4[%c0_56, %c0_57], %132 {strides = array<i32>} : memref<16x512xf32, #tpu.memory_space<vmem>>, vector<16x512xf32>,
    } else {
    }
    %c0 = arith.constant 0 : index
    %c0_1 = arith.constant 0 : index
    %3 = vector.load %arg4[%c0, %c0_1] : memref<16x512xf32, #tpu.memory_space<vmem>>, vector<16x512xf32>
    %c7_i32 = arith.constant 7 : i32
    %4 = arith.muli %arg0, %c7_i32 : i32
    %c0_2 = arith.constant 0 : index
    %c0_3 = arith.constant 0 : index
    %c0_4 = arith.constant 0 : index
    %5 = vector.load %arg2[%c0_2, %c0_3, %c0_4] : memref<7x512x512xbf16, #tpu.memory_space<vmem>>, vector<1x512x512xbf16>
    %6 = vector.shape_cast %5 : vector<1x512x512xbf16> to vector<512x512xbf16>
    %c0_i32_5 = arith.constant 0 : i32
    %7 = arith.addi %4, %c0_i32_5 : i32
    %8 = arith.index_cast %7 : i32 to index
    %c0_6 = arith.constant 0 : index
    %c0_7 = arith.constant 0 : index
    %9 = vector.load %arg3[%8, %c0_6, %c0_7] : memref<14x1x512xf32, #tpu.memory_space<vmem>>, vector<1x1x512xf32>
    %10 = vector.shape_cast %9 : vector<1x1x512xf32> to vector<1x512xf32>
    %11 = arith.truncf %3 : vector<16x512xf32> to vector<16x512xbf16>
    %cst = arith.constant dense<0.000000e+00> : vector<16x512xf32>
    %12 = tpu.matmul %11, %6, %cst {dimension_numbers = #tpu.dot_dimension_numbers<[1], [0], [0], [1], [0, 0, 1, 1], [], []>} : vector<16x512xbf16>, vector<512x512xbf16>, vector<16x512xf32> -> vector<16x512xf32>
    %13 = vector.broadcast %10 : vector<1x512xf32> to vector<16x512xf32>
    %14 = arith.addf %12, %13 : vector<16x512xf32>
    %cst_8 = arith.constant 0.000000e+00 : f32
    %15 = vector.broadcast %cst_8 : f32 to vector<16x512xf32>
    %16 = arith.maximumf %14, %15 : vector<16x512xf32>
    %17 = math.absf %14 : vector<16x512xf32>
    %cst_9 = arith.constant 0.000000e+00 : f32
    %18 = vector.broadcast %cst_9 : f32 to vector<16x512xf32>
    %19 = arith.subf %18, %17 : vector<16x512xf32>
    %20 = math.exp %19 : vector<16x512xf32>
    %21 = math.log1p %20 : vector<16x512xf32>
    %22 = arith.addf %16, %21 : vector<16x512xf32>
    %c1 = arith.constant 1 : index
    %c0_10 = arith.constant 0 : index
    %c0_11 = arith.constant 0 : index
    %23 = vector.load %arg2[%c1, %c0_10, %c0_11] : memref<7x512x512xbf16, #tpu.memory_space<vmem>>, vector<1x512x512xbf16>
    %24 = vector.shape_cast %23 : vector<1x512x512xbf16> to vector<512x512xbf16>
    %c1_i32 = arith.constant 1 : i32
    %25 = arith.addi %4, %c1_i32 : i32
    %26 = arith.index_cast %25 : i32 to index
    %c0_12 = arith.constant 0 : index
    %c0_13 = arith.constant 0 : index
    %27 = vector.load %arg3[%26, %c0_12, %c0_13] : memref<14x1x512xf32, #tpu.memory_space<vmem>>, vector<1x1x512xf32>
    %28 = vector.shape_cast %27 : vector<1x1x512xf32> to vector<1x512xf32>
    %29 = arith.truncf %22 : vector<16x512xf32> to vector<16x512xbf16>
    %cst_14 = arith.constant dense<0.000000e+00> : vector<16x512xf32>
    %30 = tpu.matmul %29, %24, %cst_14 {dimension_numbers = #tpu.dot_dimension_numbers<[1], [0], [0], [1], [0, 0, 1, 1], [], []>} : vector<16x512xbf16>, vector<512x512xbf16>, vector<16x512xf32> -> vector<16x512xf32>
    %31 = vector.broadcast %28 : vector<1x512xf32> to vector<16x512xf32>
    %32 = arith.addf %30, %31 : vector<16x512xf32>
    %cst_15 = arith.constant 0.000000e+00 : f32
    %33 = vector.broadcast %cst_15 : f32 to vector<16x512xf32>
    %34 = arith.maximumf %32, %33 : vector<16x512xf32>
    %35 = math.absf %32 : vector<16x512xf32>
    %cst_16 = arith.constant 0.000000e+00 : f32
    %36 = vector.broadcast %cst_16 : f32 to vector<16x512xf32>
    %37 = arith.subf %36, %35 : vector<16x512xf32>
    %38 = math.exp %37 : vector<16x512xf32>
    %39 = math.log1p %38 : vector<16x512xf32>
    %40 = arith.addf %34, %39 : vector<16x512xf32>
    %c2 = arith.constant 2 : index
    %c0_17 = arith.constant 0 : index
    %c0_18 = arith.constant 0 : index
    %41 = vector.load %arg2[%c2, %c0_17, %c0_18] : memref<7x512x512xbf16, #tpu.memory_space<vmem>>, vector<1x512x512xbf16>
    %42 = vector.shape_cast %41 : vector<1x512x512xbf16> to vector<512x512xbf16>
    %c2_i32 = arith.constant 2 : i32
    %43 = arith.addi %4, %c2_i32 : i32
    %44 = arith.index_cast %43 : i32 to index
    %c0_19 = arith.constant 0 : index
    %c0_20 = arith.constant 0 : index
    %45 = vector.load %arg3[%44, %c0_19, %c0_20] : memref<14x1x512xf32, #tpu.memory_space<vmem>>, vector<1x1x512xf32>
    %46 = vector.shape_cast %45 : vector<1x1x512xf32> to vector<1x512xf32>
    %47 = arith.truncf %40 : vector<16x512xf32> to vector<16x512xbf16>
    %cst_21 = arith.constant dense<0.000000e+00> : vector<16x512xf32>
    %48 = tpu.matmul %47, %42, %cst_21 {dimension_numbers = #tpu.dot_dimension_numbers<[1], [0], [0], [1], [0, 0, 1, 1], [], []>} : vector<16x512xbf16>, vector<512x512xbf16>, vector<16x512xf32> -> vector<16x512xf32>
    %49 = vector.broadcast %46 : vector<1x512xf32> to vector<16x512xf32>
    %50 = arith.addf %48, %49 : vector<16x512xf32>
    %cst_22 = arith.constant 0.000000e+00 : f32
    %51 = vector.broadcast %cst_22 : f32 to vector<16x512xf32>
    %52 = arith.maximumf %50, %51 : vector<16x512xf32>
    %53 = math.absf %50 : vector<16x512xf32>
    %cst_23 = arith.constant 0.000000e+00 : f32
    %54 = vector.broadcast %cst_23 : f32 to vector<16x512xf32>
    %55 = arith.subf %54, %53 : vector<16x512xf32>
    %56 = math.exp %55 : vector<16x512xf32>
    %57 = math.log1p %56 : vector<16x512xf32>
    %58 = arith.addf %52, %57 : vector<16x512xf32>
    %c3 = arith.constant 3 : index
    %c0_24 = arith.constant 0 : index
    %c0_25 = arith.constant 0 : index
    %59 = vector.load %arg2[%c3, %c0_24, %c0_25] : memref<7x512x512xbf16, #tpu.memory_space<vmem>>, vector<1x512x512xbf16>
    %60 = vector.shape_cast %59 : vector<1x512x512xbf16> to vector<512x512xbf16>
    %c3_i32 = arith.constant 3 : i32
    %61 = arith.addi %4, %c3_i32 : i32
    %62 = arith.index_cast %61 : i32 to index
    %c0_26 = arith.constant 0 : index
    %c0_27 = arith.constant 0 : index
    %63 = vector.load %arg3[%62, %c0_26, %c0_27] : memref<14x1x512xf32, #tpu.memory_space<vmem>>, vector<1x1x512xf32>
    %64 = vector.shape_cast %63 : vector<1x1x512xf32> to vector<1x512xf32>
    %65 = arith.truncf %58 : vector<16x512xf32> to vector<16x512xbf16>
    %cst_28 = arith.constant dense<0.000000e+00> : vector<16x512xf32>
    %66 = tpu.matmul %65, %60, %cst_28 {dimension_numbers = #tpu.dot_dimension_numbers<[1], [0], [0], [1], [0, 0, 1, 1], [], []>} : vector<16x512xbf16>, vector<512x512xbf16>, vector<16x512xf32> -> vector<16x512xf32>
    %67 = vector.broadcast %64 : vector<1x512xf32> to vector<16x512xf32>
    %68 = arith.addf %66, %67 : vector<16x512xf32>
    %cst_29 = arith.constant 0.000000e+00 : f32
    %69 = vector.broadcast %cst_29 : f32 to vector<16x512xf32>
    %70 = arith.maximumf %68, %69 : vector<16x512xf32>
    %71 = math.absf %68 : vector<16x512xf32>
    %cst_30 = arith.constant 0.000000e+00 : f32
    %72 = vector.broadcast %cst_30 : f32 to vector<16x512xf32>
    %73 = arith.subf %72, %71 : vector<16x512xf32>
    %74 = math.exp %73 : vector<16x512xf32>
    %75 = math.log1p %74 : vector<16x512xf32>
    %76 = arith.addf %70, %75 : vector<16x512xf32>
    %c4 = arith.constant 4 : index
    %c0_31 = arith.constant 0 : index
    %c0_32 = arith.constant 0 : index
    %77 = vector.load %arg2[%c4, %c0_31, %c0_32] : memref<7x512x512xbf16, #tpu.memory_space<vmem>>, vector<1x512x512xbf16>
    %78 = vector.shape_cast %77 : vector<1x512x512xbf16> to vector<512x512xbf16>
    %c4_i32 = arith.constant 4 : i32
    %79 = arith.addi %4, %c4_i32 : i32
    %80 = arith.index_cast %79 : i32 to index
    %c0_33 = arith.constant 0 : index
    %c0_34 = arith.constant 0 : index
    %81 = vector.load %arg3[%80, %c0_33, %c0_34] : memref<14x1x512xf32, #tpu.memory_space<vmem>>, vector<1x1x512xf32>
    %82 = vector.shape_cast %81 : vector<1x1x512xf32> to vector<1x512xf32>
    %83 = arith.truncf %76 : vector<16x512xf32> to vector<16x512xbf16>
    %cst_35 = arith.constant dense<0.000000e+00> : vector<16x512xf32>
    %84 = tpu.matmul %83, %78, %cst_35 {dimension_numbers = #tpu.dot_dimension_numbers<[1], [0], [0], [1], [0, 0, 1, 1], [], []>} : vector<16x512xbf16>, vector<512x512xbf16>, vector<16x512xf32> -> vector<16x512xf32>
    %85 = vector.broadcast %82 : vector<1x512xf32> to vector<16x512xf32>
    %86 = arith.addf %84, %85 : vector<16x512xf32>
    %cst_36 = arith.constant 0.000000e+00 : f32
    %87 = vector.broadcast %cst_36 : f32 to vector<16x512xf32>
    %88 = arith.maximumf %86, %87 : vector<16x512xf32>
    %89 = math.absf %86 : vector<16x512xf32>
    %cst_37 = arith.constant 0.000000e+00 : f32
    %90 = vector.broadcast %cst_37 : f32 to vector<16x512xf32>
    %91 = arith.subf %90, %89 : vector<16x512xf32>
    %92 = math.exp %91 : vector<16x512xf32>
    %93 = math.log1p %92 : vector<16x512xf32>
    %94 = arith.addf %88, %93 : vector<16x512xf32>
    %c5 = arith.constant 5 : index
    %c0_38 = arith.constant 0 : index
    %c0_39 = arith.constant 0 : index
    %95 = vector.load %arg2[%c5, %c0_38, %c0_39] : memref<7x512x512xbf16, #tpu.memory_space<vmem>>, vector<1x512x512xbf16>
    %96 = vector.shape_cast %95 : vector<1x512x512xbf16> to vector<512x512xbf16>
    %c5_i32 = arith.constant 5 : i32
    %97 = arith.addi %4, %c5_i32 : i32
    %98 = arith.index_cast %97 : i32 to index
    %c0_40 = arith.constant 0 : index
    %c0_41 = arith.constant 0 : index
    %99 = vector.load %arg3[%98, %c0_40, %c0_41] : memref<14x1x512xf32, #tpu.memory_space<vmem>>, vector<1x1x512xf32>
    %100 = vector.shape_cast %99 : vector<1x1x512xf32> to vector<1x512xf32>
    %101 = arith.truncf %94 : vector<16x512xf32> to vector<16x512xbf16>
    %cst_42 = arith.constant dense<0.000000e+00> : vector<16x512xf32>
    %102 = tpu.matmul %101, %96, %cst_42 {dimension_numbers = #tpu.dot_dimension_numbers<[1], [0], [0], [1], [0, 0, 1, 1], [], []>} : vector<16x512xbf16>, vector<512x512xbf16>, vector<16x512xf32> -> vector<16x512xf32>
    %103 = vector.broadcast %100 : vector<1x512xf32> to vector<16x512xf32>
    %104 = arith.addf %102, %103 : vector<16x512xf32>
    %cst_43 = arith.constant 0.000000e+00 : f32
    %105 = vector.broadcast %cst_43 : f32 to vector<16x512xf32>
    %106 = arith.maximumf %104, %105 : vector<16x512xf32>
    %107 = math.absf %104 : vector<16x512xf32>
    %cst_44 = arith.constant 0.000000e+00 : f32
    %108 = vector.broadcast %cst_44 : f32 to vector<16x512xf32>
    %109 = arith.subf %108, %107 : vector<16x512xf32>
    %110 = math.exp %109 : vector<16x512xf32>
    %111 = math.log1p %110 : vector<16x512xf32>
    %112 = arith.addf %106, %111 : vector<16x512xf32>
    %c6 = arith.constant 6 : index
    %c0_45 = arith.constant 0 : index
    %c0_46 = arith.constant 0 : index
    %113 = vector.load %arg2[%c6, %c0_45, %c0_46] : memref<7x512x512xbf16, #tpu.memory_space<vmem>>, vector<1x512x512xbf16>
    %114 = vector.shape_cast %113 : vector<1x512x512xbf16> to vector<512x512xbf16>
    %c6_i32 = arith.constant 6 : i32
    %115 = arith.addi %4, %c6_i32 : i32
    %116 = arith.index_cast %115 : i32 to index
    %c0_47 = arith.constant 0 : index
    %c0_48 = arith.constant 0 : index
    %117 = vector.load %arg3[%116, %c0_47, %c0_48] : memref<14x1x512xf32, #tpu.memory_space<vmem>>, vector<1x1x512xf32>
    %118 = vector.shape_cast %117 : vector<1x1x512xf32> to vector<1x512xf32>
    %119 = arith.truncf %112 : vector<16x512xf32> to vector<16x512xbf16>
    %cst_49 = arith.constant dense<0.000000e+00> : vector<16x512xf32>
    %120 = tpu.matmul %119, %114, %cst_49 {dimension_numbers = #tpu.dot_dimension_numbers<[1], [0], [0], [1], [0, 0, 1, 1], [], []>} : vector<16x512xbf16>, vector<512x512xbf16>, vector<16x512xf32> -> vector<16x512xf32>
    %121 = vector.broadcast %118 : vector<1x512xf32> to vector<16x512xf32>
    %122 = arith.addf %120, %121 : vector<16x512xf32>
    %cst_50 = arith.constant 0.000000e+00 : f32
    %123 = vector.broadcast %cst_50 : f32 to vector<16x512xf32>
    %124 = arith.maximumf %122, %123 : vector<16x512xf32>
    %125 = math.absf %122 : vector<16x512xf32>
    %cst_51 = arith.constant 0.000000e+00 : f32
    %126 = vector.broadcast %cst_51 : f32 to vector<16x512xf32>
    %127 = arith.subf %126, %125 : vector<16x512xf32>
    %128 = math.exp %127 : vector<16x512xf32>
    %129 = math.log1p %128 : vector<16x512xf32>
    %130 = arith.addf %124, %129 : vector<16x512xf32>
    %c0_52 = arith.constant 0 : index
    %c0_53 = arith.constant 0 : index
    %131 = vector.load %arg4[%c0_52, %c0_53] : memref<16x512xf32, #tpu.memory_space<vmem>>, vector<16x512xf32>
    tpu.vector_store %arg4[%c0_52, %c0_53], %130 {strides = array<i32>} : memref<16x512xf32, #tpu.memory_space<vmem>>, vector<16x512xf32>,
    return
  }
  func.func @transform_0(%arg0: i32) -> (i32, i32) {
    %c0_i32 = arith.constant 0 : i32
    %c0_i32_0 = arith.constant 0 : i32
    %c0_i32_1 = arith.constant 0 : i32
    return %c0_i32, %c0_i32_0 : i32, i32
  }
  func.func @transform_1(%arg0: i32) -> (i32, i32, i32) {
    %c0_i32 = arith.constant 0 : i32
    %c0_i32_0 = arith.constant 0 : i32
    %c0_i32_1 = arith.constant 0 : i32
    return %arg0, %c0_i32, %c0_i32_0 : i32, i32, i32
  }
  func.func @transform_2(%arg0: i32) -> (i32, i32, i32) {
    %c0_i32 = arith.constant 0 : i32
    %c0_i32_0 = arith.constant 0 : i32
    %c0_i32_1 = arith.constant 0 : i32
    %c0_i32_2 = arith.constant 0 : i32
    return %c0_i32, %c0_i32_0, %c0_i32_1 : i32, i32, i32
  }
  func.func @transform_3(%arg0: i32) -> (i32, i32) {
    %c0_i32 = arith.constant 0 : i32
    %c0_i32_0 = arith.constant 0 : i32
    %c0_i32_1 = arith.constant 0 : i32
    return %c0_i32, %c0_i32_0 : i32, i32
  }
}

</mosaic_0001>

<llo_original>
// kernel: head_forward.1
$region0: #{head_forward.1}
  #allocation0 [shape = 'u32[]', space=smem, size = 0x4, offset = 0x4, fixed_abs, tag = 'smem constant byte address 0x4 - core index']
  #allocation1 [shape = 'u32[72,128]{1,0:T(1,128)}', space=vmem, size = 0x9000, scoped, tag = 'internal scratch']
  %s0 = inlined_call_operand.vmem [shape: f32[16,512], index: 0, kind: input, shape index: {}]
  %s1 = inlined_call_operand.hbm [shape: bf16[14,512,512], index: 1, kind: input, shape index: {}]
  %s2 = inlined_call_operand.hbm [shape: f32[14,1,512], index: 2, kind: input, shape index: {}]
  %s3 = inlined_call_operand.vmem [shape: f32[16,512], index: 3, kind: output, shape index: {}]
  %s4 = sld [smem:[#allocation0]]
  $region57: #{head_forward.1} parent=0
    _
  %s6 = ssub.s32 1, %s4
  %s7 = scalar_select 0, %s6, %s4
  $region1: #{head_forward.1} parent=0
    #allocation2 [shape = 'u8[7340032]{0}', space=vmem, size = 0x700000, scoped, tag = 'input window, operand 1']
    #allocation3 [shape = 's32[2]{0}', space=sflag, size = 0x8, scoped, tag = 'scoped memory for head_forward.1']
    #allocation4 [shape = 'u8[28672]{0}', space=vmem, size = 0x7000, scoped, tag = 'input window, operand 2, single buffered']
    #allocation5 [shape = 's32[1]{0}', space=sflag, size = 0x4, scoped, tag = 'scoped memory for head_forward.1']
    %8 = vsyncpa [#allocation3], 0
    %s9 = scalar_lea.sflag [#allocation3], 1
    %10 = vsyncpa %s9, 0
    %11 = vsyncpa [#allocation5], 0
    loop: start=0, step=1, limit=4
    $region2: #{head_forward.1} parent=1 // loop_pre_header
      _
    $region3: #{head_forward.1} parent=1 // loop_header
      %s13 = sphi 0, %s17
      %p14 = scmp.ge.s32.totalorder %s13, 4
      %s21 = sphi 0, %s21
      %s23 = sphi 0, %s21
      %s24 = sphi 0, %s23
      %s38 = sphi 0, %s24
      %s44 = sphi 0, %s46
      %s47 = sphi 0, %s44
      %s48 = sphi 0, %s47
      %s64 = sphi 0, %s48
      %s68 = sphi 0, %s68
      %s70 = sphi 0, %s68
      %s71 = sphi 0, %s70
      %s85 = sphi 0, %s71
      %s89 = sphi 0, %s89
      %s91 = sphi 0, %s89
      %s92 = sphi 0, %s91
      %s106 = sphi 0, %s92
    $region4: #{head_forward.1} parent=1 // loop_header_branch
      %16 = sbr.rel (%p14) target = $region8
    $region5: #{head_forward.1} parent=1 // loop_body
      %s18 = ssub.s32 %s13, 1
      %s19 = ssub.s32 %s13, 2
      %s20 = sadd.s32 %s13, 1
      %s22 = sadd.s32 %s21, 1
      %p25 = scmp.eq.s32.totalorder %s13, 1
      %p26 = scmp.ne.s32.totalorder %s21, %s23
      %p27 = scmp.eq.s32.totalorder %s13, 0
      %p28 = por %p26, %p27
      %p29 = scmp.ne.s32.totalorder %s21, %s23
      %p30 = scmp.eq.s32.totalorder %s18, 1
      %p31 = por %p29, %p30
      %p32 = scmp.ne.s32.totalorder %s23, %s24
      %p33 = scmp.eq.s32.totalorder %s18, 0
      %p34 = por %p32, %p33
      %p35 = scmp.ne.s32.totalorder %s23, %s24
      %p36 = scmp.eq.s32.totalorder %s19, 1
      %p37 = por %p35, %p36
      %p39 = scmp.ne.s32.totalorder %s24, %s38
      %p40 = scmp.eq.s32.totalorder %s19, 0
      %p41 = por %p39, %p40
      %s42 = ssub.s32 %s13, %s20
      %p43 = scmp.eq.s32.totalorder %s42, 0
      %s45 = sadd.s32 %s44, 1
      %s46 = scalar_select %p43, %s44, %s45
      %p49 = pneg %p43
      %p50 = scmp.eq.s32.totalorder %s13, 1
      %p51 = por %p49, %p50
      %p52 = scmp.ne.s32.totalorder %s44, %s47
      %p53 = scmp.eq.s32.totalorder %s13, 0
      %p54 = por %p52, %p53
      %p55 = scmp.ne.s32.totalorder %s44, %s47
      %p56 = scmp.eq.s32.totalorder %s18, 1
      %p57 = por %p55, %p56
      %p58 = scmp.ne.s32.totalorder %s47, %s48
      %p59 = scmp.eq.s32.totalorder %s18, 0
      %p60 = por %p58, %p59
      %p61 = scmp.ne.s32.totalorder %s47, %s48
      %p62 = scmp.eq.s32.totalorder %s19, 1
      %p63 = por %p61, %p62
      %p65 = scmp.ne.s32.totalorder %s48, %s64
      %p66 = scmp.eq.s32.totalorder %s19, 0
      %p67 = por %p65, %p66
      %s69 = sadd.s32 %s68, 1
      %p72 = scmp.eq.s32.totalorder %s13, 1
      %p73 = scmp.ne.s32.totalorder %s68, %s70
      %p74 = scmp.eq.s32.totalorder %s13, 0
      %p75 = por %p73, %p74
      %p76 = scmp.ne.s32.totalorder %s68, %s70
      %p77 = scmp.eq.s32.totalorder %s18, 1
      %p78 = por %p76, %p77
      %p79 = scmp.ne.s32.totalorder %s70, %s71
      %p80 = scmp.eq.s32.totalorder %s18, 0
      %p81 = por %p79, %p80
      %p82 = scmp.ne.s32.totalorder %s70, %s71
      %p83 = scmp.eq.s32.totalorder %s19, 1
      %p84 = por %p82, %p83
      %p86 = scmp.ne.s32.totalorder %s71, %s85
      %p87 = scmp.eq.s32.totalorder %s19, 0
      %p88 = por %p86, %p87
      %s90 = sadd.s32 %s89, 1
      %p93 = scmp.eq.s32.totalorder %s13, 1
      %p94 = scmp.ne.s32.totalorder %s89, %s91
      %p95 = scmp.eq.s32.totalorder %s13, 0
      %p96 = por %p94, %p95
      %p97 = scmp.ne.s32.totalorder %s89, %s91
      %p98 = scmp.eq.s32.totalorder %s18, 1
      %p99 = por %p97, %p98
      %p100 = scmp.ne.s32.totalorder %s91, %s92
      %p101 = scmp.eq.s32.totalorder %s18, 0
      %p102 = por %p100, %p101
      %p103 = scmp.ne.s32.totalorder %s91, %s92
      %p104 = scmp.eq.s32.totalorder %s19, 1
      %p105 = por %p103, %p104
      %p107 = scmp.ne.s32.totalorder %s92, %s106
      %p108 = scmp.eq.s32.totalorder %s19, 0
      %p109 = por %p107, %p108
      %p110 = scmp.le.s32.totalorder 1, %s13
      %p111 = scmp.lt.s32.totalorder %s13, 3
      %p112 = pnand %p110, %p111
      %p113 = pneg %p112
      // Predicated region
      $region9: #{head_forward.1} parent=5 // pred_check
        _
      $region10: #{head_forward.1} parent=5 // pred_check_branch
        %115 = sbr.rel (%p112) target = $region12
      $region11: #{head_forward.1} parent=5 // pred_region
        %s116 = ssub.s32 %s13, 1
        // Predicated region
        $region13: #{head_forward.1} parent=11 // pred_check
          %p117 = pneg %p34
        $region14: #{head_forward.1} parent=11 // pred_check_branch
          %119 = sbr.rel (%p117) target = $region16
        $region15: #{head_forward.1} parent=11 // pred_region
          _
        $region16: #{head_forward.1} parent=11 // pred_fallthru
          _
        // Predicated region
        $region17: #{head_forward.1} parent=11 // pred_check
          %p120 = pneg %p81
        $region18: #{head_forward.1} parent=11 // pred_check_branch
          %122 = sbr.rel (%p120) target = $region20
        $region19: #{head_forward.1} parent=11 // pred_region
          %124 = vsyncadd [#allocation5], 0
          %s125 = sshll.u32 %s2, 4
          %s126 = int_to_ptr.hbm [resolvable:$true] %s125
          %s127 = sshll.u32 [#allocation4], 4
          %s128 = int_to_ptr.vmem [resolvable:$true] %s127
          %133 = dma.hbm_to_vmem [thread:$0]  %s126, 896, %s128, [#allocation5], 64, 64, 4
        $region20: #{head_forward.1} parent=11 // pred_fallthru
          _
      $region12: #{head_forward.1} parent=5 // pred_fallthru
        _
      %p134 = scmp.lt.s32.totalorder %s13, 2
      // Predicated region
      $region21: #{head_forward.1} parent=5 // pred_check
        %p135 = pneg %p134
      $region22: #{head_forward.1} parent=5 // pred_check_branch
        %137 = sbr.rel (%p135) target = $region24
      $region23: #{head_forward.1} parent=5 // pred_region
        // Predicated region
        $region25: #{head_forward.1} parent=23 // pred_check
          %p138 = pneg %p54
        $region26: #{head_forward.1} parent=23 // pred_check_branch
          %140 = sbr.rel (%p138) target = $region28
        $region27: #{head_forward.1} parent=23 // pred_region
          %s141 = sand.u32 %s44, 1
          %s142 = scalar_lea.sflag [#allocation3], %s141
          %s143 = sand.u32 %s44, 1
          %s144 = smul.addr %s143, 7168
          %s145 = scalar_lea.vmem [#allocation2], %s144
          %s146 = smul.u32 7, %s13
          %148 = vsyncadd %s142, 0
          %s149 = smul.addr %s146, 256
          %s150 = smul.addr %s149, 4
          %s151 = scalar_lea.hbm %s1, %s150
          %s152 = sshll.u32 %s151, 4
          %s153 = int_to_ptr.hbm [resolvable:$true] %s152
          %s154 = sshll.u32 %s145, 4
          %s155 = int_to_ptr.vmem [resolvable:$true] %s154
          %160 = dma.hbm_to_vmem [thread:$0]  %s153, 114688, %s155, %s142, 256, 256, 16
        $region28: #{head_forward.1} parent=23 // pred_fallthru
          _
      $region24: #{head_forward.1} parent=5 // pred_fallthru
        _
      %p161 = scmp.le.s32.totalorder 1, %s13
      %p162 = scmp.lt.s32.totalorder %s13, 3
      %p163 = pnand %p161, %p162
      %p164 = pneg %p163
      // Predicated region
      $region29: #{head_forward.1} parent=5 // pred_check
        _
      $region30: #{head_forward.1} parent=5 // pred_check_branch
        %166 = sbr.rel (%p163) target = $region32
      $region31: #{head_forward.1} parent=5 // pred_region
        %s167 = ssub.s32 %s13, 1
        %s168 = sand.u32 %s47, 1
        %s169 = scalar_lea.sflag [#allocation3], %s168
        %s170 = sand.u32 %s47, 1
        %s171 = smul.addr %s170, 7168
        %s172 = scalar_lea.vmem [#allocation2], %s171
        // Predicated region
        $region33: #{head_forward.1} parent=31 // pred_check
          %p173 = pneg %p60
        $region34: #{head_forward.1} parent=31 // pred_check_branch
          %175 = sbr.rel (%p173) target = $region36
        $region35: #{head_forward.1} parent=31 // pred_region
          %177 = dma.done %s169, 114688
        $region36: #{head_forward.1} parent=31 // pred_fallthru
          _
        // Predicated region
        $region37: #{head_forward.1} parent=31 // pred_check
          %p178 = pneg %p81
        $region38: #{head_forward.1} parent=31 // pred_check_branch
          %180 = sbr.rel (%p178) target = $region40
        $region39: #{head_forward.1} parent=31 // pred_region
          %182 = dma.done [#allocation5], 896
        $region40: #{head_forward.1} parent=31 // pred_fallthru
          _
        %p183 = pneg %p34
        %p184 = pneg %p31
        %s185 = sand.u32 %s47, 1
        %s186 = scalar_lea.sflag [#allocation3], %s185
        %s187 = sand.u32 %s47, 1
        %s188 = smul.addr %s187, 7168
        %s189 = scalar_lea.vmem [#allocation2], %s188
        %p190 = pneg %p60
        %p191 = pneg %p57
        %p192 = pneg %p81
        %p193 = pneg %p78
        %p194 = pneg %p102
        %p195 = pneg %p99
        %s196 = smul.u32 7, %s18
        %p197 = scmp.eq.s32.totalorder %s18, 0
        // Predicated region
        $region41: #{head_forward.1} parent=31 // pred_check
          %p198 = pneg %p197
        $region42: #{head_forward.1} parent=31 // pred_check_branch
          %200 = sbr.rel (%p198) target = $region44
        $region43: #{head_forward.1} parent=31 // pred_region
          %v201 = vld [vmem:[%s0] sm:$0xff]
          %v202 = vld [vmem:[%s0 + $0x8] sm:$0xff]
          %v203 = vld [vmem:[%s0 + $0x10] sm:$0xff]
          %v204 = vld [vmem:[%s0 + $0x18] sm:$0xff]
          %v205 = vld [vmem:[%s0 + $0x20] sm:$0xff]
          %v206 = vld [vmem:[%s0 + $0x28] sm:$0xff]
          %v207 = vld [vmem:[%s0 + $0x30] sm:$0xff]
          %v208 = vld [vmem:[%s0 + $0x38] sm:$0xff]
          %209 = vst [vmem:[%s3] sm:$0xff] %v201
          %210 = vst [vmem:[%s3 + $0x8] sm:$0xff] %v202
          %211 = vst [vmem:[%s3 + $0x10] sm:$0xff] %v203
          %212 = vst [vmem:[%s3 + $0x18] sm:$0xff] %v204
          %213 = vst [vmem:[%s3 + $0x20] sm:$0xff] %v205
          %214 = vst [vmem:[%s3 + $0x28] sm:$0xff] %v206
          %215 = vst [vmem:[%s3 + $0x30] sm:$0xff] %v207
          %216 = vst [vmem:[%s3 + $0x38] sm:$0xff] %v208
        $region44: #{head_forward.1} parent=31 // pred_fallthru
          _
        %v217 = vld [vmem:[%s3] sm:$0xff]
        %v218 = vld [vmem:[%s3 + $0x8] sm:$0xff]
        %v219 = vld [vmem:[%s3 + $0x10] sm:$0xff]
        %v220 = vld [vmem:[%s3 + $0x18] sm:$0xff]
        %v221 = vld [vmem:[%s3 + $0x20] sm:$0xff]
        %v222 = vld [vmem:[%s3 + $0x28] sm:$0xff]
        %v223 = vld [vmem:[%s3 + $0x30] sm:$0xff]
        %v224 = vld [vmem:[%s3 + $0x38] sm:$0xff]
        %s225 = smul.u32 %s18, 7
        %v226 = vld [vmem:[%s172] sm:$0xff]
        %v227 = vld [vmem:[%s172 + $0x8] sm:$0xff]
        %v228 = vld [vmem:[%s172 + $0x10] sm:$0xff]
        %v229 = vld [vmem:[%s172 + $0x18] sm:$0xff]
        %v230 = vld [vmem:[%s172 + $0x20] sm:$0xff]
        %v231 = vld [vmem:[%s172 + $0x28] sm:$0xff]
        %v232 = vld [vmem:[%s172 + $0x30] sm:$0xff]
        %v233 = vld [vmem:[%s172 + $0x38] sm:$0xff]
        %v234 = vld [vmem:[%s172 + $0x40] sm:$0xff]
        %v235 = vld [vmem:[%s172 + $0x48] sm:$0xff]
        %v236 = vld [vmem:[%s172 + $0x50] sm:$0xff]
        %v237 = vld [vmem:[%s172 + $0x58] sm:$0xff]
        %v238 = vld [vmem:[%s172 + $0x60] sm:$0xff]
        %v239 = vld [vmem:[%s172 + $0x68] sm:$0xff]
        %v240 = vld [vmem:[%s172 + $0x70] sm:$0xff]
        %v241 = vld [vmem:[%s172 + $0x78] sm:$0xff]
        %v242 = vld [vmem:[%s172 + $0x80] sm:$0xff]
        %v243 = vld [vmem:[%s172 + $0x88] sm:$0xff]
        %v244 = vld [vmem:[%s172 + $0x90] sm:$0xff]
        %v245 = vld [vmem:[%s172 + $0x98] sm:$0xff]
        %v246 = vld [vmem:[%s172 + $0xa0] sm:$0xff]
        %v247 = vld [vmem:[%s172 + $0xa8] sm:$0xff]
        %v248 = vld [vmem:[%s172 + $0xb0] sm:$0xff]
        %v249 = vld [vmem:[%s172 + $0xb8] sm:$0xff]
        %v250 = vld [vmem:[%s172 + $0xc0] sm:$0xff]
        %v251 = vld [vmem:[%s172 + $0xc8] sm:$0xff]
        %v252 = vld [vmem:[%s172 + $0xd0] sm:$0xff]
        %v253 = vld [vmem:[%s172 + $0xd8] sm:$0xff]
        %v254 = vld [vmem:[%s172 + $0xe0] sm:$0xff]
        %v255 = vld [vmem:[%s172 + $0xe8] sm:$0xff]
        %v256 = vld [vmem:[%s172 + $0xf0] sm:$0xff]
        %v257 = vld [vmem:[%s172 + $0xf8] sm:$0xff]
        %v258 = vld [vmem:[%s172 + $0x100] sm:$0xff]
        %v259 = vld [vmem:[%s172 + $0x108] sm:$0xff]
        %v260 = vld [vmem:[%s172 + $0x110] sm:$0xff]
        %v261 = vld [vmem:[%s172 + $0x118] sm:$0xff]
        %v262 = vld [vmem:[%s172 + $0x120] sm:$0xff]
        %v263 = vld [vmem:[%s172 + $0x128] sm:$0xff]
        %v264 = vld [vmem:[%s172 + $0x130] sm:$0xff]
        %v265 = vld [vmem:[%s172 + $0x138] sm:$0xff]
        %v266 = vld [vmem:[%s172 + $0x140] sm:$0xff]
        %v267 = vld [vmem:[%s172 + $0x148] sm:$0xff]
        %v268 = vld [vmem:[%s172 + $0x150] sm:$0xff]
        %v269 = vld [vmem:[%s172 + $0x158] sm:$0xff]
        %v270 = vld [vmem:[%s172 + $0x160] sm:$0xff]
        %v271 = vld [vmem:[%s172 + $0x168] sm:$0xff]
        %v272 = vld [vmem:[%s172 + $0x170] sm:$0xff]
        %v273 = vld [vmem:[%s172 + $0x178] sm:$0xff]
        %v274 = vld [vmem:[%s172 + $0x180] sm:$0xff]
        %v275 = vld [vmem:[%s172 + $0x188] sm:$0xff]
        %v276 = vld [vmem:[%s172 + $0x190] sm:$0xff]
        %v277 = vld [vmem:[%s172 + $0x198] sm:$0xff]
        %v278 = vld [vmem:[%s172 + $0x1a0] sm:$0xff]
        %v279 = vld [vmem:[%s172 + $0x1a8] sm:$0xff]
        %v280 = vld [vmem:[%s172 + $0x1b0] sm:$0xff]
        %v281 = vld [vmem:[%s172 + $0x1b8] sm:$0xff]
        %v282 = vld [vmem:[%s172 + $0x1c0] sm:$0xff]
        %v283 = vld [vmem:[%s172 + $0x1c8] sm:$0xff]
        %v284 = vld [vmem:[%s172 + $0x1d0] sm:$0xff]
        %v285 = vld [vmem:[%s172 + $0x1d8] sm:$0xff]
        %v286 = vld [vmem:[%s172 + $0x1e0] sm:$0xff]
        %v287 = vld [vmem:[%s172 + $0x1e8] sm:$0xff]
        %v288 = vld [vmem:[%s172 + $0x1f0] sm:$0xff]
        %v289 = vld [vmem:[%s172 + $0x1f8] sm:$0xff]
        %v290 = vld [vmem:[%s172 + $0x200] sm:$0xff]
        %v291 = vld [vmem:[%s172 + $0x208] sm:$0xff]
        %v292 = vld [vmem:[%s172 + $0x210] sm:$0xff]
        %v293 = vld [vmem:[%s172 + $0x218] sm:$0xff]
        %v294 = vld [vmem:[%s172 + $0x220] sm:$0xff]
        %v295 = vld [vmem:[%s172 + $0x228] sm:$0xff]
        %v296 = vld [vmem:[%s172 + $0x230] sm:$0xff]
        %v297 = vld [vmem:[%s172 + $0x238] sm:$0xff]
        %v298 = vld [vmem:[%s172 + $0x240] sm:$0xff]
        %v299 = vld [vmem:[%s172 + $0x248] sm:$0xff]
        %v300 = vld [vmem:[%s172 + $0x250] sm:$0xff]
        %v301 = vld [vmem:[%s172 + $0x258] sm:$0xff]
        %v302 = vld [vmem:[%s172 + $0x260] sm:$0xff]
        %v303 = vld [vmem:[%s172 + $0x268] sm:$0xff]
        %v304 = vld [vmem:[%s172 + $0x270] sm:$0xff]
        %v305 = vld [vmem:[%s172 + $0x278] sm:$0xff]
        %v306 = vld [vmem:[%s172 + $0x280] sm:$0xff]
        %v307 = vld [vmem:[%s172 + $0x288] sm:$0xff]
        %v308 = vld [vmem:[%s172 + $0x290] sm:$0xff]
        %v309 = vld [vmem:[%s172 + $0x298] sm:$0xff]
        %v310 = vld [vmem:[%s172 + $0x2a0] sm:$0xff]
        %v311 = vld [vmem:[%s172 + $0x2a8] sm:$0xff]
        %v312 = vld [vmem:[%s172 + $0x2b0] sm:$0xff]
        %v313 = vld [vmem:[%s172 + $0x2b8] sm:$0xff]
        %v314 = vld [vmem:[%s172 + $0x2c0] sm:$0xff]
        %v315 = vld [vmem:[%s172 + $0x2c8] sm:$0xff]
        %v316 = vld [vmem:[%s172 + $0x2d0] sm:$0xff]
        %v317 = vld [vmem:[%s172 + $0x2d8] sm:$0xff]
        %v318 = vld [vmem:[%s172 + $0x2e0] sm:$0xff]
        %v319 = vld [vmem:[%s172 + $0x2e8] sm:$0xff]
        %v320 = vld [vmem:[%s172 + $0x2f0] sm:$0xff]
        %v321 = vld [vmem:[%s172 + $0x2f8] sm:$0xff]
        %v322 = vld [vmem:[%s172 + $0x300] sm:$0xff]
        %v323 = vld [vmem:[%s172 + $0x308] sm:$0xff]
        %v324 = vld [vmem:[%s172 + $0x310] sm:$0xff]
        %v325 = vld [vmem:[%s172 + $0x318] sm:$0xff]
        %v326 = vld [vmem:[%s172 + $0x320] sm:$0xff]
        %v327 = vld [vmem:[%s172 + $0x328] sm:$0xff]
        %v328 = vld [vmem:[%s172 + $0x330] sm:$0xff]
        %v329 = vld [vmem:[%s172 + $0x338] sm:$0xff]
        %v330 = vld [vmem:[%s172 + $0x340] sm:$0xff]
        %v331 = vld [vmem:[%s172 + $0x348] sm:$0xff]
        %v332 = vld [vmem:[%s172 + $0x350] sm:$0xff]
        %v333 = vld [vmem:[%s172 + $0x358] sm:$0xff]
        %v334 = vld [vmem:[%s172 + $0x360] sm:$0xff]
        %v335 = vld [vmem:[%s172 + $0x368] sm:$0xff]
        %v336 = vld [vmem:[%s172 + $0x370] sm:$0xff]
        %v337 = vld [vmem:[%s172 + $0x378] sm:$0xff]
        %v338 = vld [vmem:[%s172 + $0x380] sm:$0xff]
        %v339 = vld [vmem:[%s172 + $0x388] sm:$0xff]
        %v340 = vld [vmem:[%s172 + $0x390] sm:$0xff]
        %v341 = vld [vmem:[%s172 + $0x398] sm:$0xff]
        %v342 = vld [vmem:[%s172 + $0x3a0] sm:$0xff]
        %v343 = vld [vmem:[%s172 + $0x3a8] sm:$0xff]
        %v344 = vld [vmem:[%s172 + $0x3b0] sm:$0xff]
        %v345 = vld [vmem:[%s172 + $0x3b8] sm:$0xff]
        %v346 = vld [vmem:[%s172 + $0x3c0] sm:$0xff]
        %v347 = vld [vmem:[%s172 + $0x3c8] sm:$0xff]
        %v348 = vld [vmem:[%s172 + $0x3d0] sm:$0xff]
        %v349 = vld [vmem:[%s172 + $0x3d8] sm:$0xff]
        %v350 = vld [vmem:[%s172 + $0x3e0] sm:$0xff]
        %v351 = vld [vmem:[%s172 + $0x3e8] sm:$0xff]
        %v352 = vld [vmem:[%s172 + $0x3f0] sm:$0xff]
        %v353 = vld [vmem:[%s172 + $0x3f8] sm:$0xff]
        %s354 = smul.u32 %s225, 4
        %s355 = scalar_lea.vmem [#allocation4], %s354
        %v356 = vld [vmem:[%s355] sm:$0xf]
        %v357 = vpack.c.bf16 %v221, %v217
        %v358 = vpack.c.bf16 %v222, %v218
        %v359 = vpack.c.bf16 %v223, %v219
        %v360 = vpack.c.bf16 %v224, %v220
        %v362 = vperm.slane %v356, 0
        %v363 = vperm.slane %v356, 1
        %v364 = vperm.slane %v356, 2
        %v365 = vperm.slane %v356, 3
        %v498 = vunpack.c.l.b16 %v226
        %v499 = vunpack.c.h.b16 %v226
        %v500 = vunpack.c.l.b16 %v227
        %v501 = vunpack.c.h.b16 %v227
        %v502 = vunpack.c.l.b16 %v228
        %v503 = vunpack.c.h.b16 %v228
        %v504 = vunpack.c.l.b16 %v229
        %v505 = vunpack.c.h.b16 %v229
        %v506 = vunpack.c.l.b16 %v230
        %v507 = vunpack.c.h.b16 %v230
        %v508 = vunpack.c.l.b16 %v231
        %v509 = vunpack.c.h.b16 %v231
        %v510 = vunpack.c.l.b16 %v232
        %v511 = vunpack.c.h.b16 %v232
        %v512 = vunpack.c.l.b16 %v233
        %v513 = vunpack.c.h.b16 %v233
        %v514 = vunpack.c.l.b16 %v234
        %v515 = vunpack.c.h.b16 %v234
        %v516 = vunpack.c.l.b16 %v235
        %v517 = vunpack.c.h.b16 %v235
        %v518 = vunpack.c.l.b16 %v236
        %v519 = vunpack.c.h.b16 %v236
        %v520 = vunpack.c.l.b16 %v237
        %v521 = vunpack.c.h.b16 %v237
        %v522 = vunpack.c.l.b16 %v238
        %v523 = vunpack.c.h.b16 %v238
        %v524 = vunpack.c.l.b16 %v239
        %v525 = vunpack.c.h.b16 %v239
        %v526 = vunpack.c.l.b16 %v240
        %v527 = vunpack.c.h.b16 %v240
        %v528 = vunpack.c.l.b16 %v241
        %v529 = vunpack.c.h.b16 %v241
        %v530 = vunpack.c.l.b16 %v242
        %v531 = vunpack.c.h.b16 %v242
        %v532 = vunpack.c.l.b16 %v243
        %v533 = vunpack.c.h.b16 %v243
        %v534 = vunpack.c.l.b16 %v244
        %v535 = vunpack.c.h.b16 %v244
        %v536 = vunpack.c.l.b16 %v245
        %v537 = vunpack.c.h.b16 %v245
        %v538 = vunpack.c.l.b16 %v246
        %v539 = vunpack.c.h.b16 %v246
        %v540 = vunpack.c.l.b16 %v247
        %v541 = vunpack.c.h.b16 %v247
        %v542 = vunpack.c.l.b16 %v248
        %v543 = vunpack.c.h.b16 %v248
        %v544 = vunpack.c.l.b16 %v249
        %v545 = vunpack.c.h.b16 %v249
        %v546 = vunpack.c.l.b16 %v250
        %v547 = vunpack.c.h.b16 %v250
        %v548 = vunpack.c.l.b16 %v251
        %v549 = vunpack.c.h.b16 %v251
        %v550 = vunpack.c.l.b16 %v252
        %v551 = vunpack.c.h.b16 %v252
        %v552 = vunpack.c.l.b16 %v253
        %v553 = vunpack.c.h.b16 %v253
        %v554 = vunpack.c.l.b16 %v254
        %v555 = vunpack.c.h.b16 %v254
        %v556 = vunpack.c.l.b16 %v255
        %v557 = vunpack.c.h.b16 %v255
        %v558 = vunpack.c.l.b16 %v256
        %v559 = vunpack.c.h.b16 %v256
        %v560 = vunpack.c.l.b16 %v257
        %v561 = vunpack.c.h.b16 %v257
        %v562 = vunpack.c.l.b16 %v258
        %v563 = vunpack.c.h.b16 %v258
        %v564 = vunpack.c.l.b16 %v259
        %v565 = vunpack.c.h.b16 %v259
        %v566 = vunpack.c.l.b16 %v260
        %v567 = vunpack.c.h.b16 %v260
        %v568 = vunpack.c.l.b16 %v261
        %v569 = vunpack.c.h.b16 %v261
        %v570 = vunpack.c.l.b16 %v262
        %v571 = vunpack.c.h.b16 %v262
        %v572 = vunpack.c.l.b16 %v263
        %v573 = vunpack.c.h.b16 %v263
        %v574 = vunpack.c.l.b16 %v264
        %v575 = vunpack.c.h.b16 %v264
        %v576 = vunpack.c.l.b16 %v265
        %v577 = vunpack.c.h.b16 %v265
        %v578 = vunpack.c.l.b16 %v266
        %v579 = vunpack.c.h.b16 %v266
        %v580 = vunpack.c.l.b16 %v267
        %v581 = vunpack.c.h.b16 %v267
        %v582 = vunpack.c.l.b16 %v268
        %v583 = vunpack.c.h.b16 %v268
        %v584 = vunpack.c.l.b16 %v269
        %v585 = vunpack.c.h.b16 %v269
        %v586 = vunpack.c.l.b16 %v270
        %v587 = vunpack.c.h.b16 %v270
        %v588 = vunpack.c.l.b16 %v271
        %v589 = vunpack.c.h.b16 %v271
        %v590 = vunpack.c.l.b16 %v272
        %v591 = vunpack.c.h.b16 %v272
        %v592 = vunpack.c.l.b16 %v273
        %v593 = vunpack.c.h.b16 %v273
        %v594 = vunpack.c.l.b16 %v274
        %v595 = vunpack.c.h.b16 %v274
        %v596 = vunpack.c.l.b16 %v275
        %v597 = vunpack.c.h.b16 %v275
        %v598 = vunpack.c.l.b16 %v276
        %v599 = vunpack.c.h.b16 %v276
        %v600 = vunpack.c.l.b16 %v277
        %v601 = vunpack.c.h.b16 %v277
        %v602 = vunpack.c.l.b16 %v278
        %v603 = vunpack.c.h.b16 %v278
        %v604 = vunpack.c.l.b16 %v279
        %v605 = vunpack.c.h.b16 %v279
        %v606 = vunpack.c.l.b16 %v280
        %v607 = vunpack.c.h.b16 %v280
        %v608 = vunpack.c.l.b16 %v281
        %v609 = vunpack.c.h.b16 %v281
        %v610 = vunpack.c.l.b16 %v282
        %v611 = vunpack.c.h.b16 %v282
        %v612 = vunpack.c.l.b16 %v283
        %v613 = vunpack.c.h.b16 %v283
        %v614 = vunpack.c.l.b16 %v284
        %v615 = vunpack.c.h.b16 %v284
        %v616 = vunpack.c.l.b16 %v285
        %v617 = vunpack.c.h.b16 %v285
        %v618 = vunpack.c.l.b16 %v286
        %v619 = vunpack.c.h.b16 %v286
        %v620 = vunpack.c.l.b16 %v287
        %v621 = vunpack.c.h.b16 %v287
        %v622 = vunpack.c.l.b16 %v288
        %v623 = vunpack.c.h.b16 %v288
        %v624 = vunpack.c.l.b16 %v289
        %v625 = vunpack.c.h.b16 %v289
        %v626 = vunpack.c.l.b16 %v290
        %v627 = vunpack.c.h.b16 %v290
        %v628 = vunpack.c.l.b16 %v291
        %v629 = vunpack.c.h.b16 %v291
        %v630 = vunpack.c.l.b16 %v292
        %v631 = vunpack.c.h.b16 %v292
        %v632 = vunpack.c.l.b16 %v293
        %v633 = vunpack.c.h.b16 %v293
        %v634 = vunpack.c.l.b16 %v294
        %v635 = vunpack.c.h.b16 %v294
        %v636 = vunpack.c.l.b16 %v295
        %v637 = vunpack.c.h.b16 %v295
        %v638 = vunpack.c.l.b16 %v296
        %v639 = vunpack.c.h.b16 %v296
        %v640 = vunpack.c.l.b16 %v297
        %v641 = vunpack.c.h.b16 %v297
        %v642 = vunpack.c.l.b16 %v298
        %v643 = vunpack.c.h.b16 %v298
        %v644 = vunpack.c.l.b16 %v299
        %v645 = vunpack.c.h.b16 %v299
        %v646 = vunpack.c.l.b16 %v300
        %v647 = vunpack.c.h.b16 %v300
        %v648 = vunpack.c.l.b16 %v301
        %v649 = vunpack.c.h.b16 %v301
        %v650 = vunpack.c.l.b16 %v302
        %v651 = vunpack.c.h.b16 %v302
        %v652 = vunpack.c.l.b16 %v303
        %v653 = vunpack.c.h.b16 %v303
        %v654 = vunpack.c.l.b16 %v304
        %v655 = vunpack.c.h.b16 %v304
        %v656 = vunpack.c.l.b16 %v305
        %v657 = vunpack.c.h.b16 %v305
        %v658 = vunpack.c.l.b16 %v306
        %v659 = vunpack.c.h.b16 %v306
        %v660 = vunpack.c.l.b16 %v307
        %v661 = vunpack.c.h.b16 %v307
        %v662 = vunpack.c.l.b16 %v308
        %v663 = vunpack.c.h.b16 %v308
        %v664 = vunpack.c.l.b16 %v309
        %v665 = vunpack.c.h.b16 %v309
        %v666 = vunpack.c.l.b16 %v310
        %v667 = vunpack.c.h.b16 %v310
        %v668 = vunpack.c.l.b16 %v311
        %v669 = vunpack.c.h.b16 %v311
        %v670 = vunpack.c.l.b16 %v312
        %v671 = vunpack.c.h.b16 %v312
        %v672 = vunpack.c.l.b16 %v313
        %v673 = vunpack.c.h.b16 %v313
        %v674 = vunpack.c.l.b16 %v314
        %v675 = vunpack.c.h.b16 %v314
        %v676 = vunpack.c.l.b16 %v315
        %v677 = vunpack.c.h.b16 %v315
        %v678 = vunpack.c.l.b16 %v316
        %v679 = vunpack.c.h.b16 %v316
        %v680 = vunpack.c.l.b16 %v317
        %v681 = vunpack.c.h.b16 %v317
        %v682 = vunpack.c.l.b16 %v318
        %v683 = vunpack.c.h.b16 %v318
        %v684 = vunpack.c.l.b16 %v319
        %v685 = vunpack.c.h.b16 %v319
        %v686 = vunpack.c.l.b16 %v320
        %v687 = vunpack.c.h.b16 %v320
        %v688 = vunpack.c.l.b16 %v321
        %v689 = vunpack.c.h.b16 %v321
        %v690 = vunpack.c.l.b16 %v322
        %v691 = vunpack.c.h.b16 %v322
        %v692 = vunpack.c.l.b16 %v323
        %v693 = vunpack.c.h.b16 %v323
        %v694 = vunpack.c.l.b16 %v324
        %v695 = vunpack.c.h.b16 %v324
        %v696 = vunpack.c.l.b16 %v325
        %v697 = vunpack.c.h.b16 %v325
        %v698 = vunpack.c.l.b16 %v326
        %v699 = vunpack.c.h.b16 %v326
        %v700 = vunpack.c.l.b16 %v327
        %v701 = vunpack.c.h.b16 %v327
        %v702 = vunpack.c.l.b16 %v328
        %v703 = vunpack.c.h.b16 %v328
        %v704 = vunpack.c.l.b16 %v329
        %v705 = vunpack.c.h.b16 %v329
        %v706 = vunpack.c.l.b16 %v330
        %v707 = vunpack.c.h.b16 %v330
        %v708 = vunpack.c.l.b16 %v331
        %v709 = vunpack.c.h.b16 %v331
        %v710 = vunpack.c.l.b16 %v332
        %v711 = vunpack.c.h.b16 %v332
        %v712 = vunpack.c.l.b16 %v333
        %v713 = vunpack.c.h.b16 %v333
        %v714 = vunpack.c.l.b16 %v334
        %v715 = vunpack.c.h.b16 %v334
        %v716 = vunpack.c.l.b16 %v335
        %v717 = vunpack.c.h.b16 %v335
        %v718 = vunpack.c.l.b16 %v336
        %v719 = vunpack.c.h.b16 %v336
        %v720 = vunpack.c.l.b16 %v337
        %v721 = vunpack.c.h.b16 %v337
        %v722 = vunpack.c.l.b16 %v338
        %v723 = vunpack.c.h.b16 %v338
        %v724 = vunpack.c.l.b16 %v339
        %v725 = vunpack.c.h.b16 %v339
        %v726 = vunpack.c.l.b16 %v340
        %v727 = vunpack.c.h.b16 %v340
        %v728 = vunpack.c.l.b16 %v341
        %v729 = vunpack.c.h.b16 %v341
        %v730 = vunpack.c.l.b16 %v342
        %v731 = vunpack.c.h.b16 %v342
        %v732 = vunpack.c.l.b16 %v343
        %v733 = vunpack.c.h.b16 %v343
        %v734 = vunpack.c.l.b16 %v344
        %v735 = vunpack.c.h.b16 %v344
        %v736 = vunpack.c.l.b16 %v345
        %v737 = vunpack.c.h.b16 %v345
        %v738 = vunpack.c.l.b16 %v346
        %v739 = vunpack.c.h.b16 %v346
        %v740 = vunpack.c.l.b16 %v347
        %v741 = vunpack.c.h.b16 %v347
        %v742 = vunpack.c.l.b16 %v348
        %v743 = vunpack.c.h.b16 %v348
        %v744 = vunpack.c.l.b16 %v349
        %v745 = vunpack.c.h.b16 %v349
        %v746 = vunpack.c.l.b16 %v350
        %v747 = vunpack.c.h.b16 %v350
        %v748 = vunpack.c.l.b16 %v351
        %v749 = vunpack.c.h.b16 %v351
        %v750 = vunpack.c.l.b16 %v352
        %v751 = vunpack.c.h.b16 %v352
        %v752 = vunpack.c.l.b16 %v353
        %v753 = vunpack.c.h.b16 %v353
        %v754 = vpack.c.b16 %v502, %v498
        %v755 = vpack.c.b16 %v503, %v499
        %v756 = vpack.c.b16 %v504, %v500
        %v757 = vpack.c.b16 %v505, %v501
        %v758 = vpack.c.b16 %v510, %v506
        %v759 = vpack.c.b16 %v511, %v507
        %v760 = vpack.c.b16 %v512, %v508
        %v761 = vpack.c.b16 %v513, %v509
        %v762 = vpack.c.b16 %v518, %v514
        %v763 = vpack.c.b16 %v519, %v515
        %v764 = vpack.c.b16 %v520, %v516
        %v765 = vpack.c.b16 %v521, %v517
        %v766 = vpack.c.b16 %v526, %v522
        %v767 = vpack.c.b16 %v527, %v523
        %v768 = vpack.c.b16 %v528, %v524
        %v769 = vpack.c.b16 %v529, %v525
        %v770 = vpack.c.b16 %v534, %v530
        %v771 = vpack.c.b16 %v535, %v531
        %v772 = vpack.c.b16 %v536, %v532
        %v773 = vpack.c.b16 %v537, %v533
        %v774 = vpack.c.b16 %v542, %v538
        %v775 = vpack.c.b16 %v543, %v539
        %v776 = vpack.c.b16 %v544, %v540
        %v777 = vpack.c.b16 %v545, %v541
        %v778 = vpack.c.b16 %v550, %v546
        %v779 = vpack.c.b16 %v551, %v547
        %v780 = vpack.c.b16 %v552, %v548
        %v781 = vpack.c.b16 %v553, %v549
        %v782 = vpack.c.b16 %v558, %v554
        %v783 = vpack.c.b16 %v559, %v555
        %v784 = vpack.c.b16 %v560, %v556
        %v785 = vpack.c.b16 %v561, %v557
        %v786 = vpack.c.b16 %v566, %v562
        %v787 = vpack.c.b16 %v567, %v563
        %v788 = vpack.c.b16 %v568, %v564
        %v789 = vpack.c.b16 %v569, %v565
        %v790 = vpack.c.b16 %v574, %v570
        %v791 = vpack.c.b16 %v575, %v571
        %v792 = vpack.c.b16 %v576, %v572
        %v793 = vpack.c.b16 %v577, %v573
        %v794 = vpack.c.b16 %v582, %v578
        %v795 = vpack.c.b16 %v583, %v579
        %v796 = vpack.c.b16 %v584, %v580
        %v797 = vpack.c.b16 %v585, %v581
        %v798 = vpack.c.b16 %v590, %v586
        %v799 = vpack.c.b16 %v591, %v587
        %v800 = vpack.c.b16 %v592, %v588
        %v801 = vpack.c.b16 %v593, %v589
        %v802 = vpack.c.b16 %v598, %v594
        %v803 = vpack.c.b16 %v599, %v595
        %v804 = vpack.c.b16 %v600, %v596
        %v805 = vpack.c.b16 %v601, %v597
        %v806 = vpack.c.b16 %v606, %v602
        %v807 = vpack.c.b16 %v607, %v603
        %v808 = vpack.c.b16 %v608, %v604
        %v809 = vpack.c.b16 %v609, %v605
        %v810 = vpack.c.b16 %v614, %v610
        %v811 = vpack.c.b16 %v615, %v611
        %v812 = vpack.c.b16 %v616, %v612
        %v813 = vpack.c.b16 %v617, %v613
        %v814 = vpack.c.b16 %v622, %v618
        %v815 = vpack.c.b16 %v623, %v619
        %v816 = vpack.c.b16 %v624, %v620
        %v817 = vpack.c.b16 %v625, %v621
        %v818 = vpack.c.b16 %v630, %v626
        %v819 = vpack.c.b16 %v631, %v627
        %v820 = vpack.c.b16 %v632, %v628
        %v821 = vpack.c.b16 %v633, %v629
        %v822 = vpack.c.b16 %v638, %v634
        %v823 = vpack.c.b16 %v639, %v635
        %v824 = vpack.c.b16 %v640, %v636
        %v825 = vpack.c.b16 %v641, %v637
        %v826 = vpack.c.b16 %v646, %v642
        %v827 = vpack.c.b16 %v647, %v643
        %v828 = vpack.c.b16 %v648, %v644
        %v829 = vpack.c.b16 %v649, %v645
        %v830 = vpack.c.b16 %v654, %v650
        %v831 = vpack.c.b16 %v655, %v651
        %v832 = vpack.c.b16 %v656, %v652
        %v833 = vpack.c.b16 %v657, %v653
        %v834 = vpack.c.b16 %v662, %v658
        %v835 = vpack.c.b16 %v663, %v659
        %v836 = vpack.c.b16 %v664, %v660
        %v837 = vpack.c.b16 %v665, %v661
        %v838 = vpack.c.b16 %v670, %v666
        %v839 = vpack.c.b16 %v671, %v667
        %v840 = vpack.c.b16 %v672, %v668
        %v841 = vpack.c.b16 %v673, %v669
        %v842 = vpack.c.b16 %v678, %v674
        %v843 = vpack.c.b16 %v679, %v675
        %v844 = vpack.c.b16 %v680, %v676
        %v845 = vpack.c.b16 %v681, %v677
        %v846 = vpack.c.b16 %v686, %v682
        %v847 = vpack.c.b16 %v687, %v683
        %v848 = vpack.c.b16 %v688, %v684
        %v849 = vpack.c.b16 %v689, %v685
        %v850 = vpack.c.b16 %v694, %v690
        %v851 = vpack.c.b16 %v695, %v691
        %v852 = vpack.c.b16 %v696, %v692
        %v853 = vpack.c.b16 %v697, %v693
        %v854 = vpack.c.b16 %v702, %v698
        %v855 = vpack.c.b16 %v703, %v699
        %v856 = vpack.c.b16 %v704, %v700
        %v857 = vpack.c.b16 %v705, %v701
        %v858 = vpack.c.b16 %v710, %v706
        %v859 = vpack.c.b16 %v711, %v707
        %v860 = vpack.c.b16 %v712, %v708
        %v861 = vpack.c.b16 %v713, %v709
        %v862 = vpack.c.b16 %v718, %v714
        %v863 = vpack.c.b16 %v719, %v715
        %v864 = vpack.c.b16 %v720, %v716
        %v865 = vpack.c.b16 %v721, %v717
        %v866 = vpack.c.b16 %v726, %v722
        %v867 = vpack.c.b16 %v727, %v723
        %v868 = vpack.c.b16 %v728, %v724
        %v869 = vpack.c.b16 %v729, %v725
        %v870 = vpack.c.b16 %v734, %v730
        %v871 = vpack.c.b16 %v735, %v731
        %v872 = vpack.c.b16 %v736, %v732
        %v873 = vpack.c.b16 %v737, %v733
        %v874 = vpack.c.b16 %v742, %v738
        %v875 = vpack.c.b16 %v743, %v739
        %v876 = vpack.c.b16 %v744, %v740
        %v877 = vpack.c.b16 %v745, %v741
        %v878 = vpack.c.b16 %v750, %v746
        %v879 = vpack.c.b16 %v751, %v747
        %v880 = vpack.c.b16 %v752, %v748
        %v881 = vpack.c.b16 %v753, %v749
        %1010 = vmatpush.bf16.msra.mxu0 %v782
        %1011 = vmatpush.bf16.msra.mxu0 %v778
        %1012 = vmatpush.bf16.msra.mxu0 %v774
        %1013 = vmatpush.bf16.msra.mxu0 %v770
        %1014 = vmatpush.bf16.msra.mxu0 %v766
        %1015 = vmatpush.bf16.msra.mxu0 %v762
        %1016 = vmatpush.bf16.msra.mxu0 %v758
        %1017 = vmatpush.bf16.msra.mxu0 %v754
        %1018 = vmatmul.bf16.gmra.mxu0 %v357
        %v1019 = vpop.f32.mrf.mxu0
        %v1020 = vadd.f32 %v362, %v1019
        %v1021 = vpop.f32.mrf.mxu0
        %v1022 = vadd.f32 %v362, %v1021
        %1023 = vdwg.mxu0
        %1024 = vmatpush.bf16.msra.mxu0 %v814
        %1025 = vmatpush.bf16.msra.mxu0 %v810
        %1026 = vmatpush.bf16.msra.mxu0 %v806
        %1027 = vmatpush.bf16.msra.mxu0 %v802
        %1028 = vmatpush.bf16.msra.mxu0 %v798
        %1029 = vmatpush.bf16.msra.mxu0 %v794
        %1030 = vmatpush.bf16.msra.mxu0 %v790
        %1031 = vmatpush.bf16.msra.mxu0 %v786
        %1032 = vmatmul.bf16.gmra.mxu0 %v358
        %v1033 = vpop.f32.mrf.mxu0
        %v1034 = vadd.f32 %v1020, %v1033
        %v1035 = vpop.f32.mrf.mxu0
        %v1036 = vadd.f32 %v1022, %v1035
        %1037 = vdwg.mxu0
        %1038 = vmatpush.bf16.msra.mxu0 %v846
        %1039 = vmatpush.bf16.msra.mxu0 %v842
        %1040 = vmatpush.bf16.msra.mxu0 %v838
        %1041 = vmatpush.bf16.msra.mxu0 %v834
        %1042 = vmatpush.bf16.msra.mxu0 %v830
        %1043 = vmatpush.bf16.msra.mxu0 %v826
        %1044 = vmatpush.bf16.msra.mxu0 %v822
        %1045 = vmatpush.bf16.msra.mxu0 %v818
        %1046 = vmatmul.bf16.gmra.mxu0 %v359
        %v1047 = vpop.f32.mrf.mxu0
        %v1048 = vadd.f32 %v1034, %v1047
        %v1049 = vpop.f32.mrf.mxu0
        %v1050 = vadd.f32 %v1036, %v1049
        %1051 = vdwg.mxu0
        %1052 = vmatpush.bf16.msra.mxu0 %v878
        %1053 = vmatpush.bf16.msra.mxu0 %v874
        %1054 = vmatpush.bf16.msra.mxu0 %v870
        %1055 = vmatpush.bf16.msra.mxu0 %v866
        %1056 = vmatpush.bf16.msra.mxu0 %v862
        %1057 = vmatpush.bf16.msra.mxu0 %v858
        %1058 = vmatpush.bf16.msra.mxu0 %v854
        %1059 = vmatpush.bf16.msra.mxu0 %v850
        %1060 = vmatmul.bf16.gmra.mxu0 %v360
        %v1061 = vpop.f32.mrf.mxu0
        %v1062 = vadd.f32 %v1048, %v1061
        %v1063 = vpop.f32.mrf.mxu0
        %v1064 = vadd.f32 %v1050, %v1063
        %1065 = vdwg.mxu0
        %1066 = vmatpush.bf16.msra.mxu0 %v783
        %1067 = vmatpush.bf16.msra.mxu0 %v779
        %1068 = vmatpush.bf16.msra.mxu0 %v775
        %1069 = vmatpush.bf16.msra.mxu0 %v771
        %1070 = vmatpush.bf16.msra.mxu0 %v767
        %1071 = vmatpush.bf16.msra.mxu0 %v763
        %1072 = vmatpush.bf16.msra.mxu0 %v759
        %1073 = vmatpush.bf16.msra.mxu0 %v755
        %1074 = vmatmul.bf16.gmra.mxu0 %v357
        %v1075 = vpop.f32.mrf.mxu0
        %v1076 = vadd.f32 %v363, %v1075
        %v1077 = vpop.f32.mrf.mxu0
        %v1078 = vadd.f32 %v363, %v1077
        %1079 = vdwg.mxu0
        %1080 = vmatpush.bf16.msra.mxu0 %v815
        %1081 = vmatpush.bf16.msra.mxu0 %v811
        %1082 = vmatpush.bf16.msra.mxu0 %v807
        %1083 = vmatpush.bf16.msra.mxu0 %v803
        %1084 = vmatpush.bf16.msra.mxu0 %v799
        %1085 = vmatpush.bf16.msra.mxu0 %v795
        %1086 = vmatpush.bf16.msra.mxu0 %v791
        %1087 = vmatpush.bf16.msra.mxu0 %v787
        %1088 = vmatmul.bf16.gmra.mxu0 %v358
        %v1089 = vpop.f32.mrf.mxu0
        %v1090 = vadd.f32 %v1076, %v1089
        %v1091 = vpop.f32.mrf.mxu0
        %v1092 = vadd.f32 %v1078, %v1091
        %1093 = vdwg.mxu0
        %1094 = vmatpush.bf16.msra.mxu0 %v847
        %1095 = vmatpush.bf16.msra.mxu0 %v843
        %1096 = vmatpush.bf16.msra.mxu0 %v839
        %1097 = vmatpush.bf16.msra.mxu0 %v835
        %1098 = vmatpush.bf16.msra.mxu0 %v831
        %1099 = vmatpush.bf16.msra.mxu0 %v827
        %1100 = vmatpush.bf16.msra.mxu0 %v823
        %1101 = vmatpush.bf16.msra.mxu0 %v819
        %1102 = vmatmul.bf16.gmra.mxu0 %v359
        %v1103 = vpop.f32.mrf.mxu0
        %v1104 = vadd.f32 %v1090, %v1103
        %v1105 = vpop.f32.mrf.mxu0
        %v1106 = vadd.f32 %v1092, %v1105
        %1107 = vdwg.mxu0
        %1108 = vmatpush.bf16.msra.mxu0 %v879
        %1109 = vmatpush.bf16.msra.mxu0 %v875
        %1110 = vmatpush.bf16.msra.mxu0 %v871
        %1111 = vmatpush.bf16.msra.mxu0 %v867
        %1112 = vmatpush.bf16.msra.mxu0 %v863
        %1113 = vmatpush.bf16.msra.mxu0 %v859
        %1114 = vmatpush.bf16.msra.mxu0 %v855
        %1115 = vmatpush.bf16.msra.mxu0 %v851
        %1116 = vmatmul.bf16.gmra.mxu0 %v360
        %v1117 = vpop.f32.mrf.mxu0
        %v1118 = vadd.f32 %v1104, %v1117
        %v1119 = vpop.f32.mrf.mxu0
        %v1120 = vadd.f32 %v1106, %v1119
        %1121 = vdwg.mxu0
        %1122 = vmatpush.bf16.msra.mxu0 %v784
        %1123 = vmatpush.bf16.msra.mxu0 %v780
        %1124 = vmatpush.bf16.msra.mxu0 %v776
        %1125 = vmatpush.bf16.msra.mxu0 %v772
        %1126 = vmatpush.bf16.msra.mxu0 %v768
        %1127 = vmatpush.bf16.msra.mxu0 %v764
        %1128 = vmatpush.bf16.msra.mxu0 %v760
        %1129 = vmatpush.bf16.msra.mxu0 %v756
        %1130 = vmatmul.bf16.gmra.mxu0 %v357
        %v1131 = vpop.f32.mrf.mxu0
        %v1132 = vadd.f32 %v364, %v1131
        %v1133 = vpop.f32.mrf.mxu0
        %v1134 = vadd.f32 %v364, %v1133
        %1135 = vdwg.mxu0
        %1136 = vmatpush.bf16.msra.mxu0 %v816
        %1137 = vmatpush.bf16.msra.mxu0 %v812
        %1138 = vmatpush.bf16.msra.mxu0 %v808
        %1139 = vmatpush.bf16.msra.mxu0 %v804
        %1140 = vmatpush.bf16.msra.mxu0 %v800
        %1141 = vmatpush.bf16.msra.mxu0 %v796
        %1142 = vmatpush.bf16.msra.mxu0 %v792
        %1143 = vmatpush.bf16.msra.mxu0 %v788
        %1144 = vmatmul.bf16.gmra.mxu0 %v358
        %v1145 = vpop.f32.mrf.mxu0
        %v1146 = vadd.f32 %v1132, %v1145
        %v1147 = vpop.f32.mrf.mxu0
        %v1148 = vadd.f32 %v1134, %v1147
        %1149 = vdwg.mxu0
        %1150 = vmatpush.bf16.msra.mxu0 %v848
        %1151 = vmatpush.bf16.msra.mxu0 %v844
        %1152 = vmatpush.bf16.msra.mxu0 %v840
        %1153 = vmatpush.bf16.msra.mxu0 %v836
        %1154 = vmatpush.bf16.msra.mxu0 %v832
        %1155 = vmatpush.bf16.msra.mxu0 %v828
        %1156 = vmatpush.bf16.msra.mxu0 %v824
        %1157 = vmatpush.bf16.msra.mxu0 %v820
        %1158 = vmatmul.bf16.gmra.mxu0 %v359
        %v1159 = vpop.f32.mrf.mxu0
        %v1160 = vadd.f32 %v1146, %v1159
        %v1161 = vpop.f32.mrf.mxu0
        %v1162 = vadd.f32 %v1148, %v1161
        %1163 = vdwg.mxu0
        %1164 = vmatpush.bf16.msra.mxu0 %v880
        %1165 = vmatpush.bf16.msra.mxu0 %v876
        %1166 = vmatpush.bf16.msra.mxu0 %v872
        %1167 = vmatpush.bf16.msra.mxu0 %v868
        %1168 = vmatpush.bf16.msra.mxu0 %v864
        %1169 = vmatpush.bf16.msra.mxu0 %v860
        %1170 = vmatpush.bf16.msra.mxu0 %v856
        %1171 = vmatpush.bf16.msra.mxu0 %v852
        %1172 = vmatmul.bf16.gmra.mxu0 %v360
        %v1173 = vpop.f32.mrf.mxu0
        %v1174 = vadd.f32 %v1160, %v1173
        %v1175 = vpop.f32.mrf.mxu0
        %v1176 = vadd.f32 %v1162, %v1175
        %1177 = vdwg.mxu0
        %1178 = vmatpush.bf16.msra.mxu0 %v785
        %1179 = vmatpush.bf16.msra.mxu0 %v781
        %1180 = vmatpush.bf16.msra.mxu0 %v777
        %1181 = vmatpush.bf16.msra.mxu0 %v773
        %1182 = vmatpush.bf16.msra.mxu0 %v769
        %1183 = vmatpush.bf16.msra.mxu0 %v765
        %1184 = vmatpush.bf16.msra.mxu0 %v761
        %1185 = vmatpush.bf16.msra.mxu0 %v757
        %1186 = vmatmul.bf16.gmra.mxu0 %v357
        %v1187 = vpop.f32.mrf.mxu0
        %v1188 = vadd.f32 %v365, %v1187
        %v1189 = vpop.f32.mrf.mxu0
        %v1190 = vadd.f32 %v365, %v1189
        %1191 = vdwg.mxu0
        %1192 = vmatpush.bf16.msra.mxu0 %v817
        %1193 = vmatpush.bf16.msra.mxu0 %v813
        %1194 = vmatpush.bf16.msra.mxu0 %v809
        %1195 = vmatpush.bf16.msra.mxu0 %v805
        %1196 = vmatpush.bf16.msra.mxu0 %v801
        %1197 = vmatpush.bf16.msra.mxu0 %v797
        %1198 = vmatpush.bf16.msra.mxu0 %v793
        %1199 = vmatpush.bf16.msra.mxu0 %v789
        %1200 = vmatmul.bf16.gmra.mxu0 %v358
        %v1201 = vpop.f32.mrf.mxu0
        %v1202 = vadd.f32 %v1188, %v1201
        %v1203 = vpop.f32.mrf.mxu0
        %v1204 = vadd.f32 %v1190, %v1203
        %1205 = vdwg.mxu0
        %1206 = vmatpush.bf16.msra.mxu0 %v849
        %1207 = vmatpush.bf16.msra.mxu0 %v845
        %1208 = vmatpush.bf16.msra.mxu0 %v841
        %1209 = vmatpush.bf16.msra.mxu0 %v837
        %1210 = vmatpush.bf16.msra.mxu0 %v833
        %1211 = vmatpush.bf16.msra.mxu0 %v829
        %1212 = vmatpush.bf16.msra.mxu0 %v825
        %1213 = vmatpush.bf16.msra.mxu0 %v821
        %1214 = vmatmul.bf16.gmra.mxu0 %v359
        %v1215 = vpop.f32.mrf.mxu0
        %v1216 = vadd.f32 %v1202, %v1215
        %v1217 = vpop.f32.mrf.mxu0
        %v1218 = vadd.f32 %v1204, %v1217
        %1219 = vdwg.mxu0
        %1220 = vmatpush.bf16.msra.mxu0 %v881
        %1221 = vmatpush.bf16.msra.mxu0 %v877
        %1222 = vmatpush.bf16.msra.mxu0 %v873
        %1223 = vmatpush.bf16.msra.mxu0 %v869
        %1224 = vmatpush.bf16.msra.mxu0 %v865
        %1225 = vmatpush.bf16.msra.mxu0 %v861
        %1226 = vmatpush.bf16.msra.mxu0 %v857
        %1227 = vmatpush.bf16.msra.mxu0 %v853
        %1228 = vmatmul.bf16.gmra.mxu0 %v360
        %v1229 = vpop.f32.mrf.mxu0
        %v1230 = vadd.f32 %v1216, %v1229
        %v1231 = vpop.f32.mrf.mxu0
        %v1232 = vadd.f32 %v1218, %v1231
        %1233 = vdwg.mxu0
        %v1234 = vmax.f32 %v1062, 0.0
        %v1235 = vmax.f32 %v1118, 0.0
        %v1236 = vmax.f32 %v1174, 0.0
        %v1237 = vmax.f32 %v1230, 0.0
        %v1238 = vmax.f32 %v1064, 0.0
        %v1239 = vmax.f32 %v1120, 0.0
        %v1240 = vmax.f32 %v1176, 0.0
        %v1241 = vmax.f32 %v1232, 0.0
        %v1242 = vand.u32 2147483647, %v1062
        %v1243 = vand.u32 2147483647, %v1118
        %v1244 = vand.u32 2147483647, %v1174
        %v1245 = vand.u32 2147483647, %v1230
        %v1246 = vand.u32 2147483647, %v1064
        %v1247 = vand.u32 2147483647, %v1120
        %v1248 = vand.u32 2147483647, %v1176
        %v1249 = vand.u32 2147483647, %v1232
        %v1250 = vsub.f32 0.0, %v1242
        %v1251 = vsub.f32 0.0, %v1243
        %v1252 = vsub.f32 0.0, %v1244
        %v1253 = vsub.f32 0.0, %v1245
        %v1254 = vsub.f32 0.0, %v1246
        %v1255 = vsub.f32 0.0, %v1247
        %v1256 = vsub.f32 0.0, %v1248
        %v1257 = vsub.f32 0.0, %v1249
        %v1258 = vmul.f32 %v1250, 1.442695
        %v1259 = vpow.pop %v1258
        %v1260 = vmul.f32 %v1251, 1.442695
        %v1261 = vpow.pop %v1260
        %v1262 = vmul.f32 %v1252, 1.442695
        %v1263 = vpow.pop %v1262
        %v1264 = vmul.f32 %v1253, 1.442695
        %v1265 = vpow.pop %v1264
        %v1266 = vmul.f32 %v1254, 1.442695
        %v1267 = vpow.pop %v1266
        %v1268 = vmul.f32 %v1255, 1.442695
        %v1269 = vpow.pop %v1268
        %v1270 = vmul.f32 %v1256, 1.442695
        %v1271 = vpow.pop %v1270
        %v1272 = vmul.f32 %v1257, 1.442695
        %v1273 = vpow.pop %v1272
        %v1274 = vadd.f32 %v1259, 1.0
        %v1275 = vlog2.pop %v1274
        %v1276 = vmul.f32 %v1275, 0.6931472
        %v1277 = vmul.f32 -0.5, %v1259
        %v1278 = vadd.f32 %v1277, 1.0
        %v1279 = vmul.f32 %v1278, %v1259
        %v1280 = vand.u32 2147483647, %v1259
        %vm1281 = vcmp.lt.f32.partialorder %v1280, 0.0004427343
        %v1282 = vsel %vm1281, %v1279, %v1276
        %v1283 = vadd.f32 %v1261, 1.0
        %v1284 = vlog2.pop %v1283
        %v1285 = vmul.f32 %v1284, 0.6931472
        %v1286 = vmul.f32 -0.5, %v1261
        %v1287 = vadd.f32 %v1286, 1.0
        %v1288 = vmul.f32 %v1287, %v1261
        %v1289 = vand.u32 2147483647, %v1261
        %vm1290 = vcmp.lt.f32.partialorder %v1289, 0.0004427343
        %v1291 = vsel %vm1290, %v1288, %v1285
        %v1292 = vadd.f32 %v1263, 1.0
        %v1293 = vlog2.pop %v1292
        %v1294 = vmul.f32 %v1293, 0.6931472
        %v1295 = vmul.f32 -0.5, %v1263
        %v1296 = vadd.f32 %v1295, 1.0
        %v1297 = vmul.f32 %v1296, %v1263
        %v1298 = vand.u32 2147483647, %v1263
        %vm1299 = vcmp.lt.f32.partialorder %v1298, 0.0004427343
        %v1300 = vsel %vm1299, %v1297, %v1294
        %v1301 = vadd.f32 %v1265, 1.0
        %v1302 = vlog2.pop %v1301
        %v1303 = vmul.f32 %v1302, 0.6931472
        %v1304 = vmul.f32 -0.5, %v1265
        %v1305 = vadd.f32 %v1304, 1.0
        %v1306 = vmul.f32 %v1305, %v1265
        %v1307 = vand.u32 2147483647, %v1265
        %vm1308 = vcmp.lt.f32.partialorder %v1307, 0.0004427343
        %v1309 = vsel %vm1308, %v1306, %v1303
        %v1310 = vadd.f32 %v1267, 1.0
        %v1311 = vlog2.pop %v1310
        %v1312 = vmul.f32 %v1311, 0.6931472
        %v1313 = vmul.f32 -0.5, %v1267
        %v1314 = vadd.f32 %v1313, 1.0
        %v1315 = vmul.f32 %v1314, %v1267
        %v1316 = vand.u32 2147483647, %v1267
        %vm1317 = vcmp.lt.f32.partialorder %v1316, 0.0004427343
        %v1318 = vsel %vm1317, %v1315, %v1312
        %v1319 = vadd.f32 %v1269, 1.0
        %v1320 = vlog2.pop %v1319
        %v1321 = vmul.f32 %v1320, 0.6931472
        %v1322 = vmul.f32 -0.5, %v1269
        %v1323 = vadd.f32 %v1322, 1.0
        %v1324 = vmul.f32 %v1323, %v1269
        %v1325 = vand.u32 2147483647, %v1269
        %vm1326 = vcmp.lt.f32.partialorder %v1325, 0.0004427343
        %v1327 = vsel %vm1326, %v1324, %v1321
        %v1328 = vadd.f32 %v1271, 1.0
        %v1329 = vlog2.pop %v1328
        %v1330 = vmul.f32 %v1329, 0.6931472
        %v1331 = vmul.f32 -0.5, %v1271
        %v1332 = vadd.f32 %v1331, 1.0
        %v1333 = vmul.f32 %v1332, %v1271
        %v1334 = vand.u32 2147483647, %v1271
        %vm1335 = vcmp.lt.f32.partialorder %v1334, 0.0004427343
        %v1336 = vsel %vm1335, %v1333, %v1330
        %v1337 = vadd.f32 %v1273, 1.0
        %v1338 = vlog2.pop %v1337
        %v1339 = vmul.f32 %v1338, 0.6931472
        %v1340 = vmul.f32 -0.5, %v1273
        %v1341 = vadd.f32 %v1340, 1.0
        %v1342 = vmul.f32 %v1341, %v1273
        %v1343 = vand.u32 2147483647, %v1273
        %vm1344 = vcmp.lt.f32.partialorder %v1343, 0.0004427343
        %v1345 = vsel %vm1344, %v1342, %v1339
        %v1346 = vadd.f32 %v1234, %v1282
        %v1347 = vadd.f32 %v1235, %v1291
        %v1348 = vadd.f32 %v1236, %v1300
        %v1349 = vadd.f32 %v1237, %v1309
        %v1350 = vadd.f32 %v1238, %v1318
        %v1351 = vadd.f32 %v1239, %v1327
        %v1352 = vadd.f32 %v1240, %v1336
        %v1353 = vadd.f32 %v1241, %v1345
        %s1354 = scalar_lea.vmem %s172, 1024 [#allocation2]
        %v1355 = vld [vmem:[%s1354] sm:$0xff]
        %v1356 = vld [vmem:[%s1354 + $0x8] sm:$0xff]
        %v1357 = vld [vmem:[%s1354 + $0x10] sm:$0xff]
        %v1358 = vld [vmem:[%s1354 + $0x18] sm:$0xff]
        %v1359 = vld [vmem:[%s1354 + $0x20] sm:$0xff]
        %v1360 = vld [vmem:[%s1354 + $0x28] sm:$0xff]
        %v1361 = vld [vmem:[%s1354 + $0x30] sm:$0xff]
        %v1362 = vld [vmem:[%s1354 + $0x38] sm:$0xff]
        %v1363 = vld [vmem:[%s1354 + $0x40] sm:$0xff]
        %v1364 = vld [vmem:[%s1354 + $0x48] sm:$0xff]
        %v1365 = vld [vmem:[%s1354 + $0x50] sm:$0xff]
        %v1366 = vld [vmem:[%s1354 + $0x58] sm:$0xff]
        %v1367 = vld [vmem:[%s1354 + $0x60] sm:$0xff]
        %v1368 = vld [vmem:[%s1354 + $0x68] sm:$0xff]
        %v1369 = vld [vmem:[%s1354 + $0x70] sm:$0xff]
        %v1370 = vld [vmem:[%s1354 + $0x78] sm:$0xff]
        %v1371 = vld [vmem:[%s1354 + $0x80] sm:$0xff]
        %v1372 = vld [vmem:[%s1354 + $0x88] sm:$0xff]
        %v1373 = vld [vmem:[%s1354 + $0x90] sm:$0xff]
        %v1374 = vld [vmem:[%s1354 + $0x98] sm:$0xff]
        %v1375 = vld [vmem:[%s1354 + $0xa0] sm:$0xff]
        %v1376 = vld [vmem:[%s1354 + $0xa8] sm:$0xff]
        %v1377 = vld [vmem:[%s1354 + $0xb0] sm:$0xff]
        %v1378 = vld [vmem:[%s1354 + $0xb8] sm:$0xff]
        %v1379 = vld [vmem:[%s1354 + $0xc0] sm:$0xff]
        %v1380 = vld [vmem:[%s1354 + $0xc8] sm:$0xff]
        %v1381 = vld [vmem:[%s1354 + $0xd0] sm:$0xff]
        %v1382 = vld [vmem:[%s1354 + $0xd8] sm:$0xff]
        %v1383 = vld [vmem:[%s1354 + $0xe0] sm:$0xff]
        %v1384 = vld [vmem:[%s1354 + $0xe8] sm:$0xff]
        %v1385 = vld [vmem:[%s1354 + $0xf0] sm:$0xff]
        %v1386 = vld [vmem:[%s1354 + $0xf8] sm:$0xff]
        %v1387 = vld [vmem:[%s1354 + $0x100] sm:$0xff]
        %v1388 = vld [vmem:[%s1354 + $0x108] sm:$0xff]
        %v1389 = vld [vmem:[%s1354 + $0x110] sm:$0xff]
        %v1390 = vld [vmem:[%s1354 + $0x118] sm:$0xff]
        %v1391 = vld [vmem:[%s1354 + $0x120] sm:$0xff]
        %v1392 = vld [vmem:[%s1354 + $0x128] sm:$0xff]
        %v1393 = vld [vmem:[%s1354 + $0x130] sm:$0xff]
        %v1394 = vld [vmem:[%s1354 + $0x138] sm:$0xff]
        %v1395 = vld [vmem:[%s1354 + $0x140] sm:$0xff]
        %v1396 = vld [vmem:[%s1354 + $0x148] sm:$0xff]
        %v1397 = vld [vmem:[%s1354 + $0x150] sm:$0xff]
        %v1398 = vld [vmem:[%s1354 + $0x158] sm:$0xff]
        %v1399 = vld [vmem:[%s1354 + $0x160] sm:$0xff]
        %v1400 = vld [vmem:[%s1354 + $0x168] sm:$0xff]
        %v1401 = vld [vmem:[%s1354 + $0x170] sm:$0xff]
        %v1402 = vld [vmem:[%s1354 + $0x178] sm:$0xff]
        %v1403 = vld [vmem:[%s1354 + $0x180] sm:$0xff]
        %v1404 = vld [vmem:[%s1354 + $0x188] sm:$0xff]
        %v1405 = vld [vmem:[%s1354 + $0x190] sm:$0xff]
        %v1406 = vld [vmem:[%s1354 + $0x198] sm:$0xff]
        %v1407 = vld [vmem:[%s1354 + $0x1a0] sm:$0xff]
        %v1408 = vld [vmem:[%s1354 + $0x1a8] sm:$0xff]
        %v1409 = vld [vmem:[%s1354 + $0x1b0] sm:$0xff]
        %v1410 = vld [vmem:[%s1354 + $0x1b8] sm:$0xff]
        %v1411 = vld [vmem:[%s1354 + $0x1c0] sm:$0xff]
        %v1412 = vld [vmem:[%s1354 + $0x1c8] sm:$0xff]
        %v1413 = vld [vmem:[%s1354 + $0x1d0] sm:$0xff]
        %v1414 = vld [vmem:[%s1354 + $0x1d8] sm:$0xff]
        %v1415 = vld [vmem:[%s1354 + $0x1e0] sm:$0xff]
        %v1416 = vld [vmem:[%s1354 + $0x1e8] sm:$0xff]
        %v1417 = vld [vmem:[%s1354 + $0x1f0] sm:$0xff]
        %v1418 = vld [vmem:[%s1354 + $0x1f8] sm:$0xff]
        %v1419 = vld [vmem:[%s1354 + $0x200] sm:$0xff]
        %v1420 = vld [vmem:[%s1354 + $0x208] sm:$0xff]
        %v1421 = vld [vmem:[%s1354 + $0x210] sm:$0xff]
        %v1422 = vld [vmem:[%s1354 + $0x218] sm:$0xff]
        %v1423 = vld [vmem:[%s1354 + $0x220] sm:$0xff]
        %v1424 = vld [vmem:[%s1354 + $0x228] sm:$0xff]
        %v1425 = vld [vmem:[%s1354 + $0x230] sm:$0xff]
        %v1426 = vld [vmem:[%s1354 + $0x238] sm:$0xff]
        %v1427 = vld [vmem:[%s1354 + $0x240] sm:$0xff]
        %v1428 = vld [vmem:[%s1354 + $0x248] sm:$0xff]
        %v1429 = vld [vmem:[%s1354 + $0x250] sm:$0xff]
        %v1430 = vld [vmem:[%s1354 + $0x258] sm:$0xff]
        %v1431 = vld [vmem:[%s1354 + $0x260] sm:$0xff]
        %v1432 = vld [vmem:[%s1354 + $0x268] sm:$0xff]
        %v1433 = vld [vmem:[%s1354 + $0x270] sm:$0xff]
        %v1434 = vld [vmem:[%s1354 + $0x278] sm:$0xff]
        %v1435 = vld [vmem:[%s1354 + $0x280] sm:$0xff]
        %v1436 = vld [vmem:[%s1354 + $0x288] sm:$0xff]
        %v1437 = vld [vmem:[%s1354 + $0x290] sm:$0xff]
        %v1438 = vld [vmem:[%s1354 + $0x298] sm:$0xff]
        %v1439 = vld [vmem:[%s1354 + $0x2a0] sm:$0xff]
        %v1440 = vld [vmem:[%s1354 + $0x2a8] sm:$0xff]
        %v1441 = vld [vmem:[%s1354 + $0x2b0] sm:$0xff]
        %v1442 = vld [vmem:[%s1354 + $0x2b8] sm:$0xff]
        %v1443 = vld [vmem:[%s1354 + $0x2c0] sm:$0xff]
        %v1444 = vld [vmem:[%s1354 + $0x2c8] sm:$0xff]
        %v1445 = vld [vmem:[%s1354 + $0x2d0] sm:$0xff]
        %v1446 = vld [vmem:[%s1354 + $0x2d8] sm:$0xff]
        %v1447 = vld [vmem:[%s1354 + $0x2e0] sm:$0xff]
        %v1448 = vld [vmem:[%s1354 + $0x2e8] sm:$0xff]
        %v1449 = vld [vmem:[%s1354 + $0x2f0] sm:$0xff]
        %v1450 = vld [vmem:[%s1354 + $0x2f8] sm:$0xff]
        %v1451 = vld [vmem:[%s1354 + $0x300] sm:$0xff]
        %v1452 = vld [vmem:[%s1354 + $0x308] sm:$0xff]
        %v1453 = vld [vmem:[%s1354 + $0x310] sm:$0xff]
        %v1454 = vld [vmem:[%s1354 + $0x318] sm:$0xff]
        %v1455 = vld [vmem:[%s1354 + $0x320] sm:$0xff]
        %v1456 = vld [vmem:[%s1354 + $0x328] sm:$0xff]
        %v1457 = vld [vmem:[%s1354 + $0x330] sm:$0xff]
        %v1458 = vld [vmem:[%s1354 + $0x338] sm:$0xff]
        %v1459 = vld [vmem:[%s1354 + $0x340] sm:$0xff]
        %v1460 = vld [vmem:[%s1354 + $0x348] sm:$0xff]
        %v1461 = vld [vmem:[%s1354 + $0x350] sm:$0xff]
        %v1462 = vld [vmem:[%s1354 + $0x358] sm:$0xff]
        %v1463 = vld [vmem:[%s1354 + $0x360] sm:$0xff]
        %v1464 = vld [vmem:[%s1354 + $0x368] sm:$0xff]
        %v1465 = vld [vmem:[%s1354 + $0x370] sm:$0xff]
        %v1466 = vld [vmem:[%s1354 + $0x378] sm:$0xff]
        %v1467 = vld [vmem:[%s1354 + $0x380] sm:$0xff]
        %v1468 = vld [vmem:[%s1354 + $0x388] sm:$0xff]
        %v1469 = vld [vmem:[%s1354 + $0x390] sm:$0xff]
        %v1470 = vld [vmem:[%s1354 + $0x398] sm:$0xff]
        %v1471 = vld [vmem:[%s1354 + $0x3a0] sm:$0xff]
        %v1472 = vld [vmem:[%s1354 + $0x3a8] sm:$0xff]
        %v1473 = vld [vmem:[%s1354 + $0x3b0] sm:$0xff]
        %v1474 = vld [vmem:[%s1354 + $0x3b8] sm:$0xff]
        %v1475 = vld [vmem:[%s1354 + $0x3c0] sm:$0xff]
        %v1476 = vld [vmem:[%s1354 + $0x3c8] sm:$0xff]
        %v1477 = vld [vmem:[%s1354 + $0x3d0] sm:$0xff]
        %v1478 = vld [vmem:[%s1354 + $0x3d8] sm:$0xff]
        %v1479 = vld [vmem:[%s1354 + $0x3e0] sm:$0xff]
        %v1480 = vld [vmem:[%s1354 + $0x3e8] sm:$0xff]
        %v1481 = vld [vmem:[%s1354 + $0x3f0] sm:$0xff]
        %v1482 = vld [vmem:[%s1354 + $0x3f8] sm:$0xff]
        %s1483 = sadd.s32 %s225, 1
        %s1484 = smul.u32 %s1483, 4
        %s1485 = scalar_lea.vmem [#allocation4], %s1484
        %v1486 = vld [vmem:[%s1485] sm:$0xf]
        %v1487 = vpack.c.bf16 %v1350, %v1346
        %v1488 = vpack.c.bf16 %v1351, %v1347
        %v1489 = vpack.c.bf16 %v1352, %v1348
        %v1490 = vpack.c.bf16 %v1353, %v1349
        %v1492 = vperm.slane %v1486, 0
        %v1493 = vperm.slane %v1486, 1
        %v1494 = vperm.slane %v1486, 2
        %v1495 = vperm.slane %v1486, 3
        %v1628 = vunpack.c.l.b16 %v1355
        %v1629 = vunpack.c.h.b16 %v1355
        %v1630 = vunpack.c.l.b16 %v1356
        %v1631 = vunpack.c.h.b16 %v1356
        %v1632 = vunpack.c.l.b16 %v1357
        %v1633 = vunpack.c.h.b16 %v1357
        %v1634 = vunpack.c.l.b16 %v1358
        %v1635 = vunpack.c.h.b16 %v1358
        %v1636 = vunpack.c.l.b16 %v1359
        %v1637 = vunpack.c.h.b16 %v1359
        %v1638 = vunpack.c.l.b16 %v1360
        %v1639 = vunpack.c.h.b16 %v1360
        %v1640 = vunpack.c.l.b16 %v1361
        %v1641 = vunpack.c.h.b16 %v1361
        %v1642 = vunpack.c.l.b16 %v1362
        %v1643 = vunpack.c.h.b16 %v1362
        %v1644 = vunpack.c.l.b16 %v1363
        %v1645 = vunpack.c.h.b16 %v1363
        %v1646 = vunpack.c.l.b16 %v1364
        %v1647 = vunpack.c.h.b16 %v1364
        %v1648 = vunpack.c.l.b16 %v1365
        %v1649 = vunpack.c.h.b16 %v1365
        %v1650 = vunpack.c.l.b16 %v1366
        %v1651 = vunpack.c.h.b16 %v1366
        %v1652 = vunpack.c.l.b16 %v1367
        %v1653 = vunpack.c.h.b16 %v1367
        %v1654 = vunpack.c.l.b16 %v1368
        %v1655 = vunpack.c.h.b16 %v1368
        %v1656 = vunpack.c.l.b16 %v1369
        %v1657 = vunpack.c.h.b16 %v1369
        %v1658 = vunpack.c.l.b16 %v1370
        %v1659 = vunpack.c.h.b16 %v1370
        %v1660 = vunpack.c.l.b16 %v1371
        %v1661 = vunpack.c.h.b16 %v1371
        %v1662 = vunpack.c.l.b16 %v1372
        %v1663 = vunpack.c.h.b16 %v1372
        %v1664 = vunpack.c.l.b16 %v1373
        %v1665 = vunpack.c.h.b16 %v1373
        %v1666 = vunpack.c.l.b16 %v1374
        %v1667 = vunpack.c.h.b16 %v1374
        %v1668 = vunpack.c.l.b16 %v1375
        %v1669 = vunpack.c.h.b16 %v1375
        %v1670 = vunpack.c.l.b16 %v1376
        %v1671 = vunpack.c.h.b16 %v1376
        %v1672 = vunpack.c.l.b16 %v1377
        %v1673 = vunpack.c.h.b16 %v1377
        %v1674 = vunpack.c.l.b16 %v1378
        %v1675 = vunpack.c.h.b16 %v1378
        %v1676 = vunpack.c.l.b16 %v1379
        %v1677 = vunpack.c.h.b16 %v1379
        %v1678 = vunpack.c.l.b16 %v1380
        %v1679 = vunpack.c.h.b16 %v1380
        %v1680 = vunpack.c.l.b16 %v1381
        %v1681 = vunpack.c.h.b16 %v1381
        %v1682 = vunpack.c.l.b16 %v1382
        %v1683 = vunpack.c.h.b16 %v1382
        %v1684 = vunpack.c.l.b16 %v1383
        %v1685 = vunpack.c.h.b16 %v1383
        %v1686 = vunpack.c.l.b16 %v1384
        %v1687 = vunpack.c.h.b16 %v1384
        %v1688 = vunpack.c.l.b16 %v1385
        %v1689 = vunpack.c.h.b16 %v1385
        %v1690 = vunpack.c.l.b16 %v1386
        %v1691 = vunpack.c.h.b16 %v1386
        %v1692 = vunpack.c.l.b16 %v1387
        %v1693 = vunpack.c.h.b16 %v1387
        %v1694 = vunpack.c.l.b16 %v1388
        %v1695 = vunpack.c.h.b16 %v1388
        %v1696 = vunpack.c.l.b16 %v1389
        %v1697 = vunpack.c.h.b16 %v1389
        %v1698 = vunpack.c.l.b16 %v1390
        %v1699 = vunpack.c.h.b16 %v1390
        %v1700 = vunpack.c.l.b16 %v1391
        %v1701 = vunpack.c.h.b16 %v1391
        %v1702 = vunpack.c.l.b16 %v1392
        %v1703 = vunpack.c.h.b16 %v1392
        %v1704 = vunpack.c.l.b16 %v1393
        %v1705 = vunpack.c.h.b16 %v1393
        %v1706 = vunpack.c.l.b16 %v1394
        %v1707 = vunpack.c.h.b16 %v1394
        %v1708 = vunpack.c.l.b16 %v1395
        %v1709 = vunpack.c.h.b16 %v1395
        %v1710 = vunpack.c.l.b16 %v1396
        %v1711 = vunpack.c.h.b16 %v1396
        %v1712 = vunpack.c.l.b16 %v1397
        %v1713 = vunpack.c.h.b16 %v1397
        %v1714 = vunpack.c.l.b16 %v1398
        %v1715 = vunpack.c.h.b16 %v1398
        %v1716 = vunpack.c.l.b16 %v1399
        %v1717 = vunpack.c.h.b16 %v1399
        %v1718 = vunpack.c.l.b16 %v1400
        %v1719 = vunpack.c.h.b16 %v1400
        %v1720 = vunpack.c.l.b16 %v1401
        %v1721 = vunpack.c.h.b16 %v1401
        %v1722 = vunpack.c.l.b16 %v1402
        %v1723 = vunpack.c.h.b16 %v1402
        %v1724 = vunpack.c.l.b16 %v1403
        %v1725 = vunpack.c.h.b16 %v1403
        %v1726 = vunpack.c.l.b16 %v1404
        %v1727 = vunpack.c.h.b16 %v1404
        %v1728 = vunpack.c.l.b16 %v1405
        %v1729 = vunpack.c.h.b16 %v1405
        %v1730 = vunpack.c.l.b16 %v1406
        %v1731 = vunpack.c.h.b16 %v1406
        %v1732 = vunpack.c.l.b16 %v1407
        %v1733 = vunpack.c.h.b16 %v1407
        %v1734 = vunpack.c.l.b16 %v1408
        %v1735 = vunpack.c.h.b16 %v1408
        %v1736 = vunpack.c.l.b16 %v1409
        %v1737 = vunpack.c.h.b16 %v1409
        %v1738 = vunpack.c.l.b16 %v1410
        %v1739 = vunpack.c.h.b16 %v1410
        %v1740 = vunpack.c.l.b16 %v1411
        %v1741 = vunpack.c.h.b16 %v1411
        %v1742 = vunpack.c.l.b16 %v1412
        %v1743 = vunpack.c.h.b16 %v1412
        %v1744 = vunpack.c.l.b16 %v1413
        %v1745 = vunpack.c.h.b16 %v1413
        %v1746 = vunpack.c.l.b16 %v1414
        %v1747 = vunpack.c.h.b16 %v1414
        %v1748 = vunpack.c.l.b16 %v1415
        %v1749 = vunpack.c.h.b16 %v1415
        %v1750 = vunpack.c.l.b16 %v1416
        %v1751 = vunpack.c.h.b16 %v1416
        %v1752 = vunpack.c.l.b16 %v1417
        %v1753 = vunpack.c.h.b16 %v1417
        %v1754 = vunpack.c.l.b16 %v1418
        %v1755 = vunpack.c.h.b16 %v1418
        %v1756 = vunpack.c.l.b16 %v1419
        %v1757 = vunpack.c.h.b16 %v1419
        %v1758 = vunpack.c.l.b16 %v1420
        %v1759 = vunpack.c.h.b16 %v1420
        %v1760 = vunpack.c.l.b16 %v1421
        %v1761 = vunpack.c.h.b16 %v1421
        %v1762 = vunpack.c.l.b16 %v1422
        %v1763 = vunpack.c.h.b16 %v1422
        %v1764 = vunpack.c.l.b16 %v1423
        %v1765 = vunpack.c.h.b16 %v1423
        %v1766 = vunpack.c.l.b16 %v1424
        %v1767 = vunpack.c.h.b16 %v1424
        %v1768 = vunpack.c.l.b16 %v1425
        %v1769 = vunpack.c.h.b16 %v1425
        %v1770 = vunpack.c.l.b16 %v1426
        %v1771 = vunpack.c.h.b16 %v1426
        %v1772 = vunpack.c.l.b16 %v1427
        %v1773 = vunpack.c.h.b16 %v1427
        %v1774 = vunpack.c.l.b16 %v1428
        %v1775 = vunpack.c.h.b16 %v1428
        %v1776 = vunpack.c.l.b16 %v1429
        %v1777 = vunpack.c.h.b16 %v1429
        %v1778 = vunpack.c.l.b16 %v1430
        %v1779 = vunpack.c.h.b16 %v1430
        %v1780 = vunpack.c.l.b16 %v1431
        %v1781 = vunpack.c.h.b16 %v1431
        %v1782 = vunpack.c.l.b16 %v1432
        %v1783 = vunpack.c.h.b16 %v1432
        %v1784 = vunpack.c.l.b16 %v1433
        %v1785 = vunpack.c.h.b16 %v1433
        %v1786 = vunpack.c.l.b16 %v1434
        %v1787 = vunpack.c.h.b16 %v1434
        %v1788 = vunpack.c.l.b16 %v1435
        %v1789 = vunpack.c.h.b16 %v1435
        %v1790 = vunpack.c.l.b16 %v1436
        %v1791 = vunpack.c.h.b16 %v1436
        %v1792 = vunpack.c.l.b16 %v1437
        %v1793 = vunpack.c.h.b16 %v1437
        %v1794 = vunpack.c.l.b16 %v1438
        %v1795 = vunpack.c.h.b16 %v1438
        %v1796 = vunpack.c.l.b16 %v1439
        %v1797 = vunpack.c.h.b16 %v1439
        %v1798 = vunpack.c.l.b16 %v1440
        %v1799 = vunpack.c.h.b16 %v1440
        %v1800 = vunpack.c.l.b16 %v1441
        %v1801 = vunpack.c.h.b16 %v1441
        %v1802 = vunpack.c.l.b16 %v1442
        %v1803 = vunpack.c.h.b16 %v1442
        %v1804 = vunpack.c.l.b16 %v1443
        %v1805 = vunpack.c.h.b16 %v1443
        %v1806 = vunpack.c.l.b16 %v1444
        %v1807 = vunpack.c.h.b16 %v1444
        %v1808 = vunpack.c.l.b16 %v1445
        %v1809 = vunpack.c.h.b16 %v1445
        %v1810 = vunpack.c.l.b16 %v1446
        %v1811 = vunpack.c.h.b16 %v1446
        %v1812 = vunpack.c.l.b16 %v1447
        %v1813 = vunpack.c.h.b16 %v1447
        %v1814 = vunpack.c.l.b16 %v1448
        %v1815 = vunpack.c.h.b16 %v1448
        %v1816 = vunpack.c.l.b16 %v1449
        %v1817 = vunpack.c.h.b16 %v1449
        %v1818 = vunpack.c.l.b16 %v1450
        %v1819 = vunpack.c.h.b16 %v1450
        %v1820 = vunpack.c.l.b16 %v1451
        %v1821 = vunpack.c.h.b16 %v1451
        %v1822 = vunpack.c.l.b16 %v1452
        %v1823 = vunpack.c.h.b16 %v1452
        %v1824 = vunpack.c.l.b16 %v1453
        %v1825 = vunpack.c.h.b16 %v1453
        %v1826 = vunpack.c.l.b16 %v1454
        %v1827 = vunpack.c.h.b16 %v1454
        %v1828 = vunpack.c.l.b16 %v1455
        %v1829 = vunpack.c.h.b16 %v1455
        %v1830 = vunpack.c.l.b16 %v1456
        %v1831 = vunpack.c.h.b16 %v1456
        %v1832 = vunpack.c.l.b16 %v1457
        %v1833 = vunpack.c.h.b16 %v1457
        %v1834 = vunpack.c.l.b16 %v1458
        %v1835 = vunpack.c.h.b16 %v1458
        %v1836 = vunpack.c.l.b16 %v1459
        %v1837 = vunpack.c.h.b16 %v1459
        %v1838 = vunpack.c.l.b16 %v1460
        %v1839 = vunpack.c.h.b16 %v1460
        %v1840 = vunpack.c.l.b16 %v1461
        %v1841 = vunpack.c.h.b16 %v1461
        %v1842 = vunpack.c.l.b16 %v1462
        %v1843 = vunpack.c.h.b16 %v1462
        %v1844 = vunpack.c.l.b16 %v1463
        %v1845 = vunpack.c.h.b16 %v1463
        %v1846 = vunpack.c.l.b16 %v1464
        %v1847 = vunpack.c.h.b16 %v1464
        %v1848 = vunpack.c.l.b16 %v1465
        %v1849 = vunpack.c.h.b16 %v1465
        %v1850 = vunpack.c.l.b16 %v1466
        %v1851 = vunpack.c.h.b16 %v1466
        %v1852 = vunpack.c.l.b16 %v1467
        %v1853 = vunpack.c.h.b16 %v1467
        %v1854 = vunpack.c.l.b16 %v1468
        %v1855 = vunpack.c.h.b16 %v1468
        %v1856 = vunpack.c.l.b16 %v1469
        %v1857 = vunpack.c.h.b16 %v1469
        %v1858 = vunpack.c.l.b16 %v1470
        %v1859 = vunpack.c.h.b16 %v1470
        %v1860 = vunpack.c.l.b16 %v1471
        %v1861 = vunpack.c.h.b16 %v1471
        %v1862 = vunpack.c.l.b16 %v1472
        %v1863 = vunpack.c.h.b16 %v1472
        %v1864 = vunpack.c.l.b16 %v1473
        %v1865 = vunpack.c.h.b16 %v1473
        %v1866 = vunpack.c.l.b16 %v1474
        %v1867 = vunpack.c.h.b16 %v1474
        %v1868 = vunpack.c.l.b16 %v1475
        %v1869 = vunpack.c.h.b16 %v1475
        %v1870 = vunpack.c.l.b16 %v1476
        %v1871 = vunpack.c.h.b16 %v1476
        %v1872 = vunpack.c.l.b16 %v1477
        %v1873 = vunpack.c.h.b16 %v1477
        %v1874 = vunpack.c.l.b16 %v1478
        %v1875 = vunpack.c.h.b16 %v1478
        %v1876 = vunpack.c.l.b16 %v1479
        %v1877 = vunpack.c.h.b16 %v1479
        %v1878 = vunpack.c.l.b16 %v1480
        %v1879 = vunpack.c.h.b16 %v1480
        %v1880 = vunpack.c.l.b16 %v1481
        %v1881 = vunpack.c.h.b16 %v1481
        %v1882 = vunpack.c.l.b16 %v1482
        %v1883 = vunpack.c.h.b16 %v1482
        %v1884 = vpack.c.b16 %v1632, %v1628
        %v1885 = vpack.c.b16 %v1633, %v1629
        %v1886 = vpack.c.b16 %v1634, %v1630
        %v1887 = vpack.c.b16 %v1635, %v1631
        %v1888 = vpack.c.b16 %v1640, %v1636
        %v1889 = vpack.c.b16 %v1641, %v1637
        %v1890 = vpack.c.b16 %v1642, %v1638
        %v1891 = vpack.c.b16 %v1643, %v1639
        %v1892 = vpack.c.b16 %v1648, %v1644
        %v1893 = vpack.c.b16 %v1649, %v1645
        %v1894 = vpack.c.b16 %v1650, %v1646
        %v1895 = vpack.c.b16 %v1651, %v1647
        %v1896 = vpack.c.b16 %v1656, %v1652
        %v1897 = vpack.c.b16 %v1657, %v1653
        %v1898 = vpack.c.b16 %v1658, %v1654
        %v1899 = vpack.c.b16 %v1659, %v1655
        %v1900 = vpack.c.b16 %v1664, %v1660
        %v1901 = vpack.c.b16 %v1665, %v1661
        %v1902 = vpack.c.b16 %v1666, %v1662
        %v1903 = vpack.c.b16 %v1667, %v1663
        %v1904 = vpack.c.b16 %v1672, %v1668
        %v1905 = vpack.c.b16 %v1673, %v1669
        %v1906 = vpack.c.b16 %v1674, %v1670
        %v1907 = vpack.c.b16 %v1675, %v1671
        %v1908 = vpack.c.b16 %v1680, %v1676
        %v1909 = vpack.c.b16 %v1681, %v1677
        %v1910 = vpack.c.b16 %v1682, %v1678
        %v1911 = vpack.c.b16 %v1683, %v1679
        %v1912 = vpack.c.b16 %v1688, %v1684
        %v1913 = vpack.c.b16 %v1689, %v1685
        %v1914 = vpack.c.b16 %v1690, %v1686
        %v1915 = vpack.c.b16 %v1691, %v1687
        %v1916 = vpack.c.b16 %v1696, %v1692
        %v1917 = vpack.c.b16 %v1697, %v1693
        %v1918 = vpack.c.b16 %v1698, %v1694
        %v1919 = vpack.c.b16 %v1699, %v1695
        %v1920 = vpack.c.b16 %v1704, %v1700
        %v1921 = vpack.c.b16 %v1705, %v1701
        %v1922 = vpack.c.b16 %v1706, %v1702
        %v1923 = vpack.c.b16 %v1707, %v1703
        %v1924 = vpack.c.b16 %v1712, %v1708
        %v1925 = vpack.c.b16 %v1713, %v1709
        %v1926 = vpack.c.b16 %v1714, %v1710
        %v1927 = vpack.c.b16 %v1715, %v1711
        %v1928 = vpack.c.b16 %v1720, %v1716
        %v1929 = vpack.c.b16 %v1721, %v1717
        %v1930 = vpack.c.b16 %v1722, %v1718
        %v1931 = vpack.c.b16 %v1723, %v1719
        %v1932 = vpack.c.b16 %v1728, %v1724
        %v1933 = vpack.c.b16 %v1729, %v1725
        %v1934 = vpack.c.b16 %v1730, %v1726
        %v1935 = vpack.c.b16 %v1731, %v1727
        %v1936 = vpack.c.b16 %v1736, %v1732
        %v1937 = vpack.c.b16 %v1737, %v1733
        %v1938 = vpack.c.b16 %v1738, %v1734
        %v1939 = vpack.c.b16 %v1739, %v1735
        %v1940 = vpack.c.b16 %v1744, %v1740
        %v1941 = vpack.c.b16 %v1745, %v1741
        %v1942 = vpack.c.b16 %v1746, %v1742
        %v1943 = vpack.c.b16 %v1747, %v1743
        %v1944 = vpack.c.b16 %v1752, %v1748
        %v1945 = vpack.c.b16 %v1753, %v1749
        %v1946 = vpack.c.b16 %v1754, %v1750
        %v1947 = vpack.c.b16 %v1755, %v1751
        %v1948 = vpack.c.b16 %v1760, %v1756
        %v1949 = vpack.c.b16 %v1761, %v1757
        %v1950 = vpack.c.b16 %v1762, %v1758
        %v1951 = vpack.c.b16 %v1763, %v1759
        %v1952 = vpack.c.b16 %v1768, %v1764
        %v1953 = vpack.c.b16 %v1769, %v1765
        %v1954 = vpack.c.b16 %v1770, %v1766
        %v1955 = vpack.c.b16 %v1771, %v1767
        %v1956 = vpack.c.b16 %v1776, %v1772
        %v1957 = vpack.c.b16 %v1777, %v1773
        %v1958 = vpack.c.b16 %v1778, %v1774
        %v1959 = vpack.c.b16 %v1779, %v1775
        %v1960 = vpack.c.b16 %v1784, %v1780
        %v1961 = vpack.c.b16 %v1785, %v1781
        %v1962 = vpack.c.b16 %v1786, %v1782
        %v1963 = vpack.c.b16 %v1787, %v1783
        %v1964 = vpack.c.b16 %v1792, %v1788
        %v1965 = vpack.c.b16 %v1793, %v1789
        %v1966 = vpack.c.b16 %v1794, %v1790
        %v1967 = vpack.c.b16 %v1795, %v1791
        %v1968 = vpack.c.b16 %v1800, %v1796
        %v1969 = vpack.c.b16 %v1801, %v1797
        %v1970 = vpack.c.b16 %v1802, %v1798
        %v1971 = vpack.c.b16 %v1803, %v1799
        %v1972 = vpack.c.b16 %v1808, %v1804
        %v1973 = vpack.c.b16 %v1809, %v1805
        %v1974 = vpack.c.b16 %v1810, %v1806
        %v1975 = vpack.c.b16 %v1811, %v1807
        %v1976 = vpack.c.b16 %v1816, %v1812
        %v1977 = vpack.c.b16 %v1817, %v1813
        %v1978 = vpack.c.b16 %v1818, %v1814
        %v1979 = vpack.c.b16 %v1819, %v1815
        %v1980 = vpack.c.b16 %v1824, %v1820
        %v1981 = vpack.c.b16 %v1825, %v1821
        %v1982 = vpack.c.b16 %v1826, %v1822
        %v1983 = vpack.c.b16 %v1827, %v1823
        %v1984 = vpack.c.b16 %v1832, %v1828
        %v1985 = vpack.c.b16 %v1833, %v1829
        %v1986 = vpack.c.b16 %v1834, %v1830
        %v1987 = vpack.c.b16 %v1835, %v1831
        %v1988 = vpack.c.b16 %v1840, %v1836
        %v1989 = vpack.c.b16 %v1841, %v1837
        %v1990 = vpack.c.b16 %v1842, %v1838
        %v1991 = vpack.c.b16 %v1843, %v1839
        %v1992 = vpack.c.b16 %v1848, %v1844
        %v1993 = vpack.c.b16 %v1849, %v1845
        %v1994 = vpack.c.b16 %v1850, %v1846
        %v1995 = vpack.c.b16 %v1851, %v1847
        %v1996 = vpack.c.b16 %v1856, %v1852
        %v1997 = vpack.c.b16 %v1857, %v1853
        %v1998 = vpack.c.b16 %v1858, %v1854
        %v1999 = vpack.c.b16 %v1859, %v1855
        %v2000 = vpack.c.b16 %v1864, %v1860
        %v2001 = vpack.c.b16 %v1865, %v1861
        %v2002 = vpack.c.b16 %v1866, %v1862
        %v2003 = vpack.c.b16 %v1867, %v1863
        %v2004 = vpack.c.b16 %v1872, %v1868
        %v2005 = vpack.c.b16 %v1873, %v1869
        %v2006 = vpack.c.b16 %v1874, %v1870
        %v2007 = vpack.c.b16 %v1875, %v1871
        %v2008 = vpack.c.b16 %v1880, %v1876
        %v2009 = vpack.c.b16 %v1881, %v1877
        %v2010 = vpack.c.b16 %v1882, %v1878
        %v2011 = vpack.c.b16 %v1883, %v1879
        %2140 = vmatpush.bf16.msra.mxu0 %v1912
        %2141 = vmatpush.bf16.msra.mxu0 %v1908
        %2142 = vmatpush.bf16.msra.mxu0 %v1904
        %2143 = vmatpush.bf16.msra.mxu0 %v1900
        %2144 = vmatpush.bf16.msra.mxu0 %v1896
        %2145 = vmatpush.bf16.msra.mxu0 %v1892
        %2146 = vmatpush.bf16.msra.mxu0 %v1888
        %2147 = vmatpush.bf16.msra.mxu0 %v1884
        %2148 = vmatmul.bf16.gmra.mxu0 %v1487
        %v2149 = vpop.f32.mrf.mxu0
        %v2150 = vadd.f32 %v1492, %v2149
        %v2151 = vpop.f32.mrf.mxu0
        %v2152 = vadd.f32 %v1492, %v2151
        %2153 = vdwg.mxu0
        %2154 = vmatpush.bf16.msra.mxu0 %v1944
        %2155 = vmatpush.bf16.msra.mxu0 %v1940
        %2156 = vmatpush.bf16.msra.mxu0 %v1936
        %2157 = vmatpush.bf16.msra.mxu0 %v1932
        %2158 = vmatpush.bf16.msra.mxu0 %v1928
        %2159 = vmatpush.bf16.msra.mxu0 %v1924
        %2160 = vmatpush.bf16.msra.mxu0 %v1920
        %2161 = vmatpush.bf16.msra.mxu0 %v1916
        %2162 = vmatmul.bf16.gmra.mxu0 %v1488
        %v2163 = vpop.f32.mrf.mxu0
        %v2164 = vadd.f32 %v2150, %v2163
        %v2165 = vpop.f32.mrf.mxu0
        %v2166 = vadd.f32 %v2152, %v2165
        %2167 = vdwg.mxu0
        %2168 = vmatpush.bf16.msra.mxu0 %v1976
        %2169 = vmatpush.bf16.msra.mxu0 %v1972
        %2170 = vmatpush.bf16.msra.mxu0 %v1968
        %2171 = vmatpush.bf16.msra.mxu0 %v1964
        %2172 = vmatpush.bf16.msra.mxu0 %v1960
        %2173 = vmatpush.bf16.msra.mxu0 %v1956
        %2174 = vmatpush.bf16.msra.mxu0 %v1952
        %2175 = vmatpush.bf16.msra.mxu0 %v1948
        %2176 = vmatmul.bf16.gmra.mxu0 %v1489
        %v2177 = vpop.f32.mrf.mxu0
        %v2178 = vadd.f32 %v2164, %v2177
        %v2179 = vpop.f32.mrf.mxu0
        %v2180 = vadd.f32 %v2166, %v2179
        %2181 = vdwg.mxu0
        %2182 = vmatpush.bf16.msra.mxu0 %v2008
        %2183 = vmatpush.bf16.msra.mxu0 %v2004
        %2184 = vmatpush.bf16.msra.mxu0 %v2000
        %2185 = vmatpush.bf16.msra.mxu0 %v1996
        %2186 = vmatpush.bf16.msra.mxu0 %v1992
        %2187 = vmatpush.bf16.msra.mxu0 %v1988
        %2188 = vmatpush.bf16.msra.mxu0 %v1984
        %2189 = vmatpush.bf16.msra.mxu0 %v1980
        %2190 = vmatmul.bf16.gmra.mxu0 %v1490
        %v2191 = vpop.f32.mrf.mxu0
        %v2192 = vadd.f32 %v2178, %v2191
        %v2193 = vpop.f32.mrf.mxu0
        %v2194 = vadd.f32 %v2180, %v2193
        %2195 = vdwg.mxu0
        %2196 = vmatpush.bf16.msra.mxu0 %v1913
        %2197 = vmatpush.bf16.msra.mxu0 %v1909
        %2198 = vmatpush.bf16.msra.mxu0 %v1905
        %2199 = vmatpush.bf16.msra.mxu0 %v1901
        %2200 = vmatpush.bf16.msra.mxu0 %v1897
        %2201 = vmatpush.bf16.msra.mxu0 %v1893
        %2202 = vmatpush.bf16.msra.mxu0 %v1889
        %2203 = vmatpush.bf16.msra.mxu0 %v1885
        %2204 = vmatmul.bf16.gmra.mxu0 %v1487
        %v2205 = vpop.f32.mrf.mxu0
        %v2206 = vadd.f32 %v1493, %v2205
        %v2207 = vpop.f32.mrf.mxu0
        %v2208 = vadd.f32 %v1493, %v2207
        %2209 = vdwg.mxu0
        %2210 = vmatpush.bf16.msra.mxu0 %v1945
        %2211 = vmatpush.bf16.msra.mxu0 %v1941
        %2212 = vmatpush.bf16.msra.mxu0 %v1937
        %2213 = vmatpush.bf16.msra.mxu0 %v1933
        %2214 = vmatpush.bf16.msra.mxu0 %v1929
        %2215 = vmatpush.bf16.msra.mxu0 %v1925
        %2216 = vmatpush.bf16.msra.mxu0 %v1921
        %2217 = vmatpush.bf16.msra.mxu0 %v1917
        %2218 = vmatmul.bf16.gmra.mxu0 %v1488
        %v2219 = vpop.f32.mrf.mxu0
        %v2220 = vadd.f32 %v2206, %v2219
        %v2221 = vpop.f32.mrf.mxu0
        %v2222 = vadd.f32 %v2208, %v2221
        %2223 = vdwg.mxu0
        %2224 = vmatpush.bf16.msra.mxu0 %v1977
        %2225 = vmatpush.bf16.msra.mxu0 %v1973
        %2226 = vmatpush.bf16.msra.mxu0 %v1969
        %2227 = vmatpush.bf16.msra.mxu0 %v1965
        %2228 = vmatpush.bf16.msra.mxu0 %v1961
        %2229 = vmatpush.bf16.msra.mxu0 %v1957
        %2230 = vmatpush.bf16.msra.mxu0 %v1953
        %2231 = vmatpush.bf16.msra.mxu0 %v1949
        %2232 = vmatmul.bf16.gmra.mxu0 %v1489
        %v2233 = vpop.f32.mrf.mxu0
        %v2234 = vadd.f32 %v2220, %v2233
        %v2235 = vpop.f32.mrf.mxu0
        %v2236 = vadd.f32 %v2222, %v2235
        %2237 = vdwg.mxu0
        %2238 = vmatpush.bf16.msra.mxu0 %v2009
        %2239 = vmatpush.bf16.msra.mxu0 %v2005
        %2240 = vmatpush.bf16.msra.mxu0 %v2001
        %2241 = vmatpush.bf16.msra.mxu0 %v1997
        %2242 = vmatpush.bf16.msra.mxu0 %v1993
        %2243 = vmatpush.bf16.msra.mxu0 %v1989
        %2244 = vmatpush.bf16.msra.mxu0 %v1985
        %2245 = vmatpush.bf16.msra.mxu0 %v1981
        %2246 = vmatmul.bf16.gmra.mxu0 %v1490
        %v2247 = vpop.f32.mrf.mxu0
        %v2248 = vadd.f32 %v2234, %v2247
        %v2249 = vpop.f32.mrf.mxu0
        %v2250 = vadd.f32 %v2236, %v2249
        %2251 = vdwg.mxu0
        %2252 = vmatpush.bf16.msra.mxu0 %v1914
        %2253 = vmatpush.bf16.msra.mxu0 %v1910
        %2254 = vmatpush.bf16.msra.mxu0 %v1906
        %2255 = vmatpush.bf16.msra.mxu0 %v1902
        %2256 = vmatpush.bf16.msra.mxu0 %v1898
        %2257 = vmatpush.bf16.msra.mxu0 %v1894
        %2258 = vmatpush.bf16.msra.mxu0 %v1890
        %2259 = vmatpush.bf16.msra.mxu0 %v1886
        %2260 = vmatmul.bf16.gmra.mxu0 %v1487
        %v2261 = vpop.f32.mrf.mxu0
        %v2262 = vadd.f32 %v1494, %v2261
        %v2263 = vpop.f32.mrf.mxu0
        %v2264 = vadd.f32 %v1494, %v2263
        %2265 = vdwg.mxu0
        %2266 = vmatpush.bf16.msra.mxu0 %v1946
        %2267 = vmatpush.bf16.msra.mxu0 %v1942
        %2268 = vmatpush.bf16.msra.mxu0 %v1938
        %2269 = vmatpush.bf16.msra.mxu0 %v1934
        %2270 = vmatpush.bf16.msra.mxu0 %v1930
        %2271 = vmatpush.bf16.msra.mxu0 %v1926
        %2272 = vmatpush.bf16.msra.mxu0 %v1922
        %2273 = vmatpush.bf16.msra.mxu0 %v1918
        %2274 = vmatmul.bf16.gmra.mxu0 %v1488
        %v2275 = vpop.f32.mrf.mxu0
        %v2276 = vadd.f32 %v2262, %v2275
        %v2277 = vpop.f32.mrf.mxu0
        %v2278 = vadd.f32 %v2264, %v2277
        %2279 = vdwg.mxu0
        %2280 = vmatpush.bf16.msra.mxu0 %v1978
        %2281 = vmatpush.bf16.msra.mxu0 %v1974
        %2282 = vmatpush.bf16.msra.mxu0 %v1970
        %2283 = vmatpush.bf16.msra.mxu0 %v1966
        %2284 = vmatpush.bf16.msra.mxu0 %v1962
        %2285 = vmatpush.bf16.msra.mxu0 %v1958
        %2286 = vmatpush.bf16.msra.mxu0 %v1954
        %2287 = vmatpush.bf16.msra.mxu0 %v1950
        %2288 = vmatmul.bf16.gmra.mxu0 %v1489
        %v2289 = vpop.f32.mrf.mxu0
        %v2290 = vadd.f32 %v2276, %v2289
        %v2291 = vpop.f32.mrf.mxu0
        %v2292 = vadd.f32 %v2278, %v2291
        %2293 = vdwg.mxu0
        %2294 = vmatpush.bf16.msra.mxu0 %v2010
        %2295 = vmatpush.bf16.msra.mxu0 %v2006
        %2296 = vmatpush.bf16.msra.mxu0 %v2002
        %2297 = vmatpush.bf16.msra.mxu0 %v1998
        %2298 = vmatpush.bf16.msra.mxu0 %v1994
        %2299 = vmatpush.bf16.msra.mxu0 %v1990
        %2300 = vmatpush.bf16.msra.mxu0 %v1986
        %2301 = vmatpush.bf16.msra.mxu0 %v1982
        %2302 = vmatmul.bf16.gmra.mxu0 %v1490
        %v2303 = vpop.f32.mrf.mxu0
        %v2304 = vadd.f32 %v2290, %v2303
        %v2305 = vpop.f32.mrf.mxu0
        %v2306 = vadd.f32 %v2292, %v2305
        %2307 = vdwg.mxu0
        %2308 = vmatpush.bf16.msra.mxu0 %v1915
        %2309 = vmatpush.bf16.msra.mxu0 %v1911
        %2310 = vmatpush.bf16.msra.mxu0 %v1907
        %2311 = vmatpush.bf16.msra.mxu0 %v1903
        %2312 = vmatpush.bf16.msra.mxu0 %v1899
        %2313 = vmatpush.bf16.msra.mxu0 %v1895
        %2314 = vmatpush.bf16.msra.mxu0 %v1891
        %2315 = vmatpush.bf16.msra.mxu0 %v1887
        %2316 = vmatmul.bf16.gmra.mxu0 %v1487
        %v2317 = vpop.f32.mrf.mxu0
        %v2318 = vadd.f32 %v1495, %v2317
        %v2319 = vpop.f32.mrf.mxu0
        %v2320 = vadd.f32 %v1495, %v2319
        %2321 = vdwg.mxu0
        %2322 = vmatpush.bf16.msra.mxu0 %v1947
        %2323 = vmatpush.bf16.msra.mxu0 %v1943
        %2324 = vmatpush.bf16.msra.mxu0 %v1939
        %2325 = vmatpush.bf16.msra.mxu0 %v1935
        %2326 = vmatpush.bf16.msra.mxu0 %v1931
        %2327 = vmatpush.bf16.msra.mxu0 %v1927
        %2328 = vmatpush.bf16.msra.mxu0 %v1923
        %2329 = vmatpush.bf16.msra.mxu0 %v1919
        %2330 = vmatmul.bf16.gmra.mxu0 %v1488
        %v2331 = vpop.f32.mrf.mxu0
        %v2332 = vadd.f32 %v2318, %v2331
        %v2333 = vpop.f32.mrf.mxu0
        %v2334 = vadd.f32 %v2320, %v2333
        %2335 = vdwg.mxu0
        %2336 = vmatpush.bf16.msra.mxu0 %v1979
        %2337 = vmatpush.bf16.msra.mxu0 %v1975
        %2338 = vmatpush.bf16.msra.mxu0 %v1971
        %2339 = vmatpush.bf16.msra.mxu0 %v1967
        %2340 = vmatpush.bf16.msra.mxu0 %v1963
        %2341 = vmatpush.bf16.msra.mxu0 %v1959
        %2342 = vmatpush.bf16.msra.mxu0 %v1955
        %2343 = vmatpush.bf16.msra.mxu0 %v1951
        %2344 = vmatmul.bf16.gmra.mxu0 %v1489
        %v2345 = vpop.f32.mrf.mxu0
        %v2346 = vadd.f32 %v2332, %v2345
        %v2347 = vpop.f32.mrf.mxu0
        %v2348 = vadd.f32 %v2334, %v2347
        %2349 = vdwg.mxu0
        %2350 = vmatpush.bf16.msra.mxu0 %v2011
        %2351 = vmatpush.bf16.msra.mxu0 %v2007
        %2352 = vmatpush.bf16.msra.mxu0 %v2003
        %2353 = vmatpush.bf16.msra.mxu0 %v1999
        %2354 = vmatpush.bf16.msra.mxu0 %v1995
        %2355 = vmatpush.bf16.msra.mxu0 %v1991
        %2356 = vmatpush.bf16.msra.mxu0 %v1987
        %2357 = vmatpush.bf16.msra.mxu0 %v1983
        %2358 = vmatmul.bf16.gmra.mxu0 %v1490
        %v2359 = vpop.f32.mrf.mxu0
        %v2360 = vadd.f32 %v2346, %v2359
        %v2361 = vpop.f32.mrf.mxu0
        %v2362 = vadd.f32 %v2348, %v2361
        %2363 = vdwg.mxu0
        %v2364 = vmax.f32 %v2192, 0.0
        %v2365 = vmax.f32 %v2248, 0.0
        %v2366 = vmax.f32 %v2304, 0.0
        %v2367 = vmax.f32 %v2360, 0.0
        %v2368 = vmax.f32 %v2194, 0.0
        %v2369 = vmax.f32 %v2250, 0.0
        %v2370 = vmax.f32 %v2306, 0.0
        %v2371 = vmax.f32 %v2362, 0.0
        %v2372 = vand.u32 2147483647, %v2192
        %v2373 = vand.u32 2147483647, %v2248
        %v2374 = vand.u32 2147483647, %v2304
        %v2375 = vand.u32 2147483647, %v2360
        %v2376 = vand.u32 2147483647, %v2194
        %v2377 = vand.u32 2147483647, %v2250
        %v2378 = vand.u32 2147483647, %v2306
        %v2379 = vand.u32 2147483647, %v2362
        %v2380 = vsub.f32 0.0, %v2372
        %v2381 = vsub.f32 0.0, %v2373
        %v2382 = vsub.f32 0.0, %v2374
        %v2383 = vsub.f32 0.0, %v2375
        %v2384 = vsub.f32 0.0, %v2376
        %v2385 = vsub.f32 0.0, %v2377
        %v2386 = vsub.f32 0.0, %v2378
        %v2387 = vsub.f32 0.0, %v2379
        %v2388 = vmul.f32 %v2380, 1.442695
        %v2389 = vpow.pop %v2388
        %v2390 = vmul.f32 %v2381, 1.442695
        %v2391 = vpow.pop %v2390
        %v2392 = vmul.f32 %v2382, 1.442695
        %v2393 = vpow.pop %v2392
        %v2394 = vmul.f32 %v2383, 1.442695
        %v2395 = vpow.pop %v2394
        %v2396 = vmul.f32 %v2384, 1.442695
        %v2397 = vpow.pop %v2396
        %v2398 = vmul.f32 %v2385, 1.442695
        %v2399 = vpow.pop %v2398
        %v2400 = vmul.f32 %v2386, 1.442695
        %v2401 = vpow.pop %v2400
        %v2402 = vmul.f32 %v2387, 1.442695
        %v2403 = vpow.pop %v2402
        %v2404 = vadd.f32 %v2389, 1.0
        %v2405 = vlog2.pop %v2404
        %v2406 = vmul.f32 %v2405, 0.6931472
        %v2407 = vmul.f32 -0.5, %v2389
        %v2408 = vadd.f32 %v2407, 1.0
        %v2409 = vmul.f32 %v2408, %v2389
        %v2410 = vand.u32 2147483647, %v2389
        %vm2411 = vcmp.lt.f32.partialorder %v2410, 0.0004427343
        %v2412 = vsel %vm2411, %v2409, %v2406
        %v2413 = vadd.f32 %v2391, 1.0
        %v2414 = vlog2.pop %v2413
        %v2415 = vmul.f32 %v2414, 0.6931472
        %v2416 = vmul.f32 -0.5, %v2391
        %v2417 = vadd.f32 %v2416, 1.0
        %v2418 = vmul.f32 %v2417, %v2391
        %v2419 = vand.u32 2147483647, %v2391
        %vm2420 = vcmp.lt.f32.partialorder %v2419, 0.0004427343
        %v2421 = vsel %vm2420, %v2418, %v2415
        %v2422 = vadd.f32 %v2393, 1.0
        %v2423 = vlog2.pop %v2422
        %v2424 = vmul.f32 %v2423, 0.6931472
        %v2425 = vmul.f32 -0.5, %v2393
        %v2426 = vadd.f32 %v2425, 1.0
        %v2427 = vmul.f32 %v2426, %v2393
        %v2428 = vand.u32 2147483647, %v2393
        %vm2429 = vcmp.lt.f32.partialorder %v2428, 0.0004427343
        %v2430 = vsel %vm2429, %v2427, %v2424
        %v2431 = vadd.f32 %v2395, 1.0
        %v2432 = vlog2.pop %v2431
        %v2433 = vmul.f32 %v2432, 0.6931472
        %v2434 = vmul.f32 -0.5, %v2395
        %v2435 = vadd.f32 %v2434, 1.0
        %v2436 = vmul.f32 %v2435, %v2395
        %v2437 = vand.u32 2147483647, %v2395
        %vm2438 = vcmp.lt.f32.partialorder %v2437, 0.0004427343
        %v2439 = vsel %vm2438, %v2436, %v2433
        %v2440 = vadd.f32 %v2397, 1.0
        %v2441 = vlog2.pop %v2440
        %v2442 = vmul.f32 %v2441, 0.6931472
        %v2443 = vmul.f32 -0.5, %v2397
        %v2444 = vadd.f32 %v2443, 1.0
        %v2445 = vmul.f32 %v2444, %v2397
        %v2446 = vand.u32 2147483647, %v2397
        %vm2447 = vcmp.lt.f32.partialorder %v2446, 0.0004427343
        %v2448 = vsel %vm2447, %v2445, %v2442
        %v2449 = vadd.f32 %v2399, 1.0
        %v2450 = vlog2.pop %v2449
        %v2451 = vmul.f32 %v2450, 0.6931472
        %v2452 = vmul.f32 -0.5, %v2399
        %v2453 = vadd.f32 %v2452, 1.0
        %v2454 = vmul.f32 %v2453, %v2399
        %v2455 = vand.u32 2147483647, %v2399
        %vm2456 = vcmp.lt.f32.partialorder %v2455, 0.0004427343
        %v2457 = vsel %vm2456, %v2454, %v2451
        %v2458 = vadd.f32 %v2401, 1.0
        %v2459 = vlog2.pop %v2458
        %v2460 = vmul.f32 %v2459, 0.6931472
        %v2461 = vmul.f32 -0.5, %v2401
        %v2462 = vadd.f32 %v2461, 1.0
        %v2463 = vmul.f32 %v2462, %v2401
        %v2464 = vand.u32 2147483647, %v2401
        %vm2465 = vcmp.lt.f32.partialorder %v2464, 0.0004427343
        %v2466 = vsel %vm2465, %v2463, %v2460
        %v2467 = vadd.f32 %v2403, 1.0
        %v2468 = vlog2.pop %v2467
        %v2469 = vmul.f32 %v2468, 0.6931472
        %v2470 = vmul.f32 -0.5, %v2403
        %v2471 = vadd.f32 %v2470, 1.0
        %v2472 = vmul.f32 %v2471, %v2403
        %v2473 = vand.u32 2147483647, %v2403
        %vm2474 = vcmp.lt.f32.partialorder %v2473, 0.0004427343
        %v2475 = vsel %vm2474, %v2472, %v2469
        %v2476 = vadd.f32 %v2364, %v2412
        %v2477 = vadd.f32 %v2365, %v2421
        %v2478 = vadd.f32 %v2366, %v2430
        %v2479 = vadd.f32 %v2367, %v2439
        %v2480 = vadd.f32 %v2368, %v2448
        %v2481 = vadd.f32 %v2369, %v2457
        %v2482 = vadd.f32 %v2370, %v2466
        %v2483 = vadd.f32 %v2371, %v2475
        %s2484 = scalar_lea.vmem %s172, 2048 [#allocation2]
        %v2485 = vld [vmem:[%s2484] sm:$0xff]
        %v2486 = vld [vmem:[%s2484 + $0x8] sm:$0xff]
        %v2487 = vld [vmem:[%s2484 + $0x10] sm:$0xff]
        %v2488 = vld [vmem:[%s2484 + $0x18] sm:$0xff]
        %v2489 = vld [vmem:[%s2484 + $0x20] sm:$0xff]
        %v2490 = vld [vmem:[%s2484 + $0x28] sm:$0xff]
        %v2491 = vld [vmem:[%s2484 + $0x30] sm:$0xff]
        %v2492 = vld [vmem:[%s2484 + $0x38] sm:$0xff]
        %v2493 = vld [vmem:[%s2484 + $0x40] sm:$0xff]
        %v2494 = vld [vmem:[%s2484 + $0x48] sm:$0xff]
        %v2495 = vld [vmem:[%s2484 + $0x50] sm:$0xff]
        %v2496 = vld [vmem:[%s2484 + $0x58] sm:$0xff]
        %v2497 = vld [vmem:[%s2484 + $0x60] sm:$0xff]
        %v2498 = vld [vmem:[%s2484 + $0x68] sm:$0xff]
        %v2499 = vld [vmem:[%s2484 + $0x70] sm:$0xff]
        %v2500 = vld [vmem:[%s2484 + $0x78] sm:$0xff]
        %v2501 = vld [vmem:[%s2484 + $0x80] sm:$0xff]
        %v2502 = vld [vmem:[%s2484 + $0x88] sm:$0xff]
        %v2503 = vld [vmem:[%s2484 + $0x90] sm:$0xff]
        %v2504 = vld [vmem:[%s2484 + $0x98] sm:$0xff]
        %v2505 = vld [vmem:[%s2484 + $0xa0] sm:$0xff]
        %v2506 = vld [vmem:[%s2484 + $0xa8] sm:$0xff]
        %v2507 = vld [vmem:[%s2484 + $0xb0] sm:$0xff]
        %v2508 = vld [vmem:[%s2484 + $0xb8] sm:$0xff]
        %v2509 = vld [vmem:[%s2484 + $0xc0] sm:$0xff]
        %v2510 = vld [vmem:[%s2484 + $0xc8] sm:$0xff]
        %v2511 = vld [vmem:[%s2484 + $0xd0] sm:$0xff]
        %v2512 = vld [vmem:[%s2484 + $0xd8] sm:$0xff]
        %v2513 = vld [vmem:[%s2484 + $0xe0] sm:$0xff]
        %v2514 = vld [vmem:[%s2484 + $0xe8] sm:$0xff]
        %v2515 = vld [vmem:[%s2484 + $0xf0] sm:$0xff]
        %v2516 = vld [vmem:[%s2484 + $0xf8] sm:$0xff]
        %v2517 = vld [vmem:[%s2484 + $0x100] sm:$0xff]
        %v2518 = vld [vmem:[%s2484 + $0x108] sm:$0xff]
        %v2519 = vld [vmem:[%s2484 + $0x110] sm:$0xff]
        %v2520 = vld [vmem:[%s2484 + $0x118] sm:$0xff]
        %v2521 = vld [vmem:[%s2484 + $0x120] sm:$0xff]
        %v2522 = vld [vmem:[%s2484 + $0x128] sm:$0xff]
        %v2523 = vld [vmem:[%s2484 + $0x130] sm:$0xff]
        %v2524 = vld [vmem:[%s2484 + $0x138] sm:$0xff]
        %v2525 = vld [vmem:[%s2484 + $0x140] sm:$0xff]
        %v2526 = vld [vmem:[%s2484 + $0x148] sm:$0xff]
        %v2527 = vld [vmem:[%s2484 + $0x150] sm:$0xff]
        %v2528 = vld [vmem:[%s2484 + $0x158] sm:$0xff]
        %v2529 = vld [vmem:[%s2484 + $0x160] sm:$0xff]
        %v2530 = vld [vmem:[%s2484 + $0x168] sm:$0xff]
        %v2531 = vld [vmem:[%s2484 + $0x170] sm:$0xff]
        %v2532 = vld [vmem:[%s2484 + $0x178] sm:$0xff]
        %v2533 = vld [vmem:[%s2484 + $0x180] sm:$0xff]
        %v2534 = vld [vmem:[%s2484 + $0x188] sm:$0xff]
        %v2535 = vld [vmem:[%s2484 + $0x190] sm:$0xff]
        %v2536 = vld [vmem:[%s2484 + $0x198] sm:$0xff]
        %v2537 = vld [vmem:[%s2484 + $0x1a0] sm:$0xff]
        %v2538 = vld [vmem:[%s2484 + $0x1a8] sm:$0xff]
        %v2539 = vld [vmem:[%s2484 + $0x1b0] sm:$0xff]
        %v2540 = vld [vmem:[%s2484 + $0x1b8] sm:$0xff]
        %v2541 = vld [vmem:[%s2484 + $0x1c0] sm:$0xff]
        %v2542 = vld [vmem:[%s2484 + $0x1c8] sm:$0xff]
        %v2543 = vld [vmem:[%s2484 + $0x1d0] sm:$0xff]
        %v2544 = vld [vmem:[%s2484 + $0x1d8] sm:$0xff]
        %v2545 = vld [vmem:[%s2484 + $0x1e0] sm:$0xff]
        %v2546 = vld [vmem:[%s2484 + $0x1e8] sm:$0xff]
        %v2547 = vld [vmem:[%s2484 + $0x1f0] sm:$0xff]
        %v2548 = vld [vmem:[%s2484 + $0x1f8] sm:$0xff]
        %v2549 = vld [vmem:[%s2484 + $0x200] sm:$0xff]
        %v2550 = vld [vmem:[%s2484 + $0x208] sm:$0xff]
        %v2551 = vld [vmem:[%s2484 + $0x210] sm:$0xff]
        %v2552 = vld [vmem:[%s2484 + $0x218] sm:$0xff]
        %v2553 = vld [vmem:[%s2484 + $0x220] sm:$0xff]
        %v2554 = vld [vmem:[%s2484 + $0x228] sm:$0xff]
        %v2555 = vld [vmem:[%s2484 + $0x230] sm:$0xff]
        %v2556 = vld [vmem:[%s2484 + $0x238] sm:$0xff]
        %v2557 = vld [vmem:[%s2484 + $0x240] sm:$0xff]
        %v2558 = vld [vmem:[%s2484 + $0x248] sm:$0xff]
        %v2559 = vld [vmem:[%s2484 + $0x250] sm:$0xff]
        %v2560 = vld [vmem:[%s2484 + $0x258] sm:$0xff]
        %v2561 = vld [vmem:[%s2484 + $0x260] sm:$0xff]
        %v2562 = vld [vmem:[%s2484 + $0x268] sm:$0xff]
        %v2563 = vld [vmem:[%s2484 + $0x270] sm:$0xff]
        %v2564 = vld [vmem:[%s2484 + $0x278] sm:$0xff]
        %v2565 = vld [vmem:[%s2484 + $0x280] sm:$0xff]
        %v2566 = vld [vmem:[%s2484 + $0x288] sm:$0xff]
        %v2567 = vld [vmem:[%s2484 + $0x290] sm:$0xff]
        %v2568 = vld [vmem:[%s2484 + $0x298] sm:$0xff]
        %v2569 = vld [vmem:[%s2484 + $0x2a0] sm:$0xff]
        %v2570 = vld [vmem:[%s2484 + $0x2a8] sm:$0xff]
        %v2571 = vld [vmem:[%s2484 + $0x2b0] sm:$0xff]
        %v2572 = vld [vmem:[%s2484 + $0x2b8] sm:$0xff]
        %v2573 = vld [vmem:[%s2484 + $0x2c0] sm:$0xff]
        %v2574 = vld [vmem:[%s2484 + $0x2c8] sm:$0xff]
        %v2575 = vld [vmem:[%s2484 + $0x2d0] sm:$0xff]
        %v2576 = vld [vmem:[%s2484 + $0x2d8] sm:$0xff]
        %v2577 = vld [vmem:[%s2484 + $0x2e0] sm:$0xff]
        %v2578 = vld [vmem:[%s2484 + $0x2e8] sm:$0xff]
        %v2579 = vld [vmem:[%s2484 + $0x2f0] sm:$0xff]
        %v2580 = vld [vmem:[%s2484 + $0x2f8] sm:$0xff]
        %v2581 = vld [vmem:[%s2484 + $0x300] sm:$0xff]
        %v2582 = vld [vmem:[%s2484 + $0x308] sm:$0xff]
        %v2583 = vld [vmem:[%s2484 + $0x310] sm:$0xff]
        %v2584 = vld [vmem:[%s2484 + $0x318] sm:$0xff]
        %v2585 = vld [vmem:[%s2484 + $0x320] sm:$0xff]
        %v2586 = vld [vmem:[%s2484 + $0x328] sm:$0xff]
        %v2587 = vld [vmem:[%s2484 + $0x330] sm:$0xff]
        %v2588 = vld [vmem:[%s2484 + $0x338] sm:$0xff]
        %v2589 = vld [vmem:[%s2484 + $0x340] sm:$0xff]
        %v2590 = vld [vmem:[%s2484 + $0x348] sm:$0xff]
        %v2591 = vld [vmem:[%s2484 + $0x350] sm:$0xff]
        %v2592 = vld [vmem:[%s2484 + $0x358] sm:$0xff]
        %v2593 = vld [vmem:[%s2484 + $0x360] sm:$0xff]
        %v2594 = vld [vmem:[%s2484 + $0x368] sm:$0xff]
        %v2595 = vld [vmem:[%s2484 + $0x370] sm:$0xff]
        %v2596 = vld [vmem:[%s2484 + $0x378] sm:$0xff]
        %v2597 = vld [vmem:[%s2484 + $0x380] sm:$0xff]
        %v2598 = vld [vmem:[%s2484 + $0x388] sm:$0xff]
        %v2599 = vld [vmem:[%s2484 + $0x390] sm:$0xff]
        %v2600 = vld [vmem:[%s2484 + $0x398] sm:$0xff]
        %v2601 = vld [vmem:[%s2484 + $0x3a0] sm:$0xff]
        %v2602 = vld [vmem:[%s2484 + $0x3a8] sm:$0xff]
        %v2603 = vld [vmem:[%s2484 + $0x3b0] sm:$0xff]
        %v2604 = vld [vmem:[%s2484 + $0x3b8] sm:$0xff]
        %v2605 = vld [vmem:[%s2484 + $0x3c0] sm:$0xff]
        %v2606 = vld [vmem:[%s2484 + $0x3c8] sm:$0xff]
        %v2607 = vld [vmem:[%s2484 + $0x3d0] sm:$0xff]
        %v2608 = vld [vmem:[%s2484 + $0x3d8] sm:$0xff]
        %v2609 = vld [vmem:[%s2484 + $0x3e0] sm:$0xff]
        %v2610 = vld [vmem:[%s2484 + $0x3e8] sm:$0xff]
        %v2611 = vld [vmem:[%s2484 + $0x3f0] sm:$0xff]
        %v2612 = vld [vmem:[%s2484 + $0x3f8] sm:$0xff]
        %s2613 = sadd.s32 %s225, 2
        %s2614 = smul.u32 %s2613, 4
        %s2615 = scalar_lea.vmem [#allocation4], %s2614
        %v2616 = vld [vmem:[%s2615] sm:$0xf]
        %v2617 = vpack.c.bf16 %v2480, %v2476
        %v2618 = vpack.c.bf16 %v2481, %v2477
        %v2619 = vpack.c.bf16 %v2482, %v2478
        %v2620 = vpack.c.bf16 %v2483, %v2479
        %v2622 = vperm.slane %v2616, 0
        %v2623 = vperm.slane %v2616, 1
        %v2624 = vperm.slane %v2616, 2
        %v2625 = vperm.slane %v2616, 3
        %v2758 = vunpack.c.l.b16 %v2485
        %v2759 = vunpack.c.h.b16 %v2485
        %v2760 = vunpack.c.l.b16 %v2486
        %v2761 = vunpack.c.h.b16 %v2486
        %v2762 = vunpack.c.l.b16 %v2487
        %v2763 = vunpack.c.h.b16 %v2487
        %v2764 = vunpack.c.l.b16 %v2488
        %v2765 = vunpack.c.h.b16 %v2488
        %v2766 = vunpack.c.l.b16 %v2489
        %v2767 = vunpack.c.h.b16 %v2489
        %v2768 = vunpack.c.l.b16 %v2490
        %v2769 = vunpack.c.h.b16 %v2490
        %v2770 = vunpack.c.l.b16 %v2491
        %v2771 = vunpack.c.h.b16 %v2491
        %v2772 = vunpack.c.l.b16 %v2492
        %v2773 = vunpack.c.h.b16 %v2492
        %v2774 = vunpack.c.l.b16 %v2493
        %v2775 = vunpack.c.h.b16 %v2493
        %v2776 = vunpack.c.l.b16 %v2494
        %v2777 = vunpack.c.h.b16 %v2494
        %v2778 = vunpack.c.l.b16 %v2495
        %v2779 = vunpack.c.h.b16 %v2495
        %v2780 = vunpack.c.l.b16 %v2496
        %v2781 = vunpack.c.h.b16 %v2496
        %v2782 = vunpack.c.l.b16 %v2497
        %v2783 = vunpack.c.h.b16 %v2497
        %v2784 = vunpack.c.l.b16 %v2498
        %v2785 = vunpack.c.h.b16 %v2498
        %v2786 = vunpack.c.l.b16 %v2499
        %v2787 = vunpack.c.h.b16 %v2499
        %v2788 = vunpack.c.l.b16 %v2500
        %v2789 = vunpack.c.h.b16 %v2500
        %v2790 = vunpack.c.l.b16 %v2501
        %v2791 = vunpack.c.h.b16 %v2501
        %v2792 = vunpack.c.l.b16 %v2502
        %v2793 = vunpack.c.h.b16 %v2502
        %v2794 = vunpack.c.l.b16 %v2503
        %v2795 = vunpack.c.h.b16 %v2503
        %v2796 = vunpack.c.l.b16 %v2504
        %v2797 = vunpack.c.h.b16 %v2504
        %v2798 = vunpack.c.l.b16 %v2505
        %v2799 = vunpack.c.h.b16 %v2505
        %v2800 = vunpack.c.l.b16 %v2506
        %v2801 = vunpack.c.h.b16 %v2506
        %v2802 = vunpack.c.l.b16 %v2507
        %v2803 = vunpack.c.h.b16 %v2507
        %v2804 = vunpack.c.l.b16 %v2508
        %v2805 = vunpack.c.h.b16 %v2508
        %v2806 = vunpack.c.l.b16 %v2509
        %v2807 = vunpack.c.h.b16 %v2509
        %v2808 = vunpack.c.l.b16 %v2510
        %v2809 = vunpack.c.h.b16 %v2510
        %v2810 = vunpack.c.l.b16 %v2511
        %v2811 = vunpack.c.h.b16 %v2511
        %v2812 = vunpack.c.l.b16 %v2512
        %v2813 = vunpack.c.h.b16 %v2512
        %v2814 = vunpack.c.l.b16 %v2513
        %v2815 = vunpack.c.h.b16 %v2513
        %v2816 = vunpack.c.l.b16 %v2514
        %v2817 = vunpack.c.h.b16 %v2514
        %v2818 = vunpack.c.l.b16 %v2515
        %v2819 = vunpack.c.h.b16 %v2515
        %v2820 = vunpack.c.l.b16 %v2516
        %v2821 = vunpack.c.h.b16 %v2516
        %v2822 = vunpack.c.l.b16 %v2517
        %v2823 = vunpack.c.h.b16 %v2517
        %v2824 = vunpack.c.l.b16 %v2518
        %v2825 = vunpack.c.h.b16 %v2518
        %v2826 = vunpack.c.l.b16 %v2519
        %v2827 = vunpack.c.h.b16 %v2519
        %v2828 = vunpack.c.l.b16 %v2520
        %v2829 = vunpack.c.h.b16 %v2520
        %v2830 = vunpack.c.l.b16 %v2521
        %v2831 = vunpack.c.h.b16 %v2521
        %v2832 = vunpack.c.l.b16 %v2522
        %v2833 = vunpack.c.h.b16 %v2522
        %v2834 = vunpack.c.l.b16 %v2523
        %v2835 = vunpack.c.h.b16 %v2523
        %v2836 = vunpack.c.l.b16 %v2524
        %v2837 = vunpack.c.h.b16 %v2524
        %v2838 = vunpack.c.l.b16 %v2525
        %v2839 = vunpack.c.h.b16 %v2525
        %v2840 = vunpack.c.l.b16 %v2526
        %v2841 = vunpack.c.h.b16 %v2526
        %v2842 = vunpack.c.l.b16 %v2527
        %v2843 = vunpack.c.h.b16 %v2527
        %v2844 = vunpack.c.l.b16 %v2528
        %v2845 = vunpack.c.h.b16 %v2528
        %v2846 = vunpack.c.l.b16 %v2529
        %v2847 = vunpack.c.h.b16 %v2529
        %v2848 = vunpack.c.l.b16 %v2530
        %v2849 = vunpack.c.h.b16 %v2530
        %v2850 = vunpack.c.l.b16 %v2531
        %v2851 = vunpack.c.h.b16 %v2531
        %v2852 = vunpack.c.l.b16 %v2532
        %v2853 = vunpack.c.h.b16 %v2532
        %v2854 = vunpack.c.l.b16 %v2533
        %v2855 = vunpack.c.h.b16 %v2533
        %v2856 = vunpack.c.l.b16 %v2534
        %v2857 = vunpack.c.h.b16 %v2534
        %v2858 = vunpack.c.l.b16 %v2535
        %v2859 = vunpack.c.h.b16 %v2535
        %v2860 = vunpack.c.l.b16 %v2536
        %v2861 = vunpack.c.h.b16 %v2536
        %v2862 = vunpack.c.l.b16 %v2537
        %v2863 = vunpack.c.h.b16 %v2537
        %v2864 = vunpack.c.l.b16 %v2538
        %v2865 = vunpack.c.h.b16 %v2538
        %v2866 = vunpack.c.l.b16 %v2539
        %v2867 = vunpack.c.h.b16 %v2539
        %v2868 = vunpack.c.l.b16 %v2540
        %v2869 = vunpack.c.h.b16 %v2540
        %v2870 = vunpack.c.l.b16 %v2541
        %v2871 = vunpack.c.h.b16 %v2541
        %v2872 = vunpack.c.l.b16 %v2542
        %v2873 = vunpack.c.h.b16 %v2542
        %v2874 = vunpack.c.l.b16 %v2543
        %v2875 = vunpack.c.h.b16 %v2543
        %v2876 = vunpack.c.l.b16 %v2544
        %v2877 = vunpack.c.h.b16 %v2544
        %v2878 = vunpack.c.l.b16 %v2545
        %v2879 = vunpack.c.h.b16 %v2545
        %v2880 = vunpack.c.l.b16 %v2546
        %v2881 = vunpack.c.h.b16 %v2546
        %v2882 = vunpack.c.l.b16 %v2547
        %v2883 = vunpack.c.h.b16 %v2547
        %v2884 = vunpack.c.l.b16 %v2548
        %v2885 = vunpack.c.h.b16 %v2548
        %v2886 = vunpack.c.l.b16 %v2549
        %v2887 = vunpack.c.h.b16 %v2549
        %v2888 = vunpack.c.l.b16 %v2550
        %v2889 = vunpack.c.h.b16 %v2550
        %v2890 = vunpack.c.l.b16 %v2551
        %v2891 = vunpack.c.h.b16 %v2551
        %v2892 = vunpack.c.l.b16 %v2552
        %v2893 = vunpack.c.h.b16 %v2552
        %v2894 = vunpack.c.l.b16 %v2553
        %v2895 = vunpack.c.h.b16 %v2553
        %v2896 = vunpack.c.l.b16 %v2554
        %v2897 = vunpack.c.h.b16 %v2554
        %v2898 = vunpack.c.l.b16 %v2555
        %v2899 = vunpack.c.h.b16 %v2555
        %v2900 = vunpack.c.l.b16 %v2556
        %v2901 = vunpack.c.h.b16 %v2556
        %v2902 = vunpack.c.l.b16 %v2557
        %v2903 = vunpack.c.h.b16 %v2557
        %v2904 = vunpack.c.l.b16 %v2558
        %v2905 = vunpack.c.h.b16 %v2558
        %v2906 = vunpack.c.l.b16 %v2559
        %v2907 = vunpack.c.h.b16 %v2559
        %v2908 = vunpack.c.l.b16 %v2560
        %v2909 = vunpack.c.h.b16 %v2560
        %v2910 = vunpack.c.l.b16 %v2561
        %v2911 = vunpack.c.h.b16 %v2561
        %v2912 = vunpack.c.l.b16 %v2562
        %v2913 = vunpack.c.h.b16 %v2562
        %v2914 = vunpack.c.l.b16 %v2563
        %v2915 = vunpack.c.h.b16 %v2563
        %v2916 = vunpack.c.l.b16 %v2564
        %v2917 = vunpack.c.h.b16 %v2564
        %v2918 = vunpack.c.l.b16 %v2565
        %v2919 = vunpack.c.h.b16 %v2565
        %v2920 = vunpack.c.l.b16 %v2566
        %v2921 = vunpack.c.h.b16 %v2566
        %v2922 = vunpack.c.l.b16 %v2567
        %v2923 = vunpack.c.h.b16 %v2567
        %v2924 = vunpack.c.l.b16 %v2568
        %v2925 = vunpack.c.h.b16 %v2568
        %v2926 = vunpack.c.l.b16 %v2569
        %v2927 = vunpack.c.h.b16 %v2569
        %v2928 = vunpack.c.l.b16 %v2570
        %v2929 = vunpack.c.h.b16 %v2570
        %v2930 = vunpack.c.l.b16 %v2571
        %v2931 = vunpack.c.h.b16 %v2571
        %v2932 = vunpack.c.l.b16 %v2572
        %v2933 = vunpack.c.h.b16 %v2572
        %v2934 = vunpack.c.l.b16 %v2573
        %v2935 = vunpack.c.h.b16 %v2573
        %v2936 = vunpack.c.l.b16 %v2574
        %v2937 = vunpack.c.h.b16 %v2574
        %v2938 = vunpack.c.l.b16 %v2575
        %v2939 = vunpack.c.h.b16 %v2575
        %v2940 = vunpack.c.l.b16 %v2576
        %v2941 = vunpack.c.h.b16 %v2576
        %v2942 = vunpack.c.l.b16 %v2577
        %v2943 = vunpack.c.h.b16 %v2577
        %v2944 = vunpack.c.l.b16 %v2578
        %v2945 = vunpack.c.h.b16 %v2578
        %v2946 = vunpack.c.l.b16 %v2579
        %v2947 = vunpack.c.h.b16 %v2579
        %v2948 = vunpack.c.l.b16 %v2580
        %v2949 = vunpack.c.h.b16 %v2580
        %v2950 = vunpack.c.l.b16 %v2581
        %v2951 = vunpack.c.h.b16 %v2581
        %v2952 = vunpack.c.l.b16 %v2582
        %v2953 = vunpack.c.h.b16 %v2582
        %v2954 = vunpack.c.l.b16 %v2583
        %v2955 = vunpack.c.h.b16 %v2583
        %v2956 = vunpack.c.l.b16 %v2584
        %v2957 = vunpack.c.h.b16 %v2584
        %v2958 = vunpack.c.l.b16 %v2585
        %v2959 = vunpack.c.h.b16 %v2585
        %v2960 = vunpack.c.l.b16 %v2586
        %v2961 = vunpack.c.h.b16 %v2586
        %v2962 = vunpack.c.l.b16 %v2587
        %v2963 = vunpack.c.h.b16 %v2587
        %v2964 = vunpack.c.l.b16 %v2588
        %v2965 = vunpack.c.h.b16 %v2588
        %v2966 = vunpack.c.l.b16 %v2589
        %v2967 = vunpack.c.h.b16 %v2589
        %v2968 = vunpack.c.l.b16 %v2590
        %v2969 = vunpack.c.h.b16 %v2590
        %v2970 = vunpack.c.l.b16 %v2591
        %v2971 = vunpack.c.h.b16 %v2591
        %v2972 = vunpack.c.l.b16 %v2592
        %v2973 = vunpack.c.h.b16 %v2592
        %v2974 = vunpack.c.l.b16 %v2593
        %v2975 = vunpack.c.h.b16 %v2593
        %v2976 = vunpack.c.l.b16 %v2594
        %v2977 = vunpack.c.h.b16 %v2594
        %v2978 = vunpack.c.l.b16 %v2595
        %v2979 = vunpack.c.h.b16 %v2595
        %v2980 = vunpack.c.l.b16 %v2596
        %v2981 = vunpack.c.h.b16 %v2596
        %v2982 = vunpack.c.l.b16 %v2597
        %v2983 = vunpack.c.h.b16 %v2597
        %v2984 = vunpack.c.l.b16 %v2598
        %v2985 = vunpack.c.h.b16 %v2598
        %v2986 = vunpack.c.l.b16 %v2599
        %v2987 = vunpack.c.h.b16 %v2599
        %v2988 = vunpack.c.l.b16 %v2600
        %v2989 = vunpack.c.h.b16 %v2600
        %v2990 = vunpack.c.l.b16 %v2601
        %v2991 = vunpack.c.h.b16 %v2601
        %v2992 = vunpack.c.l.b16 %v2602
        %v2993 = vunpack.c.h.b16 %v2602
        %v2994 = vunpack.c.l.b16 %v2603
        %v2995 = vunpack.c.h.b16 %v2603
        %v2996 = vunpack.c.l.b16 %v2604
        %v2997 = vunpack.c.h.b16 %v2604
        %v2998 = vunpack.c.l.b16 %v2605
        %v2999 = vunpack.c.h.b16 %v2605
        %v3000 = vunpack.c.l.b16 %v2606
        %v3001 = vunpack.c.h.b16 %v2606
        %v3002 = vunpack.c.l.b16 %v2607
        %v3003 = vunpack.c.h.b16 %v2607
        %v3004 = vunpack.c.l.b16 %v2608
        %v3005 = vunpack.c.h.b16 %v2608
        %v3006 = vunpack.c.l.b16 %v2609
        %v3007 = vunpack.c.h.b16 %v2609
        %v3008 = vunpack.c.l.b16 %v2610
        %v3009 = vunpack.c.h.b16 %v2610
        %v3010 = vunpack.c.l.b16 %v2611
        %v3011 = vunpack.c.h.b16 %v2611
        %v3012 = vunpack.c.l.b16 %v2612
        %v3013 = vunpack.c.h.b16 %v2612
        %v3014 = vpack.c.b16 %v2762, %v2758
        %v3015 = vpack.c.b16 %v2763, %v2759
        %v3016 = vpack.c.b16 %v2764, %v2760
        %v3017 = vpack.c.b16 %v2765, %v2761
        %v3018 = vpack.c.b16 %v2770, %v2766
        %v3019 = vpack.c.b16 %v2771, %v2767
        %v3020 = vpack.c.b16 %v2772, %v2768
        %v3021 = vpack.c.b16 %v2773, %v2769
        %v3022 = vpack.c.b16 %v2778, %v2774
        %v3023 = vpack.c.b16 %v2779, %v2775
        %v3024 = vpack.c.b16 %v2780, %v2776
        %v3025 = vpack.c.b16 %v2781, %v2777
        %v3026 = vpack.c.b16 %v2786, %v2782
        %v3027 = vpack.c.b16 %v2787, %v2783
        %v3028 = vpack.c.b16 %v2788, %v2784
        %v3029 = vpack.c.b16 %v2789, %v2785
        %v3030 = vpack.c.b16 %v2794, %v2790
        %v3031 = vpack.c.b16 %v2795, %v2791
        %v3032 = vpack.c.b16 %v2796, %v2792
        %v3033 = vpack.c.b16 %v2797, %v2793
        %v3034 = vpack.c.b16 %v2802, %v2798
        %v3035 = vpack.c.b16 %v2803, %v2799
        %v3036 = vpack.c.b16 %v2804, %v2800
        %v3037 = vpack.c.b16 %v2805, %v2801
        %v3038 = vpack.c.b16 %v2810, %v2806
        %v3039 = vpack.c.b16 %v2811, %v2807
        %v3040 = vpack.c.b16 %v2812, %v2808
        %v3041 = vpack.c.b16 %v2813, %v2809
        %v3042 = vpack.c.b16 %v2818, %v2814
        %v3043 = vpack.c.b16 %v2819, %v2815
        %v3044 = vpack.c.b16 %v2820, %v2816
        %v3045 = vpack.c.b16 %v2821, %v2817
        %v3046 = vpack.c.b16 %v2826, %v2822
        %v3047 = vpack.c.b16 %v2827, %v2823
        %v3048 = vpack.c.b16 %v2828, %v2824
        %v3049 = vpack.c.b16 %v2829, %v2825
        %v3050 = vpack.c.b16 %v2834, %v2830
        %v3051 = vpack.c.b16 %v2835, %v2831
        %v3052 = vpack.c.b16 %v2836, %v2832
        %v3053 = vpack.c.b16 %v2837, %v2833
        %v3054 = vpack.c.b16 %v2842, %v2838
        %v3055 = vpack.c.b16 %v2843, %v2839
        %v3056 = vpack.c.b16 %v2844, %v2840
        %v3057 = vpack.c.b16 %v2845, %v2841
        %v3058 = vpack.c.b16 %v2850, %v2846
        %v3059 = vpack.c.b16 %v2851, %v2847
        %v3060 = vpack.c.b16 %v2852, %v2848
        %v3061 = vpack.c.b16 %v2853, %v2849
        %v3062 = vpack.c.b16 %v2858, %v2854
        %v3063 = vpack.c.b16 %v2859, %v2855
        %v3064 = vpack.c.b16 %v2860, %v2856
        %v3065 = vpack.c.b16 %v2861, %v2857
        %v3066 = vpack.c.b16 %v2866, %v2862
        %v3067 = vpack.c.b16 %v2867, %v2863
        %v3068 = vpack.c.b16 %v2868, %v2864
        %v3069 = vpack.c.b16 %v2869, %v2865
        %v3070 = vpack.c.b16 %v2874, %v2870
        %v3071 = vpack.c.b16 %v2875, %v2871
        %v3072 = vpack.c.b16 %v2876, %v2872
        %v3073 = vpack.c.b16 %v2877, %v2873
        %v3074 = vpack.c.b16 %v2882, %v2878
        %v3075 = vpack.c.b16 %v2883, %v2879
        %v3076 = vpack.c.b16 %v2884, %v2880
        %v3077 = vpack.c.b16 %v2885, %v2881
        %v3078 = vpack.c.b16 %v2890, %v2886
        %v3079 = vpack.c.b16 %v2891, %v2887
        %v3080 = vpack.c.b16 %v2892, %v2888
        %v3081 = vpack.c.b16 %v2893, %v2889
        %v3082 = vpack.c.b16 %v2898, %v2894
        %v3083 = vpack.c.b16 %v2899, %v2895
        %v3084 = vpack.c.b16 %v2900, %v2896
        %v3085 = vpack.c.b16 %v2901, %v2897
        %v3086 = vpack.c.b16 %v2906, %v2902
        %v3087 = vpack.c.b16 %v2907, %v2903
        %v3088 = vpack.c.b16 %v2908, %v2904
        %v3089 = vpack.c.b16 %v2909, %v2905
        %v3090 = vpack.c.b16 %v2914, %v2910
        %v3091 = vpack.c.b16 %v2915, %v2911
        %v3092 = vpack.c.b16 %v2916, %v2912
        %v3093 = vpack.c.b16 %v2917, %v2913
        %v3094 = vpack.c.b16 %v2922, %v2918
        %v3095 = vpack.c.b16 %v2923, %v2919
        %v3096 = vpack.c.b16 %v2924, %v2920
        %v3097 = vpack.c.b16 %v2925, %v2921
        %v3098 = vpack.c.b16 %v2930, %v2926
        %v3099 = vpack.c.b16 %v2931, %v2927
        %v3100 = vpack.c.b16 %v2932, %v2928
        %v3101 = vpack.c.b16 %v2933, %v2929
        %v3102 = vpack.c.b16 %v2938, %v2934
        %v3103 = vpack.c.b16 %v2939, %v2935
        %v3104 = vpack.c.b16 %v2940, %v2936
        %v3105 = vpack.c.b16 %v2941, %v2937
        %v3106 = vpack.c.b16 %v2946, %v2942
        %v3107 = vpack.c.b16 %v2947, %v2943
        %v3108 = vpack.c.b16 %v2948, %v2944
        %v3109 = vpack.c.b16 %v2949, %v2945
        %v3110 = vpack.c.b16 %v2954, %v2950
        %v3111 = vpack.c.b16 %v2955, %v2951
        %v3112 = vpack.c.b16 %v2956, %v2952
        %v3113 = vpack.c.b16 %v2957, %v2953
        %v3114 = vpack.c.b16 %v2962, %v2958
        %v3115 = vpack.c.b16 %v2963, %v2959
        %v3116 = vpack.c.b16 %v2964, %v2960
        %v3117 = vpack.c.b16 %v2965, %v2961
        %v3118 = vpack.c.b16 %v2970, %v2966
        %v3119 = vpack.c.b16 %v2971, %v2967
        %v3120 = vpack.c.b16 %v2972, %v2968
        %v3121 = vpack.c.b16 %v2973, %v2969
        %v3122 = vpack.c.b16 %v2978, %v2974
        %v3123 = vpack.c.b16 %v2979, %v2975
        %v3124 = vpack.c.b16 %v2980, %v2976
        %v3125 = vpack.c.b16 %v2981, %v2977
        %v3126 = vpack.c.b16 %v2986, %v2982
        %v3127 = vpack.c.b16 %v2987, %v2983
        %v3128 = vpack.c.b16 %v2988, %v2984
        %v3129 = vpack.c.b16 %v2989, %v2985
        %v3130 = vpack.c.b16 %v2994, %v2990
        %v3131 = vpack.c.b16 %v2995, %v2991
        %v3132 = vpack.c.b16 %v2996, %v2992
        %v3133 = vpack.c.b16 %v2997, %v2993
        %v3134 = vpack.c.b16 %v3002, %v2998
        %v3135 = vpack.c.b16 %v3003, %v2999
        %v3136 = vpack.c.b16 %v3004, %v3000
        %v3137 = vpack.c.b16 %v3005, %v3001
        %v3138 = vpack.c.b16 %v3010, %v3006
        %v3139 = vpack.c.b16 %v3011, %v3007
        %v3140 = vpack.c.b16 %v3012, %v3008
        %v3141 = vpack.c.b16 %v3013, %v3009
        %3270 = vmatpush.bf16.msra.mxu0 %v3042
        %3271 = vmatpush.bf16.msra.mxu0 %v3038
        %3272 = vmatpush.bf16.msra.mxu0 %v3034
        %3273 = vmatpush.bf16.msra.mxu0 %v3030
        %3274 = vmatpush.bf16.msra.mxu0 %v3026
        %3275 = vmatpush.bf16.msra.mxu0 %v3022
        %3276 = vmatpush.bf16.msra.mxu0 %v3018
        %3277 = vmatpush.bf16.msra.mxu0 %v3014
        %3278 = vmatmul.bf16.gmra.mxu0 %v2617
        %v3279 = vpop.f32.mrf.mxu0
        %v3280 = vadd.f32 %v2622, %v3279
        %v3281 = vpop.f32.mrf.mxu0
        %v3282 = vadd.f32 %v2622, %v3281
        %3283 = vdwg.mxu0
        %3284 = vmatpush.bf16.msra.mxu0 %v3074
        %3285 = vmatpush.bf16.msra.mxu0 %v3070
        %3286 = vmatpush.bf16.msra.mxu0 %v3066
        %3287 = vmatpush.bf16.msra.mxu0 %v3062
        %3288 = vmatpush.bf16.msra.mxu0 %v3058
        %3289 = vmatpush.bf16.msra.mxu0 %v3054
        %3290 = vmatpush.bf16.msra.mxu0 %v3050
        %3291 = vmatpush.bf16.msra.mxu0 %v3046
        %3292 = vmatmul.bf16.gmra.mxu0 %v2618
        %v3293 = vpop.f32.mrf.mxu0
        %v3294 = vadd.f32 %v3280, %v3293
        %v3295 = vpop.f32.mrf.mxu0
        %v3296 = vadd.f32 %v3282, %v3295
        %3297 = vdwg.mxu0
        %3298 = vmatpush.bf16.msra.mxu0 %v3106
        %3299 = vmatpush.bf16.msra.mxu0 %v3102
        %3300 = vmatpush.bf16.msra.mxu0 %v3098
        %3301 = vmatpush.bf16.msra.mxu0 %v3094
        %3302 = vmatpush.bf16.msra.mxu0 %v3090
        %3303 = vmatpush.bf16.msra.mxu0 %v3086
        %3304 = vmatpush.bf16.msra.mxu0 %v3082
        %3305 = vmatpush.bf16.msra.mxu0 %v3078
        %3306 = vmatmul.bf16.gmra.mxu0 %v2619
        %v3307 = vpop.f32.mrf.mxu0
        %v3308 = vadd.f32 %v3294, %v3307
        %v3309 = vpop.f32.mrf.mxu0
        %v3310 = vadd.f32 %v3296, %v3309
        %3311 = vdwg.mxu0
        %3312 = vmatpush.bf16.msra.mxu0 %v3138
        %3313 = vmatpush.bf16.msra.mxu0 %v3134
        %3314 = vmatpush.bf16.msra.mxu0 %v3130
        %3315 = vmatpush.bf16.msra.mxu0 %v3126
        %3316 = vmatpush.bf16.msra.mxu0 %v3122
        %3317 = vmatpush.bf16.msra.mxu0 %v3118
        %3318 = vmatpush.bf16.msra.mxu0 %v3114
        %3319 = vmatpush.bf16.msra.mxu0 %v3110
        %3320 = vmatmul.bf16.gmra.mxu0 %v2620
        %v3321 = vpop.f32.mrf.mxu0
        %v3322 = vadd.f32 %v3308, %v3321
        %v3323 = vpop.f32.mrf.mxu0
        %v3324 = vadd.f32 %v3310, %v3323
        %3325 = vdwg.mxu0
        %3326 = vmatpush.bf16.msra.mxu0 %v3043
        %3327 = vmatpush.bf16.msra.mxu0 %v3039
        %3328 = vmatpush.bf16.msra.mxu0 %v3035
        %3329 = vmatpush.bf16.msra.mxu0 %v3031
        %3330 = vmatpush.bf16.msra.mxu0 %v3027
        %3331 = vmatpush.bf16.msra.mxu0 %v3023
        %3332 = vmatpush.bf16.msra.mxu0 %v3019
        %3333 = vmatpush.bf16.msra.mxu0 %v3015
        %3334 = vmatmul.bf16.gmra.mxu0 %v2617
        %v3335 = vpop.f32.mrf.mxu0
        %v3336 = vadd.f32 %v2623, %v3335
        %v3337 = vpop.f32.mrf.mxu0
        %v3338 = vadd.f32 %v2623, %v3337
        %3339 = vdwg.mxu0
        %3340 = vmatpush.bf16.msra.mxu0 %v3075
        %3341 = vmatpush.bf16.msra.mxu0 %v3071
        %3342 = vmatpush.bf16.msra.mxu0 %v3067
        %3343 = vmatpush.bf16.msra.mxu0 %v3063
        %3344 = vmatpush.bf16.msra.mxu0 %v3059
        %3345 = vmatpush.bf16.msra.mxu0 %v3055
        %3346 = vmatpush.bf16.msra.mxu0 %v3051
        %3347 = vmatpush.bf16.msra.mxu0 %v3047
        %3348 = vmatmul.bf16.gmra.mxu0 %v2618
        %v3349 = vpop.f32.mrf.mxu0
        %v3350 = vadd.f32 %v3336, %v3349
        %v3351 = vpop.f32.mrf.mxu0
        %v3352 = vadd.f32 %v3338, %v3351
        %3353 = vdwg.mxu0
        %3354 = vmatpush.bf16.msra.mxu0 %v3107
        %3355 = vmatpush.bf16.msra.mxu0 %v3103
        %3356 = vmatpush.bf16.msra.mxu0 %v3099
        %3357 = vmatpush.bf16.msra.mxu0 %v3095
        %3358 = vmatpush.bf16.msra.mxu0 %v3091
        %3359 = vmatpush.bf16.msra.mxu0 %v3087
        %3360 = vmatpush.bf16.msra.mxu0 %v3083
        %3361 = vmatpush.bf16.msra.mxu0 %v3079
        %3362 = vmatmul.bf16.gmra.mxu0 %v2619
        %v3363 = vpop.f32.mrf.mxu0
        %v3364 = vadd.f32 %v3350, %v3363
        %v3365 = vpop.f32.mrf.mxu0
        %v3366 = vadd.f32 %v3352, %v3365
        %3367 = vdwg.mxu0
        %3368 = vmatpush.bf16.msra.mxu0 %v3139
        %3369 = vmatpush.bf16.msra.mxu0 %v3135
        %3370 = vmatpush.bf16.msra.mxu0 %v3131
        %3371 = vmatpush.bf16.msra.mxu0 %v3127
        %3372 = vmatpush.bf16.msra.mxu0 %v3123
        %3373 = vmatpush.bf16.msra.mxu0 %v3119
        %3374 = vmatpush.bf16.msra.mxu0 %v3115
        %3375 = vmatpush.bf16.msra.mxu0 %v3111
        %3376 = vmatmul.bf16.gmra.mxu0 %v2620
        %v3377 = vpop.f32.mrf.mxu0
        %v3378 = vadd.f32 %v3364, %v3377
        %v3379 = vpop.f32.mrf.mxu0
        %v3380 = vadd.f32 %v3366, %v3379
        %3381 = vdwg.mxu0
        %3382 = vmatpush.bf16.msra.mxu0 %v3044
        %3383 = vmatpush.bf16.msra.mxu0 %v3040
        %3384 = vmatpush.bf16.msra.mxu0 %v3036
        %3385 = vmatpush.bf16.msra.mxu0 %v3032
        %3386 = vmatpush.bf16.msra.mxu0 %v3028
        %3387 = vmatpush.bf16.msra.mxu0 %v3024
        %3388 = vmatpush.bf16.msra.mxu0 %v3020
        %3389 = vmatpush.bf16.msra.mxu0 %v3016
        %3390 = vmatmul.bf16.gmra.mxu0 %v2617
        %v3391 = vpop.f32.mrf.mxu0
        %v3392 = vadd.f32 %v2624, %v3391
        %v3393 = vpop.f32.mrf.mxu0
        %v3394 = vadd.f32 %v2624, %v3393
        %3395 = vdwg.mxu0
        %3396 = vmatpush.bf16.msra.mxu0 %v3076
        %3397 = vmatpush.bf16.msra.mxu0 %v3072
        %3398 = vmatpush.bf16.msra.mxu0 %v3068
        %3399 = vmatpush.bf16.msra.mxu0 %v3064
        %3400 = vmatpush.bf16.msra.mxu0 %v3060
        %3401 = vmatpush.bf16.msra.mxu0 %v3056
        %3402 = vmatpush.bf16.msra.mxu0 %v3052
        %3403 = vmatpush.bf16.msra.mxu0 %v3048
        %3404 = vmatmul.bf16.gmra.mxu0 %v2618
        %v3405 = vpop.f32.mrf.mxu0
        %v3406 = vadd.f32 %v3392, %v3405
        %v3407 = vpop.f32.mrf.mxu0
        %v3408 = vadd.f32 %v3394, %v3407
        %3409 = vdwg.mxu0
        %3410 = vmatpush.bf16.msra.mxu0 %v3108
        %3411 = vmatpush.bf16.msra.mxu0 %v3104
        %3412 = vmatpush.bf16.msra.mxu0 %v3100
        %3413 = vmatpush.bf16.msra.mxu0 %v3096
        %3414 = vmatpush.bf16.msra.mxu0 %v3092
        %3415 = vmatpush.bf16.msra.mxu0 %v3088
        %3416 = vmatpush.bf16.msra.mxu0 %v3084
        %3417 = vmatpush.bf16.msra.mxu0 %v3080
        %3418 = vmatmul.bf16.gmra.mxu0 %v2619
        %v3419 = vpop.f32.mrf.mxu0
        %v3420 = vadd.f32 %v3406, %v3419
        %v3421 = vpop.f32.mrf.mxu0
        %v3422 = vadd.f32 %v3408, %v3421
        %3423 = vdwg.mxu0
        %3424 = vmatpush.bf16.msra.mxu0 %v3140
        %3425 = vmatpush.bf16.msra.mxu0 %v3136
        %3426 = vmatpush.bf16.msra.mxu0 %v3132
        %3427 = vmatpush.bf16.msra.mxu0 %v3128
        %3428 = vmatpush.bf16.msra.mxu0 %v3124
        %3429 = vmatpush.bf16.msra.mxu0 %v3120
        %3430 = vmatpush.bf16.msra.mxu0 %v3116
        %3431 = vmatpush.bf16.msra.mxu0 %v3112
        %3432 = vmatmul.bf16.gmra.mxu0 %v2620
        %v3433 = vpop.f32.mrf.mxu0
        %v3434 = vadd.f32 %v3420, %v3433
        %v3435 = vpop.f32.mrf.mxu0
        %v3436 = vadd.f32 %v3422, %v3435
        %3437 = vdwg.mxu0
        %3438 = vmatpush.bf16.msra.mxu0 %v3045
        %3439 = vmatpush.bf16.msra.mxu0 %v3041
        %3440 = vmatpush.bf16.msra.mxu0 %v3037
        %3441 = vmatpush.bf16.msra.mxu0 %v3033
        %3442 = vmatpush.bf16.msra.mxu0 %v3029
        %3443 = vmatpush.bf16.msra.mxu0 %v3025
        %3444 = vmatpush.bf16.msra.mxu0 %v3021
        %3445 = vmatpush.bf16.msra.mxu0 %v3017
        %3446 = vmatmul.bf16.gmra.mxu0 %v2617
        %v3447 = vpop.f32.mrf.mxu0
        %v3448 = vadd.f32 %v2625, %v3447
        %v3449 = vpop.f32.mrf.mxu0
        %v3450 = vadd.f32 %v2625, %v3449
        %3451 = vdwg.mxu0
        %3452 = vmatpush.bf16.msra.mxu0 %v3077
        %3453 = vmatpush.bf16.msra.mxu0 %v3073
        %3454 = vmatpush.bf16.msra.mxu0 %v3069
        %3455 = vmatpush.bf16.msra.mxu0 %v3065
        %3456 = vmatpush.bf16.msra.mxu0 %v3061
        %3457 = vmatpush.bf16.msra.mxu0 %v3057
        %3458 = vmatpush.bf16.msra.mxu0 %v3053
        %3459 = vmatpush.bf16.msra.mxu0 %v3049
        %3460 = vmatmul.bf16.gmra.mxu0 %v2618
        %v3461 = vpop.f32.mrf.mxu0
        %v3462 = vadd.f32 %v3448, %v3461
        %v3463 = vpop.f32.mrf.mxu0
        %v3464 = vadd.f32 %v3450, %v3463
        %3465 = vdwg.mxu0
        %3466 = vmatpush.bf16.msra.mxu0 %v3109
        %3467 = vmatpush.bf16.msra.mxu0 %v3105
        %3468 = vmatpush.bf16.msra.mxu0 %v3101
        %3469 = vmatpush.bf16.msra.mxu0 %v3097
        %3470 = vmatpush.bf16.msra.mxu0 %v3093
        %3471 = vmatpush.bf16.msra.mxu0 %v3089
        %3472 = vmatpush.bf16.msra.mxu0 %v3085
        %3473 = vmatpush.bf16.msra.mxu0 %v3081
        %3474 = vmatmul.bf16.gmra.mxu0 %v2619
        %v3475 = vpop.f32.mrf.mxu0
        %v3476 = vadd.f32 %v3462, %v3475
        %v3477 = vpop.f32.mrf.mxu0
        %v3478 = vadd.f32 %v3464, %v3477
        %3479 = vdwg.mxu0
        %3480 = vmatpush.bf16.msra.mxu0 %v3141
        %3481 = vmatpush.bf16.msra.mxu0 %v3137
        %3482 = vmatpush.bf16.msra.mxu0 %v3133
        %3483 = vmatpush.bf16.msra.mxu0 %v3129
        %3484 = vmatpush.bf16.msra.mxu0 %v3125
        %3485 = vmatpush.bf16.msra.mxu0 %v3121
        %3486 = vmatpush.bf16.msra.mxu0 %v3117
        %3487 = vmatpush.bf16.msra.mxu0 %v3113
        %3488 = vmatmul.bf16.gmra.mxu0 %v2620
        %v3489 = vpop.f32.mrf.mxu0
        %v3490 = vadd.f32 %v3476, %v3489
        %v3491 = vpop.f32.mrf.mxu0
        %v3492 = vadd.f32 %v3478, %v3491
        %3493 = vdwg.mxu0
        %v3494 = vmax.f32 %v3322, 0.0
        %v3495 = vmax.f32 %v3378, 0.0
        %v3496 = vmax.f32 %v3434, 0.0
        %v3497 = vmax.f32 %v3490, 0.0
        %v3498 = vmax.f32 %v3324, 0.0
        %v3499 = vmax.f32 %v3380, 0.0
        %v3500 = vmax.f32 %v3436, 0.0
        %v3501 = vmax.f32 %v3492, 0.0
        %v3502 = vand.u32 2147483647, %v3322
        %v3503 = vand.u32 2147483647, %v3378
        %v3504 = vand.u32 2147483647, %v3434
        %v3505 = vand.u32 2147483647, %v3490
        %v3506 = vand.u32 2147483647, %v3324
        %v3507 = vand.u32 2147483647, %v3380
        %v3508 = vand.u32 2147483647, %v3436
        %v3509 = vand.u32 2147483647, %v3492
        %v3510 = vsub.f32 0.0, %v3502
        %v3511 = vsub.f32 0.0, %v3503
        %v3512 = vsub.f32 0.0, %v3504
        %v3513 = vsub.f32 0.0, %v3505
        %v3514 = vsub.f32 0.0, %v3506
        %v3515 = vsub.f32 0.0, %v3507
        %v3516 = vsub.f32 0.0, %v3508
        %v3517 = vsub.f32 0.0, %v3509
        %v3518 = vmul.f32 %v3510, 1.442695
        %v3519 = vpow.pop %v3518
        %v3520 = vmul.f32 %v3511, 1.442695
        %v3521 = vpow.pop %v3520
        %v3522 = vmul.f32 %v3512, 1.442695
        %v3523 = vpow.pop %v3522
        %v3524 = vmul.f32 %v3513, 1.442695
        %v3525 = vpow.pop %v3524
        %v3526 = vmul.f32 %v3514, 1.442695
        %v3527 = vpow.pop %v3526
        %v3528 = vmul.f32 %v3515, 1.442695
        %v3529 = vpow.pop %v3528
        %v3530 = vmul.f32 %v3516, 1.442695
        %v3531 = vpow.pop %v3530
        %v3532 = vmul.f32 %v3517, 1.442695
        %v3533 = vpow.pop %v3532
        %v3534 = vadd.f32 %v3519, 1.0
        %v3535 = vlog2.pop %v3534
        %v3536 = vmul.f32 %v3535, 0.6931472
        %v3537 = vmul.f32 -0.5, %v3519
        %v3538 = vadd.f32 %v3537, 1.0
        %v3539 = vmul.f32 %v3538, %v3519
        %v3540 = vand.u32 2147483647, %v3519
        %vm3541 = vcmp.lt.f32.partialorder %v3540, 0.0004427343
        %v3542 = vsel %vm3541, %v3539, %v3536
        %v3543 = vadd.f32 %v3521, 1.0
        %v3544 = vlog2.pop %v3543
        %v3545 = vmul.f32 %v3544, 0.6931472
        %v3546 = vmul.f32 -0.5, %v3521
        %v3547 = vadd.f32 %v3546, 1.0
        %v3548 = vmul.f32 %v3547, %v3521
        %v3549 = vand.u32 2147483647, %v3521
        %vm3550 = vcmp.lt.f32.partialorder %v3549, 0.0004427343
        %v3551 = vsel %vm3550, %v3548, %v3545
        %v3552 = vadd.f32 %v3523, 1.0
        %v3553 = vlog2.pop %v3552
        %v3554 = vmul.f32 %v3553, 0.6931472
        %v3555 = vmul.f32 -0.5, %v3523
        %v3556 = vadd.f32 %v3555, 1.0
        %v3557 = vmul.f32 %v3556, %v3523
        %v3558 = vand.u32 2147483647, %v3523
        %vm3559 = vcmp.lt.f32.partialorder %v3558, 0.0004427343
        %v3560 = vsel %vm3559, %v3557, %v3554
        %v3561 = vadd.f32 %v3525, 1.0
        %v3562 = vlog2.pop %v3561
        %v3563 = vmul.f32 %v3562, 0.6931472
        %v3564 = vmul.f32 -0.5, %v3525
        %v3565 = vadd.f32 %v3564, 1.0
        %v3566 = vmul.f32 %v3565, %v3525
        %v3567 = vand.u32 2147483647, %v3525
        %vm3568 = vcmp.lt.f32.partialorder %v3567, 0.0004427343
        %v3569 = vsel %vm3568, %v3566, %v3563
        %v3570 = vadd.f32 %v3527, 1.0
        %v3571 = vlog2.pop %v3570
        %v3572 = vmul.f32 %v3571, 0.6931472
        %v3573 = vmul.f32 -0.5, %v3527
        %v3574 = vadd.f32 %v3573, 1.0
        %v3575 = vmul.f32 %v3574, %v3527
        %v3576 = vand.u32 2147483647, %v3527
        %vm3577 = vcmp.lt.f32.partialorder %v3576, 0.0004427343
        %v3578 = vsel %vm3577, %v3575, %v3572
        %v3579 = vadd.f32 %v3529, 1.0
        %v3580 = vlog2.pop %v3579
        %v3581 = vmul.f32 %v3580, 0.6931472
        %v3582 = vmul.f32 -0.5, %v3529
        %v3583 = vadd.f32 %v3582, 1.0
        %v3584 = vmul.f32 %v3583, %v3529
        %v3585 = vand.u32 2147483647, %v3529
        %vm3586 = vcmp.lt.f32.partialorder %v3585, 0.0004427343
        %v3587 = vsel %vm3586, %v3584, %v3581
        %v3588 = vadd.f32 %v3531, 1.0
        %v3589 = vlog2.pop %v3588
        %v3590 = vmul.f32 %v3589, 0.6931472
        %v3591 = vmul.f32 -0.5, %v3531
        %v3592 = vadd.f32 %v3591, 1.0
        %v3593 = vmul.f32 %v3592, %v3531
        %v3594 = vand.u32 2147483647, %v3531
        %vm3595 = vcmp.lt.f32.partialorder %v3594, 0.0004427343
        %v3596 = vsel %vm3595, %v3593, %v3590
        %v3597 = vadd.f32 %v3533, 1.0
        %v3598 = vlog2.pop %v3597
        %v3599 = vmul.f32 %v3598, 0.6931472
        %v3600 = vmul.f32 -0.5, %v3533
        %v3601 = vadd.f32 %v3600, 1.0
        %v3602 = vmul.f32 %v3601, %v3533
        %v3603 = vand.u32 2147483647, %v3533
        %vm3604 = vcmp.lt.f32.partialorder %v3603, 0.0004427343
        %v3605 = vsel %vm3604, %v3602, %v3599
        %v3606 = vadd.f32 %v3494, %v3542
        %v3607 = vadd.f32 %v3495, %v3551
        %v3608 = vadd.f32 %v3496, %v3560
        %v3609 = vadd.f32 %v3497, %v3569
        %v3610 = vadd.f32 %v3498, %v3578
        %v3611 = vadd.f32 %v3499, %v3587
        %v3612 = vadd.f32 %v3500, %v3596
        %v3613 = vadd.f32 %v3501, %v3605
        %s3614 = scalar_lea.vmem %s172, 3072 [#allocation2]
        %v3615 = vld [vmem:[%s3614] sm:$0xff]
        %v3616 = vld [vmem:[%s3614 + $0x8] sm:$0xff]
        %v3617 = vld [vmem:[%s3614 + $0x10] sm:$0xff]
        %v3618 = vld [vmem:[%s3614 + $0x18] sm:$0xff]
        %v3619 = vld [vmem:[%s3614 + $0x20] sm:$0xff]
        %v3620 = vld [vmem:[%s3614 + $0x28] sm:$0xff]
        %v3621 = vld [vmem:[%s3614 + $0x30] sm:$0xff]
        %v3622 = vld [vmem:[%s3614 + $0x38] sm:$0xff]
        %v3623 = vld [vmem:[%s3614 + $0x40] sm:$0xff]
        %v3624 = vld [vmem:[%s3614 + $0x48] sm:$0xff]
        %v3625 = vld [vmem:[%s3614 + $0x50] sm:$0xff]
        %v3626 = vld [vmem:[%s3614 + $0x58] sm:$0xff]
        %v3627 = vld [vmem:[%s3614 + $0x60] sm:$0xff]
        %v3628 = vld [vmem:[%s3614 + $0x68] sm:$0xff]
        %v3629 = vld [vmem:[%s3614 + $0x70] sm:$0xff]
        %v3630 = vld [vmem:[%s3614 + $0x78] sm:$0xff]
        %v3631 = vld [vmem:[%s3614 + $0x80] sm:$0xff]
        %v3632 = vld [vmem:[%s3614 + $0x88] sm:$0xff]
        %v3633 = vld [vmem:[%s3614 + $0x90] sm:$0xff]
        %v3634 = vld [vmem:[%s3614 + $0x98] sm:$0xff]
        %v3635 = vld [vmem:[%s3614 + $0xa0] sm:$0xff]
        %v3636 = vld [vmem:[%s3614 + $0xa8] sm:$0xff]
        %v3637 = vld [vmem:[%s3614 + $0xb0] sm:$0xff]
        %v3638 = vld [vmem:[%s3614 + $0xb8] sm:$0xff]
        %v3639 = vld [vmem:[%s3614 + $0xc0] sm:$0xff]
        %v3640 = vld [vmem:[%s3614 + $0xc8] sm:$0xff]
        %v3641 = vld [vmem:[%s3614 + $0xd0] sm:$0xff]
        %v3642 = vld [vmem:[%s3614 + $0xd8] sm:$0xff]
        %v3643 = vld [vmem:[%s3614 + $0xe0] sm:$0xff]
        %v3644 = vld [vmem:[%s3614 + $0xe8] sm:$0xff]
        %v3645 = vld [vmem:[%s3614 + $0xf0] sm:$0xff]
        %v3646 = vld [vmem:[%s3614 + $0xf8] sm:$0xff]
        %v3647 = vld [vmem:[%s3614 + $0x100] sm:$0xff]
        %v3648 = vld [vmem:[%s3614 + $0x108] sm:$0xff]
        %v3649 = vld [vmem:[%s3614 + $0x110] sm:$0xff]
        %v3650 = vld [vmem:[%s3614 + $0x118] sm:$0xff]
        %v3651 = vld [vmem:[%s3614 + $0x120] sm:$0xff]
        %v3652 = vld [vmem:[%s3614 + $0x128] sm:$0xff]
        %v3653 = vld [vmem:[%s3614 + $0x130] sm:$0xff]
        %v3654 = vld [vmem:[%s3614 + $0x138] sm:$0xff]
        %v3655 = vld [vmem:[%s3614 + $0x140] sm:$0xff]
        %v3656 = vld [vmem:[%s3614 + $0x148] sm:$0xff]
        %v3657 = vld [vmem:[%s3614 + $0x150] sm:$0xff]
        %v3658 = vld [vmem:[%s3614 + $0x158] sm:$0xff]
        %v3659 = vld [vmem:[%s3614 + $0x160] sm:$0xff]
        %v3660 = vld [vmem:[%s3614 + $0x168] sm:$0xff]
        %v3661 = vld [vmem:[%s3614 + $0x170] sm:$0xff]
        %v3662 = vld [vmem:[%s3614 + $0x178] sm:$0xff]
        %v3663 = vld [vmem:[%s3614 + $0x180] sm:$0xff]
        %v3664 = vld [vmem:[%s3614 + $0x188] sm:$0xff]
        %v3665 = vld [vmem:[%s3614 + $0x190] sm:$0xff]
        %v3666 = vld [vmem:[%s3614 + $0x198] sm:$0xff]
        %v3667 = vld [vmem:[%s3614 + $0x1a0] sm:$0xff]
        %v3668 = vld [vmem:[%s3614 + $0x1a8] sm:$0xff]
        %v3669 = vld [vmem:[%s3614 + $0x1b0] sm:$0xff]
        %v3670 = vld [vmem:[%s3614 + $0x1b8] sm:$0xff]
        %v3671 = vld [vmem:[%s3614 + $0x1c0] sm:$0xff]
        %v3672 = vld [vmem:[%s3614 + $0x1c8] sm:$0xff]
        %v3673 = vld [vmem:[%s3614 + $0x1d0] sm:$0xff]
        %v3674 = vld [vmem:[%s3614 + $0x1d8] sm:$0xff]
        %v3675 = vld [vmem:[%s3614 + $0x1e0] sm:$0xff]
        %v3676 = vld [vmem:[%s3614 + $0x1e8] sm:$0xff]
        %v3677 = vld [vmem:[%s3614 + $0x1f0] sm:$0xff]
        %v3678 = vld [vmem:[%s3614 + $0x1f8] sm:$0xff]
        %v3679 = vld [vmem:[%s3614 + $0x200] sm:$0xff]
        %v3680 = vld [vmem:[%s3614 + $0x208] sm:$0xff]
        %v3681 = vld [vmem:[%s3614 + $0x210] sm:$0xff]
        %v3682 = vld [vmem:[%s3614 + $0x218] sm:$0xff]
        %v3683 = vld [vmem:[%s3614 + $0x220] sm:$0xff]
        %v3684 = vld [vmem:[%s3614 + $0x228] sm:$0xff]
        %v3685 = vld [vmem:[%s3614 + $0x230] sm:$0xff]
        %v3686 = vld [vmem:[%s3614 + $0x238] sm:$0xff]
        %v3687 = vld [vmem:[%s3614 + $0x240] sm:$0xff]
        %v3688 = vld [vmem:[%s3614 + $0x248] sm:$0xff]
        %v3689 = vld [vmem:[%s3614 + $0x250] sm:$0xff]
        %v3690 = vld [vmem:[%s3614 + $0x258] sm:$0xff]
        %v3691 = vld [vmem:[%s3614 + $0x260] sm:$0xff]
        %v3692 = vld [vmem:[%s3614 + $0x268] sm:$0xff]
        %v3693 = vld [vmem:[%s3614 + $0x270] sm:$0xff]
        %v3694 = vld [vmem:[%s3614 + $0x278] sm:$0xff]
        %v3695 = vld [vmem:[%s3614 + $0x280] sm:$0xff]
        %v3696 = vld [vmem:[%s3614 + $0x288] sm:$0xff]
        %v3697 = vld [vmem:[%s3614 + $0x290] sm:$0xff]
        %v3698 = vld [vmem:[%s3614 + $0x298] sm:$0xff]
        %v3699 = vld [vmem:[%s3614 + $0x2a0] sm:$0xff]
        %v3700 = vld [vmem:[%s3614 + $0x2a8] sm:$0xff]
        %v3701 = vld [vmem:[%s3614 + $0x2b0] sm:$0xff]
        %v3702 = vld [vmem:[%s3614 + $0x2b8] sm:$0xff]
        %v3703 = vld [vmem:[%s3614 + $0x2c0] sm:$0xff]
        %v3704 = vld [vmem:[%s3614 + $0x2c8] sm:$0xff]
        %v3705 = vld [vmem:[%s3614 + $0x2d0] sm:$0xff]
        %v3706 = vld [vmem:[%s3614 + $0x2d8] sm:$0xff]
        %v3707 = vld [vmem:[%s3614 + $0x2e0] sm:$0xff]
        %v3708 = vld [vmem:[%s3614 + $0x2e8] sm:$0xff]
        %v3709 = vld [vmem:[%s3614 + $0x2f0] sm:$0xff]
        %v3710 = vld [vmem:[%s3614 + $0x2f8] sm:$0xff]
        %v3711 = vld [vmem:[%s3614 + $0x300] sm:$0xff]
        %v3712 = vld [vmem:[%s3614 + $0x308] sm:$0xff]
        %v3713 = vld [vmem:[%s3614 + $0x310] sm:$0xff]
        %v3714 = vld [vmem:[%s3614 + $0x318] sm:$0xff]
        %v3715 = vld [vmem:[%s3614 + $0x320] sm:$0xff]
        %v3716 = vld [vmem:[%s3614 + $0x328] sm:$0xff]
        %v3717 = vld [vmem:[%s3614 + $0x330] sm:$0xff]
        %v3718 = vld [vmem:[%s3614 + $0x338] sm:$0xff]
        %v3719 = vld [vmem:[%s3614 + $0x340] sm:$0xff]
        %v3720 = vld [vmem:[%s3614 + $0x348] sm:$0xff]
        %v3721 = vld [vmem:[%s3614 + $0x350] sm:$0xff]
        %v3722 = vld [vmem:[%s3614 + $0x358] sm:$0xff]
        %v3723 = vld [vmem:[%s3614 + $0x360] sm:$0xff]
        %v3724 = vld [vmem:[%s3614 + $0x368] sm:$0xff]
        %v3725 = vld [vmem:[%s3614 + $0x370] sm:$0xff]
        %v3726 = vld [vmem:[%s3614 + $0x378] sm:$0xff]
        %v3727 = vld [vmem:[%s3614 + $0x380] sm:$0xff]
        %v3728 = vld [vmem:[%s3614 + $0x388] sm:$0xff]
        %v3729 = vld [vmem:[%s3614 + $0x390] sm:$0xff]
        %v3730 = vld [vmem:[%s3614 + $0x398] sm:$0xff]
        %v3731 = vld [vmem:[%s3614 + $0x3a0] sm:$0xff]
        %v3732 = vld [vmem:[%s3614 + $0x3a8] sm:$0xff]
        %v3733 = vld [vmem:[%s3614 + $0x3b0] sm:$0xff]
        %v3734 = vld [vmem:[%s3614 + $0x3b8] sm:$0xff]
        %v3735 = vld [vmem:[%s3614 + $0x3c0] sm:$0xff]
        %v3736 = vld [vmem:[%s3614 + $0x3c8] sm:$0xff]
        %v3737 = vld [vmem:[%s3614 + $0x3d0] sm:$0xff]
        %v3738 = vld [vmem:[%s3614 + $0x3d8] sm:$0xff]
        %v3739 = vld [vmem:[%s3614 + $0x3e0] sm:$0xff]
        %v3740 = vld [vmem:[%s3614 + $0x3e8] sm:$0xff]
        %v3741 = vld [vmem:[%s3614 + $0x3f0] sm:$0xff]
        %v3742 = vld [vmem:[%s3614 + $0x3f8] sm:$0xff]
        %s3743 = sadd.s32 %s225, 3
        %s3744 = smul.u32 %s3743, 4
        %s3745 = scalar_lea.vmem [#allocation4], %s3744
        %v3746 = vld [vmem:[%s3745] sm:$0xf]
        %v3747 = vpack.c.bf16 %v3610, %v3606
        %v3748 = vpack.c.bf16 %v3611, %v3607
        %v3749 = vpack.c.bf16 %v3612, %v3608
        %v3750 = vpack.c.bf16 %v3613, %v3609
        %v3752 = vperm.slane %v3746, 0
        %v3753 = vperm.slane %v3746, 1
        %v3754 = vperm.slane %v3746, 2
        %v3755 = vperm.slane %v3746, 3
        %v3888 = vunpack.c.l.b16 %v3615
        %v3889 = vunpack.c.h.b16 %v3615
        %v3890 = vunpack.c.l.b16 %v3616
        %v3891 = vunpack.c.h.b16 %v3616
        %v3892 = vunpack.c.l.b16 %v3617
        %v3893 = vunpack.c.h.b16 %v3617
        %v3894 = vunpack.c.l.b16 %v3618
        %v3895 = vunpack.c.h.b16 %v3618
        %v3896 = vunpack.c.l.b16 %v3619
        %v3897 = vunpack.c.h.b16 %v3619
        %v3898 = vunpack.c.l.b16 %v3620
        %v3899 = vunpack.c.h.b16 %v3620
        %v3900 = vunpack.c.l.b16 %v3621
        %v3901 = vunpack.c.h.b16 %v3621
        %v3902 = vunpack.c.l.b16 %v3622
        %v3903 = vunpack.c.h.b16 %v3622
        %v3904 = vunpack.c.l.b16 %v3623
        %v3905 = vunpack.c.h.b16 %v3623
        %v3906 = vunpack.c.l.b16 %v3624
        %v3907 = vunpack.c.h.b16 %v3624
        %v3908 = vunpack.c.l.b16 %v3625
        %v3909 = vunpack.c.h.b16 %v3625
        %v3910 = vunpack.c.l.b16 %v3626
        %v3911 = vunpack.c.h.b16 %v3626
        %v3912 = vunpack.c.l.b16 %v3627
        %v3913 = vunpack.c.h.b16 %v3627
        %v3914 = vunpack.c.l.b16 %v3628
        %v3915 = vunpack.c.h.b16 %v3628
        %v3916 = vunpack.c.l.b16 %v3629
        %v3917 = vunpack.c.h.b16 %v3629
        %v3918 = vunpack.c.l.b16 %v3630
        %v3919 = vunpack.c.h.b16 %v3630
        %v3920 = vunpack.c.l.b16 %v3631
        %v3921 = vunpack.c.h.b16 %v3631
        %v3922 = vunpack.c.l.b16 %v3632
        %v3923 = vunpack.c.h.b16 %v3632
        %v3924 = vunpack.c.l.b16 %v3633
        %v3925 = vunpack.c.h.b16 %v3633
        %v3926 = vunpack.c.l.b16 %v3634
        %v3927 = vunpack.c.h.b16 %v3634
        %v3928 = vunpack.c.l.b16 %v3635
        %v3929 = vunpack.c.h.b16 %v3635
        %v3930 = vunpack.c.l.b16 %v3636
        %v3931 = vunpack.c.h.b16 %v3636
        %v3932 = vunpack.c.l.b16 %v3637
        %v3933 = vunpack.c.h.b16 %v3637
        %v3934 = vunpack.c.l.b16 %v3638
        %v3935 = vunpack.c.h.b16 %v3638
        %v3936 = vunpack.c.l.b16 %v3639
        %v3937 = vunpack.c.h.b16 %v3639
        %v3938 = vunpack.c.l.b16 %v3640
        %v3939 = vunpack.c.h.b16 %v3640
        %v3940 = vunpack.c.l.b16 %v3641
        %v3941 = vunpack.c.h.b16 %v3641
        %v3942 = vunpack.c.l.b16 %v3642
        %v3943 = vunpack.c.h.b16 %v3642
        %v3944 = vunpack.c.l.b16 %v3643
        %v3945 = vunpack.c.h.b16 %v3643
        %v3946 = vunpack.c.l.b16 %v3644
        %v3947 = vunpack.c.h.b16 %v3644
        %v3948 = vunpack.c.l.b16 %v3645
        %v3949 = vunpack.c.h.b16 %v3645
        %v3950 = vunpack.c.l.b16 %v3646
        %v3951 = vunpack.c.h.b16 %v3646
        %v3952 = vunpack.c.l.b16 %v3647
        %v3953 = vunpack.c.h.b16 %v3647
        %v3954 = vunpack.c.l.b16 %v3648
        %v3955 = vunpack.c.h.b16 %v3648
        %v3956 = vunpack.c.l.b16 %v3649
        %v3957 = vunpack.c.h.b16 %v3649
        %v3958 = vunpack.c.l.b16 %v3650
        %v3959 = vunpack.c.h.b16 %v3650
        %v3960 = vunpack.c.l.b16 %v3651
        %v3961 = vunpack.c.h.b16 %v3651
        %v3962 = vunpack.c.l.b16 %v3652
        %v3963 = vunpack.c.h.b16 %v3652
        %v3964 = vunpack.c.l.b16 %v3653
        %v3965 = vunpack.c.h.b16 %v3653
        %v3966 = vunpack.c.l.b16 %v3654
        %v3967 = vunpack.c.h.b16 %v3654
        %v3968 = vunpack.c.l.b16 %v3655
        %v3969 = vunpack.c.h.b16 %v3655
        %v3970 = vunpack.c.l.b16 %v3656
        %v3971 = vunpack.c.h.b16 %v3656
        %v3972 = vunpack.c.l.b16 %v3657
        %v3973 = vunpack.c.h.b16 %v3657
        %v3974 = vunpack.c.l.b16 %v3658
        %v3975 = vunpack.c.h.b16 %v3658
        %v3976 = vunpack.c.l.b16 %v3659
        %v3977 = vunpack.c.h.b16 %v3659
        %v3978 = vunpack.c.l.b16 %v3660
        %v3979 = vunpack.c.h.b16 %v3660
        %v3980 = vunpack.c.l.b16 %v3661
        %v3981 = vunpack.c.h.b16 %v3661
        %v3982 = vunpack.c.l.b16 %v3662
        %v3983 = vunpack.c.h.b16 %v3662
        %v3984 = vunpack.c.l.b16 %v3663
        %v3985 = vunpack.c.h.b16 %v3663
        %v3986 = vunpack.c.l.b16 %v3664
        %v3987 = vunpack.c.h.b16 %v3664
        %v3988 = vunpack.c.l.b16 %v3665
        %v3989 = vunpack.c.h.b16 %v3665
        %v3990 = vunpack.c.l.b16 %v3666
        %v3991 = vunpack.c.h.b16 %v3666
        %v3992 = vunpack.c.l.b16 %v3667
        %v3993 = vunpack.c.h.b16 %v3667
        %v3994 = vunpack.c.l.b16 %v3668
        %v3995 = vunpack.c.h.b16 %v3668
        %v3996 = vunpack.c.l.b16 %v3669
        %v3997 = vunpack.c.h.b16 %v3669
        %v3998 = vunpack.c.l.b16 %v3670
        %v3999 = vunpack.c.h.b16 %v3670
        %v4000 = vunpack.c.l.b16 %v3671
        %v4001 = vunpack.c.h.b16 %v3671
        %v4002 = vunpack.c.l.b16 %v3672
        %v4003 = vunpack.c.h.b16 %v3672
        %v4004 = vunpack.c.l.b16 %v3673
        %v4005 = vunpack.c.h.b16 %v3673
        %v4006 = vunpack.c.l.b16 %v3674
        %v4007 = vunpack.c.h.b16 %v3674
        %v4008 = vunpack.c.l.b16 %v3675
        %v4009 = vunpack.c.h.b16 %v3675
        %v4010 = vunpack.c.l.b16 %v3676
        %v4011 = vunpack.c.h.b16 %v3676
        %v4012 = vunpack.c.l.b16 %v3677
        %v4013 = vunpack.c.h.b16 %v3677
        %v4014 = vunpack.c.l.b16 %v3678
        %v4015 = vunpack.c.h.b16 %v3678
        %v4016 = vunpack.c.l.b16 %v3679
        %v4017 = vunpack.c.h.b16 %v3679
        %v4018 = vunpack.c.l.b16 %v3680
        %v4019 = vunpack.c.h.b16 %v3680
        %v4020 = vunpack.c.l.b16 %v3681
        %v4021 = vunpack.c.h.b16 %v3681
        %v4022 = vunpack.c.l.b16 %v3682
        %v4023 = vunpack.c.h.b16 %v3682
        %v4024 = vunpack.c.l.b16 %v3683
        %v4025 = vunpack.c.h.b16 %v3683
        %v4026 = vunpack.c.l.b16 %v3684
        %v4027 = vunpack.c.h.b16 %v3684
        %v4028 = vunpack.c.l.b16 %v3685
        %v4029 = vunpack.c.h.b16 %v3685
        %v4030 = vunpack.c.l.b16 %v3686
        %v4031 = vunpack.c.h.b16 %v3686
        %v4032 = vunpack.c.l.b16 %v3687
        %v4033 = vunpack.c.h.b16 %v3687
        %v4034 = vunpack.c.l.b16 %v3688
        %v4035 = vunpack.c.h.b16 %v3688
        %v4036 = vunpack.c.l.b16 %v3689
        %v4037 = vunpack.c.h.b16 %v3689
        %v4038 = vunpack.c.l.b16 %v3690
        %v4039 = vunpack.c.h.b16 %v3690
        %v4040 = vunpack.c.l.b16 %v3691
        %v4041 = vunpack.c.h.b16 %v3691
        %v4042 = vunpack.c.l.b16 %v3692
        %v4043 = vunpack.c.h.b16 %v3692
        %v4044 = vunpack.c.l.b16 %v3693
        %v4045 = vunpack.c.h.b16 %v3693
        %v4046 = vunpack.c.l.b16 %v3694
        %v4047 = vunpack.c.h.b16 %v3694
        %v4048 = vunpack.c.l.b16 %v3695
        %v4049 = vunpack.c.h.b16 %v3695
        %v4050 = vunpack.c.l.b16 %v3696
        %v4051 = vunpack.c.h.b16 %v3696
        %v4052 = vunpack.c.l.b16 %v3697
        %v4053 = vunpack.c.h.b16 %v3697
        %v4054 = vunpack.c.l.b16 %v3698
        %v4055 = vunpack.c.h.b16 %v3698
        %v4056 = vunpack.c.l.b16 %v3699
        %v4057 = vunpack.c.h.b16 %v3699
        %v4058 = vunpack.c.l.b16 %v3700
        %v4059 = vunpack.c.h.b16 %v3700
        %v4060 = vunpack.c.l.b16 %v3701
        %v4061 = vunpack.c.h.b16 %v3701
        %v4062 = vunpack.c.l.b16 %v3702
        %v4063 = vunpack.c.h.b16 %v3702
        %v4064 = vunpack.c.l.b16 %v3703
        %v4065 = vunpack.c.h.b16 %v3703
        %v4066 = vunpack.c.l.b16 %v3704
        %v4067 = vunpack.c.h.b16 %v3704
        %v4068 = vunpack.c.l.b16 %v3705
        %v4069 = vunpack.c.h.b16 %v3705
        %v4070 = vunpack.c.l.b16 %v3706
        %v4071 = vunpack.c.h.b16 %v3706
        %v4072 = vunpack.c.l.b16 %v3707
        %v4073 = vunpack.c.h.b16 %v3707
        %v4074 = vunpack.c.l.b16 %v3708
        %v4075 = vunpack.c.h.b16 %v3708
        %v4076 = vunpack.c.l.b16 %v3709
        %v4077 = vunpack.c.h.b16 %v3709
        %v4078 = vunpack.c.l.b16 %v3710
        %v4079 = vunpack.c.h.b16 %v3710
        %v4080 = vunpack.c.l.b16 %v3711
        %v4081 = vunpack.c.h.b16 %v3711
        %v4082 = vunpack.c.l.b16 %v3712
        %v4083 = vunpack.c.h.b16 %v3712
        %v4084 = vunpack.c.l.b16 %v3713
        %v4085 = vunpack.c.h.b16 %v3713
        %v4086 = vunpack.c.l.b16 %v3714
        %v4087 = vunpack.c.h.b16 %v3714
        %v4088 = vunpack.c.l.b16 %v3715
        %v4089 = vunpack.c.h.b16 %v3715
        %v4090 = vunpack.c.l.b16 %v3716
        %v4091 = vunpack.c.h.b16 %v3716
        %v4092 = vunpack.c.l.b16 %v3717
        %v4093 = vunpack.c.h.b16 %v3717
        %v4094 = vunpack.c.l.b16 %v3718
        %v4095 = vunpack.c.h.b16 %v3718
        %v4096 = vunpack.c.l.b16 %v3719
        %v4097 = vunpack.c.h.b16 %v3719
        %v4098 = vunpack.c.l.b16 %v3720
        %v4099 = vunpack.c.h.b16 %v3720
        %v4100 = vunpack.c.l.b16 %v3721
        %v4101 = vunpack.c.h.b16 %v3721
        %v4102 = vunpack.c.l.b16 %v3722
        %v4103 = vunpack.c.h.b16 %v3722
        %v4104 = vunpack.c.l.b16 %v3723
        %v4105 = vunpack.c.h.b16 %v3723
        %v4106 = vunpack.c.l.b16 %v3724
        %v4107 = vunpack.c.h.b16 %v3724
        %v4108 = vunpack.c.l.b16 %v3725
        %v4109 = vunpack.c.h.b16 %v3725
        %v4110 = vunpack.c.l.b16 %v3726
        %v4111 = vunpack.c.h.b16 %v3726
        %v4112 = vunpack.c.l.b16 %v3727
        %v4113 = vunpack.c.h.b16 %v3727
        %v4114 = vunpack.c.l.b16 %v3728
        %v4115 = vunpack.c.h.b16 %v3728
        %v4116 = vunpack.c.l.b16 %v3729
        %v4117 = vunpack.c.h.b16 %v3729
        %v4118 = vunpack.c.l.b16 %v3730
        %v4119 = vunpack.c.h.b16 %v3730
        %v4120 = vunpack.c.l.b16 %v3731
        %v4121 = vunpack.c.h.b16 %v3731
        %v4122 = vunpack.c.l.b16 %v3732
        %v4123 = vunpack.c.h.b16 %v3732
        %v4124 = vunpack.c.l.b16 %v3733
        %v4125 = vunpack.c.h.b16 %v3733
        %v4126 = vunpack.c.l.b16 %v3734
        %v4127 = vunpack.c.h.b16 %v3734
        %v4128 = vunpack.c.l.b16 %v3735
        %v4129 = vunpack.c.h.b16 %v3735
        %v4130 = vunpack.c.l.b16 %v3736
        %v4131 = vunpack.c.h.b16 %v3736
        %v4132 = vunpack.c.l.b16 %v3737
        %v4133 = vunpack.c.h.b16 %v3737
        %v4134 = vunpack.c.l.b16 %v3738
        %v4135 = vunpack.c.h.b16 %v3738
        %v4136 = vunpack.c.l.b16 %v3739
        %v4137 = vunpack.c.h.b16 %v3739
        %v4138 = vunpack.c.l.b16 %v3740
        %v4139 = vunpack.c.h.b16 %v3740
        %v4140 = vunpack.c.l.b16 %v3741
        %v4141 = vunpack.c.h.b16 %v3741
        %v4142 = vunpack.c.l.b16 %v3742
        %v4143 = vunpack.c.h.b16 %v3742
        %v4144 = vpack.c.b16 %v3892, %v3888
        %v4145 = vpack.c.b16 %v3893, %v3889
        %v4146 = vpack.c.b16 %v3894, %v3890
        %v4147 = vpack.c.b16 %v3895, %v3891
        %v4148 = vpack.c.b16 %v3900, %v3896
        %v4149 = vpack.c.b16 %v3901, %v3897
        %v4150 = vpack.c.b16 %v3902, %v3898
        %v4151 = vpack.c.b16 %v3903, %v3899
        %v4152 = vpack.c.b16 %v3908, %v3904
        %v4153 = vpack.c.b16 %v3909, %v3905
        %v4154 = vpack.c.b16 %v3910, %v3906
        %v4155 = vpack.c.b16 %v3911, %v3907
        %v4156 = vpack.c.b16 %v3916, %v3912
        %v4157 = vpack.c.b16 %v3917, %v3913
        %v4158 = vpack.c.b16 %v3918, %v3914
        %v4159 = vpack.c.b16 %v3919, %v3915
        %v4160 = vpack.c.b16 %v3924, %v3920
        %v4161 = vpack.c.b16 %v3925, %v3921
        %v4162 = vpack.c.b16 %v3926, %v3922
        %v4163 = vpack.c.b16 %v3927, %v3923
        %v4164 = vpack.c.b16 %v3932, %v3928
        %v4165 = vpack.c.b16 %v3933, %v3929
        %v4166 = vpack.c.b16 %v3934, %v3930
        %v4167 = vpack.c.b16 %v3935, %v3931
        %v4168 = vpack.c.b16 %v3940, %v3936
        %v4169 = vpack.c.b16 %v3941, %v3937
        %v4170 = vpack.c.b16 %v3942, %v3938
        %v4171 = vpack.c.b16 %v3943, %v3939
        %v4172 = vpack.c.b16 %v3948, %v3944
        %v4173 = vpack.c.b16 %v3949, %v3945
        %v4174 = vpack.c.b16 %v3950, %v3946
        %v4175 = vpack.c.b16 %v3951, %v3947
        %v4176 = vpack.c.b16 %v3956, %v3952
        %v4177 = vpack.c.b16 %v3957, %v3953
        %v4178 = vpack.c.b16 %v3958, %v3954
        %v4179 = vpack.c.b16 %v3959, %v3955
        %v4180 = vpack.c.b16 %v3964, %v3960
        %v4181 = vpack.c.b16 %v3965, %v3961
        %v4182 = vpack.c.b16 %v3966, %v3962
        %v4183 = vpack.c.b16 %v3967, %v3963
        %v4184 = vpack.c.b16 %v3972, %v3968
        %v4185 = vpack.c.b16 %v3973, %v3969
        %v4186 = vpack.c.b16 %v3974, %v3970
        %v4187 = vpack.c.b16 %v3975, %v3971
        %v4188 = vpack.c.b16 %v3980, %v3976
        %v4189 = vpack.c.b16 %v3981, %v3977
        %v4190 = vpack.c.b16 %v3982, %v3978
        %v4191 = vpack.c.b16 %v3983, %v3979
        %v4192 = vpack.c.b16 %v3988, %v3984
        %v4193 = vpack.c.b16 %v3989, %v3985
        %v4194 = vpack.c.b16 %v3990, %v3986
        %v4195 = vpack.c.b16 %v3991, %v3987
        %v4196 = vpack.c.b16 %v3996, %v3992
        %v4197 = vpack.c.b16 %v3997, %v3993
        %v4198 = vpack.c.b16 %v3998, %v3994
        %v4199 = vpack.c.b16 %v3999, %v3995
        %v4200 = vpack.c.b16 %v4004, %v4000
        %v4201 = vpack.c.b16 %v4005, %v4001
        %v4202 = vpack.c.b16 %v4006, %v4002
        %v4203 = vpack.c.b16 %v4007, %v4003
        %v4204 = vpack.c.b16 %v4012, %v4008
        %v4205 = vpack.c.b16 %v4013, %v4009
        %v4206 = vpack.c.b16 %v4014, %v4010
        %v4207 = vpack.c.b16 %v4015, %v4011
        %v4208 = vpack.c.b16 %v4020, %v4016
        %v4209 = vpack.c.b16 %v4021, %v4017
        %v4210 = vpack.c.b16 %v4022, %v4018
        %v4211 = vpack.c.b16 %v4023, %v4019
        %v4212 = vpack.c.b16 %v4028, %v4024
        %v4213 = vpack.c.b16 %v4029, %v4025
        %v4214 = vpack.c.b16 %v4030, %v4026
        %v4215 = vpack.c.b16 %v4031, %v4027
        %v4216 = vpack.c.b16 %v4036, %v4032
        %v4217 = vpack.c.b16 %v4037, %v4033
        %v4218 = vpack.c.b16 %v4038, %v4034
        %v4219 = vpack.c.b16 %v4039, %v4035
        %v4220 = vpack.c.b16 %v4044, %v4040
        %v4221 = vpack.c.b16 %v4045, %v4041
        %v4222 = vpack.c.b16 %v4046, %v4042
        %v4223 = vpack.c.b16 %v4047, %v4043
        %v4224 = vpack.c.b16 %v4052, %v4048
        %v4225 = vpack.c.b16 %v4053, %v4049
        %v4226 = vpack.c.b16 %v4054, %v4050
        %v4227 = vpack.c.b16 %v4055, %v4051
        %v4228 = vpack.c.b16 %v4060, %v4056
        %v4229 = vpack.c.b16 %v4061, %v4057
        %v4230 = vpack.c.b16 %v4062, %v4058
        %v4231 = vpack.c.b16 %v4063, %v4059
        %v4232 = vpack.c.b16 %v4068, %v4064
        %v4233 = vpack.c.b16 %v4069, %v4065
        %v4234 = vpack.c.b16 %v4070, %v4066
        %v4235 = vpack.c.b16 %v4071, %v4067
        %v4236 = vpack.c.b16 %v4076, %v4072
        %v4237 = vpack.c.b16 %v4077, %v4073
        %v4238 = vpack.c.b16 %v4078, %v4074
        %v4239 = vpack.c.b16 %v4079, %v4075
        %v4240 = vpack.c.b16 %v4084, %v4080
        %v4241 = vpack.c.b16 %v4085, %v4081
        %v4242 = vpack.c.b16 %v4086, %v4082
        %v4243 = vpack.c.b16 %v4087, %v4083
        %v4244 = vpack.c.b16 %v4092, %v4088
        %v4245 = vpack.c.b16 %v4093, %v4089
        %v4246 = vpack.c.b16 %v4094, %v4090
        %v4247 = vpack.c.b16 %v4095, %v4091
        %v4248 = vpack.c.b16 %v4100, %v4096
        %v4249 = vpack.c.b16 %v4101, %v4097
        %v4250 = vpack.c.b16 %v4102, %v4098
        %v4251 = vpack.c.b16 %v4103, %v4099
        %v4252 = vpack.c.b16 %v4108, %v4104
        %v4253 = vpack.c.b16 %v4109, %v4105
        %v4254 = vpack.c.b16 %v4110, %v4106
        %v4255 = vpack.c.b16 %v4111, %v4107
        %v4256 = vpack.c.b16 %v4116, %v4112
        %v4257 = vpack.c.b16 %v4117, %v4113
        %v4258 = vpack.c.b16 %v4118, %v4114
        %v4259 = vpack.c.b16 %v4119, %v4115
        %v4260 = vpack.c.b16 %v4124, %v4120
        %v4261 = vpack.c.b16 %v4125, %v4121
        %v4262 = vpack.c.b16 %v4126, %v4122
        %v4263 = vpack.c.b16 %v4127, %v4123
        %v4264 = vpack.c.b16 %v4132, %v4128
        %v4265 = vpack.c.b16 %v4133, %v4129
        %v4266 = vpack.c.b16 %v4134, %v4130
        %v4267 = vpack.c.b16 %v4135, %v4131
        %v4268 = vpack.c.b16 %v4140, %v4136
        %v4269 = vpack.c.b16 %v4141, %v4137
        %v4270 = vpack.c.b16 %v4142, %v4138
        %v4271 = vpack.c.b16 %v4143, %v4139
        %4400 = vmatpush.bf16.msra.mxu0 %v4172
        %4401 = vmatpush.bf16.msra.mxu0 %v4168
        %4402 = vmatpush.bf16.msra.mxu0 %v4164
        %4403 = vmatpush.bf16.msra.mxu0 %v4160
        %4404 = vmatpush.bf16.msra.mxu0 %v4156
        %4405 = vmatpush.bf16.msra.mxu0 %v4152
        %4406 = vmatpush.bf16.msra.mxu0 %v4148
        %4407 = vmatpush.bf16.msra.mxu0 %v4144
        %4408 = vmatmul.bf16.gmra.mxu0 %v3747
        %v4409 = vpop.f32.mrf.mxu0
        %v4410 = vadd.f32 %v3752, %v4409
        %v4411 = vpop.f32.mrf.mxu0
        %v4412 = vadd.f32 %v3752, %v4411
        %4413 = vdwg.mxu0
        %4414 = vmatpush.bf16.msra.mxu0 %v4204
        %4415 = vmatpush.bf16.msra.mxu0 %v4200
        %4416 = vmatpush.bf16.msra.mxu0 %v4196
        %4417 = vmatpush.bf16.msra.mxu0 %v4192
        %4418 = vmatpush.bf16.msra.mxu0 %v4188
        %4419 = vmatpush.bf16.msra.mxu0 %v4184
        %4420 = vmatpush.bf16.msra.mxu0 %v4180
        %4421 = vmatpush.bf16.msra.mxu0 %v4176
        %4422 = vmatmul.bf16.gmra.mxu0 %v3748
        %v4423 = vpop.f32.mrf.mxu0
        %v4424 = vadd.f32 %v4410, %v4423
        %v4425 = vpop.f32.mrf.mxu0
        %v4426 = vadd.f32 %v4412, %v4425
        %4427 = vdwg.mxu0
        %4428 = vmatpush.bf16.msra.mxu0 %v4236
        %4429 = vmatpush.bf16.msra.mxu0 %v4232
        %4430 = vmatpush.bf16.msra.mxu0 %v4228
        %4431 = vmatpush.bf16.msra.mxu0 %v4224
        %4432 = vmatpush.bf16.msra.mxu0 %v4220
        %4433 = vmatpush.bf16.msra.mxu0 %v4216
        %4434 = vmatpush.bf16.msra.mxu0 %v4212
        %4435 = vmatpush.bf16.msra.mxu0 %v4208
        %4436 = vmatmul.bf16.gmra.mxu0 %v3749
        %v4437 = vpop.f32.mrf.mxu0
        %v4438 = vadd.f32 %v4424, %v4437
        %v4439 = vpop.f32.mrf.mxu0
        %v4440 = vadd.f32 %v4426, %v4439
        %4441 = vdwg.mxu0
        %4442 = vmatpush.bf16.msra.mxu0 %v4268
        %4443 = vmatpush.bf16.msra.mxu0 %v4264
        %4444 = vmatpush.bf16.msra.mxu0 %v4260
        %4445 = vmatpush.bf16.msra.mxu0 %v4256
        %4446 = vmatpush.bf16.msra.mxu0 %v4252
        %4447 = vmatpush.bf16.msra.mxu0 %v4248
        %4448 = vmatpush.bf16.msra.mxu0 %v4244
        %4449 = vmatpush.bf16.msra.mxu0 %v4240
        %4450 = vmatmul.bf16.gmra.mxu0 %v3750
        %v4451 = vpop.f32.mrf.mxu0
        %v4452 = vadd.f32 %v4438, %v4451
        %v4453 = vpop.f32.mrf.mxu0
        %v4454 = vadd.f32 %v4440, %v4453
        %4455 = vdwg.mxu0
        %4456 = vmatpush.bf16.msra.mxu0 %v4173
        %4457 = vmatpush.bf16.msra.mxu0 %v4169
        %4458 = vmatpush.bf16.msra.mxu0 %v4165
        %4459 = vmatpush.bf16.msra.mxu0 %v4161
        %4460 = vmatpush.bf16.msra.mxu0 %v4157
        %4461 = vmatpush.bf16.msra.mxu0 %v4153
        %4462 = vmatpush.bf16.msra.mxu0 %v4149
        %4463 = vmatpush.bf16.msra.mxu0 %v4145
        %4464 = vmatmul.bf16.gmra.mxu0 %v3747
        %v4465 = vpop.f32.mrf.mxu0
        %v4466 = vadd.f32 %v3753, %v4465
        %v4467 = vpop.f32.mrf.mxu0
        %v4468 = vadd.f32 %v3753, %v4467
        %4469 = vdwg.mxu0
        %4470 = vmatpush.bf16.msra.mxu0 %v4205
        %4471 = vmatpush.bf16.msra.mxu0 %v4201
        %4472 = vmatpush.bf16.msra.mxu0 %v4197
        %4473 = vmatpush.bf16.msra.mxu0 %v4193
        %4474 = vmatpush.bf16.msra.mxu0 %v4189
        %4475 = vmatpush.bf16.msra.mxu0 %v4185
        %4476 = vmatpush.bf16.msra.mxu0 %v4181
        %4477 = vmatpush.bf16.msra.mxu0 %v4177
        %4478 = vmatmul.bf16.gmra.mxu0 %v3748
        %v4479 = vpop.f32.mrf.mxu0
        %v4480 = vadd.f32 %v4466, %v4479
        %v4481 = vpop.f32.mrf.mxu0
        %v4482 = vadd.f32 %v4468, %v4481
        %4483 = vdwg.mxu0
        %4484 = vmatpush.bf16.msra.mxu0 %v4237
        %4485 = vmatpush.bf16.msra.mxu0 %v4233
        %4486 = vmatpush.bf16.msra.mxu0 %v4229
        %4487 = vmatpush.bf16.msra.mxu0 %v4225
        %4488 = vmatpush.bf16.msra.mxu0 %v4221
        %4489 = vmatpush.bf16.msra.mxu0 %v4217
        %4490 = vmatpush.bf16.msra.mxu0 %v4213
        %4491 = vmatpush.bf16.msra.mxu0 %v4209
        %4492 = vmatmul.bf16.gmra.mxu0 %v3749
        %v4493 = vpop.f32.mrf.mxu0
        %v4494 = vadd.f32 %v4480, %v4493
        %v4495 = vpop.f32.mrf.mxu0
        %v4496 = vadd.f32 %v4482, %v4495
        %4497 = vdwg.mxu0
        %4498 = vmatpush.bf16.msra.mxu0 %v4269
        %4499 = vmatpush.bf16.msra.mxu0 %v4265
        %4500 = vmatpush.bf16.msra.mxu0 %v4261
        %4501 = vmatpush.bf16.msra.mxu0 %v4257
        %4502 = vmatpush.bf16.msra.mxu0 %v4253
        %4503 = vmatpush.bf16.msra.mxu0 %v4249
        %4504 = vmatpush.bf16.msra.mxu0 %v4245
        %4505 = vmatpush.bf16.msra.mxu0 %v4241
        %4506 = vmatmul.bf16.gmra.mxu0 %v3750
        %v4507 = vpop.f32.mrf.mxu0
        %v4508 = vadd.f32 %v4494, %v4507
        %v4509 = vpop.f32.mrf.mxu0
        %v4510 = vadd.f32 %v4496, %v4509
        %4511 = vdwg.mxu0
        %4512 = vmatpush.bf16.msra.mxu0 %v4174
        %4513 = vmatpush.bf16.msra.mxu0 %v4170
        %4514 = vmatpush.bf16.msra.mxu0 %v4166
        %4515 = vmatpush.bf16.msra.mxu0 %v4162
        %4516 = vmatpush.bf16.msra.mxu0 %v4158
        %4517 = vmatpush.bf16.msra.mxu0 %v4154
        %4518 = vmatpush.bf16.msra.mxu0 %v4150
        %4519 = vmatpush.bf16.msra.mxu0 %v4146
        %4520 = vmatmul.bf16.gmra.mxu0 %v3747
        %v4521 = vpop.f32.mrf.mxu0
        %v4522 = vadd.f32 %v3754, %v4521
        %v4523 = vpop.f32.mrf.mxu0
        %v4524 = vadd.f32 %v3754, %v4523
        %4525 = vdwg.mxu0
        %4526 = vmatpush.bf16.msra.mxu0 %v4206
        %4527 = vmatpush.bf16.msra.mxu0 %v4202
        %4528 = vmatpush.bf16.msra.mxu0 %v4198
        %4529 = vmatpush.bf16.msra.mxu0 %v4194
        %4530 = vmatpush.bf16.msra.mxu0 %v4190
        %4531 = vmatpush.bf16.msra.mxu0 %v4186
        %4532 = vmatpush.bf16.msra.mxu0 %v4182
        %4533 = vmatpush.bf16.msra.mxu0 %v4178
        %4534 = vmatmul.bf16.gmra.mxu0 %v3748
        %v4535 = vpop.f32.mrf.mxu0
        %v4536 = vadd.f32 %v4522, %v4535
        %v4537 = vpop.f32.mrf.mxu0
        %v4538 = vadd.f32 %v4524, %v4537
        %4539 = vdwg.mxu0
        %4540 = vmatpush.bf16.msra.mxu0 %v4238
        %4541 = vmatpush.bf16.msra.mxu0 %v4234
        %4542 = vmatpush.bf16.msra.mxu0 %v4230
        %4543 = vmatpush.bf16.msra.mxu0 %v4226
        %4544 = vmatpush.bf16.msra.mxu0 %v4222
        %4545 = vmatpush.bf16.msra.mxu0 %v4218
        %4546 = vmatpush.bf16.msra.mxu0 %v4214
        %4547 = vmatpush.bf16.msra.mxu0 %v4210
        %4548 = vmatmul.bf16.gmra.mxu0 %v3749
        %v4549 = vpop.f32.mrf.mxu0
        %v4550 = vadd.f32 %v4536, %v4549
        %v4551 = vpop.f32.mrf.mxu0
        %v4552 = vadd.f32 %v4538, %v4551
        %4553 = vdwg.mxu0
        %4554 = vmatpush.bf16.msra.mxu0 %v4270
        %4555 = vmatpush.bf16.msra.mxu0 %v4266
        %4556 = vmatpush.bf16.msra.mxu0 %v4262
        %4557 = vmatpush.bf16.msra.mxu0 %v4258
        %4558 = vmatpush.bf16.msra.mxu0 %v4254
        %4559 = vmatpush.bf16.msra.mxu0 %v4250
        %4560 = vmatpush.bf16.msra.mxu0 %v4246
        %4561 = vmatpush.bf16.msra.mxu0 %v4242
        %4562 = vmatmul.bf16.gmra.mxu0 %v3750
        %v4563 = vpop.f32.mrf.mxu0
        %v4564 = vadd.f32 %v4550, %v4563
        %v4565 = vpop.f32.mrf.mxu0
        %v4566 = vadd.f32 %v4552, %v4565
        %4567 = vdwg.mxu0
        %4568 = vmatpush.bf16.msra.mxu0 %v4175
        %4569 = vmatpush.bf16.msra.mxu0 %v4171
        %4570 = vmatpush.bf16.msra.mxu0 %v4167
        %4571 = vmatpush.bf16.msra.mxu0 %v4163
        %4572 = vmatpush.bf16.msra.mxu0 %v4159
        %4573 = vmatpush.bf16.msra.mxu0 %v4155
        %4574 = vmatpush.bf16.msra.mxu0 %v4151
        %4575 = vmatpush.bf16.msra.mxu0 %v4147
        %4576 = vmatmul.bf16.gmra.mxu0 %v3747
        %v4577 = vpop.f32.mrf.mxu0
        %v4578 = vadd.f32 %v3755, %v4577
        %v4579 = vpop.f32.mrf.mxu0
        %v4580 = vadd.f32 %v3755, %v4579
        %4581 = vdwg.mxu0
        %4582 = vmatpush.bf16.msra.mxu0 %v4207
        %4583 = vmatpush.bf16.msra.mxu0 %v4203
        %4584 = vmatpush.bf16.msra.mxu0 %v4199
        %4585 = vmatpush.bf16.msra.mxu0 %v4195
        %4586 = vmatpush.bf16.msra.mxu0 %v4191
        %4587 = vmatpush.bf16.msra.mxu0 %v4187
        %4588 = vmatpush.bf16.msra.mxu0 %v4183
        %4589 = vmatpush.bf16.msra.mxu0 %v4179
        %4590 = vmatmul.bf16.gmra.mxu0 %v3748
        %v4591 = vpop.f32.mrf.mxu0
        %v4592 = vadd.f32 %v4578, %v4591
        %v4593 = vpop.f32.mrf.mxu0
        %v4594 = vadd.f32 %v4580, %v4593
        %4595 = vdwg.mxu0
        %4596 = vmatpush.bf16.msra.mxu0 %v4239
        %4597 = vmatpush.bf16.msra.mxu0 %v4235
        %4598 = vmatpush.bf16.msra.mxu0 %v4231
        %4599 = vmatpush.bf16.msra.mxu0 %v4227
        %4600 = vmatpush.bf16.msra.mxu0 %v4223
        %4601 = vmatpush.bf16.msra.mxu0 %v4219
        %4602 = vmatpush.bf16.msra.mxu0 %v4215
        %4603 = vmatpush.bf16.msra.mxu0 %v4211
        %4604 = vmatmul.bf16.gmra.mxu0 %v3749
        %v4605 = vpop.f32.mrf.mxu0
        %v4606 = vadd.f32 %v4592, %v4605
        %v4607 = vpop.f32.mrf.mxu0
        %v4608 = vadd.f32 %v4594, %v4607
        %4609 = vdwg.mxu0
        %4610 = vmatpush.bf16.msra.mxu0 %v4271
        %4611 = vmatpush.bf16.msra.mxu0 %v4267
        %4612 = vmatpush.bf16.msra.mxu0 %v4263
        %4613 = vmatpush.bf16.msra.mxu0 %v4259
        %4614 = vmatpush.bf16.msra.mxu0 %v4255
        %4615 = vmatpush.bf16.msra.mxu0 %v4251
        %4616 = vmatpush.bf16.msra.mxu0 %v4247
        %4617 = vmatpush.bf16.msra.mxu0 %v4243
        %4618 = vmatmul.bf16.gmra.mxu0 %v3750
        %v4619 = vpop.f32.mrf.mxu0
        %v4620 = vadd.f32 %v4606, %v4619
        %v4621 = vpop.f32.mrf.mxu0
        %v4622 = vadd.f32 %v4608, %v4621
        %4623 = vdwg.mxu0
        %v4624 = vmax.f32 %v4452, 0.0
        %v4625 = vmax.f32 %v4508, 0.0
        %v4626 = vmax.f32 %v4564, 0.0
        %v4627 = vmax.f32 %v4620, 0.0
        %v4628 = vmax.f32 %v4454, 0.0
        %v4629 = vmax.f32 %v4510, 0.0
        %v4630 = vmax.f32 %v4566, 0.0
        %v4631 = vmax.f32 %v4622, 0.0
        %v4632 = vand.u32 2147483647, %v4452
        %v4633 = vand.u32 2147483647, %v4508
        %v4634 = vand.u32 2147483647, %v4564
        %v4635 = vand.u32 2147483647, %v4620
        %v4636 = vand.u32 2147483647, %v4454
        %v4637 = vand.u32 2147483647, %v4510
        %v4638 = vand.u32 2147483647, %v4566
        %v4639 = vand.u32 2147483647, %v4622
        %v4640 = vsub.f32 0.0, %v4632
        %v4641 = vsub.f32 0.0, %v4633
        %v4642 = vsub.f32 0.0, %v4634
        %v4643 = vsub.f32 0.0, %v4635
        %v4644 = vsub.f32 0.0, %v4636
        %v4645 = vsub.f32 0.0, %v4637
        %v4646 = vsub.f32 0.0, %v4638
        %v4647 = vsub.f32 0.0, %v4639
        %v4648 = vmul.f32 %v4640, 1.442695
        %v4649 = vpow.pop %v4648
        %v4650 = vmul.f32 %v4641, 1.442695
        %v4651 = vpow.pop %v4650
        %v4652 = vmul.f32 %v4642, 1.442695
        %v4653 = vpow.pop %v4652
        %v4654 = vmul.f32 %v4643, 1.442695
        %v4655 = vpow.pop %v4654
        %v4656 = vmul.f32 %v4644, 1.442695
        %v4657 = vpow.pop %v4656
        %v4658 = vmul.f32 %v4645, 1.442695
        %v4659 = vpow.pop %v4658
        %v4660 = vmul.f32 %v4646, 1.442695
        %v4661 = vpow.pop %v4660
        %v4662 = vmul.f32 %v4647, 1.442695
        %v4663 = vpow.pop %v4662
        %v4664 = vadd.f32 %v4649, 1.0
        %v4665 = vlog2.pop %v4664
        %v4666 = vmul.f32 %v4665, 0.6931472
        %v4667 = vmul.f32 -0.5, %v4649
        %v4668 = vadd.f32 %v4667, 1.0
        %v4669 = vmul.f32 %v4668, %v4649
        %v4670 = vand.u32 2147483647, %v4649
        %vm4671 = vcmp.lt.f32.partialorder %v4670, 0.0004427343
        %v4672 = vsel %vm4671, %v4669, %v4666
        %v4673 = vadd.f32 %v4651, 1.0
        %v4674 = vlog2.pop %v4673
        %v4675 = vmul.f32 %v4674, 0.6931472
        %v4676 = vmul.f32 -0.5, %v4651
        %v4677 = vadd.f32 %v4676, 1.0
        %v4678 = vmul.f32 %v4677, %v4651
        %v4679 = vand.u32 2147483647, %v4651
        %vm4680 = vcmp.lt.f32.partialorder %v4679, 0.0004427343
        %v4681 = vsel %vm4680, %v4678, %v4675
        %v4682 = vadd.f32 %v4653, 1.0
        %v4683 = vlog2.pop %v4682
        %v4684 = vmul.f32 %v4683, 0.6931472
        %v4685 = vmul.f32 -0.5, %v4653
        %v4686 = vadd.f32 %v4685, 1.0
        %v4687 = vmul.f32 %v4686, %v4653
        %v4688 = vand.u32 2147483647, %v4653
        %vm4689 = vcmp.lt.f32.partialorder %v4688, 0.0004427343
        %v4690 = vsel %vm4689, %v4687, %v4684
        %v4691 = vadd.f32 %v4655, 1.0
        %v4692 = vlog2.pop %v4691
        %v4693 = vmul.f32 %v4692, 0.6931472
        %v4694 = vmul.f32 -0.5, %v4655
        %v4695 = vadd.f32 %v4694, 1.0
        %v4696 = vmul.f32 %v4695, %v4655
        %v4697 = vand.u32 2147483647, %v4655
        %vm4698 = vcmp.lt.f32.partialorder %v4697, 0.0004427343
        %v4699 = vsel %vm4698, %v4696, %v4693
        %v4700 = vadd.f32 %v4657, 1.0
        %v4701 = vlog2.pop %v4700
        %v4702 = vmul.f32 %v4701, 0.6931472
        %v4703 = vmul.f32 -0.5, %v4657
        %v4704 = vadd.f32 %v4703, 1.0
        %v4705 = vmul.f32 %v4704, %v4657
        %v4706 = vand.u32 2147483647, %v4657
        %vm4707 = vcmp.lt.f32.partialorder %v4706, 0.0004427343
        %v4708 = vsel %vm4707, %v4705, %v4702
        %v4709 = vadd.f32 %v4659, 1.0
        %v4710 = vlog2.pop %v4709
        %v4711 = vmul.f32 %v4710, 0.6931472
        %v4712 = vmul.f32 -0.5, %v4659
        %v4713 = vadd.f32 %v4712, 1.0
        %v4714 = vmul.f32 %v4713, %v4659
        %v4715 = vand.u32 2147483647, %v4659
        %vm4716 = vcmp.lt.f32.partialorder %v4715, 0.0004427343
        %v4717 = vsel %vm4716, %v4714, %v4711
        %v4718 = vadd.f32 %v4661, 1.0
        %v4719 = vlog2.pop %v4718
        %v4720 = vmul.f32 %v4719, 0.6931472
        %v4721 = vmul.f32 -0.5, %v4661
        %v4722 = vadd.f32 %v4721, 1.0
        %v4723 = vmul.f32 %v4722, %v4661
        %v4724 = vand.u32 2147483647, %v4661
        %vm4725 = vcmp.lt.f32.partialorder %v4724, 0.0004427343
        %v4726 = vsel %vm4725, %v4723, %v4720
        %v4727 = vadd.f32 %v4663, 1.0
        %v4728 = vlog2.pop %v4727
        %v4729 = vmul.f32 %v4728, 0.6931472
        %v4730 = vmul.f32 -0.5, %v4663
        %v4731 = vadd.f32 %v4730, 1.0
        %v4732 = vmul.f32 %v4731, %v4663
        %v4733 = vand.u32 2147483647, %v4663
        %vm4734 = vcmp.lt.f32.partialorder %v4733, 0.0004427343
        %v4735 = vsel %vm4734, %v4732, %v4729
        %v4736 = vadd.f32 %v4624, %v4672
        %v4737 = vadd.f32 %v4625, %v4681
        %v4738 = vadd.f32 %v4626, %v4690
        %v4739 = vadd.f32 %v4627, %v4699
        %v4740 = vadd.f32 %v4628, %v4708
        %v4741 = vadd.f32 %v4629, %v4717
        %v4742 = vadd.f32 %v4630, %v4726
        %v4743 = vadd.f32 %v4631, %v4735
        %s4744 = scalar_lea.vmem %s172, 4096 [#allocation2]
        %v4745 = vld [vmem:[%s4744] sm:$0xff]
        %v4746 = vld [vmem:[%s4744 + $0x8] sm:$0xff]
        %v4747 = vld [vmem:[%s4744 + $0x10] sm:$0xff]
        %v4748 = vld [vmem:[%s4744 + $0x18] sm:$0xff]
        %v4749 = vld [vmem:[%s4744 + $0x20] sm:$0xff]
        %v4750 = vld [vmem:[%s4744 + $0x28] sm:$0xff]
        %v4751 = vld [vmem:[%s4744 + $0x30] sm:$0xff]
        %v4752 = vld [vmem:[%s4744 + $0x38] sm:$0xff]
        %v4753 = vld [vmem:[%s4744 + $0x40] sm:$0xff]
        %v4754 = vld [vmem:[%s4744 + $0x48] sm:$0xff]
        %v4755 = vld [vmem:[%s4744 + $0x50] sm:$0xff]
        %v4756 = vld [vmem:[%s4744 + $0x58] sm:$0xff]
        %v4757 = vld [vmem:[%s4744 + $0x60] sm:$0xff]
        %v4758 = vld [vmem:[%s4744 + $0x68] sm:$0xff]
        %v4759 = vld [vmem:[%s4744 + $0x70] sm:$0xff]
        %v4760 = vld [vmem:[%s4744 + $0x78] sm:$0xff]
        %v4761 = vld [vmem:[%s4744 + $0x80] sm:$0xff]
        %v4762 = vld [vmem:[%s4744 + $0x88] sm:$0xff]
        %v4763 = vld [vmem:[%s4744 + $0x90] sm:$0xff]
        %v4764 = vld [vmem:[%s4744 + $0x98] sm:$0xff]
        %v4765 = vld [vmem:[%s4744 + $0xa0] sm:$0xff]
        %v4766 = vld [vmem:[%s4744 + $0xa8] sm:$0xff]
        %v4767 = vld [vmem:[%s4744 + $0xb0] sm:$0xff]
        %v4768 = vld [vmem:[%s4744 + $0xb8] sm:$0xff]
        %v4769 = vld [vmem:[%s4744 + $0xc0] sm:$0xff]
        %v4770 = vld [vmem:[%s4744 + $0xc8] sm:$0xff]
        %v4771 = vld [vmem:[%s4744 + $0xd0] sm:$0xff]
        %v4772 = vld [vmem:[%s4744 + $0xd8] sm:$0xff]
        %v4773 = vld [vmem:[%s4744 + $0xe0] sm:$0xff]
        %v4774 = vld [vmem:[%s4744 + $0xe8] sm:$0xff]
        %v4775 = vld [vmem:[%s4744 + $0xf0] sm:$0xff]
        %v4776 = vld [vmem:[%s4744 + $0xf8] sm:$0xff]
        %v4777 = vld [vmem:[%s4744 + $0x100] sm:$0xff]
        %v4778 = vld [vmem:[%s4744 + $0x108] sm:$0xff]
        %v4779 = vld [vmem:[%s4744 + $0x110] sm:$0xff]
        %v4780 = vld [vmem:[%s4744 + $0x118] sm:$0xff]
        %v4781 = vld [vmem:[%s4744 + $0x120] sm:$0xff]
        %v4782 = vld [vmem:[%s4744 + $0x128] sm:$0xff]
        %v4783 = vld [vmem:[%s4744 + $0x130] sm:$0xff]
        %v4784 = vld [vmem:[%s4744 + $0x138] sm:$0xff]
        %v4785 = vld [vmem:[%s4744 + $0x140] sm:$0xff]
        %v4786 = vld [vmem:[%s4744 + $0x148] sm:$0xff]
        %v4787 = vld [vmem:[%s4744 + $0x150] sm:$0xff]
        %v4788 = vld [vmem:[%s4744 + $0x158] sm:$0xff]
        %v4789 = vld [vmem:[%s4744 + $0x160] sm:$0xff]
        %v4790 = vld [vmem:[%s4744 + $0x168] sm:$0xff]
        %v4791 = vld [vmem:[%s4744 + $0x170] sm:$0xff]
        %v4792 = vld [vmem:[%s4744 + $0x178] sm:$0xff]
        %v4793 = vld [vmem:[%s4744 + $0x180] sm:$0xff]
        %v4794 = vld [vmem:[%s4744 + $0x188] sm:$0xff]
        %v4795 = vld [vmem:[%s4744 + $0x190] sm:$0xff]
        %v4796 = vld [vmem:[%s4744 + $0x198] sm:$0xff]
        %v4797 = vld [vmem:[%s4744 + $0x1a0] sm:$0xff]
        %v4798 = vld [vmem:[%s4744 + $0x1a8] sm:$0xff]
        %v4799 = vld [vmem:[%s4744 + $0x1b0] sm:$0xff]
        %v4800 = vld [vmem:[%s4744 + $0x1b8] sm:$0xff]
        %v4801 = vld [vmem:[%s4744 + $0x1c0] sm:$0xff]
        %v4802 = vld [vmem:[%s4744 + $0x1c8] sm:$0xff]
        %v4803 = vld [vmem:[%s4744 + $0x1d0] sm:$0xff]
        %v4804 = vld [vmem:[%s4744 + $0x1d8] sm:$0xff]
        %v4805 = vld [vmem:[%s4744 + $0x1e0] sm:$0xff]
        %v4806 = vld [vmem:[%s4744 + $0x1e8] sm:$0xff]
        %v4807 = vld [vmem:[%s4744 + $0x1f0] sm:$0xff]
        %v4808 = vld [vmem:[%s4744 + $0x1f8] sm:$0xff]
        %v4809 = vld [vmem:[%s4744 + $0x200] sm:$0xff]
        %v4810 = vld [vmem:[%s4744 + $0x208] sm:$0xff]
        %v4811 = vld [vmem:[%s4744 + $0x210] sm:$0xff]
        %v4812 = vld [vmem:[%s4744 + $0x218] sm:$0xff]
        %v4813 = vld [vmem:[%s4744 + $0x220] sm:$0xff]
        %v4814 = vld [vmem:[%s4744 + $0x228] sm:$0xff]
        %v4815 = vld [vmem:[%s4744 + $0x230] sm:$0xff]
        %v4816 = vld [vmem:[%s4744 + $0x238] sm:$0xff]
        %v4817 = vld [vmem:[%s4744 + $0x240] sm:$0xff]
        %v4818 = vld [vmem:[%s4744 + $0x248] sm:$0xff]
        %v4819 = vld [vmem:[%s4744 + $0x250] sm:$0xff]
        %v4820 = vld [vmem:[%s4744 + $0x258] sm:$0xff]
        %v4821 = vld [vmem:[%s4744 + $0x260] sm:$0xff]
        %v4822 = vld [vmem:[%s4744 + $0x268] sm:$0xff]
        %v4823 = vld [vmem:[%s4744 + $0x270] sm:$0xff]
        %v4824 = vld [vmem:[%s4744 + $0x278] sm:$0xff]
        %v4825 = vld [vmem:[%s4744 + $0x280] sm:$0xff]
        %v4826 = vld [vmem:[%s4744 + $0x288] sm:$0xff]
        %v4827 = vld [vmem:[%s4744 + $0x290] sm:$0xff]
        %v4828 = vld [vmem:[%s4744 + $0x298] sm:$0xff]
        %v4829 = vld [vmem:[%s4744 + $0x2a0] sm:$0xff]
        %v4830 = vld [vmem:[%s4744 + $0x2a8] sm:$0xff]
        %v4831 = vld [vmem:[%s4744 + $0x2b0] sm:$0xff]
        %v4832 = vld [vmem:[%s4744 + $0x2b8] sm:$0xff]
        %v4833 = vld [vmem:[%s4744 + $0x2c0] sm:$0xff]
        %v4834 = vld [vmem:[%s4744 + $0x2c8] sm:$0xff]
        %v4835 = vld [vmem:[%s4744 + $0x2d0] sm:$0xff]
        %v4836 = vld [vmem:[%s4744 + $0x2d8] sm:$0xff]
        %v4837 = vld [vmem:[%s4744 + $0x2e0] sm:$0xff]
        %v4838 = vld [vmem:[%s4744 + $0x2e8] sm:$0xff]
        %v4839 = vld [vmem:[%s4744 + $0x2f0] sm:$0xff]
        %v4840 = vld [vmem:[%s4744 + $0x2f8] sm:$0xff]
        %v4841 = vld [vmem:[%s4744 + $0x300] sm:$0xff]
        %v4842 = vld [vmem:[%s4744 + $0x308] sm:$0xff]
        %v4843 = vld [vmem:[%s4744 + $0x310] sm:$0xff]
        %v4844 = vld [vmem:[%s4744 + $0x318] sm:$0xff]
        %v4845 = vld [vmem:[%s4744 + $0x320] sm:$0xff]
        %v4846 = vld [vmem:[%s4744 + $0x328] sm:$0xff]
        %v4847 = vld [vmem:[%s4744 + $0x330] sm:$0xff]
        %v4848 = vld [vmem:[%s4744 + $0x338] sm:$0xff]
        %v4849 = vld [vmem:[%s4744 + $0x340] sm:$0xff]
        %v4850 = vld [vmem:[%s4744 + $0x348] sm:$0xff]
        %v4851 = vld [vmem:[%s4744 + $0x350] sm:$0xff]
        %v4852 = vld [vmem:[%s4744 + $0x358] sm:$0xff]
        %v4853 = vld [vmem:[%s4744 + $0x360] sm:$0xff]
        %v4854 = vld [vmem:[%s4744 + $0x368] sm:$0xff]
        %v4855 = vld [vmem:[%s4744 + $0x370] sm:$0xff]
        %v4856 = vld [vmem:[%s4744 + $0x378] sm:$0xff]
        %v4857 = vld [vmem:[%s4744 + $0x380] sm:$0xff]
        %v4858 = vld [vmem:[%s4744 + $0x388] sm:$0xff]
        %v4859 = vld [vmem:[%s4744 + $0x390] sm:$0xff]
        %v4860 = vld [vmem:[%s4744 + $0x398] sm:$0xff]
        %v4861 = vld [vmem:[%s4744 + $0x3a0] sm:$0xff]
        %v4862 = vld [vmem:[%s4744 + $0x3a8] sm:$0xff]
        %v4863 = vld [vmem:[%s4744 + $0x3b0] sm:$0xff]
        %v4864 = vld [vmem:[%s4744 + $0x3b8] sm:$0xff]
        %v4865 = vld [vmem:[%s4744 + $0x3c0] sm:$0xff]
        %v4866 = vld [vmem:[%s4744 + $0x3c8] sm:$0xff]
        %v4867 = vld [vmem:[%s4744 + $0x3d0] sm:$0xff]
        %v4868 = vld [vmem:[%s4744 + $0x3d8] sm:$0xff]
        %v4869 = vld [vmem:[%s4744 + $0x3e0] sm:$0xff]
        %v4870 = vld [vmem:[%s4744 + $0x3e8] sm:$0xff]
        %v4871 = vld [vmem:[%s4744 + $0x3f0] sm:$0xff]
        %v4872 = vld [vmem:[%s4744 + $0x3f8] sm:$0xff]
        %s4873 = sadd.s32 %s225, 4
        %s4874 = smul.u32 %s4873, 4
        %s4875 = scalar_lea.vmem [#allocation4], %s4874
        %v4876 = vld [vmem:[%s4875] sm:$0xf]
        %v4877 = vpack.c.bf16 %v4740, %v4736
        %v4878 = vpack.c.bf16 %v4741, %v4737
        %v4879 = vpack.c.bf16 %v4742, %v4738
        %v4880 = vpack.c.bf16 %v4743, %v4739
        %v4882 = vperm.slane %v4876, 0
        %v4883 = vperm.slane %v4876, 1
        %v4884 = vperm.slane %v4876, 2
        %v4885 = vperm.slane %v4876, 3
        %v5018 = vunpack.c.l.b16 %v4745
        %v5019 = vunpack.c.h.b16 %v4745
        %v5020 = vunpack.c.l.b16 %v4746
        %v5021 = vunpack.c.h.b16 %v4746
        %v5022 = vunpack.c.l.b16 %v4747
        %v5023 = vunpack.c.h.b16 %v4747
        %v5024 = vunpack.c.l.b16 %v4748
        %v5025 = vunpack.c.h.b16 %v4748
        %v5026 = vunpack.c.l.b16 %v4749
        %v5027 = vunpack.c.h.b16 %v4749
        %v5028 = vunpack.c.l.b16 %v4750
        %v5029 = vunpack.c.h.b16 %v4750
        %v5030 = vunpack.c.l.b16 %v4751
        %v5031 = vunpack.c.h.b16 %v4751
        %v5032 = vunpack.c.l.b16 %v4752
        %v5033 = vunpack.c.h.b16 %v4752
        %v5034 = vunpack.c.l.b16 %v4753
        %v5035 = vunpack.c.h.b16 %v4753
        %v5036 = vunpack.c.l.b16 %v4754
        %v5037 = vunpack.c.h.b16 %v4754
        %v5038 = vunpack.c.l.b16 %v4755
        %v5039 = vunpack.c.h.b16 %v4755
        %v5040 = vunpack.c.l.b16 %v4756
        %v5041 = vunpack.c.h.b16 %v4756
        %v5042 = vunpack.c.l.b16 %v4757
        %v5043 = vunpack.c.h.b16 %v4757
        %v5044 = vunpack.c.l.b16 %v4758
        %v5045 = vunpack.c.h.b16 %v4758
        %v5046 = vunpack.c.l.b16 %v4759
        %v5047 = vunpack.c.h.b16 %v4759
        %v5048 = vunpack.c.l.b16 %v4760
        %v5049 = vunpack.c.h.b16 %v4760
        %v5050 = vunpack.c.l.b16 %v4761
        %v5051 = vunpack.c.h.b16 %v4761
        %v5052 = vunpack.c.l.b16 %v4762
        %v5053 = vunpack.c.h.b16 %v4762
        %v5054 = vunpack.c.l.b16 %v4763
        %v5055 = vunpack.c.h.b16 %v4763
        %v5056 = vunpack.c.l.b16 %v4764
        %v5057 = vunpack.c.h.b16 %v4764
        %v5058 = vunpack.c.l.b16 %v4765
        %v5059 = vunpack.c.h.b16 %v4765
        %v5060 = vunpack.c.l.b16 %v4766
        %v5061 = vunpack.c.h.b16 %v4766
        %v5062 = vunpack.c.l.b16 %v4767
        %v5063 = vunpack.c.h.b16 %v4767
        %v5064 = vunpack.c.l.b16 %v4768
        %v5065 = vunpack.c.h.b16 %v4768
        %v5066 = vunpack.c.l.b16 %v4769
        %v5067 = vunpack.c.h.b16 %v4769
        %v5068 = vunpack.c.l.b16 %v4770
        %v5069 = vunpack.c.h.b16 %v4770
        %v5070 = vunpack.c.l.b16 %v4771
        %v5071 = vunpack.c.h.b16 %v4771
        %v5072 = vunpack.c.l.b16 %v4772
        %v5073 = vunpack.c.h.b16 %v4772
        %v5074 = vunpack.c.l.b16 %v4773
        %v5075 = vunpack.c.h.b16 %v4773
        %v5076 = vunpack.c.l.b16 %v4774
        %v5077 = vunpack.c.h.b16 %v4774
        %v5078 = vunpack.c.l.b16 %v4775
        %v5079 = vunpack.c.h.b16 %v4775
        %v5080 = vunpack.c.l.b16 %v4776
        %v5081 = vunpack.c.h.b16 %v4776
        %v5082 = vunpack.c.l.b16 %v4777
        %v5083 = vunpack.c.h.b16 %v4777
        %v5084 = vunpack.c.l.b16 %v4778
        %v5085 = vunpack.c.h.b16 %v4778
        %v5086 = vunpack.c.l.b16 %v4779
        %v5087 = vunpack.c.h.b16 %v4779
        %v5088 = vunpack.c.l.b16 %v4780
        %v5089 = vunpack.c.h.b16 %v4780
        %v5090 = vunpack.c.l.b16 %v4781
        %v5091 = vunpack.c.h.b16 %v4781
        %v5092 = vunpack.c.l.b16 %v4782
        %v5093 = vunpack.c.h.b16 %v4782
        %v5094 = vunpack.c.l.b16 %v4783
        %v5095 = vunpack.c.h.b16 %v4783
        %v5096 = vunpack.c.l.b16 %v4784
        %v5097 = vunpack.c.h.b16 %v4784
        %v5098 = vunpack.c.l.b16 %v4785
        %v5099 = vunpack.c.h.b16 %v4785
        %v5100 = vunpack.c.l.b16 %v4786
        %v5101 = vunpack.c.h.b16 %v4786
        %v5102 = vunpack.c.l.b16 %v4787
        %v5103 = vunpack.c.h.b16 %v4787
        %v5104 = vunpack.c.l.b16 %v4788
        %v5105 = vunpack.c.h.b16 %v4788
        %v5106 = vunpack.c.l.b16 %v4789
        %v5107 = vunpack.c.h.b16 %v4789
        %v5108 = vunpack.c.l.b16 %v4790
        %v5109 = vunpack.c.h.b16 %v4790
        %v5110 = vunpack.c.l.b16 %v4791
        %v5111 = vunpack.c.h.b16 %v4791
        %v5112 = vunpack.c.l.b16 %v4792
        %v5113 = vunpack.c.h.b16 %v4792
        %v5114 = vunpack.c.l.b16 %v4793
        %v5115 = vunpack.c.h.b16 %v4793
        %v5116 = vunpack.c.l.b16 %v4794
        %v5117 = vunpack.c.h.b16 %v4794
        %v5118 = vunpack.c.l.b16 %v4795
        %v5119 = vunpack.c.h.b16 %v4795
        %v5120 = vunpack.c.l.b16 %v4796
        %v5121 = vunpack.c.h.b16 %v4796
        %v5122 = vunpack.c.l.b16 %v4797
        %v5123 = vunpack.c.h.b16 %v4797
        %v5124 = vunpack.c.l.b16 %v4798
        %v5125 = vunpack.c.h.b16 %v4798
        %v5126 = vunpack.c.l.b16 %v4799
        %v5127 = vunpack.c.h.b16 %v4799
        %v5128 = vunpack.c.l.b16 %v4800
        %v5129 = vunpack.c.h.b16 %v4800
        %v5130 = vunpack.c.l.b16 %v4801
        %v5131 = vunpack.c.h.b16 %v4801
        %v5132 = vunpack.c.l.b16 %v4802
        %v5133 = vunpack.c.h.b16 %v4802
        %v5134 = vunpack.c.l.b16 %v4803
        %v5135 = vunpack.c.h.b16 %v4803
        %v5136 = vunpack.c.l.b16 %v4804
        %v5137 = vunpack.c.h.b16 %v4804
        %v5138 = vunpack.c.l.b16 %v4805
        %v5139 = vunpack.c.h.b16 %v4805
        %v5140 = vunpack.c.l.b16 %v4806
        %v5141 = vunpack.c.h.b16 %v4806
        %v5142 = vunpack.c.l.b16 %v4807
        %v5143 = vunpack.c.h.b16 %v4807
        %v5144 = vunpack.c.l.b16 %v4808
        %v5145 = vunpack.c.h.b16 %v4808
        %v5146 = vunpack.c.l.b16 %v4809
        %v5147 = vunpack.c.h.b16 %v4809
        %v5148 = vunpack.c.l.b16 %v4810
        %v5149 = vunpack.c.h.b16 %v4810
        %v5150 = vunpack.c.l.b16 %v4811
        %v5151 = vunpack.c.h.b16 %v4811
        %v5152 = vunpack.c.l.b16 %v4812
        %v5153 = vunpack.c.h.b16 %v4812
        %v5154 = vunpack.c.l.b16 %v4813
        %v5155 = vunpack.c.h.b16 %v4813
        %v5156 = vunpack.c.l.b16 %v4814
        %v5157 = vunpack.c.h.b16 %v4814
        %v5158 = vunpack.c.l.b16 %v4815
        %v5159 = vunpack.c.h.b16 %v4815
        %v5160 = vunpack.c.l.b16 %v4816
        %v5161 = vunpack.c.h.b16 %v4816
        %v5162 = vunpack.c.l.b16 %v4817
        %v5163 = vunpack.c.h.b16 %v4817
        %v5164 = vunpack.c.l.b16 %v4818
        %v5165 = vunpack.c.h.b16 %v4818
        %v5166 = vunpack.c.l.b16 %v4819
        %v5167 = vunpack.c.h.b16 %v4819
        %v5168 = vunpack.c.l.b16 %v4820
        %v5169 = vunpack.c.h.b16 %v4820
        %v5170 = vunpack.c.l.b16 %v4821
        %v5171 = vunpack.c.h.b16 %v4821
        %v5172 = vunpack.c.l.b16 %v4822
        %v5173 = vunpack.c.h.b16 %v4822
        %v5174 = vunpack.c.l.b16 %v4823
        %v5175 = vunpack.c.h.b16 %v4823
        %v5176 = vunpack.c.l.b16 %v4824
        %v5177 = vunpack.c.h.b16 %v4824
        %v5178 = vunpack.c.l.b16 %v4825
        %v5179 = vunpack.c.h.b16 %v4825
        %v5180 = vunpack.c.l.b16 %v4826
        %v5181 = vunpack.c.h.b16 %v4826
        %v5182 = vunpack.c.l.b16 %v4827
        %v5183 = vunpack.c.h.b16 %v4827
        %v5184 = vunpack.c.l.b16 %v4828
        %v5185 = vunpack.c.h.b16 %v4828
        %v5186 = vunpack.c.l.b16 %v4829
        %v5187 = vunpack.c.h.b16 %v4829
        %v5188 = vunpack.c.l.b16 %v4830
        %v5189 = vunpack.c.h.b16 %v4830
        %v5190 = vunpack.c.l.b16 %v4831
        %v5191 = vunpack.c.h.b16 %v4831
        %v5192 = vunpack.c.l.b16 %v4832
        %v5193 = vunpack.c.h.b16 %v4832
        %v5194 = vunpack.c.l.b16 %v4833
        %v5195 = vunpack.c.h.b16 %v4833
        %v5196 = vunpack.c.l.b16 %v4834
        %v5197 = vunpack.c.h.b16 %v4834
        %v5198 = vunpack.c.l.b16 %v4835
        %v5199 = vunpack.c.h.b16 %v4835
        %v5200 = vunpack.c.l.b16 %v4836
        %v5201 = vunpack.c.h.b16 %v4836
        %v5202 = vunpack.c.l.b16 %v4837
        %v5203 = vunpack.c.h.b16 %v4837
        %v5204 = vunpack.c.l.b16 %v4838
        %v5205 = vunpack.c.h.b16 %v4838
        %v5206 = vunpack.c.l.b16 %v4839
        %v5207 = vunpack.c.h.b16 %v4839
        %v5208 = vunpack.c.l.b16 %v4840
        %v5209 = vunpack.c.h.b16 %v4840
        %v5210 = vunpack.c.l.b16 %v4841
        %v5211 = vunpack.c.h.b16 %v4841
        %v5212 = vunpack.c.l.b16 %v4842
        %v5213 = vunpack.c.h.b16 %v4842
        %v5214 = vunpack.c.l.b16 %v4843
        %v5215 = vunpack.c.h.b16 %v4843
        %v5216 = vunpack.c.l.b16 %v4844
        %v5217 = vunpack.c.h.b16 %v4844
        %v5218 = vunpack.c.l.b16 %v4845
        %v5219 = vunpack.c.h.b16 %v4845
        %v5220 = vunpack.c.l.b16 %v4846
        %v5221 = vunpack.c.h.b16 %v4846
        %v5222 = vunpack.c.l.b16 %v4847
        %v5223 = vunpack.c.h.b16 %v4847
        %v5224 = vunpack.c.l.b16 %v4848
        %v5225 = vunpack.c.h.b16 %v4848
        %v5226 = vunpack.c.l.b16 %v4849
        %v5227 = vunpack.c.h.b16 %v4849
        %v5228 = vunpack.c.l.b16 %v4850
        %v5229 = vunpack.c.h.b16 %v4850
        %v5230 = vunpack.c.l.b16 %v4851
        %v5231 = vunpack.c.h.b16 %v4851
        %v5232 = vunpack.c.l.b16 %v4852
        %v5233 = vunpack.c.h.b16 %v4852
        %v5234 = vunpack.c.l.b16 %v4853
        %v5235 = vunpack.c.h.b16 %v4853
        %v5236 = vunpack.c.l.b16 %v4854
        %v5237 = vunpack.c.h.b16 %v4854
        %v5238 = vunpack.c.l.b16 %v4855
        %v5239 = vunpack.c.h.b16 %v4855
        %v5240 = vunpack.c.l.b16 %v4856
        %v5241 = vunpack.c.h.b16 %v4856
        %v5242 = vunpack.c.l.b16 %v4857
        %v5243 = vunpack.c.h.b16 %v4857
        %v5244 = vunpack.c.l.b16 %v4858
        %v5245 = vunpack.c.h.b16 %v4858
        %v5246 = vunpack.c.l.b16 %v4859
        %v5247 = vunpack.c.h.b16 %v4859
        %v5248 = vunpack.c.l.b16 %v4860
        %v5249 = vunpack.c.h.b16 %v4860
        %v5250 = vunpack.c.l.b16 %v4861
        %v5251 = vunpack.c.h.b16 %v4861
        %v5252 = vunpack.c.l.b16 %v4862
        %v5253 = vunpack.c.h.b16 %v4862
        %v5254 = vunpack.c.l.b16 %v4863
        %v5255 = vunpack.c.h.b16 %v4863
        %v5256 = vunpack.c.l.b16 %v4864
        %v5257 = vunpack.c.h.b16 %v4864
        %v5258 = vunpack.c.l.b16 %v4865
        %v5259 = vunpack.c.h.b16 %v4865
        %v5260 = vunpack.c.l.b16 %v4866
        %v5261 = vunpack.c.h.b16 %v4866
        %v5262 = vunpack.c.l.b16 %v4867
        %v5263 = vunpack.c.h.b16 %v4867
        %v5264 = vunpack.c.l.b16 %v4868
        %v5265 = vunpack.c.h.b16 %v4868
        %v5266 = vunpack.c.l.b16 %v4869
        %v5267 = vunpack.c.h.b16 %v4869
        %v5268 = vunpack.c.l.b16 %v4870
        %v5269 = vunpack.c.h.b16 %v4870
        %v5270 = vunpack.c.l.b16 %v4871
        %v5271 = vunpack.c.h.b16 %v4871
        %v5272 = vunpack.c.l.b16 %v4872
        %v5273 = vunpack.c.h.b16 %v4872
        %v5274 = vpack.c.b16 %v5022, %v5018
        %v5275 = vpack.c.b16 %v5023, %v5019
        %v5276 = vpack.c.b16 %v5024, %v5020
        %v5277 = vpack.c.b16 %v5025, %v5021
        %v5278 = vpack.c.b16 %v5030, %v5026
        %v5279 = vpack.c.b16 %v5031, %v5027
        %v5280 = vpack.c.b16 %v5032, %v5028
        %v5281 = vpack.c.b16 %v5033, %v5029
        %v5282 = vpack.c.b16 %v5038, %v5034
        %v5283 = vpack.c.b16 %v5039, %v5035
        %v5284 = vpack.c.b16 %v5040, %v5036
        %v5285 = vpack.c.b16 %v5041, %v5037
        %v5286 = vpack.c.b16 %v5046, %v5042
        %v5287 = vpack.c.b16 %v5047, %v5043
        %v5288 = vpack.c.b16 %v5048, %v5044
        %v5289 = vpack.c.b16 %v5049, %v5045
        %v5290 = vpack.c.b16 %v5054, %v5050
        %v5291 = vpack.c.b16 %v5055, %v5051
        %v5292 = vpack.c.b16 %v5056, %v5052
        %v5293 = vpack.c.b16 %v5057, %v5053
        %v5294 = vpack.c.b16 %v5062, %v5058
        %v5295 = vpack.c.b16 %v5063, %v5059
        %v5296 = vpack.c.b16 %v5064, %v5060
        %v5297 = vpack.c.b16 %v5065, %v5061
        %v5298 = vpack.c.b16 %v5070, %v5066
        %v5299 = vpack.c.b16 %v5071, %v5067
        %v5300 = vpack.c.b16 %v5072, %v5068
        %v5301 = vpack.c.b16 %v5073, %v5069
        %v5302 = vpack.c.b16 %v5078, %v5074
        %v5303 = vpack.c.b16 %v5079, %v5075
        %v5304 = vpack.c.b16 %v5080, %v5076
        %v5305 = vpack.c.b16 %v5081, %v5077
        %v5306 = vpack.c.b16 %v5086, %v5082
        %v5307 = vpack.c.b16 %v5087, %v5083
        %v5308 = vpack.c.b16 %v5088, %v5084
        %v5309 = vpack.c.b16 %v5089, %v5085
        %v5310 = vpack.c.b16 %v5094, %v5090
        %v5311 = vpack.c.b16 %v5095, %v5091
        %v5312 = vpack.c.b16 %v5096, %v5092
        %v5313 = vpack.c.b16 %v5097, %v5093
        %v5314 = vpack.c.b16 %v5102, %v5098
        %v5315 = vpack.c.b16 %v5103, %v5099
        %v5316 = vpack.c.b16 %v5104, %v5100
        %v5317 = vpack.c.b16 %v5105, %v5101
        %v5318 = vpack.c.b16 %v5110, %v5106
        %v5319 = vpack.c.b16 %v5111, %v5107
        %v5320 = vpack.c.b16 %v5112, %v5108
        %v5321 = vpack.c.b16 %v5113, %v5109
        %v5322 = vpack.c.b16 %v5118, %v5114
        %v5323 = vpack.c.b16 %v5119, %v5115
        %v5324 = vpack.c.b16 %v5120, %v5116
        %v5325 = vpack.c.b16 %v5121, %v5117
        %v5326 = vpack.c.b16 %v5126, %v5122
        %v5327 = vpack.c.b16 %v5127, %v5123
        %v5328 = vpack.c.b16 %v5128, %v5124
        %v5329 = vpack.c.b16 %v5129, %v5125
        %v5330 = vpack.c.b16 %v5134, %v5130
        %v5331 = vpack.c.b16 %v5135, %v5131
        %v5332 = vpack.c.b16 %v5136, %v5132
        %v5333 = vpack.c.b16 %v5137, %v5133
        %v5334 = vpack.c.b16 %v5142, %v5138
        %v5335 = vpack.c.b16 %v5143, %v5139
        %v5336 = vpack.c.b16 %v5144, %v5140
        %v5337 = vpack.c.b16 %v5145, %v5141
        %v5338 = vpack.c.b16 %v5150, %v5146
        %v5339 = vpack.c.b16 %v5151, %v5147
        %v5340 = vpack.c.b16 %v5152, %v5148
        %v5341 = vpack.c.b16 %v5153, %v5149
        %v5342 = vpack.c.b16 %v5158, %v5154
        %v5343 = vpack.c.b16 %v5159, %v5155
        %v5344 = vpack.c.b16 %v5160, %v5156
        %v5345 = vpack.c.b16 %v5161, %v5157
        %v5346 = vpack.c.b16 %v5166, %v5162
        %v5347 = vpack.c.b16 %v5167, %v5163
        %v5348 = vpack.c.b16 %v5168, %v5164
        %v5349 = vpack.c.b16 %v5169, %v5165
        %v5350 = vpack.c.b16 %v5174, %v5170
        %v5351 = vpack.c.b16 %v5175, %v5171
        %v5352 = vpack.c.b16 %v5176, %v5172
        %v5353 = vpack.c.b16 %v5177, %v5173
        %v5354 = vpack.c.b16 %v5182, %v5178
        %v5355 = vpack.c.b16 %v5183, %v5179
        %v5356 = vpack.c.b16 %v5184, %v5180
        %v5357 = vpack.c.b16 %v5185, %v5181
        %v5358 = vpack.c.b16 %v5190, %v5186
        %v5359 = vpack.c.b16 %v5191, %v5187
        %v5360 = vpack.c.b16 %v5192, %v5188
        %v5361 = vpack.c.b16 %v5193, %v5189
        %v5362 = vpack.c.b16 %v5198, %v5194
        %v5363 = vpack.c.b16 %v5199, %v5195
        %v5364 = vpack.c.b16 %v5200, %v5196
        %v5365 = vpack.c.b16 %v5201, %v5197
        %v5366 = vpack.c.b16 %v5206, %v5202
        %v5367 = vpack.c.b16 %v5207, %v5203
        %v5368 = vpack.c.b16 %v5208, %v5204
        %v5369 = vpack.c.b16 %v5209, %v5205
        %v5370 = vpack.c.b16 %v5214, %v5210
        %v5371 = vpack.c.b16 %v5215, %v5211
        %v5372 = vpack.c.b16 %v5216, %v5212
        %v5373 = vpack.c.b16 %v5217, %v5213
        %v5374 = vpack.c.b16 %v5222, %v5218
        %v5375 = vpack.c.b16 %v5223, %v5219
        %v5376 = vpack.c.b16 %v5224, %v5220
        %v5377 = vpack.c.b16 %v5225, %v5221
        %v5378 = vpack.c.b16 %v5230, %v5226
        %v5379 = vpack.c.b16 %v5231, %v5227
        %v5380 = vpack.c.b16 %v5232, %v5228
        %v5381 = vpack.c.b16 %v5233, %v5229
        %v5382 = vpack.c.b16 %v5238, %v5234
        %v5383 = vpack.c.b16 %v5239, %v5235
        %v5384 = vpack.c.b16 %v5240, %v5236
        %v5385 = vpack.c.b16 %v5241, %v5237
        %v5386 = vpack.c.b16 %v5246, %v5242
        %v5387 = vpack.c.b16 %v5247, %v5243
        %v5388 = vpack.c.b16 %v5248, %v5244
        %v5389 = vpack.c.b16 %v5249, %v5245
        %v5390 = vpack.c.b16 %v5254, %v5250
        %v5391 = vpack.c.b16 %v5255, %v5251
        %v5392 = vpack.c.b16 %v5256, %v5252
        %v5393 = vpack.c.b16 %v5257, %v5253
        %v5394 = vpack.c.b16 %v5262, %v5258
        %v5395 = vpack.c.b16 %v5263, %v5259
        %v5396 = vpack.c.b16 %v5264, %v5260
        %v5397 = vpack.c.b16 %v5265, %v5261
        %v5398 = vpack.c.b16 %v5270, %v5266
        %v5399 = vpack.c.b16 %v5271, %v5267
        %v5400 = vpack.c.b16 %v5272, %v5268
        %v5401 = vpack.c.b16 %v5273, %v5269
        %5530 = vmatpush.bf16.msra.mxu0 %v5302
        %5531 = vmatpush.bf16.msra.mxu0 %v5298
        %5532 = vmatpush.bf16.msra.mxu0 %v5294
        %5533 = vmatpush.bf16.msra.mxu0 %v5290
        %5534 = vmatpush.bf16.msra.mxu0 %v5286
        %5535 = vmatpush.bf16.msra.mxu0 %v5282
        %5536 = vmatpush.bf16.msra.mxu0 %v5278
        %5537 = vmatpush.bf16.msra.mxu0 %v5274
        %5538 = vmatmul.bf16.gmra.mxu0 %v4877
        %v5539 = vpop.f32.mrf.mxu0
        %v5540 = vadd.f32 %v4882, %v5539
        %v5541 = vpop.f32.mrf.mxu0
        %v5542 = vadd.f32 %v4882, %v5541
        %5543 = vdwg.mxu0
        %5544 = vmatpush.bf16.msra.mxu0 %v5334
        %5545 = vmatpush.bf16.msra.mxu0 %v5330
        %5546 = vmatpush.bf16.msra.mxu0 %v5326
        %5547 = vmatpush.bf16.msra.mxu0 %v5322
        %5548 = vmatpush.bf16.msra.mxu0 %v5318
        %5549 = vmatpush.bf16.msra.mxu0 %v5314
        %5550 = vmatpush.bf16.msra.mxu0 %v5310
        %5551 = vmatpush.bf16.msra.mxu0 %v5306
        %5552 = vmatmul.bf16.gmra.mxu0 %v4878
        %v5553 = vpop.f32.mrf.mxu0
        %v5554 = vadd.f32 %v5540, %v5553
        %v5555 = vpop.f32.mrf.mxu0
        %v5556 = vadd.f32 %v5542, %v5555
        %5557 = vdwg.mxu0
        %5558 = vmatpush.bf16.msra.mxu0 %v5366
        %5559 = vmatpush.bf16.msra.mxu0 %v5362
        %5560 = vmatpush.bf16.msra.mxu0 %v5358
        %5561 = vmatpush.bf16.msra.mxu0 %v5354
        %5562 = vmatpush.bf16.msra.mxu0 %v5350
        %5563 = vmatpush.bf16.msra.mxu0 %v5346
        %5564 = vmatpush.bf16.msra.mxu0 %v5342
        %5565 = vmatpush.bf16.msra.mxu0 %v5338
        %5566 = vmatmul.bf16.gmra.mxu0 %v4879
        %v5567 = vpop.f32.mrf.mxu0
        %v5568 = vadd.f32 %v5554, %v5567
        %v5569 = vpop.f32.mrf.mxu0
        %v5570 = vadd.f32 %v5556, %v5569
        %5571 = vdwg.mxu0
        %5572 = vmatpush.bf16.msra.mxu0 %v5398
        %5573 = vmatpush.bf16.msra.mxu0 %v5394
        %5574 = vmatpush.bf16.msra.mxu0 %v5390
        %5575 = vmatpush.bf16.msra.mxu0 %v5386
        %5576 = vmatpush.bf16.msra.mxu0 %v5382
        %5577 = vmatpush.bf16.msra.mxu0 %v5378
        %5578 = vmatpush.bf16.msra.mxu0 %v5374
        %5579 = vmatpush.bf16.msra.mxu0 %v5370
        %5580 = vmatmul.bf16.gmra.mxu0 %v4880
        %v5581 = vpop.f32.mrf.mxu0
        %v5582 = vadd.f32 %v5568, %v5581
        %v5583 = vpop.f32.mrf.mxu0
        %v5584 = vadd.f32 %v5570, %v5583
        %5585 = vdwg.mxu0
        %5586 = vmatpush.bf16.msra.mxu0 %v5303
        %5587 = vmatpush.bf16.msra.mxu0 %v5299
        %5588 = vmatpush.bf16.msra.mxu0 %v5295
        %5589 = vmatpush.bf16.msra.mxu0 %v5291
        %5590 = vmatpush.bf16.msra.mxu0 %v5287
        %5591 = vmatpush.bf16.msra.mxu0 %v5283
        %5592 = vmatpush.bf16.msra.mxu0 %v5279
        %5593 = vmatpush.bf16.msra.mxu0 %v5275
        %5594 = vmatmul.bf16.gmra.mxu0 %v4877
        %v5595 = vpop.f32.mrf.mxu0
        %v5596 = vadd.f32 %v4883, %v5595
        %v5597 = vpop.f32.mrf.mxu0
        %v5598 = vadd.f32 %v4883, %v5597
        %5599 = vdwg.mxu0
        %5600 = vmatpush.bf16.msra.mxu0 %v5335
        %5601 = vmatpush.bf16.msra.mxu0 %v5331
        %5602 = vmatpush.bf16.msra.mxu0 %v5327
        %5603 = vmatpush.bf16.msra.mxu0 %v5323
        %5604 = vmatpush.bf16.msra.mxu0 %v5319
        %5605 = vmatpush.bf16.msra.mxu0 %v5315
        %5606 = vmatpush.bf16.msra.mxu0 %v5311
        %5607 = vmatpush.bf16.msra.mxu0 %v5307
        %5608 = vmatmul.bf16.gmra.mxu0 %v4878
        %v5609 = vpop.f32.mrf.mxu0
        %v5610 = vadd.f32 %v5596, %v5609
        %v5611 = vpop.f32.mrf.mxu0
        %v5612 = vadd.f32 %v5598, %v5611
        %5613 = vdwg.mxu0
        %5614 = vmatpush.bf16.msra.mxu0 %v5367
        %5615 = vmatpush.bf16.msra.mxu0 %v5363
        %5616 = vmatpush.bf16.msra.mxu0 %v5359
        %5617 = vmatpush.bf16.msra.mxu0 %v5355
        %5618 = vmatpush.bf16.msra.mxu0 %v5351
        %5619 = vmatpush.bf16.msra.mxu0 %v5347
        %5620 = vmatpush.bf16.msra.mxu0 %v5343
        %5621 = vmatpush.bf16.msra.mxu0 %v5339
        %5622 = vmatmul.bf16.gmra.mxu0 %v4879
        %v5623 = vpop.f32.mrf.mxu0
        %v5624 = vadd.f32 %v5610, %v5623
        %v5625 = vpop.f32.mrf.mxu0
        %v5626 = vadd.f32 %v5612, %v5625
        %5627 = vdwg.mxu0
        %5628 = vmatpush.bf16.msra.mxu0 %v5399
        %5629 = vmatpush.bf16.msra.mxu0 %v5395
        %5630 = vmatpush.bf16.msra.mxu0 %v5391
        %5631 = vmatpush.bf16.msra.mxu0 %v5387
        %5632 = vmatpush.bf16.msra.mxu0 %v5383
        %5633 = vmatpush.bf16.msra.mxu0 %v5379
        %5634 = vmatpush.bf16.msra.mxu0 %v5375
        %5635 = vmatpush.bf16.msra.mxu0 %v5371
        %5636 = vmatmul.bf16.gmra.mxu0 %v4880
        %v5637 = vpop.f32.mrf.mxu0
        %v5638 = vadd.f32 %v5624, %v5637
        %v5639 = vpop.f32.mrf.mxu0
        %v5640 = vadd.f32 %v5626, %v5639
        %5641 = vdwg.mxu0
        %5642 = vmatpush.bf16.msra.mxu0 %v5304
        %5643 = vmatpush.bf16.msra.mxu0 %v5300
        %5644 = vmatpush.bf16.msra.mxu0 %v5296
        %5645 = vmatpush.bf16.msra.mxu0 %v5292
        %5646 = vmatpush.bf16.msra.mxu0 %v5288
        %5647 = vmatpush.bf16.msra.mxu0 %v5284
        %5648 = vmatpush.bf16.msra.mxu0 %v5280
        %5649 = vmatpush.bf16.msra.mxu0 %v5276
        %5650 = vmatmul.bf16.gmra.mxu0 %v4877
        %v5651 = vpop.f32.mrf.mxu0
        %v5652 = vadd.f32 %v4884, %v5651
        %v5653 = vpop.f32.mrf.mxu0
        %v5654 = vadd.f32 %v4884, %v5653
        %5655 = vdwg.mxu0
        %5656 = vmatpush.bf16.msra.mxu0 %v5336
        %5657 = vmatpush.bf16.msra.mxu0 %v5332
        %5658 = vmatpush.bf16.msra.mxu0 %v5328
        %5659 = vmatpush.bf16.msra.mxu0 %v5324
        %5660 = vmatpush.bf16.msra.mxu0 %v5320
        %5661 = vmatpush.bf16.msra.mxu0 %v5316
        %5662 = vmatpush.bf16.msra.mxu0 %v5312
        %5663 = vmatpush.bf16.msra.mxu0 %v5308
        %5664 = vmatmul.bf16.gmra.mxu0 %v4878
        %v5665 = vpop.f32.mrf.mxu0
        %v5666 = vadd.f32 %v5652, %v5665
        %v5667 = vpop.f32.mrf.mxu0
        %v5668 = vadd.f32 %v5654, %v5667
        %5669 = vdwg.mxu0
        %5670 = vmatpush.bf16.msra.mxu0 %v5368
        %5671 = vmatpush.bf16.msra.mxu0 %v5364
        %5672 = vmatpush.bf16.msra.mxu0 %v5360
        %5673 = vmatpush.bf16.msra.mxu0 %v5356
        %5674 = vmatpush.bf16.msra.mxu0 %v5352
        %5675 = vmatpush.bf16.msra.mxu0 %v5348
        %5676 = vmatpush.bf16.msra.mxu0 %v5344
        %5677 = vmatpush.bf16.msra.mxu0 %v5340
        %5678 = vmatmul.bf16.gmra.mxu0 %v4879
        %v5679 = vpop.f32.mrf.mxu0
        %v5680 = vadd.f32 %v5666, %v5679
        %v5681 = vpop.f32.mrf.mxu0
        %v5682 = vadd.f32 %v5668, %v5681
        %5683 = vdwg.mxu0
        %5684 = vmatpush.bf16.msra.mxu0 %v5400
        %5685 = vmatpush.bf16.msra.mxu0 %v5396
        %5686 = vmatpush.bf16.msra.mxu0 %v5392
        %5687 = vmatpush.bf16.msra.mxu0 %v5388
        %5688 = vmatpush.bf16.msra.mxu0 %v5384
        %5689 = vmatpush.bf16.msra.mxu0 %v5380
        %5690 = vmatpush.bf16.msra.mxu0 %v5376
        %5691 = vmatpush.bf16.msra.mxu0 %v5372
        %5692 = vmatmul.bf16.gmra.mxu0 %v4880
        %v5693 = vpop.f32.mrf.mxu0
        %v5694 = vadd.f32 %v5680, %v5693
        %v5695 = vpop.f32.mrf.mxu0
        %v5696 = vadd.f32 %v5682, %v5695
        %5697 = vdwg.mxu0
        %5698 = vmatpush.bf16.msra.mxu0 %v5305
        %5699 = vmatpush.bf16.msra.mxu0 %v5301
        %5700 = vmatpush.bf16.msra.mxu0 %v5297
        %5701 = vmatpush.bf16.msra.mxu0 %v5293
        %5702 = vmatpush.bf16.msra.mxu0 %v5289
        %5703 = vmatpush.bf16.msra.mxu0 %v5285
        %5704 = vmatpush.bf16.msra.mxu0 %v5281
        %5705 = vmatpush.bf16.msra.mxu0 %v5277
        %5706 = vmatmul.bf16.gmra.mxu0 %v4877
        %v5707 = vpop.f32.mrf.mxu0
        %v5708 = vadd.f32 %v4885, %v5707
        %v5709 = vpop.f32.mrf.mxu0
        %v5710 = vadd.f32 %v4885, %v5709
        %5711 = vdwg.mxu0
        %5712 = vmatpush.bf16.msra.mxu0 %v5337
        %5713 = vmatpush.bf16.msra.mxu0 %v5333
        %5714 = vmatpush.bf16.msra.mxu0 %v5329
        %5715 = vmatpush.bf16.msra.mxu0 %v5325
        %5716 = vmatpush.bf16.msra.mxu0 %v5321
        %5717 = vmatpush.bf16.msra.mxu0 %v5317
        %5718 = vmatpush.bf16.msra.mxu0 %v5313
        %5719 = vmatpush.bf16.msra.mxu0 %v5309
        %5720 = vmatmul.bf16.gmra.mxu0 %v4878
        %v5721 = vpop.f32.mrf.mxu0
        %v5722 = vadd.f32 %v5708, %v5721
        %v5723 = vpop.f32.mrf.mxu0
        %v5724 = vadd.f32 %v5710, %v5723
        %5725 = vdwg.mxu0
        %5726 = vmatpush.bf16.msra.mxu0 %v5369
        %5727 = vmatpush.bf16.msra.mxu0 %v5365
        %5728 = vmatpush.bf16.msra.mxu0 %v5361
        %5729 = vmatpush.bf16.msra.mxu0 %v5357
        %5730 = vmatpush.bf16.msra.mxu0 %v5353
        %5731 = vmatpush.bf16.msra.mxu0 %v5349
        %5732 = vmatpush.bf16.msra.mxu0 %v5345
        %5733 = vmatpush.bf16.msra.mxu0 %v5341
        %5734 = vmatmul.bf16.gmra.mxu0 %v4879
        %v5735 = vpop.f32.mrf.mxu0
        %v5736 = vadd.f32 %v5722, %v5735
        %v5737 = vpop.f32.mrf.mxu0
        %v5738 = vadd.f32 %v5724, %v5737
        %5739 = vdwg.mxu0
        %5740 = vmatpush.bf16.msra.mxu0 %v5401
        %5741 = vmatpush.bf16.msra.mxu0 %v5397
        %5742 = vmatpush.bf16.msra.mxu0 %v5393
        %5743 = vmatpush.bf16.msra.mxu0 %v5389
        %5744 = vmatpush.bf16.msra.mxu0 %v5385
        %5745 = vmatpush.bf16.msra.mxu0 %v5381
        %5746 = vmatpush.bf16.msra.mxu0 %v5377
        %5747 = vmatpush.bf16.msra.mxu0 %v5373
        %5748 = vmatmul.bf16.gmra.mxu0 %v4880
        %v5749 = vpop.f32.mrf.mxu0
        %v5750 = vadd.f32 %v5736, %v5749
        %v5751 = vpop.f32.mrf.mxu0
        %v5752 = vadd.f32 %v5738, %v5751
        %5753 = vdwg.mxu0
        %v5754 = vmax.f32 %v5582, 0.0
        %v5755 = vmax.f32 %v5638, 0.0
        %v5756 = vmax.f32 %v5694, 0.0
        %v5757 = vmax.f32 %v5750, 0.0
        %v5758 = vmax.f32 %v5584, 0.0
        %v5759 = vmax.f32 %v5640, 0.0
        %v5760 = vmax.f32 %v5696, 0.0
        %v5761 = vmax.f32 %v5752, 0.0
        %v5762 = vand.u32 2147483647, %v5582
        %v5763 = vand.u32 2147483647, %v5638
        %v5764 = vand.u32 2147483647, %v5694
        %v5765 = vand.u32 2147483647, %v5750
        %v5766 = vand.u32 2147483647, %v5584
        %v5767 = vand.u32 2147483647, %v5640
        %v5768 = vand.u32 2147483647, %v5696
        %v5769 = vand.u32 2147483647, %v5752
        %v5770 = vsub.f32 0.0, %v5762
        %v5771 = vsub.f32 0.0, %v5763
        %v5772 = vsub.f32 0.0, %v5764
        %v5773 = vsub.f32 0.0, %v5765
        %v5774 = vsub.f32 0.0, %v5766
        %v5775 = vsub.f32 0.0, %v5767
        %v5776 = vsub.f32 0.0, %v5768
        %v5777 = vsub.f32 0.0, %v5769
        %v5778 = vmul.f32 %v5770, 1.442695
        %v5779 = vpow.pop %v5778
        %v5780 = vmul.f32 %v5771, 1.442695
        %v5781 = vpow.pop %v5780
        %v5782 = vmul.f32 %v5772, 1.442695
        %v5783 = vpow.pop %v5782
        %v5784 = vmul.f32 %v5773, 1.442695
        %v5785 = vpow.pop %v5784
        %v5786 = vmul.f32 %v5774, 1.442695
        %v5787 = vpow.pop %v5786
        %v5788 = vmul.f32 %v5775, 1.442695
        %v5789 = vpow.pop %v5788
        %v5790 = vmul.f32 %v5776, 1.442695
        %v5791 = vpow.pop %v5790
        %v5792 = vmul.f32 %v5777, 1.442695
        %v5793 = vpow.pop %v5792
        %v5794 = vadd.f32 %v5779, 1.0
        %v5795 = vlog2.pop %v5794
        %v5796 = vmul.f32 %v5795, 0.6931472
        %v5797 = vmul.f32 -0.5, %v5779
        %v5798 = vadd.f32 %v5797, 1.0
        %v5799 = vmul.f32 %v5798, %v5779
        %v5800 = vand.u32 2147483647, %v5779
        %vm5801 = vcmp.lt.f32.partialorder %v5800, 0.0004427343
        %v5802 = vsel %vm5801, %v5799, %v5796
        %v5803 = vadd.f32 %v5781, 1.0
        %v5804 = vlog2.pop %v5803
        %v5805 = vmul.f32 %v5804, 0.6931472
        %v5806 = vmul.f32 -0.5, %v5781
        %v5807 = vadd.f32 %v5806, 1.0
        %v5808 = vmul.f32 %v5807, %v5781
        %v5809 = vand.u32 2147483647, %v5781
        %vm5810 = vcmp.lt.f32.partialorder %v5809, 0.0004427343
        %v5811 = vsel %vm5810, %v5808, %v5805
        %v5812 = vadd.f32 %v5783, 1.0
        %v5813 = vlog2.pop %v5812
        %v5814 = vmul.f32 %v5813, 0.6931472
        %v5815 = vmul.f32 -0.5, %v5783
        %v5816 = vadd.f32 %v5815, 1.0
        %v5817 = vmul.f32 %v5816, %v5783
        %v5818 = vand.u32 2147483647, %v5783
        %vm5819 = vcmp.lt.f32.partialorder %v5818, 0.0004427343
        %v5820 = vsel %vm5819, %v5817, %v5814
        %v5821 = vadd.f32 %v5785, 1.0
        %v5822 = vlog2.pop %v5821
        %v5823 = vmul.f32 %v5822, 0.6931472
        %v5824 = vmul.f32 -0.5, %v5785
        %v5825 = vadd.f32 %v5824, 1.0
        %v5826 = vmul.f32 %v5825, %v5785
        %v5827 = vand.u32 2147483647, %v5785
        %vm5828 = vcmp.lt.f32.partialorder %v5827, 0.0004427343
        %v5829 = vsel %vm5828, %v5826, %v5823
        %v5830 = vadd.f32 %v5787, 1.0
        %v5831 = vlog2.pop %v5830
        %v5832 = vmul.f32 %v5831, 0.6931472
        %v5833 = vmul.f32 -0.5, %v5787
        %v5834 = vadd.f32 %v5833, 1.0
        %v5835 = vmul.f32 %v5834, %v5787
        %v5836 = vand.u32 2147483647, %v5787
        %vm5837 = vcmp.lt.f32.partialorder %v5836, 0.0004427343
        %v5838 = vsel %vm5837, %v5835, %v5832
        %v5839 = vadd.f32 %v5789, 1.0
        %v5840 = vlog2.pop %v5839
        %v5841 = vmul.f32 %v5840, 0.6931472
        %v5842 = vmul.f32 -0.5, %v5789
        %v5843 = vadd.f32 %v5842, 1.0
        %v5844 = vmul.f32 %v5843, %v5789
        %v5845 = vand.u32 2147483647, %v5789
        %vm5846 = vcmp.lt.f32.partialorder %v5845, 0.0004427343
        %v5847 = vsel %vm5846, %v5844, %v5841
        %v5848 = vadd.f32 %v5791, 1.0
        %v5849 = vlog2.pop %v5848
        %v5850 = vmul.f32 %v5849, 0.6931472
        %v5851 = vmul.f32 -0.5, %v5791
        %v5852 = vadd.f32 %v5851, 1.0
        %v5853 = vmul.f32 %v5852, %v5791
        %v5854 = vand.u32 2147483647, %v5791
        %vm5855 = vcmp.lt.f32.partialorder %v5854, 0.0004427343
        %v5856 = vsel %vm5855, %v5853, %v5850
        %v5857 = vadd.f32 %v5793, 1.0
        %v5858 = vlog2.pop %v5857
        %v5859 = vmul.f32 %v5858, 0.6931472
        %v5860 = vmul.f32 -0.5, %v5793
        %v5861 = vadd.f32 %v5860, 1.0
        %v5862 = vmul.f32 %v5861, %v5793
        %v5863 = vand.u32 2147483647, %v5793
        %vm5864 = vcmp.lt.f32.partialorder %v5863, 0.0004427343
        %v5865 = vsel %vm5864, %v5862, %v5859
        %v5866 = vadd.f32 %v5754, %v5802
        %v5867 = vadd.f32 %v5755, %v5811
        %v5868 = vadd.f32 %v5756, %v5820
        %v5869 = vadd.f32 %v5757, %v5829
        %v5870 = vadd.f32 %v5758, %v5838
        %v5871 = vadd.f32 %v5759, %v5847
        %v5872 = vadd.f32 %v5760, %v5856
        %v5873 = vadd.f32 %v5761, %v5865
        %s5874 = scalar_lea.vmem %s172, 5120 [#allocation2]
        %v5875 = vld [vmem:[%s5874] sm:$0xff]
        %v5876 = vld [vmem:[%s5874 + $0x8] sm:$0xff]
        %v5877 = vld [vmem:[%s5874 + $0x10] sm:$0xff]
        %v5878 = vld [vmem:[%s5874 + $0x18] sm:$0xff]
        %v5879 = vld [vmem:[%s5874 + $0x20] sm:$0xff]
        %v5880 = vld [vmem:[%s5874 + $0x28] sm:$0xff]
        %v5881 = vld [vmem:[%s5874 + $0x30] sm:$0xff]
        %v5882 = vld [vmem:[%s5874 + $0x38] sm:$0xff]
        %v5883 = vld [vmem:[%s5874 + $0x40] sm:$0xff]
        %v5884 = vld [vmem:[%s5874 + $0x48] sm:$0xff]
        %v5885 = vld [vmem:[%s5874 + $0x50] sm:$0xff]
        %v5886 = vld [vmem:[%s5874 + $0x58] sm:$0xff]
        %v5887 = vld [vmem:[%s5874 + $0x60] sm:$0xff]
        %v5888 = vld [vmem:[%s5874 + $0x68] sm:$0xff]
        %v5889 = vld [vmem:[%s5874 + $0x70] sm:$0xff]
        %v5890 = vld [vmem:[%s5874 + $0x78] sm:$0xff]
        %v5891 = vld [vmem:[%s5874 + $0x80] sm:$0xff]
        %v5892 = vld [vmem:[%s5874 + $0x88] sm:$0xff]
        %v5893 = vld [vmem:[%s5874 + $0x90] sm:$0xff]
        %v5894 = vld [vmem:[%s5874 + $0x98] sm:$0xff]
        %v5895 = vld [vmem:[%s5874 + $0xa0] sm:$0xff]
        %v5896 = vld [vmem:[%s5874 + $0xa8] sm:$0xff]
        %v5897 = vld [vmem:[%s5874 + $0xb0] sm:$0xff]
        %v5898 = vld [vmem:[%s5874 + $0xb8] sm:$0xff]
        %v5899 = vld [vmem:[%s5874 + $0xc0] sm:$0xff]
        %v5900 = vld [vmem:[%s5874 + $0xc8] sm:$0xff]
        %v5901 = vld [vmem:[%s5874 + $0xd0] sm:$0xff]
        %v5902 = vld [vmem:[%s5874 + $0xd8] sm:$0xff]
        %v5903 = vld [vmem:[%s5874 + $0xe0] sm:$0xff]
        %v5904 = vld [vmem:[%s5874 + $0xe8] sm:$0xff]
        %v5905 = vld [vmem:[%s5874 + $0xf0] sm:$0xff]
        %v5906 = vld [vmem:[%s5874 + $0xf8] sm:$0xff]
        %v5907 = vld [vmem:[%s5874 + $0x100] sm:$0xff]
        %v5908 = vld [vmem:[%s5874 + $0x108] sm:$0xff]
        %v5909 = vld [vmem:[%s5874 + $0x110] sm:$0xff]
        %v5910 = vld [vmem:[%s5874 + $0x118] sm:$0xff]
        %v5911 = vld [vmem:[%s5874 + $0x120] sm:$0xff]
        %v5912 = vld [vmem:[%s5874 + $0x128] sm:$0xff]
        %v5913 = vld [vmem:[%s5874 + $0x130] sm:$0xff]
        %v5914 = vld [vmem:[%s5874 + $0x138] sm:$0xff]
        %v5915 = vld [vmem:[%s5874 + $0x140] sm:$0xff]
        %v5916 = vld [vmem:[%s5874 + $0x148] sm:$0xff]
        %v5917 = vld [vmem:[%s5874 + $0x150] sm:$0xff]
        %v5918 = vld [vmem:[%s5874 + $0x158] sm:$0xff]
        %v5919 = vld [vmem:[%s5874 + $0x160] sm:$0xff]
        %v5920 = vld [vmem:[%s5874 + $0x168] sm:$0xff]
        %v5921 = vld [vmem:[%s5874 + $0x170] sm:$0xff]
        %v5922 = vld [vmem:[%s5874 + $0x178] sm:$0xff]
        %v5923 = vld [vmem:[%s5874 + $0x180] sm:$0xff]
        %v5924 = vld [vmem:[%s5874 + $0x188] sm:$0xff]
        %v5925 = vld [vmem:[%s5874 + $0x190] sm:$0xff]
        %v5926 = vld [vmem:[%s5874 + $0x198] sm:$0xff]
        %v5927 = vld [vmem:[%s5874 + $0x1a0] sm:$0xff]
        %v5928 = vld [vmem:[%s5874 + $0x1a8] sm:$0xff]
        %v5929 = vld [vmem:[%s5874 + $0x1b0] sm:$0xff]
        %v5930 = vld [vmem:[%s5874 + $0x1b8] sm:$0xff]
        %v5931 = vld [vmem:[%s5874 + $0x1c0] sm:$0xff]
        %v5932 = vld [vmem:[%s5874 + $0x1c8] sm:$0xff]
        %v5933 = vld [vmem:[%s5874 + $0x1d0] sm:$0xff]
        %v5934 = vld [vmem:[%s5874 + $0x1d8] sm:$0xff]
        %v5935 = vld [vmem:[%s5874 + $0x1e0] sm:$0xff]
        %v5936 = vld [vmem:[%s5874 + $0x1e8] sm:$0xff]
        %v5937 = vld [vmem:[%s5874 + $0x1f0] sm:$0xff]
        %v5938 = vld [vmem:[%s5874 + $0x1f8] sm:$0xff]
        %v5939 = vld [vmem:[%s5874 + $0x200] sm:$0xff]
        %v5940 = vld [vmem:[%s5874 + $0x208] sm:$0xff]
        %v5941 = vld [vmem:[%s5874 + $0x210] sm:$0xff]
        %v5942 = vld [vmem:[%s5874 + $0x218] sm:$0xff]
        %v5943 = vld [vmem:[%s5874 + $0x220] sm:$0xff]
        %v5944 = vld [vmem:[%s5874 + $0x228] sm:$0xff]
        %v5945 = vld [vmem:[%s5874 + $0x230] sm:$0xff]
        %v5946 = vld [vmem:[%s5874 + $0x238] sm:$0xff]
        %v5947 = vld [vmem:[%s5874 + $0x240] sm:$0xff]
        %v5948 = vld [vmem:[%s5874 + $0x248] sm:$0xff]
        %v5949 = vld [vmem:[%s5874 + $0x250] sm:$0xff]
        %v5950 = vld [vmem:[%s5874 + $0x258] sm:$0xff]
        %v5951 = vld [vmem:[%s5874 + $0x260] sm:$0xff]
        %v5952 = vld [vmem:[%s5874 + $0x268] sm:$0xff]
        %v5953 = vld [vmem:[%s5874 + $0x270] sm:$0xff]
        %v5954 = vld [vmem:[%s5874 + $0x278] sm:$0xff]
        %v5955 = vld [vmem:[%s5874 + $0x280] sm:$0xff]
        %v5956 = vld [vmem:[%s5874 + $0x288] sm:$0xff]
        %v5957 = vld [vmem:[%s5874 + $0x290] sm:$0xff]
        %v5958 = vld [vmem:[%s5874 + $0x298] sm:$0xff]
        %v5959 = vld [vmem:[%s5874 + $0x2a0] sm:$0xff]
        %v5960 = vld [vmem:[%s5874 + $0x2a8] sm:$0xff]
        %v5961 = vld [vmem:[%s5874 + $0x2b0] sm:$0xff]
        %v5962 = vld [vmem:[%s5874 + $0x2b8] sm:$0xff]
        %v5963 = vld [vmem:[%s5874 + $0x2c0] sm:$0xff]
        %v5964 = vld [vmem:[%s5874 + $0x2c8] sm:$0xff]
        %v5965 = vld [vmem:[%s5874 + $0x2d0] sm:$0xff]
        %v5966 = vld [vmem:[%s5874 + $0x2d8] sm:$0xff]
        %v5967 = vld [vmem:[%s5874 + $0x2e0] sm:$0xff]
        %v5968 = vld [vmem:[%s5874 + $0x2e8] sm:$0xff]
        %v5969 = vld [vmem:[%s5874 + $0x2f0] sm:$0xff]
        %v5970 = vld [vmem:[%s5874 + $0x2f8] sm:$0xff]
        %v5971 = vld [vmem:[%s5874 + $0x300] sm:$0xff]
        %v5972 = vld [vmem:[%s5874 + $0x308] sm:$0xff]
        %v5973 = vld [vmem:[%s5874 + $0x310] sm:$0xff]
        %v5974 = vld [vmem:[%s5874 + $0x318] sm:$0xff]
        %v5975 = vld [vmem:[%s5874 + $0x320] sm:$0xff]
        %v5976 = vld [vmem:[%s5874 + $0x328] sm:$0xff]
        %v5977 = vld [vmem:[%s5874 + $0x330] sm:$0xff]
        %v5978 = vld [vmem:[%s5874 + $0x338] sm:$0xff]
        %v5979 = vld [vmem:[%s5874 + $0x340] sm:$0xff]
        %v5980 = vld [vmem:[%s5874 + $0x348] sm:$0xff]
        %v5981 = vld [vmem:[%s5874 + $0x350] sm:$0xff]
        %v5982 = vld [vmem:[%s5874 + $0x358] sm:$0xff]
        %v5983 = vld [vmem:[%s5874 + $0x360] sm:$0xff]
        %v5984 = vld [vmem:[%s5874 + $0x368] sm:$0xff]
        %v5985 = vld [vmem:[%s5874 + $0x370] sm:$0xff]
        %v5986 = vld [vmem:[%s5874 + $0x378] sm:$0xff]
        %v5987 = vld [vmem:[%s5874 + $0x380] sm:$0xff]
        %v5988 = vld [vmem:[%s5874 + $0x388] sm:$0xff]
        %v5989 = vld [vmem:[%s5874 + $0x390] sm:$0xff]
        %v5990 = vld [vmem:[%s5874 + $0x398] sm:$0xff]
        %v5991 = vld [vmem:[%s5874 + $0x3a0] sm:$0xff]
        %v5992 = vld [vmem:[%s5874 + $0x3a8] sm:$0xff]
        %v5993 = vld [vmem:[%s5874 + $0x3b0] sm:$0xff]
        %v5994 = vld [vmem:[%s5874 + $0x3b8] sm:$0xff]
        %v5995 = vld [vmem:[%s5874 + $0x3c0] sm:$0xff]
        %v5996 = vld [vmem:[%s5874 + $0x3c8] sm:$0xff]
        %v5997 = vld [vmem:[%s5874 + $0x3d0] sm:$0xff]
        %v5998 = vld [vmem:[%s5874 + $0x3d8] sm:$0xff]
        %v5999 = vld [vmem:[%s5874 + $0x3e0] sm:$0xff]
        %v6000 = vld [vmem:[%s5874 + $0x3e8] sm:$0xff]
        %v6001 = vld [vmem:[%s5874 + $0x3f0] sm:$0xff]
        %v6002 = vld [vmem:[%s5874 + $0x3f8] sm:$0xff]
        %s6003 = sadd.s32 %s225, 5
        %s6004 = smul.u32 %s6003, 4
        %s6005 = scalar_lea.vmem [#allocation4], %s6004
        %v6006 = vld [vmem:[%s6005] sm:$0xf]
        %v6007 = vpack.c.bf16 %v5870, %v5866
        %v6008 = vpack.c.bf16 %v5871, %v5867
        %v6009 = vpack.c.bf16 %v5872, %v5868
        %v6010 = vpack.c.bf16 %v5873, %v5869
        %v6012 = vperm.slane %v6006, 0
        %v6013 = vperm.slane %v6006, 1
        %v6014 = vperm.slane %v6006, 2
        %v6015 = vperm.slane %v6006, 3
        %v6148 = vunpack.c.l.b16 %v5875
        %v6149 = vunpack.c.h.b16 %v5875
        %v6150 = vunpack.c.l.b16 %v5876
        %v6151 = vunpack.c.h.b16 %v5876
        %v6152 = vunpack.c.l.b16 %v5877
        %v6153 = vunpack.c.h.b16 %v5877
        %v6154 = vunpack.c.l.b16 %v5878
        %v6155 = vunpack.c.h.b16 %v5878
        %v6156 = vunpack.c.l.b16 %v5879
        %v6157 = vunpack.c.h.b16 %v5879
        %v6158 = vunpack.c.l.b16 %v5880
        %v6159 = vunpack.c.h.b16 %v5880
        %v6160 = vunpack.c.l.b16 %v5881
        %v6161 = vunpack.c.h.b16 %v5881
        %v6162 = vunpack.c.l.b16 %v5882
        %v6163 = vunpack.c.h.b16 %v5882
        %v6164 = vunpack.c.l.b16 %v5883
        %v6165 = vunpack.c.h.b16 %v5883
        %v6166 = vunpack.c.l.b16 %v5884
        %v6167 = vunpack.c.h.b16 %v5884
        %v6168 = vunpack.c.l.b16 %v5885
        %v6169 = vunpack.c.h.b16 %v5885
        %v6170 = vunpack.c.l.b16 %v5886
        %v6171 = vunpack.c.h.b16 %v5886
        %v6172 = vunpack.c.l.b16 %v5887
        %v6173 = vunpack.c.h.b16 %v5887
        %v6174 = vunpack.c.l.b16 %v5888
        %v6175 = vunpack.c.h.b16 %v5888
        %v6176 = vunpack.c.l.b16 %v5889
        %v6177 = vunpack.c.h.b16 %v5889
        %v6178 = vunpack.c.l.b16 %v5890
        %v6179 = vunpack.c.h.b16 %v5890
        %v6180 = vunpack.c.l.b16 %v5891
        %v6181 = vunpack.c.h.b16 %v5891
        %v6182 = vunpack.c.l.b16 %v5892
        %v6183 = vunpack.c.h.b16 %v5892
        %v6184 = vunpack.c.l.b16 %v5893
        %v6185 = vunpack.c.h.b16 %v5893
        %v6186 = vunpack.c.l.b16 %v5894
        %v6187 = vunpack.c.h.b16 %v5894
        %v6188 = vunpack.c.l.b16 %v5895
        %v6189 = vunpack.c.h.b16 %v5895
        %v6190 = vunpack.c.l.b16 %v5896
        %v6191 = vunpack.c.h.b16 %v5896
        %v6192 = vunpack.c.l.b16 %v5897
        %v6193 = vunpack.c.h.b16 %v5897
        %v6194 = vunpack.c.l.b16 %v5898
        %v6195 = vunpack.c.h.b16 %v5898
        %v6196 = vunpack.c.l.b16 %v5899
        %v6197 = vunpack.c.h.b16 %v5899
        %v6198 = vunpack.c.l.b16 %v5900
        %v6199 = vunpack.c.h.b16 %v5900
        %v6200 = vunpack.c.l.b16 %v5901
        %v6201 = vunpack.c.h.b16 %v5901
        %v6202 = vunpack.c.l.b16 %v5902
        %v6203 = vunpack.c.h.b16 %v5902
        %v6204 = vunpack.c.l.b16 %v5903
        %v6205 = vunpack.c.h.b16 %v5903
        %v6206 = vunpack.c.l.b16 %v5904
        %v6207 = vunpack.c.h.b16 %v5904
        %v6208 = vunpack.c.l.b16 %v5905
        %v6209 = vunpack.c.h.b16 %v5905
        %v6210 = vunpack.c.l.b16 %v5906
        %v6211 = vunpack.c.h.b16 %v5906
        %v6212 = vunpack.c.l.b16 %v5907
        %v6213 = vunpack.c.h.b16 %v5907
        %v6214 = vunpack.c.l.b16 %v5908
        %v6215 = vunpack.c.h.b16 %v5908
        %v6216 = vunpack.c.l.b16 %v5909
        %v6217 = vunpack.c.h.b16 %v5909
        %v6218 = vunpack.c.l.b16 %v5910
        %v6219 = vunpack.c.h.b16 %v5910
        %v6220 = vunpack.c.l.b16 %v5911
        %v6221 = vunpack.c.h.b16 %v5911
        %v6222 = vunpack.c.l.b16 %v5912
        %v6223 = vunpack.c.h.b16 %v5912
        %v6224 = vunpack.c.l.b16 %v5913
        %v6225 = vunpack.c.h.b16 %v5913
        %v6226 = vunpack.c.l.b16 %v5914
        %v6227 = vunpack.c.h.b16 %v5914
        %v6228 = vunpack.c.l.b16 %v5915
        %v6229 = vunpack.c.h.b16 %v5915
        %v6230 = vunpack.c.l.b16 %v5916
        %v6231 = vunpack.c.h.b16 %v5916
        %v6232 = vunpack.c.l.b16 %v5917
        %v6233 = vunpack.c.h.b16 %v5917
        %v6234 = vunpack.c.l.b16 %v5918
        %v6235 = vunpack.c.h.b16 %v5918
        %v6236 = vunpack.c.l.b16 %v5919
        %v6237 = vunpack.c.h.b16 %v5919
        %v6238 = vunpack.c.l.b16 %v5920
        %v6239 = vunpack.c.h.b16 %v5920
        %v6240 = vunpack.c.l.b16 %v5921
        %v6241 = vunpack.c.h.b16 %v5921
        %v6242 = vunpack.c.l.b16 %v5922
        %v6243 = vunpack.c.h.b16 %v5922
        %v6244 = vunpack.c.l.b16 %v5923
        %v6245 = vunpack.c.h.b16 %v5923
        %v6246 = vunpack.c.l.b16 %v5924
        %v6247 = vunpack.c.h.b16 %v5924
        %v6248 = vunpack.c.l.b16 %v5925
        %v6249 = vunpack.c.h.b16 %v5925
        %v6250 = vunpack.c.l.b16 %v5926
        %v6251 = vunpack.c.h.b16 %v5926
        %v6252 = vunpack.c.l.b16 %v5927
        %v6253 = vunpack.c.h.b16 %v5927
        %v6254 = vunpack.c.l.b16 %v5928
        %v6255 = vunpack.c.h.b16 %v5928
        %v6256 = vunpack.c.l.b16 %v5929
        %v6257 = vunpack.c.h.b16 %v5929
        %v6258 = vunpack.c.l.b16 %v5930
        %v6259 = vunpack.c.h.b16 %v5930
        %v6260 = vunpack.c.l.b16 %v5931
        %v6261 = vunpack.c.h.b16 %v5931
        %v6262 = vunpack.c.l.b16 %v5932
        %v6263 = vunpack.c.h.b16 %v5932
        %v6264 = vunpack.c.l.b16 %v5933
        %v6265 = vunpack.c.h.b16 %v5933
        %v6266 = vunpack.c.l.b16 %v5934
        %v6267 = vunpack.c.h.b16 %v5934
        %v6268 = vunpack.c.l.b16 %v5935
        %v6269 = vunpack.c.h.b16 %v5935
        %v6270 = vunpack.c.l.b16 %v5936
        %v6271 = vunpack.c.h.b16 %v5936
        %v6272 = vunpack.c.l.b16 %v5937
        %v6273 = vunpack.c.h.b16 %v5937
        %v6274 = vunpack.c.l.b16 %v5938
        %v6275 = vunpack.c.h.b16 %v5938
        %v6276 = vunpack.c.l.b16 %v5939
        %v6277 = vunpack.c.h.b16 %v5939
        %v6278 = vunpack.c.l.b16 %v5940
        %v6279 = vunpack.c.h.b16 %v5940
        %v6280 = vunpack.c.l.b16 %v5941
        %v6281 = vunpack.c.h.b16 %v5941
        %v6282 = vunpack.c.l.b16 %v5942
        %v6283 = vunpack.c.h.b16 %v5942
        %v6284 = vunpack.c.l.b16 %v5943
        %v6285 = vunpack.c.h.b16 %v5943
        %v6286 = vunpack.c.l.b16 %v5944
        %v6287 = vunpack.c.h.b16 %v5944
        %v6288 = vunpack.c.l.b16 %v5945
        %v6289 = vunpack.c.h.b16 %v5945
        %v6290 = vunpack.c.l.b16 %v5946
        %v6291 = vunpack.c.h.b16 %v5946
        %v6292 = vunpack.c.l.b16 %v5947
        %v6293 = vunpack.c.h.b16 %v5947
        %v6294 = vunpack.c.l.b16 %v5948
        %v6295 = vunpack.c.h.b16 %v5948
        %v6296 = vunpack.c.l.b16 %v5949
        %v6297 = vunpack.c.h.b16 %v5949
        %v6298 = vunpack.c.l.b16 %v5950
        %v6299 = vunpack.c.h.b16 %v5950
        %v6300 = vunpack.c.l.b16 %v5951
        %v6301 = vunpack.c.h.b16 %v5951
        %v6302 = vunpack.c.l.b16 %v5952
        %v6303 = vunpack.c.h.b16 %v5952
        %v6304 = vunpack.c.l.b16 %v5953
        %v6305 = vunpack.c.h.b16 %v5953
        %v6306 = vunpack.c.l.b16 %v5954
        %v6307 = vunpack.c.h.b16 %v5954
        %v6308 = vunpack.c.l.b16 %v5955
        %v6309 = vunpack.c.h.b16 %v5955
        %v6310 = vunpack.c.l.b16 %v5956
        %v6311 = vunpack.c.h.b16 %v5956
        %v6312 = vunpack.c.l.b16 %v5957
        %v6313 = vunpack.c.h.b16 %v5957
        %v6314 = vunpack.c.l.b16 %v5958
        %v6315 = vunpack.c.h.b16 %v5958
        %v6316 = vunpack.c.l.b16 %v5959
        %v6317 = vunpack.c.h.b16 %v5959
        %v6318 = vunpack.c.l.b16 %v5960
        %v6319 = vunpack.c.h.b16 %v5960
        %v6320 = vunpack.c.l.b16 %v5961
        %v6321 = vunpack.c.h.b16 %v5961
        %v6322 = vunpack.c.l.b16 %v5962
        %v6323 = vunpack.c.h.b16 %v5962
        %v6324 = vunpack.c.l.b16 %v5963
        %v6325 = vunpack.c.h.b16 %v5963
        %v6326 = vunpack.c.l.b16 %v5964
        %v6327 = vunpack.c.h.b16 %v5964
        %v6328 = vunpack.c.l.b16 %v5965
        %v6329 = vunpack.c.h.b16 %v5965
        %v6330 = vunpack.c.l.b16 %v5966
        %v6331 = vunpack.c.h.b16 %v5966
        %v6332 = vunpack.c.l.b16 %v5967
        %v6333 = vunpack.c.h.b16 %v5967
        %v6334 = vunpack.c.l.b16 %v5968
        %v6335 = vunpack.c.h.b16 %v5968
        %v6336 = vunpack.c.l.b16 %v5969
        %v6337 = vunpack.c.h.b16 %v5969
        %v6338 = vunpack.c.l.b16 %v5970
        %v6339 = vunpack.c.h.b16 %v5970
        %v6340 = vunpack.c.l.b16 %v5971
        %v6341 = vunpack.c.h.b16 %v5971
        %v6342 = vunpack.c.l.b16 %v5972
        %v6343 = vunpack.c.h.b16 %v5972
        %v6344 = vunpack.c.l.b16 %v5973
        %v6345 = vunpack.c.h.b16 %v5973
        %v6346 = vunpack.c.l.b16 %v5974
        %v6347 = vunpack.c.h.b16 %v5974
        %v6348 = vunpack.c.l.b16 %v5975
        %v6349 = vunpack.c.h.b16 %v5975
        %v6350 = vunpack.c.l.b16 %v5976
        %v6351 = vunpack.c.h.b16 %v5976
        %v6352 = vunpack.c.l.b16 %v5977
        %v6353 = vunpack.c.h.b16 %v5977
        %v6354 = vunpack.c.l.b16 %v5978
        %v6355 = vunpack.c.h.b16 %v5978
        %v6356 = vunpack.c.l.b16 %v5979
        %v6357 = vunpack.c.h.b16 %v5979
        %v6358 = vunpack.c.l.b16 %v5980
        %v6359 = vunpack.c.h.b16 %v5980
        %v6360 = vunpack.c.l.b16 %v5981
        %v6361 = vunpack.c.h.b16 %v5981
        %v6362 = vunpack.c.l.b16 %v5982
        %v6363 = vunpack.c.h.b16 %v5982
        %v6364 = vunpack.c.l.b16 %v5983
        %v6365 = vunpack.c.h.b16 %v5983
        %v6366 = vunpack.c.l.b16 %v5984
        %v6367 = vunpack.c.h.b16 %v5984
        %v6368 = vunpack.c.l.b16 %v5985
        %v6369 = vunpack.c.h.b16 %v5985
        %v6370 = vunpack.c.l.b16 %v5986
        %v6371 = vunpack.c.h.b16 %v5986
        %v6372 = vunpack.c.l.b16 %v5987
        %v6373 = vunpack.c.h.b16 %v5987
        %v6374 = vunpack.c.l.b16 %v5988
        %v6375 = vunpack.c.h.b16 %v5988
        %v6376 = vunpack.c.l.b16 %v5989
        %v6377 = vunpack.c.h.b16 %v5989
        %v6378 = vunpack.c.l.b16 %v5990
        %v6379 = vunpack.c.h.b16 %v5990
        %v6380 = vunpack.c.l.b16 %v5991
        %v6381 = vunpack.c.h.b16 %v5991
        %v6382 = vunpack.c.l.b16 %v5992
        %v6383 = vunpack.c.h.b16 %v5992
        %v6384 = vunpack.c.l.b16 %v5993
        %v6385 = vunpack.c.h.b16 %v5993
        %v6386 = vunpack.c.l.b16 %v5994
        %v6387 = vunpack.c.h.b16 %v5994
        %v6388 = vunpack.c.l.b16 %v5995
        %v6389 = vunpack.c.h.b16 %v5995
        %v6390 = vunpack.c.l.b16 %v5996
        %v6391 = vunpack.c.h.b16 %v5996
        %v6392 = vunpack.c.l.b16 %v5997
        %v6393 = vunpack.c.h.b16 %v5997
        %v6394 = vunpack.c.l.b16 %v5998
        %v6395 = vunpack.c.h.b16 %v5998
        %v6396 = vunpack.c.l.b16 %v5999
        %v6397 = vunpack.c.h.b16 %v5999
        %v6398 = vunpack.c.l.b16 %v6000
        %v6399 = vunpack.c.h.b16 %v6000
        %v6400 = vunpack.c.l.b16 %v6001
        %v6401 = vunpack.c.h.b16 %v6001
        %v6402 = vunpack.c.l.b16 %v6002
        %v6403 = vunpack.c.h.b16 %v6002
        %v6404 = vpack.c.b16 %v6152, %v6148
        %v6405 = vpack.c.b16 %v6153, %v6149
        %v6406 = vpack.c.b16 %v6154, %v6150
        %v6407 = vpack.c.b16 %v6155, %v6151
        %v6408 = vpack.c.b16 %v6160, %v6156
        %v6409 = vpack.c.b16 %v6161, %v6157
        %v6410 = vpack.c.b16 %v6162, %v6158
        %v6411 = vpack.c.b16 %v6163, %v6159
        %v6412 = vpack.c.b16 %v6168, %v6164
        %v6413 = vpack.c.b16 %v6169, %v6165
        %v6414 = vpack.c.b16 %v6170, %v6166
        %v6415 = vpack.c.b16 %v6171, %v6167
        %v6416 = vpack.c.b16 %v6176, %v6172
        %v6417 = vpack.c.b16 %v6177, %v6173
        %v6418 = vpack.c.b16 %v6178, %v6174
        %v6419 = vpack.c.b16 %v6179, %v6175
        %v6420 = vpack.c.b16 %v6184, %v6180
        %v6421 = vpack.c.b16 %v6185, %v6181
        %v6422 = vpack.c.b16 %v6186, %v6182
        %v6423 = vpack.c.b16 %v6187, %v6183
        %v6424 = vpack.c.b16 %v6192, %v6188
        %v6425 = vpack.c.b16 %v6193, %v6189
        %v6426 = vpack.c.b16 %v6194, %v6190
        %v6427 = vpack.c.b16 %v6195, %v6191
        %v6428 = vpack.c.b16 %v6200, %v6196
        %v6429 = vpack.c.b16 %v6201, %v6197
        %v6430 = vpack.c.b16 %v6202, %v6198
        %v6431 = vpack.c.b16 %v6203, %v6199
        %v6432 = vpack.c.b16 %v6208, %v6204
        %v6433 = vpack.c.b16 %v6209, %v6205
        %v6434 = vpack.c.b16 %v6210, %v6206
        %v6435 = vpack.c.b16 %v6211, %v6207
        %v6436 = vpack.c.b16 %v6216, %v6212
        %v6437 = vpack.c.b16 %v6217, %v6213
        %v6438 = vpack.c.b16 %v6218, %v6214
        %v6439 = vpack.c.b16 %v6219, %v6215
        %v6440 = vpack.c.b16 %v6224, %v6220
        %v6441 = vpack.c.b16 %v6225, %v6221
        %v6442 = vpack.c.b16 %v6226, %v6222
        %v6443 = vpack.c.b16 %v6227, %v6223
        %v6444 = vpack.c.b16 %v6232, %v6228
        %v6445 = vpack.c.b16 %v6233, %v6229
        %v6446 = vpack.c.b16 %v6234, %v6230
        %v6447 = vpack.c.b16 %v6235, %v6231
        %v6448 = vpack.c.b16 %v6240, %v6236
        %v6449 = vpack.c.b16 %v6241, %v6237
        %v6450 = vpack.c.b16 %v6242, %v6238
        %v6451 = vpack.c.b16 %v6243, %v6239
        %v6452 = vpack.c.b16 %v6248, %v6244
        %v6453 = vpack.c.b16 %v6249, %v6245
        %v6454 = vpack.c.b16 %v6250, %v6246
        %v6455 = vpack.c.b16 %v6251, %v6247
        %v6456 = vpack.c.b16 %v6256, %v6252
        %v6457 = vpack.c.b16 %v6257, %v6253
        %v6458 = vpack.c.b16 %v6258, %v6254
        %v6459 = vpack.c.b16 %v6259, %v6255
        %v6460 = vpack.c.b16 %v6264, %v6260
        %v6461 = vpack.c.b16 %v6265, %v6261
        %v6462 = vpack.c.b16 %v6266, %v6262
        %v6463 = vpack.c.b16 %v6267, %v6263
        %v6464 = vpack.c.b16 %v6272, %v6268
        %v6465 = vpack.c.b16 %v6273, %v6269
        %v6466 = vpack.c.b16 %v6274, %v6270
        %v6467 = vpack.c.b16 %v6275, %v6271
        %v6468 = vpack.c.b16 %v6280, %v6276
        %v6469 = vpack.c.b16 %v6281, %v6277
        %v6470 = vpack.c.b16 %v6282, %v6278
        %v6471 = vpack.c.b16 %v6283, %v6279
        %v6472 = vpack.c.b16 %v6288, %v6284
        %v6473 = vpack.c.b16 %v6289, %v6285
        %v6474 = vpack.c.b16 %v6290, %v6286
        %v6475 = vpack.c.b16 %v6291, %v6287
        %v6476 = vpack.c.b16 %v6296, %v6292
        %v6477 = vpack.c.b16 %v6297, %v6293
        %v6478 = vpack.c.b16 %v6298, %v6294
        %v6479 = vpack.c.b16 %v6299, %v6295
        %v6480 = vpack.c.b16 %v6304, %v6300
        %v6481 = vpack.c.b16 %v6305, %v6301
        %v6482 = vpack.c.b16 %v6306, %v6302
        %v6483 = vpack.c.b16 %v6307, %v6303
        %v6484 = vpack.c.b16 %v6312, %v6308
        %v6485 = vpack.c.b16 %v6313, %v6309
        %v6486 = vpack.c.b16 %v6314, %v6310
        %v6487 = vpack.c.b16 %v6315, %v6311
        %v6488 = vpack.c.b16 %v6320, %v6316
        %v6489 = vpack.c.b16 %v6321, %v6317
        %v6490 = vpack.c.b16 %v6322, %v6318
        %v6491 = vpack.c.b16 %v6323, %v6319
        %v6492 = vpack.c.b16 %v6328, %v6324
        %v6493 = vpack.c.b16 %v6329, %v6325
        %v6494 = vpack.c.b16 %v6330, %v6326
        %v6495 = vpack.c.b16 %v6331, %v6327
        %v6496 = vpack.c.b16 %v6336, %v6332
        %v6497 = vpack.c.b16 %v6337, %v6333
        %v6498 = vpack.c.b16 %v6338, %v6334
        %v6499 = vpack.c.b16 %v6339, %v6335
        %v6500 = vpack.c.b16 %v6344, %v6340
        %v6501 = vpack.c.b16 %v6345, %v6341
        %v6502 = vpack.c.b16 %v6346, %v6342
        %v6503 = vpack.c.b16 %v6347, %v6343
        %v6504 = vpack.c.b16 %v6352, %v6348
        %v6505 = vpack.c.b16 %v6353, %v6349
        %v6506 = vpack.c.b16 %v6354, %v6350
        %v6507 = vpack.c.b16 %v6355, %v6351
        %v6508 = vpack.c.b16 %v6360, %v6356
        %v6509 = vpack.c.b16 %v6361, %v6357
        %v6510 = vpack.c.b16 %v6362, %v6358
        %v6511 = vpack.c.b16 %v6363, %v6359
        %v6512 = vpack.c.b16 %v6368, %v6364
        %v6513 = vpack.c.b16 %v6369, %v6365
        %v6514 = vpack.c.b16 %v6370, %v6366
        %v6515 = vpack.c.b16 %v6371, %v6367
        %v6516 = vpack.c.b16 %v6376, %v6372
        %v6517 = vpack.c.b16 %v6377, %v6373
        %v6518 = vpack.c.b16 %v6378, %v6374
        %v6519 = vpack.c.b16 %v6379, %v6375
        %v6520 = vpack.c.b16 %v6384, %v6380
        %v6521 = vpack.c.b16 %v6385, %v6381
        %v6522 = vpack.c.b16 %v6386, %v6382
        %v6523 = vpack.c.b16 %v6387, %v6383
        %v6524 = vpack.c.b16 %v6392, %v6388
        %v6525 = vpack.c.b16 %v6393, %v6389
        %v6526 = vpack.c.b16 %v6394, %v6390
        %v6527 = vpack.c.b16 %v6395, %v6391
        %v6528 = vpack.c.b16 %v6400, %v6396
        %v6529 = vpack.c.b16 %v6401, %v6397
        %v6530 = vpack.c.b16 %v6402, %v6398
        %v6531 = vpack.c.b16 %v6403, %v6399
        %6660 = vmatpush.bf16.msra.mxu0 %v6432
        %6661 = vmatpush.bf16.msra.mxu0 %v6428
        %6662 = vmatpush.bf16.msra.mxu0 %v6424
        %6663 = vmatpush.bf16.msra.mxu0 %v6420
        %6664 = vmatpush.bf16.msra.mxu0 %v6416
        %6665 = vmatpush.bf16.msra.mxu0 %v6412
        %6666 = vmatpush.bf16.msra.mxu0 %v6408
        %6667 = vmatpush.bf16.msra.mxu0 %v6404
        %6668 = vmatmul.bf16.gmra.mxu0 %v6007
        %v6669 = vpop.f32.mrf.mxu0
        %v6670 = vadd.f32 %v6012, %v6669
        %v6671 = vpop.f32.mrf.mxu0
        %v6672 = vadd.f32 %v6012, %v6671
        %6673 = vdwg.mxu0
        %6674 = vmatpush.bf16.msra.mxu0 %v6464
        %6675 = vmatpush.bf16.msra.mxu0 %v6460
        %6676 = vmatpush.bf16.msra.mxu0 %v6456
        %6677 = vmatpush.bf16.msra.mxu0 %v6452
        %6678 = vmatpush.bf16.msra.mxu0 %v6448
        %6679 = vmatpush.bf16.msra.mxu0 %v6444
        %6680 = vmatpush.bf16.msra.mxu0 %v6440
        %6681 = vmatpush.bf16.msra.mxu0 %v6436
        %6682 = vmatmul.bf16.gmra.mxu0 %v6008
        %v6683 = vpop.f32.mrf.mxu0
        %v6684 = vadd.f32 %v6670, %v6683
        %v6685 = vpop.f32.mrf.mxu0
        %v6686 = vadd.f32 %v6672, %v6685
        %6687 = vdwg.mxu0
        %6688 = vmatpush.bf16.msra.mxu0 %v6496
        %6689 = vmatpush.bf16.msra.mxu0 %v6492
        %6690 = vmatpush.bf16.msra.mxu0 %v6488
        %6691 = vmatpush.bf16.msra.mxu0 %v6484
        %6692 = vmatpush.bf16.msra.mxu0 %v6480
        %6693 = vmatpush.bf16.msra.mxu0 %v6476
        %6694 = vmatpush.bf16.msra.mxu0 %v6472
        %6695 = vmatpush.bf16.msra.mxu0 %v6468
        %6696 = vmatmul.bf16.gmra.mxu0 %v6009
        %v6697 = vpop.f32.mrf.mxu0
        %v6698 = vadd.f32 %v6684, %v6697
        %v6699 = vpop.f32.mrf.mxu0
        %v6700 = vadd.f32 %v6686, %v6699
        %6701 = vdwg.mxu0
        %6702 = vmatpush.bf16.msra.mxu0 %v6528
        %6703 = vmatpush.bf16.msra.mxu0 %v6524
        %6704 = vmatpush.bf16.msra.mxu0 %v6520
        %6705 = vmatpush.bf16.msra.mxu0 %v6516
        %6706 = vmatpush.bf16.msra.mxu0 %v6512
        %6707 = vmatpush.bf16.msra.mxu0 %v6508
        %6708 = vmatpush.bf16.msra.mxu0 %v6504
        %6709 = vmatpush.bf16.msra.mxu0 %v6500
        %6710 = vmatmul.bf16.gmra.mxu0 %v6010
        %v6711 = vpop.f32.mrf.mxu0
        %v6712 = vadd.f32 %v6698, %v6711
        %v6713 = vpop.f32.mrf.mxu0
        %v6714 = vadd.f32 %v6700, %v6713
        %6715 = vdwg.mxu0
        %6716 = vmatpush.bf16.msra.mxu0 %v6433
        %6717 = vmatpush.bf16.msra.mxu0 %v6429
        %6718 = vmatpush.bf16.msra.mxu0 %v6425
        %6719 = vmatpush.bf16.msra.mxu0 %v6421
        %6720 = vmatpush.bf16.msra.mxu0 %v6417
        %6721 = vmatpush.bf16.msra.mxu0 %v6413
        %6722 = vmatpush.bf16.msra.mxu0 %v6409
        %6723 = vmatpush.bf16.msra.mxu0 %v6405
        %6724 = vmatmul.bf16.gmra.mxu0 %v6007
        %v6725 = vpop.f32.mrf.mxu0
        %v6726 = vadd.f32 %v6013, %v6725
        %v6727 = vpop.f32.mrf.mxu0
        %v6728 = vadd.f32 %v6013, %v6727
        %6729 = vdwg.mxu0
        %6730 = vmatpush.bf16.msra.mxu0 %v6465
        %6731 = vmatpush.bf16.msra.mxu0 %v6461
        %6732 = vmatpush.bf16.msra.mxu0 %v6457
        %6733 = vmatpush.bf16.msra.mxu0 %v6453
        %6734 = vmatpush.bf16.msra.mxu0 %v6449
        %6735 = vmatpush.bf16.msra.mxu0 %v6445
        %6736 = vmatpush.bf16.msra.mxu0 %v6441
        %6737 = vmatpush.bf16.msra.mxu0 %v6437
        %6738 = vmatmul.bf16.gmra.mxu0 %v6008
        %v6739 = vpop.f32.mrf.mxu0
        %v6740 = vadd.f32 %v6726, %v6739
        %v6741 = vpop.f32.mrf.mxu0
        %v6742 = vadd.f32 %v6728, %v6741
        %6743 = vdwg.mxu0
        %6744 = vmatpush.bf16.msra.mxu0 %v6497
        %6745 = vmatpush.bf16.msra.mxu0 %v6493
        %6746 = vmatpush.bf16.msra.mxu0 %v6489
        %6747 = vmatpush.bf16.msra.mxu0 %v6485
        %6748 = vmatpush.bf16.msra.mxu0 %v6481
        %6749 = vmatpush.bf16.msra.mxu0 %v6477
        %6750 = vmatpush.bf16.msra.mxu0 %v6473
        %6751 = vmatpush.bf16.msra.mxu0 %v6469
        %6752 = vmatmul.bf16.gmra.mxu0 %v6009
        %v6753 = vpop.f32.mrf.mxu0
        %v6754 = vadd.f32 %v6740, %v6753
        %v6755 = vpop.f32.mrf.mxu0
        %v6756 = vadd.f32 %v6742, %v6755
        %6757 = vdwg.mxu0
        %6758 = vmatpush.bf16.msra.mxu0 %v6529
        %6759 = vmatpush.bf16.msra.mxu0 %v6525
        %6760 = vmatpush.bf16.msra.mxu0 %v6521
        %6761 = vmatpush.bf16.msra.mxu0 %v6517
        %6762 = vmatpush.bf16.msra.mxu0 %v6513
        %6763 = vmatpush.bf16.msra.mxu0 %v6509
        %6764 = vmatpush.bf16.msra.mxu0 %v6505
        %6765 = vmatpush.bf16.msra.mxu0 %v6501
        %6766 = vmatmul.bf16.gmra.mxu0 %v6010
        %v6767 = vpop.f32.mrf.mxu0
        %v6768 = vadd.f32 %v6754, %v6767
        %v6769 = vpop.f32.mrf.mxu0
        %v6770 = vadd.f32 %v6756, %v6769
        %6771 = vdwg.mxu0
        %6772 = vmatpush.bf16.msra.mxu0 %v6434
        %6773 = vmatpush.bf16.msra.mxu0 %v6430
        %6774 = vmatpush.bf16.msra.mxu0 %v6426
        %6775 = vmatpush.bf16.msra.mxu0 %v6422
        %6776 = vmatpush.bf16.msra.mxu0 %v6418
        %6777 = vmatpush.bf16.msra.mxu0 %v6414
        %6778 = vmatpush.bf16.msra.mxu0 %v6410
        %6779 = vmatpush.bf16.msra.mxu0 %v6406
        %6780 = vmatmul.bf16.gmra.mxu0 %v6007
        %v6781 = vpop.f32.mrf.mxu0
        %v6782 = vadd.f32 %v6014, %v6781
        %v6783 = vpop.f32.mrf.mxu0
        %v6784 = vadd.f32 %v6014, %v6783
        %6785 = vdwg.mxu0
        %6786 = vmatpush.bf16.msra.mxu0 %v6466
        %6787 = vmatpush.bf16.msra.mxu0 %v6462
        %6788 = vmatpush.bf16.msra.mxu0 %v6458
        %6789 = vmatpush.bf16.msra.mxu0 %v6454
        %6790 = vmatpush.bf16.msra.mxu0 %v6450
        %6791 = vmatpush.bf16.msra.mxu0 %v6446
        %6792 = vmatpush.bf16.msra.mxu0 %v6442
        %6793 = vmatpush.bf16.msra.mxu0 %v6438
        %6794 = vmatmul.bf16.gmra.mxu0 %v6008
        %v6795 = vpop.f32.mrf.mxu0
        %v6796 = vadd.f32 %v6782, %v6795
        %v6797 = vpop.f32.mrf.mxu0
        %v6798 = vadd.f32 %v6784, %v6797
        %6799 = vdwg.mxu0
        %6800 = vmatpush.bf16.msra.mxu0 %v6498
        %6801 = vmatpush.bf16.msra.mxu0 %v6494
        %6802 = vmatpush.bf16.msra.mxu0 %v6490
        %6803 = vmatpush.bf16.msra.mxu0 %v6486
        %6804 = vmatpush.bf16.msra.mxu0 %v6482
        %6805 = vmatpush.bf16.msra.mxu0 %v6478
        %6806 = vmatpush.bf16.msra.mxu0 %v6474
        %6807 = vmatpush.bf16.msra.mxu0 %v6470
        %6808 = vmatmul.bf16.gmra.mxu0 %v6009
        %v6809 = vpop.f32.mrf.mxu0
        %v6810 = vadd.f32 %v6796, %v6809
        %v6811 = vpop.f32.mrf.mxu0
        %v6812 = vadd.f32 %v6798, %v6811
        %6813 = vdwg.mxu0
        %6814 = vmatpush.bf16.msra.mxu0 %v6530
        %6815 = vmatpush.bf16.msra.mxu0 %v6526
        %6816 = vmatpush.bf16.msra.mxu0 %v6522
        %6817 = vmatpush.bf16.msra.mxu0 %v6518
        %6818 = vmatpush.bf16.msra.mxu0 %v6514
        %6819 = vmatpush.bf16.msra.mxu0 %v6510
        %6820 = vmatpush.bf16.msra.mxu0 %v6506
        %6821 = vmatpush.bf16.msra.mxu0 %v6502
        %6822 = vmatmul.bf16.gmra.mxu0 %v6010
        %v6823 = vpop.f32.mrf.mxu0
        %v6824 = vadd.f32 %v6810, %v6823
        %v6825 = vpop.f32.mrf.mxu0
        %v6826 = vadd.f32 %v6812, %v6825
        %6827 = vdwg.mxu0
        %6828 = vmatpush.bf16.msra.mxu0 %v6435
        %6829 = vmatpush.bf16.msra.mxu0 %v6431
        %6830 = vmatpush.bf16.msra.mxu0 %v6427
        %6831 = vmatpush.bf16.msra.mxu0 %v6423
        %6832 = vmatpush.bf16.msra.mxu0 %v6419
        %6833 = vmatpush.bf16.msra.mxu0 %v6415
        %6834 = vmatpush.bf16.msra.mxu0 %v6411
        %6835 = vmatpush.bf16.msra.mxu0 %v6407
        %6836 = vmatmul.bf16.gmra.mxu0 %v6007
        %v6837 = vpop.f32.mrf.mxu0
        %v6838 = vadd.f32 %v6015, %v6837
        %v6839 = vpop.f32.mrf.mxu0
        %v6840 = vadd.f32 %v6015, %v6839
        %6841 = vdwg.mxu0
        %6842 = vmatpush.bf16.msra.mxu0 %v6467
        %6843 = vmatpush.bf16.msra.mxu0 %v6463
        %6844 = vmatpush.bf16.msra.mxu0 %v6459
        %6845 = vmatpush.bf16.msra.mxu0 %v6455
        %6846 = vmatpush.bf16.msra.mxu0 %v6451
        %6847 = vmatpush.bf16.msra.mxu0 %v6447
        %6848 = vmatpush.bf16.msra.mxu0 %v6443
        %6849 = vmatpush.bf16.msra.mxu0 %v6439
        %6850 = vmatmul.bf16.gmra.mxu0 %v6008
        %v6851 = vpop.f32.mrf.mxu0
        %v6852 = vadd.f32 %v6838, %v6851
        %v6853 = vpop.f32.mrf.mxu0
        %v6854 = vadd.f32 %v6840, %v6853
        %6855 = vdwg.mxu0
        %6856 = vmatpush.bf16.msra.mxu0 %v6499
        %6857 = vmatpush.bf16.msra.mxu0 %v6495
        %6858 = vmatpush.bf16.msra.mxu0 %v6491
        %6859 = vmatpush.bf16.msra.mxu0 %v6487
        %6860 = vmatpush.bf16.msra.mxu0 %v6483
        %6861 = vmatpush.bf16.msra.mxu0 %v6479
        %6862 = vmatpush.bf16.msra.mxu0 %v6475
        %6863 = vmatpush.bf16.msra.mxu0 %v6471
        %6864 = vmatmul.bf16.gmra.mxu0 %v6009
        %v6865 = vpop.f32.mrf.mxu0
        %v6866 = vadd.f32 %v6852, %v6865
        %v6867 = vpop.f32.mrf.mxu0
        %v6868 = vadd.f32 %v6854, %v6867
        %6869 = vdwg.mxu0
        %6870 = vmatpush.bf16.msra.mxu0 %v6531
        %6871 = vmatpush.bf16.msra.mxu0 %v6527
        %6872 = vmatpush.bf16.msra.mxu0 %v6523
        %6873 = vmatpush.bf16.msra.mxu0 %v6519
        %6874 = vmatpush.bf16.msra.mxu0 %v6515
        %6875 = vmatpush.bf16.msra.mxu0 %v6511
        %6876 = vmatpush.bf16.msra.mxu0 %v6507
        %6877 = vmatpush.bf16.msra.mxu0 %v6503
        %6878 = vmatmul.bf16.gmra.mxu0 %v6010
        %v6879 = vpop.f32.mrf.mxu0
        %v6880 = vadd.f32 %v6866, %v6879
        %v6881 = vpop.f32.mrf.mxu0
        %v6882 = vadd.f32 %v6868, %v6881
        %6883 = vdwg.mxu0
        %v6884 = vmax.f32 %v6712, 0.0
        %v6885 = vmax.f32 %v6768, 0.0
        %v6886 = vmax.f32 %v6824, 0.0
        %v6887 = vmax.f32 %v6880, 0.0
        %v6888 = vmax.f32 %v6714, 0.0
        %v6889 = vmax.f32 %v6770, 0.0
        %v6890 = vmax.f32 %v6826, 0.0
        %v6891 = vmax.f32 %v6882, 0.0
        %v6892 = vand.u32 2147483647, %v6712
        %v6893 = vand.u32 2147483647, %v6768
        %v6894 = vand.u32 2147483647, %v6824
        %v6895 = vand.u32 2147483647, %v6880
        %v6896 = vand.u32 2147483647, %v6714
        %v6897 = vand.u32 2147483647, %v6770
        %v6898 = vand.u32 2147483647, %v6826
        %v6899 = vand.u32 2147483647, %v6882
        %v6900 = vsub.f32 0.0, %v6892
        %v6901 = vsub.f32 0.0, %v6893
        %v6902 = vsub.f32 0.0, %v6894
        %v6903 = vsub.f32 0.0, %v6895
        %v6904 = vsub.f32 0.0, %v6896
        %v6905 = vsub.f32 0.0, %v6897
        %v6906 = vsub.f32 0.0, %v6898
        %v6907 = vsub.f32 0.0, %v6899
        %v6908 = vmul.f32 %v6900, 1.442695
        %v6909 = vpow.pop %v6908
        %v6910 = vmul.f32 %v6901, 1.442695
        %v6911 = vpow.pop %v6910
        %v6912 = vmul.f32 %v6902, 1.442695
        %v6913 = vpow.pop %v6912
        %v6914 = vmul.f32 %v6903, 1.442695
        %v6915 = vpow.pop %v6914
        %v6916 = vmul.f32 %v6904, 1.442695
        %v6917 = vpow.pop %v6916
        %v6918 = vmul.f32 %v6905, 1.442695
        %v6919 = vpow.pop %v6918
        %v6920 = vmul.f32 %v6906, 1.442695
        %v6921 = vpow.pop %v6920
        %v6922 = vmul.f32 %v6907, 1.442695
        %v6923 = vpow.pop %v6922
        %v6924 = vadd.f32 %v6909, 1.0
        %v6925 = vlog2.pop %v6924
        %v6926 = vmul.f32 %v6925, 0.6931472
        %v6927 = vmul.f32 -0.5, %v6909
        %v6928 = vadd.f32 %v6927, 1.0
        %v6929 = vmul.f32 %v6928, %v6909
        %v6930 = vand.u32 2147483647, %v6909
        %vm6931 = vcmp.lt.f32.partialorder %v6930, 0.0004427343
        %v6932 = vsel %vm6931, %v6929, %v6926
        %v6933 = vadd.f32 %v6911, 1.0
        %v6934 = vlog2.pop %v6933
        %v6935 = vmul.f32 %v6934, 0.6931472
        %v6936 = vmul.f32 -0.5, %v6911
        %v6937 = vadd.f32 %v6936, 1.0
        %v6938 = vmul.f32 %v6937, %v6911
        %v6939 = vand.u32 2147483647, %v6911
        %vm6940 = vcmp.lt.f32.partialorder %v6939, 0.0004427343
        %v6941 = vsel %vm6940, %v6938, %v6935
        %v6942 = vadd.f32 %v6913, 1.0
        %v6943 = vlog2.pop %v6942
        %v6944 = vmul.f32 %v6943, 0.6931472
        %v6945 = vmul.f32 -0.5, %v6913
        %v6946 = vadd.f32 %v6945, 1.0
        %v6947 = vmul.f32 %v6946, %v6913
        %v6948 = vand.u32 2147483647, %v6913
        %vm6949 = vcmp.lt.f32.partialorder %v6948, 0.0004427343
        %v6950 = vsel %vm6949, %v6947, %v6944
        %v6951 = vadd.f32 %v6915, 1.0
        %v6952 = vlog2.pop %v6951
        %v6953 = vmul.f32 %v6952, 0.6931472
        %v6954 = vmul.f32 -0.5, %v6915
        %v6955 = vadd.f32 %v6954, 1.0
        %v6956 = vmul.f32 %v6955, %v6915
        %v6957 = vand.u32 2147483647, %v6915
        %vm6958 = vcmp.lt.f32.partialorder %v6957, 0.0004427343
        %v6959 = vsel %vm6958, %v6956, %v6953
        %v6960 = vadd.f32 %v6917, 1.0
        %v6961 = vlog2.pop %v6960
        %v6962 = vmul.f32 %v6961, 0.6931472
        %v6963 = vmul.f32 -0.5, %v6917
        %v6964 = vadd.f32 %v6963, 1.0
        %v6965 = vmul.f32 %v6964, %v6917
        %v6966 = vand.u32 2147483647, %v6917
        %vm6967 = vcmp.lt.f32.partialorder %v6966, 0.0004427343
        %v6968 = vsel %vm6967, %v6965, %v6962
        %v6969 = vadd.f32 %v6919, 1.0
        %v6970 = vlog2.pop %v6969
        %v6971 = vmul.f32 %v6970, 0.6931472
        %v6972 = vmul.f32 -0.5, %v6919
        %v6973 = vadd.f32 %v6972, 1.0
        %v6974 = vmul.f32 %v6973, %v6919
        %v6975 = vand.u32 2147483647, %v6919
        %vm6976 = vcmp.lt.f32.partialorder %v6975, 0.0004427343
        %v6977 = vsel %vm6976, %v6974, %v6971
        %v6978 = vadd.f32 %v6921, 1.0
        %v6979 = vlog2.pop %v6978
        %v6980 = vmul.f32 %v6979, 0.6931472
        %v6981 = vmul.f32 -0.5, %v6921
        %v6982 = vadd.f32 %v6981, 1.0
        %v6983 = vmul.f32 %v6982, %v6921
        %v6984 = vand.u32 2147483647, %v6921
        %vm6985 = vcmp.lt.f32.partialorder %v6984, 0.0004427343
        %v6986 = vsel %vm6985, %v6983, %v6980
        %v6987 = vadd.f32 %v6923, 1.0
        %v6988 = vlog2.pop %v6987
        %v6989 = vmul.f32 %v6988, 0.6931472
        %v6990 = vmul.f32 -0.5, %v6923
        %v6991 = vadd.f32 %v6990, 1.0
        %v6992 = vmul.f32 %v6991, %v6923
        %v6993 = vand.u32 2147483647, %v6923
        %vm6994 = vcmp.lt.f32.partialorder %v6993, 0.0004427343
        %v6995 = vsel %vm6994, %v6992, %v6989
        %v6996 = vadd.f32 %v6884, %v6932
        %v6997 = vadd.f32 %v6885, %v6941
        %v6998 = vadd.f32 %v6886, %v6950
        %v6999 = vadd.f32 %v6887, %v6959
        %v7000 = vadd.f32 %v6888, %v6968
        %v7001 = vadd.f32 %v6889, %v6977
        %v7002 = vadd.f32 %v6890, %v6986
        %v7003 = vadd.f32 %v6891, %v6995
        %s7004 = scalar_lea.vmem %s172, 6144 [#allocation2]
        %v7005 = vld [vmem:[%s7004] sm:$0xff]
        %v7006 = vld [vmem:[%s7004 + $0x8] sm:$0xff]
        %v7007 = vld [vmem:[%s7004 + $0x10] sm:$0xff]
        %v7008 = vld [vmem:[%s7004 + $0x18] sm:$0xff]
        %v7009 = vld [vmem:[%s7004 + $0x20] sm:$0xff]
        %v7010 = vld [vmem:[%s7004 + $0x28] sm:$0xff]
        %v7011 = vld [vmem:[%s7004 + $0x30] sm:$0xff]
        %v7012 = vld [vmem:[%s7004 + $0x38] sm:$0xff]
        %v7013 = vld [vmem:[%s7004 + $0x40] sm:$0xff]
        %v7014 = vld [vmem:[%s7004 + $0x48] sm:$0xff]
        %v7015 = vld [vmem:[%s7004 + $0x50] sm:$0xff]
        %v7016 = vld [vmem:[%s7004 + $0x58] sm:$0xff]
        %v7017 = vld [vmem:[%s7004 + $0x60] sm:$0xff]
        %v7018 = vld [vmem:[%s7004 + $0x68] sm:$0xff]
        %v7019 = vld [vmem:[%s7004 + $0x70] sm:$0xff]
        %v7020 = vld [vmem:[%s7004 + $0x78] sm:$0xff]
        %v7021 = vld [vmem:[%s7004 + $0x80] sm:$0xff]
        %v7022 = vld [vmem:[%s7004 + $0x88] sm:$0xff]
        %v7023 = vld [vmem:[%s7004 + $0x90] sm:$0xff]
        %v7024 = vld [vmem:[%s7004 + $0x98] sm:$0xff]
        %v7025 = vld [vmem:[%s7004 + $0xa0] sm:$0xff]
        %v7026 = vld [vmem:[%s7004 + $0xa8] sm:$0xff]
        %v7027 = vld [vmem:[%s7004 + $0xb0] sm:$0xff]
        %v7028 = vld [vmem:[%s7004 + $0xb8] sm:$0xff]
        %v7029 = vld [vmem:[%s7004 + $0xc0] sm:$0xff]
        %v7030 = vld [vmem:[%s7004 + $0xc8] sm:$0xff]
        %v7031 = vld [vmem:[%s7004 + $0xd0] sm:$0xff]
        %v7032 = vld [vmem:[%s7004 + $0xd8] sm:$0xff]
        %v7033 = vld [vmem:[%s7004 + $0xe0] sm:$0xff]
        %v7034 = vld [vmem:[%s7004 + $0xe8] sm:$0xff]
        %v7035 = vld [vmem:[%s7004 + $0xf0] sm:$0xff]
        %v7036 = vld [vmem:[%s7004 + $0xf8] sm:$0xff]
        %v7037 = vld [vmem:[%s7004 + $0x100] sm:$0xff]
        %v7038 = vld [vmem:[%s7004 + $0x108] sm:$0xff]
        %v7039 = vld [vmem:[%s7004 + $0x110] sm:$0xff]
        %v7040 = vld [vmem:[%s7004 + $0x118] sm:$0xff]
        %v7041 = vld [vmem:[%s7004 + $0x120] sm:$0xff]
        %v7042 = vld [vmem:[%s7004 + $0x128] sm:$0xff]
        %v7043 = vld [vmem:[%s7004 + $0x130] sm:$0xff]
        %v7044 = vld [vmem:[%s7004 + $0x138] sm:$0xff]
        %v7045 = vld [vmem:[%s7004 + $0x140] sm:$0xff]
        %v7046 = vld [vmem:[%s7004 + $0x148] sm:$0xff]
        %v7047 = vld [vmem:[%s7004 + $0x150] sm:$0xff]
        %v7048 = vld [vmem:[%s7004 + $0x158] sm:$0xff]
        %v7049 = vld [vmem:[%s7004 + $0x160] sm:$0xff]
        %v7050 = vld [vmem:[%s7004 + $0x168] sm:$0xff]
        %v7051 = vld [vmem:[%s7004 + $0x170] sm:$0xff]
        %v7052 = vld [vmem:[%s7004 + $0x178] sm:$0xff]
        %v7053 = vld [vmem:[%s7004 + $0x180] sm:$0xff]
        %v7054 = vld [vmem:[%s7004 + $0x188] sm:$0xff]
        %v7055 = vld [vmem:[%s7004 + $0x190] sm:$0xff]
        %v7056 = vld [vmem:[%s7004 + $0x198] sm:$0xff]
        %v7057 = vld [vmem:[%s7004 + $0x1a0] sm:$0xff]
        %v7058 = vld [vmem:[%s7004 + $0x1a8] sm:$0xff]
        %v7059 = vld [vmem:[%s7004 + $0x1b0] sm:$0xff]
        %v7060 = vld [vmem:[%s7004 + $0x1b8] sm:$0xff]
        %v7061 = vld [vmem:[%s7004 + $0x1c0] sm:$0xff]
        %v7062 = vld [vmem:[%s7004 + $0x1c8] sm:$0xff]
        %v7063 = vld [vmem:[%s7004 + $0x1d0] sm:$0xff]
        %v7064 = vld [vmem:[%s7004 + $0x1d8] sm:$0xff]
        %v7065 = vld [vmem:[%s7004 + $0x1e0] sm:$0xff]
        %v7066 = vld [vmem:[%s7004 + $0x1e8] sm:$0xff]
        %v7067 = vld [vmem:[%s7004 + $0x1f0] sm:$0xff]
        %v7068 = vld [vmem:[%s7004 + $0x1f8] sm:$0xff]
        %v7069 = vld [vmem:[%s7004 + $0x200] sm:$0xff]
        %v7070 = vld [vmem:[%s7004 + $0x208] sm:$0xff]
        %v7071 = vld [vmem:[%s7004 + $0x210] sm:$0xff]
        %v7072 = vld [vmem:[%s7004 + $0x218] sm:$0xff]
        %v7073 = vld [vmem:[%s7004 + $0x220] sm:$0xff]
        %v7074 = vld [vmem:[%s7004 + $0x228] sm:$0xff]
        %v7075 = vld [vmem:[%s7004 + $0x230] sm:$0xff]
        %v7076 = vld [vmem:[%s7004 + $0x238] sm:$0xff]
        %v7077 = vld [vmem:[%s7004 + $0x240] sm:$0xff]
        %v7078 = vld [vmem:[%s7004 + $0x248] sm:$0xff]
        %v7079 = vld [vmem:[%s7004 + $0x250] sm:$0xff]
        %v7080 = vld [vmem:[%s7004 + $0x258] sm:$0xff]
        %v7081 = vld [vmem:[%s7004 + $0x260] sm:$0xff]
        %v7082 = vld [vmem:[%s7004 + $0x268] sm:$0xff]
        %v7083 = vld [vmem:[%s7004 + $0x270] sm:$0xff]
        %v7084 = vld [vmem:[%s7004 + $0x278] sm:$0xff]
        %v7085 = vld [vmem:[%s7004 + $0x280] sm:$0xff]
        %v7086 = vld [vmem:[%s7004 + $0x288] sm:$0xff]
        %v7087 = vld [vmem:[%s7004 + $0x290] sm:$0xff]
        %v7088 = vld [vmem:[%s7004 + $0x298] sm:$0xff]
        %v7089 = vld [vmem:[%s7004 + $0x2a0] sm:$0xff]
        %v7090 = vld [vmem:[%s7004 + $0x2a8] sm:$0xff]
        %v7091 = vld [vmem:[%s7004 + $0x2b0] sm:$0xff]
        %v7092 = vld [vmem:[%s7004 + $0x2b8] sm:$0xff]
        %v7093 = vld [vmem:[%s7004 + $0x2c0] sm:$0xff]
        %v7094 = vld [vmem:[%s7004 + $0x2c8] sm:$0xff]
        %v7095 = vld [vmem:[%s7004 + $0x2d0] sm:$0xff]
        %v7096 = vld [vmem:[%s7004 + $0x2d8] sm:$0xff]
        %v7097 = vld [vmem:[%s7004 + $0x2e0] sm:$0xff]
        %v7098 = vld [vmem:[%s7004 + $0x2e8] sm:$0xff]
        %v7099 = vld [vmem:[%s7004 + $0x2f0] sm:$0xff]
        %v7100 = vld [vmem:[%s7004 + $0x2f8] sm:$0xff]
        %v7101 = vld [vmem:[%s7004 + $0x300] sm:$0xff]
        %v7102 = vld [vmem:[%s7004 + $0x308] sm:$0xff]
        %v7103 = vld [vmem:[%s7004 + $0x310] sm:$0xff]
        %v7104 = vld [vmem:[%s7004 + $0x318] sm:$0xff]
        %v7105 = vld [vmem:[%s7004 + $0x320] sm:$0xff]
        %v7106 = vld [vmem:[%s7004 + $0x328] sm:$0xff]
        %v7107 = vld [vmem:[%s7004 + $0x330] sm:$0xff]
        %v7108 = vld [vmem:[%s7004 + $0x338] sm:$0xff]
        %v7109 = vld [vmem:[%s7004 + $0x340] sm:$0xff]
        %v7110 = vld [vmem:[%s7004 + $0x348] sm:$0xff]
        %v7111 = vld [vmem:[%s7004 + $0x350] sm:$0xff]
        %v7112 = vld [vmem:[%s7004 + $0x358] sm:$0xff]
        %v7113 = vld [vmem:[%s7004 + $0x360] sm:$0xff]
        %v7114 = vld [vmem:[%s7004 + $0x368] sm:$0xff]
        %v7115 = vld [vmem:[%s7004 + $0x370] sm:$0xff]
        %v7116 = vld [vmem:[%s7004 + $0x378] sm:$0xff]
        %v7117 = vld [vmem:[%s7004 + $0x380] sm:$0xff]
        %v7118 = vld [vmem:[%s7004 + $0x388] sm:$0xff]
        %v7119 = vld [vmem:[%s7004 + $0x390] sm:$0xff]
        %v7120 = vld [vmem:[%s7004 + $0x398] sm:$0xff]
        %v7121 = vld [vmem:[%s7004 + $0x3a0] sm:$0xff]
        %v7122 = vld [vmem:[%s7004 + $0x3a8] sm:$0xff]
        %v7123 = vld [vmem:[%s7004 + $0x3b0] sm:$0xff]
        %v7124 = vld [vmem:[%s7004 + $0x3b8] sm:$0xff]
        %v7125 = vld [vmem:[%s7004 + $0x3c0] sm:$0xff]
        %v7126 = vld [vmem:[%s7004 + $0x3c8] sm:$0xff]
        %v7127 = vld [vmem:[%s7004 + $0x3d0] sm:$0xff]
        %v7128 = vld [vmem:[%s7004 + $0x3d8] sm:$0xff]
        %v7129 = vld [vmem:[%s7004 + $0x3e0] sm:$0xff]
        %v7130 = vld [vmem:[%s7004 + $0x3e8] sm:$0xff]
        %v7131 = vld [vmem:[%s7004 + $0x3f0] sm:$0xff]
        %v7132 = vld [vmem:[%s7004 + $0x3f8] sm:$0xff]
        %s7133 = sadd.s32 %s225, 6
        %s7134 = smul.u32 %s7133, 4
        %s7135 = scalar_lea.vmem [#allocation4], %s7134
        %v7136 = vld [vmem:[%s7135] sm:$0xf]
        %v7137 = vpack.c.bf16 %v7000, %v6996
        %v7138 = vpack.c.bf16 %v7001, %v6997
        %v7139 = vpack.c.bf16 %v7002, %v6998
        %v7140 = vpack.c.bf16 %v7003, %v6999
        %v7142 = vperm.slane %v7136, 0
        %v7143 = vperm.slane %v7136, 1
        %v7144 = vperm.slane %v7136, 2
        %v7145 = vperm.slane %v7136, 3
        %v7278 = vunpack.c.l.b16 %v7005
        %v7279 = vunpack.c.h.b16 %v7005
        %v7280 = vunpack.c.l.b16 %v7006
        %v7281 = vunpack.c.h.b16 %v7006
        %v7282 = vunpack.c.l.b16 %v7007
        %v7283 = vunpack.c.h.b16 %v7007
        %v7284 = vunpack.c.l.b16 %v7008
        %v7285 = vunpack.c.h.b16 %v7008
        %v7286 = vunpack.c.l.b16 %v7009
        %v7287 = vunpack.c.h.b16 %v7009
        %v7288 = vunpack.c.l.b16 %v7010
        %v7289 = vunpack.c.h.b16 %v7010
        %v7290 = vunpack.c.l.b16 %v7011
        %v7291 = vunpack.c.h.b16 %v7011
        %v7292 = vunpack.c.l.b16 %v7012
        %v7293 = vunpack.c.h.b16 %v7012
        %v7294 = vunpack.c.l.b16 %v7013
        %v7295 = vunpack.c.h.b16 %v7013
        %v7296 = vunpack.c.l.b16 %v7014
        %v7297 = vunpack.c.h.b16 %v7014
        %v7298 = vunpack.c.l.b16 %v7015
        %v7299 = vunpack.c.h.b16 %v7015
        %v7300 = vunpack.c.l.b16 %v7016
        %v7301 = vunpack.c.h.b16 %v7016
        %v7302 = vunpack.c.l.b16 %v7017
        %v7303 = vunpack.c.h.b16 %v7017
        %v7304 = vunpack.c.l.b16 %v7018
        %v7305 = vunpack.c.h.b16 %v7018
        %v7306 = vunpack.c.l.b16 %v7019
        %v7307 = vunpack.c.h.b16 %v7019
        %v7308 = vunpack.c.l.b16 %v7020
        %v7309 = vunpack.c.h.b16 %v7020
        %v7310 = vunpack.c.l.b16 %v7021
        %v7311 = vunpack.c.h.b16 %v7021
        %v7312 = vunpack.c.l.b16 %v7022
        %v7313 = vunpack.c.h.b16 %v7022
        %v7314 = vunpack.c.l.b16 %v7023
        %v7315 = vunpack.c.h.b16 %v7023
        %v7316 = vunpack.c.l.b16 %v7024
        %v7317 = vunpack.c.h.b16 %v7024
        %v7318 = vunpack.c.l.b16 %v7025
        %v7319 = vunpack.c.h.b16 %v7025
        %v7320 = vunpack.c.l.b16 %v7026
        %v7321 = vunpack.c.h.b16 %v7026
        %v7322 = vunpack.c.l.b16 %v7027
        %v7323 = vunpack.c.h.b16 %v7027
        %v7324 = vunpack.c.l.b16 %v7028
        %v7325 = vunpack.c.h.b16 %v7028
        %v7326 = vunpack.c.l.b16 %v7029
        %v7327 = vunpack.c.h.b16 %v7029
        %v7328 = vunpack.c.l.b16 %v7030
        %v7329 = vunpack.c.h.b16 %v7030
        %v7330 = vunpack.c.l.b16 %v7031
        %v7331 = vunpack.c.h.b16 %v7031
        %v7332 = vunpack.c.l.b16 %v7032
        %v7333 = vunpack.c.h.b16 %v7032
        %v7334 = vunpack.c.l.b16 %v7033
        %v7335 = vunpack.c.h.b16 %v7033
        %v7336 = vunpack.c.l.b16 %v7034
        %v7337 = vunpack.c.h.b16 %v7034
        %v7338 = vunpack.c.l.b16 %v7035
        %v7339 = vunpack.c.h.b16 %v7035
        %v7340 = vunpack.c.l.b16 %v7036
        %v7341 = vunpack.c.h.b16 %v7036
        %v7342 = vunpack.c.l.b16 %v7037
        %v7343 = vunpack.c.h.b16 %v7037
        %v7344 = vunpack.c.l.b16 %v7038
        %v7345 = vunpack.c.h.b16 %v7038
        %v7346 = vunpack.c.l.b16 %v7039
        %v7347 = vunpack.c.h.b16 %v7039
        %v7348 = vunpack.c.l.b16 %v7040
        %v7349 = vunpack.c.h.b16 %v7040
        %v7350 = vunpack.c.l.b16 %v7041
        %v7351 = vunpack.c.h.b16 %v7041
        %v7352 = vunpack.c.l.b16 %v7042
        %v7353 = vunpack.c.h.b16 %v7042
        %v7354 = vunpack.c.l.b16 %v7043
        %v7355 = vunpack.c.h.b16 %v7043
        %v7356 = vunpack.c.l.b16 %v7044
        %v7357 = vunpack.c.h.b16 %v7044
        %v7358 = vunpack.c.l.b16 %v7045
        %v7359 = vunpack.c.h.b16 %v7045
        %v7360 = vunpack.c.l.b16 %v7046
        %v7361 = vunpack.c.h.b16 %v7046
        %v7362 = vunpack.c.l.b16 %v7047
        %v7363 = vunpack.c.h.b16 %v7047
        %v7364 = vunpack.c.l.b16 %v7048
        %v7365 = vunpack.c.h.b16 %v7048
        %v7366 = vunpack.c.l.b16 %v7049
        %v7367 = vunpack.c.h.b16 %v7049
        %v7368 = vunpack.c.l.b16 %v7050
        %v7369 = vunpack.c.h.b16 %v7050
        %v7370 = vunpack.c.l.b16 %v7051
        %v7371 = vunpack.c.h.b16 %v7051
        %v7372 = vunpack.c.l.b16 %v7052
        %v7373 = vunpack.c.h.b16 %v7052
        %v7374 = vunpack.c.l.b16 %v7053
        %v7375 = vunpack.c.h.b16 %v7053
        %v7376 = vunpack.c.l.b16 %v7054
        %v7377 = vunpack.c.h.b16 %v7054
        %v7378 = vunpack.c.l.b16 %v7055
        %v7379 = vunpack.c.h.b16 %v7055
        %v7380 = vunpack.c.l.b16 %v7056
        %v7381 = vunpack.c.h.b16 %v7056
        %v7382 = vunpack.c.l.b16 %v7057
        %v7383 = vunpack.c.h.b16 %v7057
        %v7384 = vunpack.c.l.b16 %v7058
        %v7385 = vunpack.c.h.b16 %v7058
        %v7386 = vunpack.c.l.b16 %v7059
        %v7387 = vunpack.c.h.b16 %v7059
        %v7388 = vunpack.c.l.b16 %v7060
        %v7389 = vunpack.c.h.b16 %v7060
        %v7390 = vunpack.c.l.b16 %v7061
        %v7391 = vunpack.c.h.b16 %v7061
        %v7392 = vunpack.c.l.b16 %v7062
        %v7393 = vunpack.c.h.b16 %v7062
        %v7394 = vunpack.c.l.b16 %v7063
        %v7395 = vunpack.c.h.b16 %v7063
        %v7396 = vunpack.c.l.b16 %v7064
        %v7397 = vunpack.c.h.b16 %v7064
        %v7398 = vunpack.c.l.b16 %v7065
        %v7399 = vunpack.c.h.b16 %v7065
        %v7400 = vunpack.c.l.b16 %v7066
        %v7401 = vunpack.c.h.b16 %v7066
        %v7402 = vunpack.c.l.b16 %v7067
        %v7403 = vunpack.c.h.b16 %v7067
        %v7404 = vunpack.c.l.b16 %v7068
        %v7405 = vunpack.c.h.b16 %v7068
        %v7406 = vunpack.c.l.b16 %v7069
        %v7407 = vunpack.c.h.b16 %v7069
        %v7408 = vunpack.c.l.b16 %v7070
        %v7409 = vunpack.c.h.b16 %v7070
        %v7410 = vunpack.c.l.b16 %v7071
        %v7411 = vunpack.c.h.b16 %v7071
        %v7412 = vunpack.c.l.b16 %v7072
        %v7413 = vunpack.c.h.b16 %v7072
        %v7414 = vunpack.c.l.b16 %v7073
        %v7415 = vunpack.c.h.b16 %v7073
        %v7416 = vunpack.c.l.b16 %v7074
        %v7417 = vunpack.c.h.b16 %v7074
        %v7418 = vunpack.c.l.b16 %v7075
        %v7419 = vunpack.c.h.b16 %v7075
        %v7420 = vunpack.c.l.b16 %v7076
        %v7421 = vunpack.c.h.b16 %v7076
        %v7422 = vunpack.c.l.b16 %v7077
        %v7423 = vunpack.c.h.b16 %v7077
        %v7424 = vunpack.c.l.b16 %v7078
        %v7425 = vunpack.c.h.b16 %v7078
        %v7426 = vunpack.c.l.b16 %v7079
        %v7427 = vunpack.c.h.b16 %v7079
        %v7428 = vunpack.c.l.b16 %v7080
        %v7429 = vunpack.c.h.b16 %v7080
        %v7430 = vunpack.c.l.b16 %v7081
        %v7431 = vunpack.c.h.b16 %v7081
        %v7432 = vunpack.c.l.b16 %v7082
        %v7433 = vunpack.c.h.b16 %v7082
        %v7434 = vunpack.c.l.b16 %v7083
        %v7435 = vunpack.c.h.b16 %v7083
        %v7436 = vunpack.c.l.b16 %v7084
        %v7437 = vunpack.c.h.b16 %v7084
        %v7438 = vunpack.c.l.b16 %v7085
        %v7439 = vunpack.c.h.b16 %v7085
        %v7440 = vunpack.c.l.b16 %v7086
        %v7441 = vunpack.c.h.b16 %v7086
        %v7442 = vunpack.c.l.b16 %v7087
        %v7443 = vunpack.c.h.b16 %v7087
        %v7444 = vunpack.c.l.b16 %v7088
        %v7445 = vunpack.c.h.b16 %v7088
        %v7446 = vunpack.c.l.b16 %v7089
        %v7447 = vunpack.c.h.b16 %v7089
        %v7448 = vunpack.c.l.b16 %v7090
        %v7449 = vunpack.c.h.b16 %v7090
        %v7450 = vunpack.c.l.b16 %v7091
        %v7451 = vunpack.c.h.b16 %v7091
        %v7452 = vunpack.c.l.b16 %v7092
        %v7453 = vunpack.c.h.b16 %v7092
        %v7454 = vunpack.c.l.b16 %v7093
        %v7455 = vunpack.c.h.b16 %v7093
        %v7456 = vunpack.c.l.b16 %v7094
        %v7457 = vunpack.c.h.b16 %v7094
        %v7458 = vunpack.c.l.b16 %v7095
        %v7459 = vunpack.c.h.b16 %v7095
        %v7460 = vunpack.c.l.b16 %v7096
        %v7461 = vunpack.c.h.b16 %v7096
        %v7462 = vunpack.c.l.b16 %v7097
        %v7463 = vunpack.c.h.b16 %v7097
        %v7464 = vunpack.c.l.b16 %v7098
        %v7465 = vunpack.c.h.b16 %v7098
        %v7466 = vunpack.c.l.b16 %v7099
        %v7467 = vunpack.c.h.b16 %v7099
        %v7468 = vunpack.c.l.b16 %v7100
        %v7469 = vunpack.c.h.b16 %v7100
        %v7470 = vunpack.c.l.b16 %v7101
        %v7471 = vunpack.c.h.b16 %v7101
        %v7472 = vunpack.c.l.b16 %v7102
        %v7473 = vunpack.c.h.b16 %v7102
        %v7474 = vunpack.c.l.b16 %v7103
        %v7475 = vunpack.c.h.b16 %v7103
        %v7476 = vunpack.c.l.b16 %v7104
        %v7477 = vunpack.c.h.b16 %v7104
        %v7478 = vunpack.c.l.b16 %v7105
        %v7479 = vunpack.c.h.b16 %v7105
        %v7480 = vunpack.c.l.b16 %v7106
        %v7481 = vunpack.c.h.b16 %v7106
        %v7482 = vunpack.c.l.b16 %v7107
        %v7483 = vunpack.c.h.b16 %v7107
        %v7484 = vunpack.c.l.b16 %v7108
        %v7485 = vunpack.c.h.b16 %v7108
        %v7486 = vunpack.c.l.b16 %v7109
        %v7487 = vunpack.c.h.b16 %v7109
        %v7488 = vunpack.c.l.b16 %v7110
        %v7489 = vunpack.c.h.b16 %v7110
        %v7490 = vunpack.c.l.b16 %v7111
        %v7491 = vunpack.c.h.b16 %v7111
        %v7492 = vunpack.c.l.b16 %v7112
        %v7493 = vunpack.c.h.b16 %v7112
        %v7494 = vunpack.c.l.b16 %v7113
        %v7495 = vunpack.c.h.b16 %v7113
        %v7496 = vunpack.c.l.b16 %v7114
        %v7497 = vunpack.c.h.b16 %v7114
        %v7498 = vunpack.c.l.b16 %v7115
        %v7499 = vunpack.c.h.b16 %v7115
        %v7500 = vunpack.c.l.b16 %v7116
        %v7501 = vunpack.c.h.b16 %v7116
        %v7502 = vunpack.c.l.b16 %v7117
        %v7503 = vunpack.c.h.b16 %v7117
        %v7504 = vunpack.c.l.b16 %v7118
        %v7505 = vunpack.c.h.b16 %v7118
        %v7506 = vunpack.c.l.b16 %v7119
        %v7507 = vunpack.c.h.b16 %v7119
        %v7508 = vunpack.c.l.b16 %v7120
        %v7509 = vunpack.c.h.b16 %v7120
        %v7510 = vunpack.c.l.b16 %v7121
        %v7511 = vunpack.c.h.b16 %v7121
        %v7512 = vunpack.c.l.b16 %v7122
        %v7513 = vunpack.c.h.b16 %v7122
        %v7514 = vunpack.c.l.b16 %v7123
        %v7515 = vunpack.c.h.b16 %v7123
        %v7516 = vunpack.c.l.b16 %v7124
        %v7517 = vunpack.c.h.b16 %v7124
        %v7518 = vunpack.c.l.b16 %v7125
        %v7519 = vunpack.c.h.b16 %v7125
        %v7520 = vunpack.c.l.b16 %v7126
        %v7521 = vunpack.c.h.b16 %v7126
        %v7522 = vunpack.c.l.b16 %v7127
        %v7523 = vunpack.c.h.b16 %v7127
        %v7524 = vunpack.c.l.b16 %v7128
        %v7525 = vunpack.c.h.b16 %v7128
        %v7526 = vunpack.c.l.b16 %v7129
        %v7527 = vunpack.c.h.b16 %v7129
        %v7528 = vunpack.c.l.b16 %v7130
        %v7529 = vunpack.c.h.b16 %v7130
        %v7530 = vunpack.c.l.b16 %v7131
        %v7531 = vunpack.c.h.b16 %v7131
        %v7532 = vunpack.c.l.b16 %v7132
        %v7533 = vunpack.c.h.b16 %v7132
        %v7534 = vpack.c.b16 %v7282, %v7278
        %v7535 = vpack.c.b16 %v7283, %v7279
        %v7536 = vpack.c.b16 %v7284, %v7280
        %v7537 = vpack.c.b16 %v7285, %v7281
        %v7538 = vpack.c.b16 %v7290, %v7286
        %v7539 = vpack.c.b16 %v7291, %v7287
        %v7540 = vpack.c.b16 %v7292, %v7288
        %v7541 = vpack.c.b16 %v7293, %v7289
        %v7542 = vpack.c.b16 %v7298, %v7294
        %v7543 = vpack.c.b16 %v7299, %v7295
        %v7544 = vpack.c.b16 %v7300, %v7296
        %v7545 = vpack.c.b16 %v7301, %v7297
        %v7546 = vpack.c.b16 %v7306, %v7302
        %v7547 = vpack.c.b16 %v7307, %v7303
        %v7548 = vpack.c.b16 %v7308, %v7304
        %v7549 = vpack.c.b16 %v7309, %v7305
        %v7550 = vpack.c.b16 %v7314, %v7310
        %v7551 = vpack.c.b16 %v7315, %v7311
        %v7552 = vpack.c.b16 %v7316, %v7312
        %v7553 = vpack.c.b16 %v7317, %v7313
        %v7554 = vpack.c.b16 %v7322, %v7318
        %v7555 = vpack.c.b16 %v7323, %v7319
        %v7556 = vpack.c.b16 %v7324, %v7320
        %v7557 = vpack.c.b16 %v7325, %v7321
        %v7558 = vpack.c.b16 %v7330, %v7326
        %v7559 = vpack.c.b16 %v7331, %v7327
        %v7560 = vpack.c.b16 %v7332, %v7328
        %v7561 = vpack.c.b16 %v7333, %v7329
        %v7562 = vpack.c.b16 %v7338, %v7334
        %v7563 = vpack.c.b16 %v7339, %v7335
        %v7564 = vpack.c.b16 %v7340, %v7336
        %v7565 = vpack.c.b16 %v7341, %v7337
        %v7566 = vpack.c.b16 %v7346, %v7342
        %v7567 = vpack.c.b16 %v7347, %v7343
        %v7568 = vpack.c.b16 %v7348, %v7344
        %v7569 = vpack.c.b16 %v7349, %v7345
        %v7570 = vpack.c.b16 %v7354, %v7350
        %v7571 = vpack.c.b16 %v7355, %v7351
        %v7572 = vpack.c.b16 %v7356, %v7352
        %v7573 = vpack.c.b16 %v7357, %v7353
        %v7574 = vpack.c.b16 %v7362, %v7358
        %v7575 = vpack.c.b16 %v7363, %v7359
        %v7576 = vpack.c.b16 %v7364, %v7360
        %v7577 = vpack.c.b16 %v7365, %v7361
        %v7578 = vpack.c.b16 %v7370, %v7366
        %v7579 = vpack.c.b16 %v7371, %v7367
        %v7580 = vpack.c.b16 %v7372, %v7368
        %v7581 = vpack.c.b16 %v7373, %v7369
        %v7582 = vpack.c.b16 %v7378, %v7374
        %v7583 = vpack.c.b16 %v7379, %v7375
        %v7584 = vpack.c.b16 %v7380, %v7376
        %v7585 = vpack.c.b16 %v7381, %v7377
        %v7586 = vpack.c.b16 %v7386, %v7382
        %v7587 = vpack.c.b16 %v7387, %v7383
        %v7588 = vpack.c.b16 %v7388, %v7384
        %v7589 = vpack.c.b16 %v7389, %v7385
        %v7590 = vpack.c.b16 %v7394, %v7390
        %v7591 = vpack.c.b16 %v7395, %v7391
        %v7592 = vpack.c.b16 %v7396, %v7392
        %v7593 = vpack.c.b16 %v7397, %v7393
        %v7594 = vpack.c.b16 %v7402, %v7398
        %v7595 = vpack.c.b16 %v7403, %v7399
        %v7596 = vpack.c.b16 %v7404, %v7400
        %v7597 = vpack.c.b16 %v7405, %v7401
        %v7598 = vpack.c.b16 %v7410, %v7406
        %v7599 = vpack.c.b16 %v7411, %v7407
        %v7600 = vpack.c.b16 %v7412, %v7408
        %v7601 = vpack.c.b16 %v7413, %v7409
        %v7602 = vpack.c.b16 %v7418, %v7414
        %v7603 = vpack.c.b16 %v7419, %v7415
        %v7604 = vpack.c.b16 %v7420, %v7416
        %v7605 = vpack.c.b16 %v7421, %v7417
        %v7606 = vpack.c.b16 %v7426, %v7422
        %v7607 = vpack.c.b16 %v7427, %v7423
        %v7608 = vpack.c.b16 %v7428, %v7424
        %v7609 = vpack.c.b16 %v7429, %v7425
        %v7610 = vpack.c.b16 %v7434, %v7430
        %v7611 = vpack.c.b16 %v7435, %v7431
        %v7612 = vpack.c.b16 %v7436, %v7432
        %v7613 = vpack.c.b16 %v7437, %v7433
        %v7614 = vpack.c.b16 %v7442, %v7438
        %v7615 = vpack.c.b16 %v7443, %v7439
        %v7616 = vpack.c.b16 %v7444, %v7440
        %v7617 = vpack.c.b16 %v7445, %v7441
        %v7618 = vpack.c.b16 %v7450, %v7446
        %v7619 = vpack.c.b16 %v7451, %v7447
        %v7620 = vpack.c.b16 %v7452, %v7448
        %v7621 = vpack.c.b16 %v7453, %v7449
        %v7622 = vpack.c.b16 %v7458, %v7454
        %v7623 = vpack.c.b16 %v7459, %v7455
        %v7624 = vpack.c.b16 %v7460, %v7456
        %v7625 = vpack.c.b16 %v7461, %v7457
        %v7626 = vpack.c.b16 %v7466, %v7462
        %v7627 = vpack.c.b16 %v7467, %v7463
        %v7628 = vpack.c.b16 %v7468, %v7464
        %v7629 = vpack.c.b16 %v7469, %v7465
        %v7630 = vpack.c.b16 %v7474, %v7470
        %v7631 = vpack.c.b16 %v7475, %v7471
        %v7632 = vpack.c.b16 %v7476, %v7472
        %v7633 = vpack.c.b16 %v7477, %v7473
        %v7634 = vpack.c.b16 %v7482, %v7478
        %v7635 = vpack.c.b16 %v7483, %v7479
        %v7636 = vpack.c.b16 %v7484, %v7480
        %v7637 = vpack.c.b16 %v7485, %v7481
        %v7638 = vpack.c.b16 %v7490, %v7486
        %v7639 = vpack.c.b16 %v7491, %v7487
        %v7640 = vpack.c.b16 %v7492, %v7488
        %v7641 = vpack.c.b16 %v7493, %v7489
        %v7642 = vpack.c.b16 %v7498, %v7494
        %v7643 = vpack.c.b16 %v7499, %v7495
        %v7644 = vpack.c.b16 %v7500, %v7496
        %v7645 = vpack.c.b16 %v7501, %v7497
        %v7646 = vpack.c.b16 %v7506, %v7502
        %v7647 = vpack.c.b16 %v7507, %v7503
        %v7648 = vpack.c.b16 %v7508, %v7504
        %v7649 = vpack.c.b16 %v7509, %v7505
        %v7650 = vpack.c.b16 %v7514, %v7510
        %v7651 = vpack.c.b16 %v7515, %v7511
        %v7652 = vpack.c.b16 %v7516, %v7512
        %v7653 = vpack.c.b16 %v7517, %v7513
        %v7654 = vpack.c.b16 %v7522, %v7518
        %v7655 = vpack.c.b16 %v7523, %v7519
        %v7656 = vpack.c.b16 %v7524, %v7520
        %v7657 = vpack.c.b16 %v7525, %v7521
        %v7658 = vpack.c.b16 %v7530, %v7526
        %v7659 = vpack.c.b16 %v7531, %v7527
        %v7660 = vpack.c.b16 %v7532, %v7528
        %v7661 = vpack.c.b16 %v7533, %v7529
        %7790 = vmatpush.bf16.msra.mxu0 %v7562
        %7791 = vmatpush.bf16.msra.mxu0 %v7558
        %7792 = vmatpush.bf16.msra.mxu0 %v7554
        %7793 = vmatpush.bf16.msra.mxu0 %v7550
        %7794 = vmatpush.bf16.msra.mxu0 %v7546
        %7795 = vmatpush.bf16.msra.mxu0 %v7542
        %7796 = vmatpush.bf16.msra.mxu0 %v7538
        %7797 = vmatpush.bf16.msra.mxu0 %v7534
        %7798 = vmatmul.bf16.gmra.mxu0 %v7137
        %v7799 = vpop.f32.mrf.mxu0
        %v7800 = vadd.f32 %v7142, %v7799
        %v7801 = vpop.f32.mrf.mxu0
        %v7802 = vadd.f32 %v7142, %v7801
        %7803 = vdwg.mxu0
        %7804 = vmatpush.bf16.msra.mxu0 %v7594
        %7805 = vmatpush.bf16.msra.mxu0 %v7590
        %7806 = vmatpush.bf16.msra.mxu0 %v7586
        %7807 = vmatpush.bf16.msra.mxu0 %v7582
        %7808 = vmatpush.bf16.msra.mxu0 %v7578
        %7809 = vmatpush.bf16.msra.mxu0 %v7574
        %7810 = vmatpush.bf16.msra.mxu0 %v7570
        %7811 = vmatpush.bf16.msra.mxu0 %v7566
        %7812 = vmatmul.bf16.gmra.mxu0 %v7138
        %v7813 = vpop.f32.mrf.mxu0
        %v7814 = vadd.f32 %v7800, %v7813
        %v7815 = vpop.f32.mrf.mxu0
        %v7816 = vadd.f32 %v7802, %v7815
        %7817 = vdwg.mxu0
        %7818 = vmatpush.bf16.msra.mxu0 %v7626
        %7819 = vmatpush.bf16.msra.mxu0 %v7622
        %7820 = vmatpush.bf16.msra.mxu0 %v7618
        %7821 = vmatpush.bf16.msra.mxu0 %v7614
        %7822 = vmatpush.bf16.msra.mxu0 %v7610
        %7823 = vmatpush.bf16.msra.mxu0 %v7606
        %7824 = vmatpush.bf16.msra.mxu0 %v7602
        %7825 = vmatpush.bf16.msra.mxu0 %v7598
        %7826 = vmatmul.bf16.gmra.mxu0 %v7139
        %v7827 = vpop.f32.mrf.mxu0
        %v7828 = vadd.f32 %v7814, %v7827
        %v7829 = vpop.f32.mrf.mxu0
        %v7830 = vadd.f32 %v7816, %v7829
        %7831 = vdwg.mxu0
        %7832 = vmatpush.bf16.msra.mxu0 %v7658
        %7833 = vmatpush.bf16.msra.mxu0 %v7654
        %7834 = vmatpush.bf16.msra.mxu0 %v7650
        %7835 = vmatpush.bf16.msra.mxu0 %v7646
        %7836 = vmatpush.bf16.msra.mxu0 %v7642
        %7837 = vmatpush.bf16.msra.mxu0 %v7638
        %7838 = vmatpush.bf16.msra.mxu0 %v7634
        %7839 = vmatpush.bf16.msra.mxu0 %v7630
        %7840 = vmatmul.bf16.gmra.mxu0 %v7140
        %v7841 = vpop.f32.mrf.mxu0
        %v7842 = vadd.f32 %v7828, %v7841
        %v7843 = vpop.f32.mrf.mxu0
        %v7844 = vadd.f32 %v7830, %v7843
        %7845 = vdwg.mxu0
        %7846 = vmatpush.bf16.msra.mxu0 %v7563
        %7847 = vmatpush.bf16.msra.mxu0 %v7559
        %7848 = vmatpush.bf16.msra.mxu0 %v7555
        %7849 = vmatpush.bf16.msra.mxu0 %v7551
        %7850 = vmatpush.bf16.msra.mxu0 %v7547
        %7851 = vmatpush.bf16.msra.mxu0 %v7543
        %7852 = vmatpush.bf16.msra.mxu0 %v7539
        %7853 = vmatpush.bf16.msra.mxu0 %v7535
        %7854 = vmatmul.bf16.gmra.mxu0 %v7137
        %v7855 = vpop.f32.mrf.mxu0
        %v7856 = vadd.f32 %v7143, %v7855
        %v7857 = vpop.f32.mrf.mxu0
        %v7858 = vadd.f32 %v7143, %v7857
        %7859 = vdwg.mxu0
        %7860 = vmatpush.bf16.msra.mxu0 %v7595
        %7861 = vmatpush.bf16.msra.mxu0 %v7591
        %7862 = vmatpush.bf16.msra.mxu0 %v7587
        %7863 = vmatpush.bf16.msra.mxu0 %v7583
        %7864 = vmatpush.bf16.msra.mxu0 %v7579
        %7865 = vmatpush.bf16.msra.mxu0 %v7575
        %7866 = vmatpush.bf16.msra.mxu0 %v7571
        %7867 = vmatpush.bf16.msra.mxu0 %v7567
        %7868 = vmatmul.bf16.gmra.mxu0 %v7138
        %v7869 = vpop.f32.mrf.mxu0
        %v7870 = vadd.f32 %v7856, %v7869
        %v7871 = vpop.f32.mrf.mxu0
        %v7872 = vadd.f32 %v7858, %v7871
        %7873 = vdwg.mxu0
        %7874 = vmatpush.bf16.msra.mxu0 %v7627
        %7875 = vmatpush.bf16.msra.mxu0 %v7623
        %7876 = vmatpush.bf16.msra.mxu0 %v7619
        %7877 = vmatpush.bf16.msra.mxu0 %v7615
        %7878 = vmatpush.bf16.msra.mxu0 %v7611
        %7879 = vmatpush.bf16.msra.mxu0 %v7607
        %7880 = vmatpush.bf16.msra.mxu0 %v7603
        %7881 = vmatpush.bf16.msra.mxu0 %v7599
        %7882 = vmatmul.bf16.gmra.mxu0 %v7139
        %v7883 = vpop.f32.mrf.mxu0
        %v7884 = vadd.f32 %v7870, %v7883
        %v7885 = vpop.f32.mrf.mxu0
        %v7886 = vadd.f32 %v7872, %v7885
        %7887 = vdwg.mxu0
        %7888 = vmatpush.bf16.msra.mxu0 %v7659
        %7889 = vmatpush.bf16.msra.mxu0 %v7655
        %7890 = vmatpush.bf16.msra.mxu0 %v7651
        %7891 = vmatpush.bf16.msra.mxu0 %v7647
        %7892 = vmatpush.bf16.msra.mxu0 %v7643
        %7893 = vmatpush.bf16.msra.mxu0 %v7639
        %7894 = vmatpush.bf16.msra.mxu0 %v7635
        %7895 = vmatpush.bf16.msra.mxu0 %v7631
        %7896 = vmatmul.bf16.gmra.mxu0 %v7140
        %v7897 = vpop.f32.mrf.mxu0
        %v7898 = vadd.f32 %v7884, %v7897
        %v7899 = vpop.f32.mrf.mxu0
        %v7900 = vadd.f32 %v7886, %v7899
        %7901 = vdwg.mxu0
        %7902 = vmatpush.bf16.msra.mxu0 %v7564
        %7903 = vmatpush.bf16.msra.mxu0 %v7560
        %7904 = vmatpush.bf16.msra.mxu0 %v7556
        %7905 = vmatpush.bf16.msra.mxu0 %v7552
        %7906 = vmatpush.bf16.msra.mxu0 %v7548
        %7907 = vmatpush.bf16.msra.mxu0 %v7544
        %7908 = vmatpush.bf16.msra.mxu0 %v7540
        %7909 = vmatpush.bf16.msra.mxu0 %v7536
        %7910 = vmatmul.bf16.gmra.mxu0 %v7137
        %v7911 = vpop.f32.mrf.mxu0
        %v7912 = vadd.f32 %v7144, %v7911
        %v7913 = vpop.f32.mrf.mxu0
        %v7914 = vadd.f32 %v7144, %v7913
        %7915 = vdwg.mxu0
        %7916 = vmatpush.bf16.msra.mxu0 %v7596
        %7917 = vmatpush.bf16.msra.mxu0 %v7592
        %7918 = vmatpush.bf16.msra.mxu0 %v7588
        %7919 = vmatpush.bf16.msra.mxu0 %v7584
        %7920 = vmatpush.bf16.msra.mxu0 %v7580
        %7921 = vmatpush.bf16.msra.mxu0 %v7576
        %7922 = vmatpush.bf16.msra.mxu0 %v7572
        %7923 = vmatpush.bf16.msra.mxu0 %v7568
        %7924 = vmatmul.bf16.gmra.mxu0 %v7138
        %v7925 = vpop.f32.mrf.mxu0
        %v7926 = vadd.f32 %v7912, %v7925
        %v7927 = vpop.f32.mrf.mxu0
        %v7928 = vadd.f32 %v7914, %v7927
        %7929 = vdwg.mxu0
        %7930 = vmatpush.bf16.msra.mxu0 %v7628
        %7931 = vmatpush.bf16.msra.mxu0 %v7624
        %7932 = vmatpush.bf16.msra.mxu0 %v7620
        %7933 = vmatpush.bf16.msra.mxu0 %v7616
        %7934 = vmatpush.bf16.msra.mxu0 %v7612
        %7935 = vmatpush.bf16.msra.mxu0 %v7608
        %7936 = vmatpush.bf16.msra.mxu0 %v7604
        %7937 = vmatpush.bf16.msra.mxu0 %v7600
        %7938 = vmatmul.bf16.gmra.mxu0 %v7139
        %v7939 = vpop.f32.mrf.mxu0
        %v7940 = vadd.f32 %v7926, %v7939
        %v7941 = vpop.f32.mrf.mxu0
        %v7942 = vadd.f32 %v7928, %v7941
        %7943 = vdwg.mxu0
        %7944 = vmatpush.bf16.msra.mxu0 %v7660
        %7945 = vmatpush.bf16.msra.mxu0 %v7656
        %7946 = vmatpush.bf16.msra.mxu0 %v7652
        %7947 = vmatpush.bf16.msra.mxu0 %v7648
        %7948 = vmatpush.bf16.msra.mxu0 %v7644
        %7949 = vmatpush.bf16.msra.mxu0 %v7640
        %7950 = vmatpush.bf16.msra.mxu0 %v7636
        %7951 = vmatpush.bf16.msra.mxu0 %v7632
        %7952 = vmatmul.bf16.gmra.mxu0 %v7140
        %v7953 = vpop.f32.mrf.mxu0
        %v7954 = vadd.f32 %v7940, %v7953
        %v7955 = vpop.f32.mrf.mxu0
        %v7956 = vadd.f32 %v7942, %v7955
        %7957 = vdwg.mxu0
        %7958 = vmatpush.bf16.msra.mxu0 %v7565
        %7959 = vmatpush.bf16.msra.mxu0 %v7561
        %7960 = vmatpush.bf16.msra.mxu0 %v7557
        %7961 = vmatpush.bf16.msra.mxu0 %v7553
        %7962 = vmatpush.bf16.msra.mxu0 %v7549
        %7963 = vmatpush.bf16.msra.mxu0 %v7545
        %7964 = vmatpush.bf16.msra.mxu0 %v7541
        %7965 = vmatpush.bf16.msra.mxu0 %v7537
        %7966 = vmatmul.bf16.gmra.mxu0 %v7137
        %v7967 = vpop.f32.mrf.mxu0
        %v7968 = vadd.f32 %v7145, %v7967
        %v7969 = vpop.f32.mrf.mxu0
        %v7970 = vadd.f32 %v7145, %v7969
        %7971 = vdwg.mxu0
        %7972 = vmatpush.bf16.msra.mxu0 %v7597
        %7973 = vmatpush.bf16.msra.mxu0 %v7593
        %7974 = vmatpush.bf16.msra.mxu0 %v7589
        %7975 = vmatpush.bf16.msra.mxu0 %v7585
        %7976 = vmatpush.bf16.msra.mxu0 %v7581
        %7977 = vmatpush.bf16.msra.mxu0 %v7577
        %7978 = vmatpush.bf16.msra.mxu0 %v7573
        %7979 = vmatpush.bf16.msra.mxu0 %v7569
        %7980 = vmatmul.bf16.gmra.mxu0 %v7138
        %v7981 = vpop.f32.mrf.mxu0
        %v7982 = vadd.f32 %v7968, %v7981
        %v7983 = vpop.f32.mrf.mxu0
        %v7984 = vadd.f32 %v7970, %v7983
        %7985 = vdwg.mxu0
        %7986 = vmatpush.bf16.msra.mxu0 %v7629
        %7987 = vmatpush.bf16.msra.mxu0 %v7625
        %7988 = vmatpush.bf16.msra.mxu0 %v7621
        %7989 = vmatpush.bf16.msra.mxu0 %v7617
        %7990 = vmatpush.bf16.msra.mxu0 %v7613
        %7991 = vmatpush.bf16.msra.mxu0 %v7609
        %7992 = vmatpush.bf16.msra.mxu0 %v7605
        %7993 = vmatpush.bf16.msra.mxu0 %v7601
        %7994 = vmatmul.bf16.gmra.mxu0 %v7139
        %v7995 = vpop.f32.mrf.mxu0
        %v7996 = vadd.f32 %v7982, %v7995
        %v7997 = vpop.f32.mrf.mxu0
        %v7998 = vadd.f32 %v7984, %v7997
        %7999 = vdwg.mxu0
        %8000 = vmatpush.bf16.msra.mxu0 %v7661
        %8001 = vmatpush.bf16.msra.mxu0 %v7657
        %8002 = vmatpush.bf16.msra.mxu0 %v7653
        %8003 = vmatpush.bf16.msra.mxu0 %v7649
        %8004 = vmatpush.bf16.msra.mxu0 %v7645
        %8005 = vmatpush.bf16.msra.mxu0 %v7641
        %8006 = vmatpush.bf16.msra.mxu0 %v7637
        %8007 = vmatpush.bf16.msra.mxu0 %v7633
        %8008 = vmatmul.bf16.gmra.mxu0 %v7140
        %v8009 = vpop.f32.mrf.mxu0
        %v8010 = vadd.f32 %v7996, %v8009
        %v8011 = vpop.f32.mrf.mxu0
        %v8012 = vadd.f32 %v7998, %v8011
        %8013 = vdwg.mxu0
        %v8014 = vmax.f32 %v7842, 0.0
        %v8015 = vmax.f32 %v7898, 0.0
        %v8016 = vmax.f32 %v7954, 0.0
        %v8017 = vmax.f32 %v8010, 0.0
        %v8018 = vmax.f32 %v7844, 0.0
        %v8019 = vmax.f32 %v7900, 0.0
        %v8020 = vmax.f32 %v7956, 0.0
        %v8021 = vmax.f32 %v8012, 0.0
        %v8022 = vand.u32 2147483647, %v7842
        %v8023 = vand.u32 2147483647, %v7898
        %v8024 = vand.u32 2147483647, %v7954
        %v8025 = vand.u32 2147483647, %v8010
        %v8026 = vand.u32 2147483647, %v7844
        %v8027 = vand.u32 2147483647, %v7900
        %v8028 = vand.u32 2147483647, %v7956
        %v8029 = vand.u32 2147483647, %v8012
        %v8030 = vsub.f32 0.0, %v8022
        %v8031 = vsub.f32 0.0, %v8023
        %v8032 = vsub.f32 0.0, %v8024
        %v8033 = vsub.f32 0.0, %v8025
        %v8034 = vsub.f32 0.0, %v8026
        %v8035 = vsub.f32 0.0, %v8027
        %v8036 = vsub.f32 0.0, %v8028
        %v8037 = vsub.f32 0.0, %v8029
        %v8038 = vmul.f32 %v8030, 1.442695
        %v8039 = vpow.pop %v8038
        %v8040 = vmul.f32 %v8031, 1.442695
        %v8041 = vpow.pop %v8040
        %v8042 = vmul.f32 %v8032, 1.442695
        %v8043 = vpow.pop %v8042
        %v8044 = vmul.f32 %v8033, 1.442695
        %v8045 = vpow.pop %v8044
        %v8046 = vmul.f32 %v8034, 1.442695
        %v8047 = vpow.pop %v8046
        %v8048 = vmul.f32 %v8035, 1.442695
        %v8049 = vpow.pop %v8048
        %v8050 = vmul.f32 %v8036, 1.442695
        %v8051 = vpow.pop %v8050
        %v8052 = vmul.f32 %v8037, 1.442695
        %v8053 = vpow.pop %v8052
        %v8054 = vadd.f32 %v8039, 1.0
        %v8055 = vlog2.pop %v8054
        %v8056 = vmul.f32 %v8055, 0.6931472
        %v8057 = vmul.f32 -0.5, %v8039
        %v8058 = vadd.f32 %v8057, 1.0
        %v8059 = vmul.f32 %v8058, %v8039
        %v8060 = vand.u32 2147483647, %v8039
        %vm8061 = vcmp.lt.f32.partialorder %v8060, 0.0004427343
        %v8062 = vsel %vm8061, %v8059, %v8056
        %v8063 = vadd.f32 %v8041, 1.0
        %v8064 = vlog2.pop %v8063
        %v8065 = vmul.f32 %v8064, 0.6931472
        %v8066 = vmul.f32 -0.5, %v8041
        %v8067 = vadd.f32 %v8066, 1.0
        %v8068 = vmul.f32 %v8067, %v8041
        %v8069 = vand.u32 2147483647, %v8041
        %vm8070 = vcmp.lt.f32.partialorder %v8069, 0.0004427343
        %v8071 = vsel %vm8070, %v8068, %v8065
        %v8072 = vadd.f32 %v8043, 1.0
        %v8073 = vlog2.pop %v8072
        %v8074 = vmul.f32 %v8073, 0.6931472
        %v8075 = vmul.f32 -0.5, %v8043
        %v8076 = vadd.f32 %v8075, 1.0
        %v8077 = vmul.f32 %v8076, %v8043
        %v8078 = vand.u32 2147483647, %v8043
        %vm8079 = vcmp.lt.f32.partialorder %v8078, 0.0004427343
        %v8080 = vsel %vm8079, %v8077, %v8074
        %v8081 = vadd.f32 %v8045, 1.0
        %v8082 = vlog2.pop %v8081
        %v8083 = vmul.f32 %v8082, 0.6931472
        %v8084 = vmul.f32 -0.5, %v8045
        %v8085 = vadd.f32 %v8084, 1.0
        %v8086 = vmul.f32 %v8085, %v8045
        %v8087 = vand.u32 2147483647, %v8045
        %vm8088 = vcmp.lt.f32.partialorder %v8087, 0.0004427343
        %v8089 = vsel %vm8088, %v8086, %v8083
        %v8090 = vadd.f32 %v8047, 1.0
        %v8091 = vlog2.pop %v8090
        %v8092 = vmul.f32 %v8091, 0.6931472
        %v8093 = vmul.f32 -0.5, %v8047
        %v8094 = vadd.f32 %v8093, 1.0
        %v8095 = vmul.f32 %v8094, %v8047
        %v8096 = vand.u32 2147483647, %v8047
        %vm8097 = vcmp.lt.f32.partialorder %v8096, 0.0004427343
        %v8098 = vsel %vm8097, %v8095, %v8092
        %v8099 = vadd.f32 %v8049, 1.0
        %v8100 = vlog2.pop %v8099
        %v8101 = vmul.f32 %v8100, 0.6931472
        %v8102 = vmul.f32 -0.5, %v8049
        %v8103 = vadd.f32 %v8102, 1.0
        %v8104 = vmul.f32 %v8103, %v8049
        %v8105 = vand.u32 2147483647, %v8049
        %vm8106 = vcmp.lt.f32.partialorder %v8105, 0.0004427343
        %v8107 = vsel %vm8106, %v8104, %v8101
        %v8108 = vadd.f32 %v8051, 1.0
        %v8109 = vlog2.pop %v8108
        %v8110 = vmul.f32 %v8109, 0.6931472
        %v8111 = vmul.f32 -0.5, %v8051
        %v8112 = vadd.f32 %v8111, 1.0
        %v8113 = vmul.f32 %v8112, %v8051
        %v8114 = vand.u32 2147483647, %v8051
        %vm8115 = vcmp.lt.f32.partialorder %v8114, 0.0004427343
        %v8116 = vsel %vm8115, %v8113, %v8110
        %v8117 = vadd.f32 %v8053, 1.0
        %v8118 = vlog2.pop %v8117
        %v8119 = vmul.f32 %v8118, 0.6931472
        %v8120 = vmul.f32 -0.5, %v8053
        %v8121 = vadd.f32 %v8120, 1.0
        %v8122 = vmul.f32 %v8121, %v8053
        %v8123 = vand.u32 2147483647, %v8053
        %vm8124 = vcmp.lt.f32.partialorder %v8123, 0.0004427343
        %v8125 = vsel %vm8124, %v8122, %v8119
        %v8126 = vadd.f32 %v8014, %v8062
        %v8127 = vadd.f32 %v8015, %v8071
        %v8128 = vadd.f32 %v8016, %v8080
        %v8129 = vadd.f32 %v8017, %v8089
        %v8130 = vadd.f32 %v8018, %v8098
        %v8131 = vadd.f32 %v8019, %v8107
        %v8132 = vadd.f32 %v8020, %v8116
        %v8133 = vadd.f32 %v8021, %v8125
        %8134 = vst [vmem:[%s3] sm:$0xff] %v8126
        %8135 = vst [vmem:[%s3 + $0x8] sm:$0xff] %v8127
        %8136 = vst [vmem:[%s3 + $0x10] sm:$0xff] %v8128
        %8137 = vst [vmem:[%s3 + $0x18] sm:$0xff] %v8129
        %8138 = vst [vmem:[%s3 + $0x20] sm:$0xff] %v8130
        %8139 = vst [vmem:[%s3 + $0x28] sm:$0xff] %v8131
        %8140 = vst [vmem:[%s3 + $0x30] sm:$0xff] %v8132
        %8141 = vst [vmem:[%s3 + $0x38] sm:$0xff] %v8133
        // Predicated region
        $region45: #{head_forward.1} parent=31 // pred_check
          %p8142 = pneg %p99
        $region46: #{head_forward.1} parent=31 // pred_check_branch
          %8144 = sbr.rel (%p8142) target = $region48
        $region47: #{head_forward.1} parent=31 // pred_region
          _
        $region48: #{head_forward.1} parent=31 // pred_fallthru
          _
        // Predicated region
        $region49: #{head_forward.1} parent=31 // pred_check
          %p8145 = pneg %p99
        $region50: #{head_forward.1} parent=31 // pred_check_branch
          %8147 = sbr.rel (%p8145) target = $region52
        $region51: #{head_forward.1} parent=31 // pred_region
          _
        $region52: #{head_forward.1} parent=31 // pred_fallthru
          _
      $region32: #{head_forward.1} parent=5 // pred_fallthru
        _
      %p8148 = scmp.le.s32.totalorder 2, %s13
      // Predicated region
      $region53: #{head_forward.1} parent=5 // pred_check
        %p8149 = pneg %p8148
      $region54: #{head_forward.1} parent=5 // pred_check_branch
        %8151 = sbr.rel (%p8149) target = $region56
      $region55: #{head_forward.1} parent=5 // pred_region
        %s8152 = ssub.s32 %s13, 2
      $region56: #{head_forward.1} parent=5 // pred_fallthru
        _
    $region6: #{head_forward.1} parent=1 // loop_footer
      %s17 = sadd.s32 1, %s13
    $region7: #{head_forward.1} parent=1 // loop_footer_branch
      %12 = sbr.rel target = $region3
    $region8: #{head_forward.1} parent=1 // loop_exit
      _
    %8153 = vsyncpa [#allocation3], 1
    %s8154 = scalar_lea.sflag [#allocation3], 1
    %8155 = vsyncpa %s8154, 1
    %8156 = vsyncpa [#allocation5], 1

</llo_original>
